<compile_context>
chip_gen: v5e
topology: v5e:2x2
jax: 0.10.0
libtpu: 0.0.40
codegen_flags: <defaults>
</compile_context>

<pallas_src>
import functools

import jax
import jax.numpy as jnp
from jax.experimental import pallas as pl
from jax.experimental.pallas import tpu as pltpu

PATCH_SIZE = 14
DINO_DIM = 384
CAUSAL_SELF_ATTN = True  # assumption: "AR" + start-token shift => causal MHSA
_VMEM_LIMIT = 32 * 1024 * 1024  # safe on v5e/v6e (128 MiB) and v7x (64 MiB)


# -----------------------------------------------------------------------------
# Helpers
# -----------------------------------------------------------------------------
def _round_up(x, m):
    return ((x + m - 1) // m) * m


def _pick_tile(full, preferred, align):
    """Largest tile <= preferred that evenly divides `full`, else full (valid)."""
    if full <= preferred:
        return full
    t = (preferred // align) * align
    while t >= align:
        if full % t == 0:
            return t
        t -= align
    return full


# -----------------------------------------------------------------------------
# Fused (LayerNorm ->) matmul (-> bias -> activation -> residual) kernel
# -----------------------------------------------------------------------------
def _fused_linear_kernel(*refs, ln, residual, activation, eps=1e-5):
    idx = 0
    x_ref = refs[idx]; idx += 1
    w_ref = refs[idx]; idx += 1
    b_ref = refs[idx]; idx += 1
    if ln:
        g_ref = refs[idx]; idx += 1
        gb_ref = refs[idx]; idx += 1
    if residual:
        r_ref = refs[idx]; idx += 1
    o_ref = refs[idx]; idx += 1
    acc_ref = refs[idx]

    k_idx = pl.program_id(2)
    n_k = pl.num_programs(2)

    @pl.when(k_idx == 0)
    def _():
        acc_ref[...] = jnp.zeros_like(acc_ref)

    x = x_ref[...]
    if ln:
        # LayerNorm fused into the matmul input tile (K is untiled here).
        xf = x.astype(jnp.float32)
        mean = jnp.mean(xf, axis=-1, keepdims=True)
        xc = xf - mean
        var = jnp.mean(xc * xc, axis=-1, keepdims=True)
        inv = jax.lax.rsqrt(var + eps)
        xf = xc * inv * g_ref[...].astype(jnp.float32) + gb_ref[...].astype(jnp.float32)
        x = xf.astype(jnp.bfloat16)
    else:
        x = x.astype(jnp.bfloat16)

    acc_ref[...] += jnp.dot(x, w_ref[...].astype(jnp.bfloat16),
                            preferred_element_type=jnp.float32)

    @pl.when(k_idx == n_k - 1)
    def _():
        y = acc_ref[...] + b_ref[...].astype(jnp.float32)
        if activation == "silu":
            y = y * jax.nn.sigmoid(y)
        elif activation == "gelu":
            y = jax.nn.gelu(y, approximate=True)
        if residual:
            y = y + r_ref[...].astype(jnp.float32)
        o_ref[...] = y.astype(o_ref.dtype)


def fused_linear(x, w, b, *, ln=None, residual=None, activation="none",
                 out_dtype=jnp.bfloat16):
    """y = act(LN(x) @ w + b) + residual.  x: (M, K), w: (K, N), b: (N,)."""
    M, K = x.shape
    K2, N = w.shape
    assert K == K2

    tm = _pick_tile(M, 256, 8)
    tn = _pick_tile(N, 256, 128)
    # LN needs the full feature row in one tile; otherwise tile K for pipelining.
    tk = K if ln is not None else _pick_tile(K, 256, 128)
    grid = (M // tm, N // tn, K // tk)

    in_specs = [
        pl.BlockSpec((tm, tk), lambda i, j, k: (i, k)),
        pl.BlockSpec((tk, tn), lambda i, j, k: (k, j)),
        pl.BlockSpec((1, tn), lambda i, j, k: (0, j)),
    ]
    inputs = [x, w, b.reshape(1, N)]
    if ln is not None:
        g, gb = ln
        in_specs += [pl.BlockSpec((1, K), lambda i, j, k: (0, 0)),
                     pl.BlockSpec((1, K), lambda i, j, k: (0, 0))]
        inputs += [g.reshape(1, K), gb.reshape(1, K)]
    if residual is not None:
        in_specs.append(pl.BlockSpec((tm, tn), lambda i, j, k: (i, j)))
        inputs.append(residual)

    kernel = functools.partial(_fused_linear_kernel,
                               ln=ln is not None,
                               residual=residual is not None,
                               activation=activation)
    return pl.pallas_call(
        kernel,
        grid=grid,
        out_shape=jax.ShapeDtypeStruct((M, N), out_dtype),
        in_specs=in_specs,
        out_specs=pl.BlockSpec((tm, tn), lambda i, j, k: (i, j)),
        scratch_shapes=[pltpu.VMEM((tm, tn), jnp.float32)],
        compiler_params=pltpu.CompilerParams(
            dimension_semantics=("parallel", "parallel", "arbitrary"),
            vmem_limit_bytes=_VMEM_LIMIT),
    )(*inputs)


# -----------------------------------------------------------------------------
# Attention kernels (lane-dense blocks, in-kernel head split)
# -----------------------------------------------------------------------------
def _mha_heads(q, k, v, o_ref, *, num_heads, scale, causal):
    """q: (Lq, D), k/v: (Lk, D) loaded values; writes o_ref (1, Lq, D)."""
    Lq, D = q.shape
    Lk = k.shape[0]
    Dh = D // num_heads
    q = (q * scale).astype(jnp.bfloat16)   # fold 1/sqrt(Dh) into q
    k = k.astype(jnp.bfloat16)
    v = v.astype(jnp.bfloat16)
    if causal:
        qi = jax.lax.broadcasted_iota(jnp.int32, (Lq, Lk), 0)
        ki = jax.lax.broadcasted_iota(jnp.int32, (Lq, Lk), 1)
        causal_mask = ki <= qi
    # TODO(synk): for long sequences convert this to a flash-style online
    # softmax with a KV grid axis; full (Lq, Lk) scores are fine at these sizes.
    for h in range(num_heads):
        lo, hi = h * Dh, (h + 1) * Dh
        s = jax.lax.dot_general(
            q[:, lo:hi], k[:, lo:hi],
            dimension_numbers=(((1,), (1,)), ((), ())),
            preferred_element_type=jnp.float32)
        if causal:
            s = jnp.where(causal_mask, s, -1e30)
        m = jnp.max(s, axis=-1, keepdims=True)
        p = jnp.exp(s - m)
        denom = jnp.sum(p, axis=-1, keepdims=True)
        p = p * pl.reciprocal(denom, approx=True)
        o_h = jnp.dot(p.astype(jnp.bfloat16), v[:, lo:hi],
                      preferred_element_type=jnp.float32)
        o_ref[0, :, pl.ds(h * Dh, Dh)] = o_h.astype(o_ref.dtype)


def _self_attn_kernel(qkv_ref, o_ref, *, num_heads, scale, causal):
    qkv = qkv_ref[0]                       # (L, 3D)
    D = o_ref.shape[-1]
    _mha_heads(qkv[:, :D], qkv[:, D:2 * D], qkv[:, 2 * D:], o_ref,
               num_heads=num_heads, scale=scale, causal=causal)


def _cross_attn_kernel(q_ref, kv_ref, o_ref, *, num_heads, scale):
    q = q_ref[0]                           # (Lq, D)
    kv = kv_ref[0]                         # (Lk, 2D)
    D = o_ref.shape[-1]
    _mha_heads(q, kv[:, :D], kv[:, D:], o_ref,
               num_heads=num_heads, scale=scale, causal=False)


def self_attention(qkv, num_heads, causal):
    """qkv: (B, L, 3D) fused projections -> (B, L, D)."""
    B, L, threeD = qkv.shape
    D = threeD // 3
    assert D % num_heads == 0
    scale = 1.0 / float(D // num_heads) ** 0.5
    kernel = functools.partial(_self_attn_kernel, num_heads=num_heads,
                               scale=scale, causal=causal)
    return pl.pallas_call(
        kernel,
        grid=(B,),
        out_shape=jax.ShapeDtypeStruct((B, L, D), qkv.dtype),
        in_specs=[pl.BlockSpec((1, L, threeD), lambda i: (i, 0, 0))],
        out_specs=pl.BlockSpec((1, L, D), lambda i: (i, 0, 0)),
        compiler_params=pltpu.CompilerParams(dimension_semantics=("parallel",)),
    )(qkv)


def cross_attention(q, kv, num_heads):
    """q: (B, Lq, D), kv: (B, Lk, 2D) -> (B, Lq, D)."""
    B, Lq, D = q.shape
    _, Lk, twoD = kv.shape
    assert twoD == 2 * D and D % num_heads == 0
    scale = 1.0 / float(D // num_heads) ** 0.5
    kernel = functools.partial(_cross_attn_kernel, num_heads=num_heads, scale=scale)
    return pl.pallas_call(
        kernel,
        grid=(B,),
        out_shape=jax.ShapeDtypeStruct((B, Lq, D), q.dtype),
        in_specs=[pl.BlockSpec((1, Lq, D), lambda i: (i, 0, 0)),
                  pl.BlockSpec((1, Lk, twoD), lambda i: (i, 0, 0))],
        out_specs=pl.BlockSpec((1, Lq, D), lambda i: (i, 0, 0)),
        compiler_params=pltpu.CompilerParams(dimension_semantics=("parallel",)),
    )(q, kv)


# -----------------------------------------------------------------------------
# Transformer blocks (assumed standard pre-norm MHSA / MHCA blocks)
# -----------------------------------------------------------------------------
def mhsa_block(x, p, num_heads):
    b, L, d = x.shape
    xf = x.reshape(b * L, d)
    # fused LN + QKV projection (one matmul, (d, 3d))
    qkv = fused_linear(xf, p["wqkv"], p["bqkv"],
                       ln=(p["ln1_g"], p["ln1_b"])).reshape(b, L, 3 * d)
    a = self_attention(qkv, num_heads, causal=CAUSAL_SELF_ATTN)
    # fused out-projection + residual
    x = fused_linear(a.reshape(b * L, d), p["wo"], p["bo"],
                     residual=xf).reshape(b, L, d)
    xf = x.reshape(b * L, d)
    # fused LN + MLP-up + GELU, then MLP-down + residual
    h = fused_linear(xf, p["w1"], p["b1"],
                     ln=(p["ln2_g"], p["ln2_b"]), activation="gelu")
    x = fused_linear(h, p["w2"], p["b2"], residual=xf).reshape(b, L, d)
    return x


def mhca_block(x, feats, p, num_heads):
    b, L, d = x.shape
    _, Lf, _ = feats.shape
    xf = x.reshape(b * L, d)
    q = fused_linear(xf, p["wq"], p["bq"],
                     ln=(p["ln1_g"], p["ln1_b"])).reshape(b, L, d)
    kv = fused_linear(feats.reshape(b * Lf, d), p["wkv"], p["bkv"],
                      ln=(p["lnkv_g"], p["lnkv_b"])).reshape(b, Lf, 2 * d)
    a = cross_attention(q, kv, num_heads)
    x = fused_linear(a.reshape(b * L, d), p["wo"], p["bo"],
                     residual=xf).reshape(b, L, d)
    xf = x.reshape(b * L, d)
    h = fused_linear(xf, p["w1"], p["b1"],
                     ln=(p["ln2_g"], p["ln2_b"]), activation="gelu")
    x = fused_linear(h, p["w2"], p["b2"], residual=xf).reshape(b, L, d)
    return x


# -----------------------------------------------------------------------------
# Glue: pos-embed helper, parameters, full forward
# -----------------------------------------------------------------------------
def get_1d_sincos_pos_embed_from_grid(embed_dim, pos):
    assert embed_dim % 2 == 0
    omega = jnp.arange(embed_dim // 2, dtype=jnp.float32)
    omega = omega / (embed_dim / 2.0)
    omega = 1.0 / (10000.0 ** omega)
    pos = pos.reshape(-1).astype(jnp.float32)
    out = jnp.einsum("m,d->md", pos, omega)
    return jnp.concatenate([jnp.sin(out), jnp.cos(out)], axis=1)


def init_params(key, *, dim, n_blocks, n_tokens, discretized_space,
                token_input_dim, in_chans):
    keys = iter(jax.random.split(key, 64 * n_blocks + 64))

    def nrm(shape, std=0.02, dtype=jnp.bfloat16):
        return (std * jax.random.normal(next(keys), shape, jnp.float32)).astype(dtype)

    def zeros(shape, dtype=jnp.float32):
        return jnp.zeros(shape, dtype)

    hid = dim // 2
    hid_pad = _round_up(hid, 128)                      # lane-dense embed hidden
    ds_pad = _round_up(discretized_space, 128)         # lane-dense output head

    # zero-padding keeps the math identical to the unpadded Linear layers
    w1 = jnp.pad(nrm((token_input_dim, hid)), ((0, 0), (0, hid_pad - hid)))
    w2 = jnp.pad(nrm((hid, dim)), ((0, hid_pad - hid), (0, 0)))
    out_w = jnp.pad(nrm((dim, discretized_space)),
                    ((0, 0), (0, ds_pad - discretized_space)))

    p = {
        "embed_w1": w1, "embed_b1": zeros((hid_pad,)),
        "embed_w2": w2, "embed_b2": zeros((dim,)),
        "start_token": nrm((1, 1, dim), std=1.0, dtype=jnp.float32),
        "pos_w": nrm((dim, dim)), "pos_b": zeros((dim,)),
        "patch_w": nrm((in_chans * PATCH_SIZE * PATCH_SIZE, DINO_DIM)),
        "patch_b": zeros((DINO_DIM,)),
        "proj_w": nrm((DINO_DIM, dim)), "proj_b": zeros((dim,)),
        "out_w": out_w, "out_b": zeros((ds_pad,)),
        "tokens_param": nrm((n_tokens, dim), dtype=jnp.float32),  # unused in fwd (as in module)
    }

    def mhsa_params():
        return {
            "ln1_g": jnp.ones((dim,), jnp.float32), "ln1_b": zeros((dim,)),
            "wqkv": nrm((dim, 3 * dim)), "bqkv": zeros((3 * dim,)),
            "wo": nrm((dim, dim)), "bo": zeros((dim,)),
            "ln2_g": jnp.ones((dim,), jnp.float32), "ln2_b": zeros((dim,)),
            "w1": nrm((dim, 4 * dim)), "b1": zeros((4 * dim,)),
            "w2": nrm((4 * dim, dim)), "b2": zeros((dim,)),
        }

    def mhca_params():
        return {
            "ln1_g": jnp.ones((dim,), jnp.float32), "ln1_b": zeros((dim,)),
            "lnkv_g": jnp.ones((dim,), jnp.float32), "lnkv_b": zeros((dim,)),
            "wq": nrm((dim, dim)), "bq": zeros((dim,)),
            "wkv": nrm((dim, 2 * dim)), "bkv": zeros((2 * dim,)),
            "wo": nrm((dim, dim)), "bo": zeros((dim,)),
            "ln2_g": jnp.ones((dim,), jnp.float32), "ln2_b": zeros((dim,)),
            "w1": nrm((dim, 4 * dim)), "b1": zeros((4 * dim,)),
            "w2": nrm((4 * dim, dim)), "b2": zeros((dim,)),
        }

    p["blocks"] = [{"mhsa": mhsa_params(), "mhca": mhca_params()}
                   for _ in range(n_blocks)]
    return p


def ar_straighter_forward(params, image, tokens, *, num_heads, discretized_space,
                          abs_pos_emb=False):
    b, c, H, W = image.shape
    _, n, tin = tokens.shape
    dim = params["start_token"].shape[-1]

    # ---- embed_tokens: Linear -> SiLU -> Linear (fused bias+act in kernel) ----
    t = tokens.reshape(b * n, tin).astype(jnp.bfloat16)
    t = fused_linear(t, params["embed_w1"], params["embed_b1"], activation="silu")
    t = fused_linear(t, params["embed_w2"], params["embed_b2"])
    t = t.reshape(b, n, dim)

    # ---- prepend start token, drop last (AR shift) ----------------------------
    start = jnp.broadcast_to(params["start_token"], (b, 1, dim)).astype(t.dtype)
    t = jnp.concatenate([start, t], axis=1)[:, :-1, :]

    # ---- optional absolute positional embedding --------------------------------
    if abs_pos_emb:
        pos = get_1d_sincos_pos_embed_from_grid(dim, jnp.arange(n))
        t = t + pos[None].astype(t.dtype)
        t = fused_linear(t.reshape(b * n, dim), params["pos_w"], params["pos_b"]
                         ).reshape(b, n, dim)

    # ---- backbone features ------------------------------------------------------
    # TODO(synk): pretrained DINOv2 ViT backbone replaced by a deterministic
    # patch-embedding linear producing 384-d patch features (no checkpoint load).
    hp, wp = H // PATCH_SIZE, W // PATCH_SIZE
    patches = image.reshape(b, c, hp, PATCH_SIZE, wp, PATCH_SIZE)
    patches = patches.transpose(0, 2, 4, 1, 3, 5).reshape(
        b * hp * wp, c * PATCH_SIZE * PATCH_SIZE).astype(jnp.bfloat16)
    feats = fused_linear(patches, params["patch_w"], params["patch_b"])  # -> 384
    feats = fused_linear(feats, params["proj_w"], params["proj_b"])      # proj_dino_features
    feats = feats.reshape(b, hp * wp, dim)

    # ---- interleaved MHSA / MHCA blocks ----------------------------------------
    for blk in params["blocks"]:
        t = mhsa_block(t, blk["mhsa"], num_heads)
        t = mhca_block(t, feats, blk["mhca"], num_heads)

    # ---- output head (lane-padded weights, sliced back afterwards) -------------
    out = fused_linear(t.reshape(b * n, dim), params["out_w"], params["out_b"],
                       out_dtype=jnp.float32)
    out = out[:, :discretized_space]
    return out.reshape(b, n, discretized_space)


# -----------------------------------------------------------------------------
if __name__ == "__main__":
    # small-but-consistent configuration
    dim = 128
    num_heads = 4
    n_blocks = 2
    n_tokens = 8
    discretized_space = 301
    token_input_dim = 1
    B, C, H, W = 2, 3, 28, 28  # 14x14 patches -> 2x2 = 4 image tokens

    key = jax.random.PRNGKey(0)
    kparam, kimg, ktok = jax.random.split(key, 3)

    params = init_params(
        kparam, dim=dim, n_blocks=n_blocks, n_tokens=n_tokens,
        discretized_space=discretized_space, token_input_dim=token_input_dim,
        in_chans=C)

    image = jax.random.normal(kimg, (B, C, H, W), jnp.float32)
    tokens = jax.random.normal(ktok, (B, n_tokens, token_input_dim), jnp.float32)

    fwd = jax.jit(functools.partial(
        ar_straighter_forward, num_heads=num_heads,
        discretized_space=discretized_space, abs_pos_emb=False))
    out = fwd(params, image, tokens)
    jax.block_until_ready(out)

    assert out.shape == (B, n_tokens, discretized_space), out.shape
    assert jnp.all(jnp.isfinite(out))
    print("KERNEL_OK")
</pallas_src>

<mosaic_0001>
module attributes {stable_mosaic.version = 11 : i64} {
  func.func @_fused_linear_kernel(%arg0: i32, %arg1: i32, %arg2: i32, %arg3: memref<16x1xbf16, #tpu.memory_space<vmem>>, %arg4: memref<1x128xbf16, #tpu.memory_space<vmem>>, %arg5: memref<1x128xf32, #tpu.memory_space<vmem>>, %arg6: memref<16x128xbf16, #tpu.memory_space<vmem>>, %arg7: memref<16x128xf32, #tpu.memory_space<vmem>>) attributes {dimension_semantics = [#tpu.dimension_semantics<parallel>, #tpu.dimension_semantics<parallel>, #tpu.dimension_semantics<arbitrary>], iteration_bounds = array<i64: 1, 1, 1>, scalar_prefetch = 0 : i64, scratch_operands = 1 : i64, tpu.core_type = #tpu.core_type<tc>, window_params = [{transform_indices = @transform_0, window_bounds = array<i64: 16, 1>}, {transform_indices = @transform_1, window_bounds = array<i64: 1, 128>}, {transform_indices = @transform_2, window_bounds = array<i64: 1, 128>}, {transform_indices = @transform_3, window_bounds = array<i64: 16, 128>}]} {
    %c0_i32 = arith.constant 0 : i32
    %0 = arith.cmpi eq, %arg2, %c0_i32 : i32
    %1 = arith.extui %0 : i1 to i32
    %c0_i32_0 = arith.constant 0 : i32
    %2 = arith.cmpi ne, %1, %c0_i32_0 : i32
    scf.if %2 {
      %cst_10 = arith.constant 0.000000e+00 : f32
      %12 = vector.broadcast %cst_10 : f32 to vector<16x128xf32>
      %c0_11 = arith.constant 0 : index
      %c0_12 = arith.constant 0 : index
      %13 = vector.load %arg7[%c0_11, %c0_12] : memref<16x128xf32, #tpu.memory_space<vmem>>, vector<16x128xf32>
      tpu.vector_store %arg7[%c0_11, %c0_12], %12 {strides = array<i32>} : memref<16x128xf32, #tpu.memory_space<vmem>>, vector<16x128xf32>,
    } else {
    }
    %c0 = arith.constant 0 : index
    %c0_1 = arith.constant 0 : index
    %3 = vector.load %arg3[%c0, %c0_1] : memref<16x1xbf16, #tpu.memory_space<vmem>>, vector<16x1xbf16>
    %c0_2 = arith.constant 0 : index
    %c0_3 = arith.constant 0 : index
    %4 = vector.load %arg7[%c0_2, %c0_3] : memref<16x128xf32, #tpu.memory_space<vmem>>, vector<16x128xf32>
    %c0_4 = arith.constant 0 : index
    %c0_5 = arith.constant 0 : index
    %5 = vector.load %arg4[%c0_4, %c0_5] : memref<1x128xbf16, #tpu.memory_space<vmem>>, vector<1x128xbf16>
    %cst = arith.constant dense<0.000000e+00> : vector<16x128xf32>
    %6 = tpu.matmul %3, %5, %cst {dimension_numbers = #tpu.dot_dimension_numbers<[1], [0], [0], [1], [0, 0, 1, 1], [], []>} : vector<16x1xbf16>, vector<1x128xbf16>, vector<16x128xf32> -> vector<16x128xf32>
    %7 = arith.addf %4, %6 : vector<16x128xf32>
    %c0_6 = arith.constant 0 : index
    %c0_7 = arith.constant 0 : index
    %8 = vector.load %arg7[%c0_6, %c0_7] : memref<16x128xf32, #tpu.memory_space<vmem>>, vector<16x128xf32>
    tpu.vector_store %arg7[%c0_6, %c0_7], %7 {strides = array<i32>} : memref<16x128xf32, #tpu.memory_space<vmem>>, vector<16x128xf32>,
    %c0_i32_8 = arith.constant 0 : i32
    %9 = arith.cmpi eq, %arg2, %c0_i32_8 : i32
    %10 = arith.extui %9 : i1 to i32
    %c0_i32_9 = arith.constant 0 : i32
    %11 = arith.cmpi ne, %10, %c0_i32_9 : i32
    scf.if %11 {
      %c0_10 = arith.constant 0 : index
      %c0_11 = arith.constant 0 : index
      %12 = vector.load %arg7[%c0_10, %c0_11] : memref<16x128xf32, #tpu.memory_space<vmem>>, vector<16x128xf32>
      %c0_12 = arith.constant 0 : index
      %c0_13 = arith.constant 0 : index
      %13 = vector.load %arg5[%c0_12, %c0_13] : memref<1x128xf32, #tpu.memory_space<vmem>>, vector<1x128xf32>
      %14 = vector.broadcast %13 : vector<1x128xf32> to vector<16x128xf32>
      %15 = arith.addf %12, %14 : vector<16x128xf32>
      %16 = arith.negf %15 : vector<16x128xf32>
      %17 = math.exp %16 : vector<16x128xf32>
      %cst_14 = arith.constant 1.000000e+00 : f32
      %18 = vector.broadcast %cst_14 : f32 to vector<16x128xf32>
      %19 = arith.addf %18, %17 : vector<16x128xf32>
      %20 = arith.divf %18, %19 : vector<16x128xf32>
      %21 = arith.mulf %15, %20 : vector<16x128xf32>
      %22 = arith.truncf %21 : vector<16x128xf32> to vector<16x128xbf16>
      %c0_15 = arith.constant 0 : index
      %c0_16 = arith.constant 0 : index
      %23 = vector.load %arg6[%c0_15, %c0_16] : memref<16x128xbf16, #tpu.memory_space<vmem>>, vector<16x128xbf16>
      tpu.vector_store %arg6[%c0_15, %c0_16], %22 {strides = array<i32>} : memref<16x128xbf16, #tpu.memory_space<vmem>>, vector<16x128xbf16>,
    } else {
    }
    return
  }
  func.func @transform_0(%arg0: i32, %arg1: i32, %arg2: i32) -> (i32, i32) {
    %c0_i32 = arith.constant 0 : i32
    return %arg0, %arg2 : i32, i32
  }
  func.func @transform_1(%arg0: i32, %arg1: i32, %arg2: i32) -> (i32, i32) {
    %c0_i32 = arith.constant 0 : i32
    return %arg2, %arg1 : i32, i32
  }
  func.func @transform_2(%arg0: i32, %arg1: i32, %arg2: i32) -> (i32, i32) {
    %c0_i32 = arith.constant 0 : i32
    %c0_i32_0 = arith.constant 0 : i32
    return %c0_i32, %arg1 : i32, i32
  }
  func.func @transform_3(%arg0: i32, %arg1: i32, %arg2: i32) -> (i32, i32) {
    %c0_i32 = arith.constant 0 : i32
    return %arg0, %arg1 : i32, i32
  }
}

module attributes {stable_mosaic.version = 11 : i64} {
  func.func @_fused_linear_kernel(%arg0: i32, %arg1: i32, %arg2: i32, %arg3: memref<16x128xbf16, #tpu.memory_space<vmem>>, %arg4: memref<128x128xbf16, #tpu.memory_space<vmem>>, %arg5: memref<1x128xf32, #tpu.memory_space<vmem>>, %arg6: memref<16x128xbf16, #tpu.memory_space<vmem>>, %arg7: memref<16x128xf32, #tpu.memory_space<vmem>>) attributes {dimension_semantics = [#tpu.dimension_semantics<parallel>, #tpu.dimension_semantics<parallel>, #tpu.dimension_semantics<arbitrary>], iteration_bounds = array<i64: 1, 1, 1>, scalar_prefetch = 0 : i64, scratch_operands = 1 : i64, tpu.core_type = #tpu.core_type<tc>, window_params = [{transform_indices = @transform_0, window_bounds = array<i64: 16, 128>}, {transform_indices = @transform_1, window_bounds = array<i64: 128, 128>}, {transform_indices = @transform_2, window_bounds = array<i64: 1, 128>}, {transform_indices = @transform_3, window_bounds = array<i64: 16, 128>}]} {
    %c0_i32 = arith.constant 0 : i32
    %0 = arith.cmpi eq, %arg2, %c0_i32 : i32
    %1 = arith.extui %0 : i1 to i32
    %c0_i32_0 = arith.constant 0 : i32
    %2 = arith.cmpi ne, %1, %c0_i32_0 : i32
    scf.if %2 {
      %cst_10 = arith.constant 0.000000e+00 : f32
      %12 = vector.broadcast %cst_10 : f32 to vector<16x128xf32>
      %c0_11 = arith.constant 0 : index
      %c0_12 = arith.constant 0 : index
      %13 = vector.load %arg7[%c0_11, %c0_12] : memref<16x128xf32, #tpu.memory_space<vmem>>, vector<16x128xf32>
      tpu.vector_store %arg7[%c0_11, %c0_12], %12 {strides = array<i32>} : memref<16x128xf32, #tpu.memory_space<vmem>>, vector<16x128xf32>,
    } else {
    }
    %c0 = arith.constant 0 : index
    %c0_1 = arith.constant 0 : index
    %3 = vector.load %arg3[%c0, %c0_1] : memref<16x128xbf16, #tpu.memory_space<vmem>>, vector<16x128xbf16>
    %c0_2 = arith.constant 0 : index
    %c0_3 = arith.constant 0 : index
    %4 = vector.load %arg7[%c0_2, %c0_3] : memref<16x128xf32, #tpu.memory_space<vmem>>, vector<16x128xf32>
    %c0_4 = arith.constant 0 : index
    %c0_5 = arith.constant 0 : index
    %5 = vector.load %arg4[%c0_4, %c0_5] : memref<128x128xbf16, #tpu.memory_space<vmem>>, vector<128x128xbf16>
    %cst = arith.constant dense<0.000000e+00> : vector<16x128xf32>
    %6 = tpu.matmul %3, %5, %cst {dimension_numbers = #tpu.dot_dimension_numbers<[1], [0], [0], [1], [0, 0, 1, 1], [], []>} : vector<16x128xbf16>, vector<128x128xbf16>, vector<16x128xf32> -> vector<16x128xf32>
    %7 = arith.addf %4, %6 : vector<16x128xf32>
    %c0_6 = arith.constant 0 : index
    %c0_7 = arith.constant 0 : index
    %8 = vector.load %arg7[%c0_6, %c0_7] : memref<16x128xf32, #tpu.memory_space<vmem>>, vector<16x128xf32>
    tpu.vector_store %arg7[%c0_6, %c0_7], %7 {strides = array<i32>} : memref<16x128xf32, #tpu.memory_space<vmem>>, vector<16x128xf32>,
    %c0_i32_8 = arith.constant 0 : i32
    %9 = arith.cmpi eq, %arg2, %c0_i32_8 : i32
    %10 = arith.extui %9 : i1 to i32
    %c0_i32_9 = arith.constant 0 : i32
    %11 = arith.cmpi ne, %10, %c0_i32_9 : i32
    scf.if %11 {
      %c0_10 = arith.constant 0 : index
      %c0_11 = arith.constant 0 : index
      %12 = vector.load %arg7[%c0_10, %c0_11] : memref<16x128xf32, #tpu.memory_space<vmem>>, vector<16x128xf32>
      %c0_12 = arith.constant 0 : index
      %c0_13 = arith.constant 0 : index
      %13 = vector.load %arg5[%c0_12, %c0_13] : memref<1x128xf32, #tpu.memory_space<vmem>>, vector<1x128xf32>
      %14 = vector.broadcast %13 : vector<1x128xf32> to vector<16x128xf32>
      %15 = arith.addf %12, %14 : vector<16x128xf32>
      %16 = arith.truncf %15 : vector<16x128xf32> to vector<16x128xbf16>
      %c0_14 = arith.constant 0 : index
      %c0_15 = arith.constant 0 : index
      %17 = vector.load %arg6[%c0_14, %c0_15] : memref<16x128xbf16, #tpu.memory_space<vmem>>, vector<16x128xbf16>
      tpu.vector_store %arg6[%c0_14, %c0_15], %16 {strides = array<i32>} : memref<16x128xbf16, #tpu.memory_space<vmem>>, vector<16x128xbf16>,
    } else {
    }
    return
  }
  func.func @transform_0(%arg0: i32, %arg1: i32, %arg2: i32) -> (i32, i32) {
    %c0_i32 = arith.constant 0 : i32
    return %arg0, %arg2 : i32, i32
  }
  func.func @transform_1(%arg0: i32, %arg1: i32, %arg2: i32) -> (i32, i32) {
    %c0_i32 = arith.constant 0 : i32
    return %arg2, %arg1 : i32, i32
  }
  func.func @transform_2(%arg0: i32, %arg1: i32, %arg2: i32) -> (i32, i32) {
    %c0_i32 = arith.constant 0 : i32
    %c0_i32_0 = arith.constant 0 : i32
    return %c0_i32, %arg1 : i32, i32
  }
  func.func @transform_3(%arg0: i32, %arg1: i32, %arg2: i32) -> (i32, i32) {
    %c0_i32 = arith.constant 0 : i32
    return %arg0, %arg1 : i32, i32
  }
}

module attributes {stable_mosaic.version = 11 : i64} {
  func.func @_self_attn_kernel(%arg0: i32, %arg1: memref<1x8x384xbf16, #tpu.memory_space<vmem>>, %arg2: memref<1x8x128xbf16, #tpu.memory_space<vmem>>) attributes {dimension_semantics = [#tpu.dimension_semantics<parallel>], iteration_bounds = array<i64: 2>, scalar_prefetch = 0 : i64, scratch_operands = 0 : i64, tpu.core_type = #tpu.core_type<tc>, window_params = [{transform_indices = @transform_0, window_bounds = array<i64: 1, 8, 384>}, {transform_indices = @transform_1, window_bounds = array<i64: 1, 8, 128>}]} {
    %c0 = arith.constant 0 : index
    %c0_0 = arith.constant 0 : index
    %c0_1 = arith.constant 0 : index
    %0 = vector.load %arg1[%c0, %c0_0, %c0_1] : memref<1x8x384xbf16, #tpu.memory_space<vmem>>, vector<1x8x384xbf16>
    %1 = vector.shape_cast %0 : vector<1x8x384xbf16> to vector<8x384xbf16>
    %2 = vector.extract_strided_slice %1 {offsets = [0, 0], sizes = [8, 128], strides = [1, 1]} : vector<8x384xbf16> to vector<8x128xbf16>
    %3 = vector.extract_strided_slice %1 {offsets = [0, 128], sizes = [8, 128], strides = [1, 1]} : vector<8x384xbf16> to vector<8x128xbf16>
    %4 = vector.extract_strided_slice %1 {offsets = [0, 256], sizes = [8, 128], strides = [1, 1]} : vector<8x384xbf16> to vector<8x128xbf16>
    %cst = arith.constant 1.767580e-01 : bf16
    %5 = vector.broadcast %cst : bf16 to vector<8x128xbf16>
    %6 = arith.mulf %2, %5 : vector<8x128xbf16>
    %7 = tpu.iota {dimensions = array<i32: 0>} : vector<8x8xi32>
    %8 = tpu.iota {dimensions = array<i32: 1>} : vector<8x8xi32>
    %9 = arith.cmpi sle, %8, %7 : vector<8x8xi32>
    %10 = vector.extract_strided_slice %6 {offsets = [0, 0], sizes = [8, 32], strides = [1, 1]} : vector<8x128xbf16> to vector<8x32xbf16>
    %11 = vector.extract_strided_slice %3 {offsets = [0, 0], sizes = [8, 32], strides = [1, 1]} : vector<8x128xbf16> to vector<8x32xbf16>
    %cst_2 = arith.constant dense<0.000000e+00> : vector<8x8xf32>
    %12 = tpu.matmul %10, %11, %cst_2 {dimension_numbers = #tpu.dot_dimension_numbers<[1], [1], [0], [0], [0, 0, 1, 0], [], []>} : vector<8x32xbf16>, vector<8x32xbf16>, vector<8x8xf32> -> vector<8x8xf32>
    %cst_3 = arith.constant -1.000000e+30 : f32
    %13 = vector.broadcast %cst_3 : f32 to vector<8x8xf32>
    %14 = arith.select %9, %12, %13 : vector<8x8xi1>, vector<8x8xf32>
    %cst_4 = arith.constant dense<0xFF800000> : vector<8xf32>
    %15 = vector.multi_reduction <maximumf>, %14, %cst_4 [1] : vector<8x8xf32> to vector<8xf32>
    %16 = vector.shape_cast %15 : vector<8xf32> to vector<8x1xf32>
    %17 = vector.broadcast %16 : vector<8x1xf32> to vector<8x8xf32>
    %18 = arith.subf %14, %17 : vector<8x8xf32>
    %19 = math.exp %18 : vector<8x8xf32>
    %cst_5 = arith.constant dense<0.000000e+00> : vector<8xf32>
    %20 = vector.multi_reduction <add>, %19, %cst_5 [1] : vector<8x8xf32> to vector<8xf32>
    %21 = vector.shape_cast %20 : vector<8xf32> to vector<8x1xf32>
    %22 = tpu.reciprocal %21 {approx = true} : vector<8x1xf32> -> vector<8x1xf32>
    %23 = vector.broadcast %22 : vector<8x1xf32> to vector<8x8xf32>
    %24 = arith.mulf %19, %23 : vector<8x8xf32>
    %25 = arith.truncf %24 : vector<8x8xf32> to vector<8x8xbf16>
    %26 = vector.extract_strided_slice %4 {offsets = [0, 0], sizes = [8, 32], strides = [1, 1]} : vector<8x128xbf16> to vector<8x32xbf16>
    %cst_6 = arith.constant dense<0.000000e+00> : vector<8x32xf32>
    %27 = tpu.matmul %25, %26, %cst_6 {dimension_numbers = #tpu.dot_dimension_numbers<[1], [0], [0], [1], [0, 0, 1, 1], [], []>} : vector<8x8xbf16>, vector<8x32xbf16>, vector<8x32xf32> -> vector<8x32xf32>
    %28 = arith.truncf %27 : vector<8x32xf32> to vector<8x32xbf16>
    %c0_7 = arith.constant 0 : index
    %c0_8 = arith.constant 0 : index
    %c0_9 = arith.constant 0 : index
    %29 = vector.load %arg2[%c0_7, %c0_8, %c0_9] : memref<1x8x128xbf16, #tpu.memory_space<vmem>>, vector<1x8x32xbf16>
    %30 = vector.shape_cast %29 : vector<1x8x32xbf16> to vector<8x32xbf16>
    %31 = vector.shape_cast %28 : vector<8x32xbf16> to vector<1x8x32xbf16>
    tpu.vector_store %arg2[%c0_7, %c0_8, %c0_9], %31 {strides = array<i32>} : memref<1x8x128xbf16, #tpu.memory_space<vmem>>, vector<1x8x32xbf16>,
    %32 = vector.extract_strided_slice %6 {offsets = [0, 32], sizes = [8, 32], strides = [1, 1]} : vector<8x128xbf16> to vector<8x32xbf16>
    %33 = vector.extract_strided_slice %3 {offsets = [0, 32], sizes = [8, 32], strides = [1, 1]} : vector<8x128xbf16> to vector<8x32xbf16>
    %cst_10 = arith.constant dense<0.000000e+00> : vector<8x8xf32>
    %34 = tpu.matmul %32, %33, %cst_10 {dimension_numbers = #tpu.dot_dimension_numbers<[1], [1], [0], [0], [0, 0, 1, 0], [], []>} : vector<8x32xbf16>, vector<8x32xbf16>, vector<8x8xf32> -> vector<8x8xf32>
    %cst_11 = arith.constant -1.000000e+30 : f32
    %35 = vector.broadcast %cst_11 : f32 to vector<8x8xf32>
    %36 = arith.select %9, %34, %35 : vector<8x8xi1>, vector<8x8xf32>
    %cst_12 = arith.constant dense<0xFF800000> : vector<8xf32>
    %37 = vector.multi_reduction <maximumf>, %36, %cst_12 [1] : vector<8x8xf32> to vector<8xf32>
    %38 = vector.shape_cast %37 : vector<8xf32> to vector<8x1xf32>
    %39 = vector.broadcast %38 : vector<8x1xf32> to vector<8x8xf32>
    %40 = arith.subf %36, %39 : vector<8x8xf32>
    %41 = math.exp %40 : vector<8x8xf32>
    %cst_13 = arith.constant dense<0.000000e+00> : vector<8xf32>
    %42 = vector.multi_reduction <add>, %41, %cst_13 [1] : vector<8x8xf32> to vector<8xf32>
    %43 = vector.shape_cast %42 : vector<8xf32> to vector<8x1xf32>
    %44 = tpu.reciprocal %43 {approx = true} : vector<8x1xf32> -> vector<8x1xf32>
    %45 = vector.broadcast %44 : vector<8x1xf32> to vector<8x8xf32>
    %46 = arith.mulf %41, %45 : vector<8x8xf32>
    %47 = arith.truncf %46 : vector<8x8xf32> to vector<8x8xbf16>
    %48 = vector.extract_strided_slice %4 {offsets = [0, 32], sizes = [8, 32], strides = [1, 1]} : vector<8x128xbf16> to vector<8x32xbf16>
    %cst_14 = arith.constant dense<0.000000e+00> : vector<8x32xf32>
    %49 = tpu.matmul %47, %48, %cst_14 {dimension_numbers = #tpu.dot_dimension_numbers<[1], [0], [0], [1], [0, 0, 1, 1], [], []>} : vector<8x8xbf16>, vector<8x32xbf16>, vector<8x32xf32> -> vector<8x32xf32>
    %50 = arith.truncf %49 : vector<8x32xf32> to vector<8x32xbf16>
    %c0_15 = arith.constant 0 : index
    %c0_16 = arith.constant 0 : index
    %c32 = arith.constant 32 : index
    %51 = vector.load %arg2[%c0_15, %c0_16, %c32] : memref<1x8x128xbf16, #tpu.memory_space<vmem>>, vector<1x8x32xbf16>
    %52 = vector.shape_cast %51 : vector<1x8x32xbf16> to vector<8x32xbf16>
    %53 = vector.shape_cast %50 : vector<8x32xbf16> to vector<1x8x32xbf16>
    tpu.vector_store %arg2[%c0_15, %c0_16, %c32], %53 {strides = array<i32>} : memref<1x8x128xbf16, #tpu.memory_space<vmem>>, vector<1x8x32xbf16>,
    %54 = vector.extract_strided_slice %6 {offsets = [0, 64], sizes = [8, 32], strides = [1, 1]} : vector<8x128xbf16> to vector<8x32xbf16>
    %55 = vector.extract_strided_slice %3 {offsets = [0, 64], sizes = [8, 32], strides = [1, 1]} : vector<8x128xbf16> to vector<8x32xbf16>
    %cst_17 = arith.constant dense<0.000000e+00> : vector<8x8xf32>
    %56 = tpu.matmul %54, %55, %cst_17 {dimension_numbers = #tpu.dot_dimension_numbers<[1], [1], [0], [0], [0, 0, 1, 0], [], []>} : vector<8x32xbf16>, vector<8x32xbf16>, vector<8x8xf32> -> vector<8x8xf32>
    %cst_18 = arith.constant -1.000000e+30 : f32
    %57 = vector.broadcast %cst_18 : f32 to vector<8x8xf32>
    %58 = arith.select %9, %56, %57 : vector<8x8xi1>, vector<8x8xf32>
    %cst_19 = arith.constant dense<0xFF800000> : vector<8xf32>
    %59 = vector.multi_reduction <maximumf>, %58, %cst_19 [1] : vector<8x8xf32> to vector<8xf32>
    %60 = vector.shape_cast %59 : vector<8xf32> to vector<8x1xf32>
    %61 = vector.broadcast %60 : vector<8x1xf32> to vector<8x8xf32>
    %62 = arith.subf %58, %61 : vector<8x8xf32>
    %63 = math.exp %62 : vector<8x8xf32>
    %cst_20 = arith.constant dense<0.000000e+00> : vector<8xf32>
    %64 = vector.multi_reduction <add>, %63, %cst_20 [1] : vector<8x8xf32> to vector<8xf32>
    %65 = vector.shape_cast %64 : vector<8xf32> to vector<8x1xf32>
    %66 = tpu.reciprocal %65 {approx = true} : vector<8x1xf32> -> vector<8x1xf32>
    %67 = vector.broadcast %66 : vector<8x1xf32> to vector<8x8xf32>
    %68 = arith.mulf %63, %67 : vector<8x8xf32>
    %69 = arith.truncf %68 : vector<8x8xf32> to vector<8x8xbf16>
    %70 = vector.extract_strided_slice %4 {offsets = [0, 64], sizes = [8, 32], strides = [1, 1]} : vector<8x128xbf16> to vector<8x32xbf16>
    %cst_21 = arith.constant dense<0.000000e+00> : vector<8x32xf32>
    %71 = tpu.matmul %69, %70, %cst_21 {dimension_numbers = #tpu.dot_dimension_numbers<[1], [0], [0], [1], [0, 0, 1, 1], [], []>} : vector<8x8xbf16>, vector<8x32xbf16>, vector<8x32xf32> -> vector<8x32xf32>
    %72 = arith.truncf %71 : vector<8x32xf32> to vector<8x32xbf16>
    %c0_22 = arith.constant 0 : index
    %c0_23 = arith.constant 0 : index
    %c64 = arith.constant 64 : index
    %73 = vector.load %arg2[%c0_22, %c0_23, %c64] : memref<1x8x128xbf16, #tpu.memory_space<vmem>>, vector<1x8x32xbf16>
    %74 = vector.shape_cast %73 : vector<1x8x32xbf16> to vector<8x32xbf16>
    %75 = vector.shape_cast %72 : vector<8x32xbf16> to vector<1x8x32xbf16>
    tpu.vector_store %arg2[%c0_22, %c0_23, %c64], %75 {strides = array<i32>} : memref<1x8x128xbf16, #tpu.memory_space<vmem>>, vector<1x8x32xbf16>,
    %76 = vector.extract_strided_slice %6 {offsets = [0, 96], sizes = [8, 32], strides = [1, 1]} : vector<8x128xbf16> to vector<8x32xbf16>
    %77 = vector.extract_strided_slice %3 {offsets = [0, 96], sizes = [8, 32], strides = [1, 1]} : vector<8x128xbf16> to vector<8x32xbf16>
    %cst_24 = arith.constant dense<0.000000e+00> : vector<8x8xf32>
    %78 = tpu.matmul %76, %77, %cst_24 {dimension_numbers = #tpu.dot_dimension_numbers<[1], [1], [0], [0], [0, 0, 1, 0], [], []>} : vector<8x32xbf16>, vector<8x32xbf16>, vector<8x8xf32> -> vector<8x8xf32>
    %cst_25 = arith.constant -1.000000e+30 : f32
    %79 = vector.broadcast %cst_25 : f32 to vector<8x8xf32>
    %80 = arith.select %9, %78, %79 : vector<8x8xi1>, vector<8x8xf32>
    %cst_26 = arith.constant dense<0xFF800000> : vector<8xf32>
    %81 = vector.multi_reduction <maximumf>, %80, %cst_26 [1] : vector<8x8xf32> to vector<8xf32>
    %82 = vector.shape_cast %81 : vector<8xf32> to vector<8x1xf32>
    %83 = vector.broadcast %82 : vector<8x1xf32> to vector<8x8xf32>
    %84 = arith.subf %80, %83 : vector<8x8xf32>
    %85 = math.exp %84 : vector<8x8xf32>
    %cst_27 = arith.constant dense<0.000000e+00> : vector<8xf32>
    %86 = vector.multi_reduction <add>, %85, %cst_27 [1] : vector<8x8xf32> to vector<8xf32>
    %87 = vector.shape_cast %86 : vector<8xf32> to vector<8x1xf32>
    %88 = tpu.reciprocal %87 {approx = true} : vector<8x1xf32> -> vector<8x1xf32>
    %89 = vector.broadcast %88 : vector<8x1xf32> to vector<8x8xf32>
    %90 = arith.mulf %85, %89 : vector<8x8xf32>
    %91 = arith.truncf %90 : vector<8x8xf32> to vector<8x8xbf16>
    %92 = vector.extract_strided_slice %4 {offsets = [0, 96], sizes = [8, 32], strides = [1, 1]} : vector<8x128xbf16> to vector<8x32xbf16>
    %cst_28 = arith.constant dense<0.000000e+00> : vector<8x32xf32>
    %93 = tpu.matmul %91, %92, %cst_28 {dimension_numbers = #tpu.dot_dimension_numbers<[1], [0], [0], [1], [0, 0, 1, 1], [], []>} : vector<8x8xbf16>, vector<8x32xbf16>, vector<8x32xf32> -> vector<8x32xf32>
    %94 = arith.truncf %93 : vector<8x32xf32> to vector<8x32xbf16>
    %c0_29 = arith.constant 0 : index
    %c0_30 = arith.constant 0 : index
    %c96 = arith.constant 96 : index
    %95 = vector.load %arg2[%c0_29, %c0_30, %c96] : memref<1x8x128xbf16, #tpu.memory_space<vmem>>, vector<1x8x32xbf16>
    %96 = vector.shape_cast %95 : vector<1x8x32xbf16> to vector<8x32xbf16>
    %97 = vector.shape_cast %94 : vector<8x32xbf16> to vector<1x8x32xbf16>
    tpu.vector_store %arg2[%c0_29, %c0_30, %c96], %97 {strides = array<i32>} : memref<1x8x128xbf16, #tpu.memory_space<vmem>>, vector<1x8x32xbf16>,
    return
  }
  func.func @transform_0(%arg0: i32) -> (i32, i32, i32) {
    %c0_i32 = arith.constant 0 : i32
    %c0_i32_0 = arith.constant 0 : i32
    %c0_i32_1 = arith.constant 0 : i32
    return %arg0, %c0_i32, %c0_i32_0 : i32, i32, i32
  }
  func.func @transform_1(%arg0: i32) -> (i32, i32, i32) {
    %c0_i32 = arith.constant 0 : i32
    %c0_i32_0 = arith.constant 0 : i32
    %c0_i32_1 = arith.constant 0 : i32
    return %arg0, %c0_i32, %c0_i32_0 : i32, i32, i32
  }
}

module attributes {stable_mosaic.version = 11 : i64} {
  func.func @_fused_linear_kernel(%arg0: i32, %arg1: i32, %arg2: i32, %arg3: memref<16x128xbf16, #tpu.memory_space<vmem>>, %arg4: memref<128x128xbf16, #tpu.memory_space<vmem>>, %arg5: memref<1x128xf32, #tpu.memory_space<vmem>>, %arg6: memref<1x128xf32, #tpu.memory_space<vmem>>, %arg7: memref<1x128xf32, #tpu.memory_space<vmem>>, %arg8: memref<16x128xbf16, #tpu.memory_space<vmem>>, %arg9: memref<16x128xf32, #tpu.memory_space<vmem>>) attributes {dimension_semantics = [#tpu.dimension_semantics<parallel>, #tpu.dimension_semantics<parallel>, #tpu.dimension_semantics<arbitrary>], iteration_bounds = array<i64: 1, 3, 1>, scalar_prefetch = 0 : i64, scratch_operands = 1 : i64, tpu.core_type = #tpu.core_type<tc>, window_params = [{transform_indices = @transform_0, window_bounds = array<i64: 16, 128>}, {transform_indices = @transform_1, window_bounds = array<i64: 128, 128>}, {transform_indices = @transform_2, window_bounds = array<i64: 1, 128>}, {pipeline_mode = #tpu.pipeline_mode<synchronous>, transform_indices = @transform_3, window_bounds = array<i64: 1, 128>}, {pipeline_mode = #tpu.pipeline_mode<synchronous>, transform_indices = @transform_4, window_bounds = array<i64: 1, 128>}, {transform_indices = @transform_5, window_bounds = array<i64: 16, 128>}]} {
    %c0_i32 = arith.constant 0 : i32
    %0 = arith.cmpi eq, %arg2, %c0_i32 : i32
    %1 = arith.extui %0 : i1 to i32
    %c0_i32_0 = arith.constant 0 : i32
    %2 = arith.cmpi ne, %1, %c0_i32_0 : i32
    scf.if %2 {
      %cst_19 = arith.constant 0.000000e+00 : f32
      %36 = vector.broadcast %cst_19 : f32 to vector<16x128xf32>
      %c0_20 = arith.constant 0 : index
      %c0_21 = arith.constant 0 : index
      %37 = vector.load %arg9[%c0_20, %c0_21] : memref<16x128xf32, #tpu.memory_space<vmem>>, vector<16x128xf32>
      tpu.vector_store %arg9[%c0_20, %c0_21], %36 {strides = array<i32>} : memref<16x128xf32, #tpu.memory_space<vmem>>, vector<16x128xf32>,
    } else {
    }
    %c0 = arith.constant 0 : index
    %c0_1 = arith.constant 0 : index
    %3 = vector.load %arg3[%c0, %c0_1] : memref<16x128xbf16, #tpu.memory_space<vmem>>, vector<16x128xbf16>
    %4 = arith.extf %3 : vector<16x128xbf16> to vector<16x128xf32>
    %cst = arith.constant dense<0.000000e+00> : vector<16xf32>
    %5 = vector.multi_reduction <add>, %4, %cst [1] : vector<16x128xf32> to vector<16xf32>
    %6 = vector.shape_cast %5 : vector<16xf32> to vector<16x1xf32>
    %cst_2 = arith.constant 1.280000e+02 : f32
    %7 = vector.broadcast %cst_2 : f32 to vector<16x1xf32>
    %8 = arith.divf %6, %7 : vector<16x1xf32>
    %9 = vector.broadcast %8 : vector<16x1xf32> to vector<16x128xf32>
    %10 = arith.subf %4, %9 : vector<16x128xf32>
    %11 = arith.mulf %10, %10 : vector<16x128xf32>
    %cst_3 = arith.constant dense<0.000000e+00> : vector<16xf32>
    %12 = vector.multi_reduction <add>, %11, %cst_3 [1] : vector<16x128xf32> to vector<16xf32>
    %13 = vector.shape_cast %12 : vector<16xf32> to vector<16x1xf32>
    %cst_4 = arith.constant 1.280000e+02 : f32
    %14 = vector.broadcast %cst_4 : f32 to vector<16x1xf32>
    %15 = arith.divf %13, %14 : vector<16x1xf32>
    %cst_5 = arith.constant 9.99999974E-6 : f32
    %16 = vector.broadcast %cst_5 : f32 to vector<16x1xf32>
    %17 = arith.addf %15, %16 : vector<16x1xf32>
    %18 = math.rsqrt %17 : vector<16x1xf32>
    %19 = vector.broadcast %18 : vector<16x1xf32> to vector<16x128xf32>
    %20 = arith.mulf %10, %19 : vector<16x128xf32>
    %c0_6 = arith.constant 0 : index
    %c0_7 = arith.constant 0 : index
    %21 = vector.load %arg6[%c0_6, %c0_7] : memref<1x128xf32, #tpu.memory_space<vmem>>, vector<1x128xf32>
    %22 = vector.broadcast %21 : vector<1x128xf32> to vector<16x128xf32>
    %23 = arith.mulf %20, %22 : vector<16x128xf32>
    %c0_8 = arith.constant 0 : index
    %c0_9 = arith.constant 0 : index
    %24 = vector.load %arg7[%c0_8, %c0_9] : memref<1x128xf32, #tpu.memory_space<vmem>>, vector<1x128xf32>
    %25 = vector.broadcast %24 : vector<1x128xf32> to vector<16x128xf32>
    %26 = arith.addf %23, %25 : vector<16x128xf32>
    %27 = arith.truncf %26 : vector<16x128xf32> to vector<16x128xbf16>
    %c0_10 = arith.constant 0 : index
    %c0_11 = arith.constant 0 : index
    %28 = vector.load %arg9[%c0_10, %c0_11] : memref<16x128xf32, #tpu.memory_space<vmem>>, vector<16x128xf32>
    %c0_12 = arith.constant 0 : index
    %c0_13 = arith.constant 0 : index
    %29 = vector.load %arg4[%c0_12, %c0_13] : memref<128x128xbf16, #tpu.memory_space<vmem>>, vector<128x128xbf16>
    %cst_14 = arith.constant dense<0.000000e+00> : vector<16x128xf32>
    %30 = tpu.matmul %27, %29, %cst_14 {dimension_numbers = #tpu.dot_dimension_numbers<[1], [0], [0], [1], [0, 0, 1, 1], [], []>} : vector<16x128xbf16>, vector<128x128xbf16>, vector<16x128xf32> -> vector<16x128xf32>
    %31 = arith.addf %28, %30 : vector<16x128xf32>
    %c0_15 = arith.constant 0 : index
    %c0_16 = arith.constant 0 : index
    %32 = vector.load %arg9[%c0_15, %c0_16] : memref<16x128xf32, #tpu.memory_space<vmem>>, vector<16x128xf32>
    tpu.vector_store %arg9[%c0_15, %c0_16], %31 {strides = array<i32>} : memref<16x128xf32, #tpu.memory_space<vmem>>, vector<16x128xf32>,
    %c0_i32_17 = arith.constant 0 : i32
    %33 = arith.cmpi eq, %arg2, %c0_i32_17 : i32
    %34 = arith.extui %33 : i1 to i32
    %c0_i32_18 = arith.constant 0 : i32
    %35 = arith.cmpi ne, %34, %c0_i32_18 : i32
    scf.if %35 {
      %c0_19 = arith.constant 0 : index
      %c0_20 = arith.constant 0 : index
      %36 = vector.load %arg9[%c0_19, %c0_20] : memref<16x128xf32, #tpu.memory_space<vmem>>, vector<16x128xf32>
      %c0_21 = arith.constant 0 : index
      %c0_22 = arith.constant 0 : index
      %37 = vector.load %arg5[%c0_21, %c0_22] : memref<1x128xf32, #tpu.memory_space<vmem>>, vector<1x128xf32>
      %38 = vector.broadcast %37 : vector<1x128xf32> to vector<16x128xf32>
      %39 = arith.addf %36, %38 : vector<16x128xf32>
      %40 = arith.truncf %39 : vector<16x128xf32> to vector<16x128xbf16>
      %c0_23 = arith.constant 0 : index
      %c0_24 = arith.constant 0 : index
      %41 = vector.load %arg8[%c0_23, %c0_24] : memref<16x128xbf16, #tpu.memory_space<vmem>>, vector<16x128xbf16>
      tpu.vector_store %arg8[%c0_23, %c0_24], %40 {strides = array<i32>} : memref<16x128xbf16, #tpu.memory_space<vmem>>, vector<16x128xbf16>,
    } else {
    }
    return
  }
  func.func @transform_0(%arg0: i32, %arg1: i32, %arg2: i32) -> (i32, i32) {
    %c0_i32 = arith.constant 0 : i32
    return %arg0, %arg2 : i32, i32
  }
  func.func @transform_1(%arg0: i32, %arg1: i32, %arg2: i32) -> (i32, i32) {
    %c0_i32 = arith.constant 0 : i32
    return %arg2, %arg1 : i32, i32
  }
  func.func @transform_2(%arg0: i32, %arg1: i32, %arg2: i32) -> (i32, i32) {
    %c0_i32 = arith.constant 0 : i32
    %c0_i32_0 = arith.constant 0 : i32
    return %c0_i32, %arg1 : i32, i32
  }
  func.func @transform_3(%arg0: i32, %arg1: i32, %arg2: i32) -> (i32, i32) {
    %c0_i32 = arith.constant 0 : i32
    %c0_i32_0 = arith.constant 0 : i32
    %c0_i32_1 = arith.constant 0 : i32
    return %c0_i32, %c0_i32_0 : i32, i32
  }
  func.func @transform_4(%arg0: i32, %arg1: i32, %arg2: i32) -> (i32, i32) {
    %c0_i32 = arith.constant 0 : i32
    %c0_i32_0 = arith.constant 0 : i32
    %c0_i32_1 = arith.constant 0 : i32
    return %c0_i32, %c0_i32_0 : i32, i32
  }
  func.func @transform_5(%arg0: i32, %arg1: i32, %arg2: i32) -> (i32, i32) {
    %c0_i32 = arith.constant 0 : i32
    return %arg0, %arg1 : i32, i32
  }
}

module attributes {stable_mosaic.version = 11 : i64} {
  func.func @_fused_linear_kernel(%arg0: i32, %arg1: i32, %arg2: i32, %arg3: memref<16x128xbf16, #tpu.memory_space<vmem>>, %arg4: memref<128x256xbf16, #tpu.memory_space<vmem>>, %arg5: memref<1x256xf32, #tpu.memory_space<vmem>>, %arg6: memref<1x128xf32, #tpu.memory_space<vmem>>, %arg7: memref<1x128xf32, #tpu.memory_space<vmem>>, %arg8: memref<16x256xbf16, #tpu.memory_space<vmem>>, %arg9: memref<16x256xf32, #tpu.memory_space<vmem>>) attributes {dimension_semantics = [#tpu.dimension_semantics<parallel>, #tpu.dimension_semantics<parallel>, #tpu.dimension_semantics<arbitrary>], iteration_bounds = array<i64: 1, 2, 1>, scalar_prefetch = 0 : i64, scratch_operands = 1 : i64, tpu.core_type = #tpu.core_type<tc>, window_params = [{transform_indices = @transform_0, window_bounds = array<i64: 16, 128>}, {transform_indices = @transform_1, window_bounds = array<i64: 128, 256>}, {transform_indices = @transform_2, window_bounds = array<i64: 1, 256>}, {pipeline_mode = #tpu.pipeline_mode<synchronous>, transform_indices = @transform_3, window_bounds = array<i64: 1, 128>}, {pipeline_mode = #tpu.pipeline_mode<synchronous>, transform_indices = @transform_4, window_bounds = array<i64: 1, 128>}, {transform_indices = @transform_5, window_bounds = array<i64: 16, 256>}]} {
    %c0_i32 = arith.constant 0 : i32
    %0 = arith.cmpi eq, %arg2, %c0_i32 : i32
    %1 = arith.extui %0 : i1 to i32
    %c0_i32_0 = arith.constant 0 : i32
    %2 = arith.cmpi ne, %1, %c0_i32_0 : i32
    scf.if %2 {
      %cst_19 = arith.constant 0.000000e+00 : f32
      %36 = vector.broadcast %cst_19 : f32 to vector<16x256xf32>
      %c0_20 = arith.constant 0 : index
      %c0_21 = arith.constant 0 : index
      %37 = vector.load %arg9[%c0_20, %c0_21] : memref<16x256xf32, #tpu.memory_space<vmem>>, vector<16x256xf32>
      tpu.vector_store %arg9[%c0_20, %c0_21], %36 {strides = array<i32>} : memref<16x256xf32, #tpu.memory_space<vmem>>, vector<16x256xf32>,
    } else {
    }
    %c0 = arith.constant 0 : index
    %c0_1 = arith.constant 0 : index
    %3 = vector.load %arg3[%c0, %c0_1] : memref<16x128xbf16, #tpu.memory_space<vmem>>, vector<16x128xbf16>
    %4 = arith.extf %3 : vector<16x128xbf16> to vector<16x128xf32>
    %cst = arith.constant dense<0.000000e+00> : vector<16xf32>
    %5 = vector.multi_reduction <add>, %4, %cst [1] : vector<16x128xf32> to vector<16xf32>
    %6 = vector.shape_cast %5 : vector<16xf32> to vector<16x1xf32>
    %cst_2 = arith.constant 1.280000e+02 : f32
    %7 = vector.broadcast %cst_2 : f32 to vector<16x1xf32>
    %8 = arith.divf %6, %7 : vector<16x1xf32>
    %9 = vector.broadcast %8 : vector<16x1xf32> to vector<16x128xf32>
    %10 = arith.subf %4, %9 : vector<16x128xf32>
    %11 = arith.mulf %10, %10 : vector<16x128xf32>
    %cst_3 = arith.constant dense<0.000000e+00> : vector<16xf32>
    %12 = vector.multi_reduction <add>, %11, %cst_3 [1] : vector<16x128xf32> to vector<16xf32>
    %13 = vector.shape_cast %12 : vector<16xf32> to vector<16x1xf32>
    %cst_4 = arith.constant 1.280000e+02 : f32
    %14 = vector.broadcast %cst_4 : f32 to vector<16x1xf32>
    %15 = arith.divf %13, %14 : vector<16x1xf32>
    %cst_5 = arith.constant 9.99999974E-6 : f32
    %16 = vector.broadcast %cst_5 : f32 to vector<16x1xf32>
    %17 = arith.addf %15, %16 : vector<16x1xf32>
    %18 = math.rsqrt %17 : vector<16x1xf32>
    %19 = vector.broadcast %18 : vector<16x1xf32> to vector<16x128xf32>
    %20 = arith.mulf %10, %19 : vector<16x128xf32>
    %c0_6 = arith.constant 0 : index
    %c0_7 = arith.constant 0 : index
    %21 = vector.load %arg6[%c0_6, %c0_7] : memref<1x128xf32, #tpu.memory_space<vmem>>, vector<1x128xf32>
    %22 = vector.broadcast %21 : vector<1x128xf32> to vector<16x128xf32>
    %23 = arith.mulf %20, %22 : vector<16x128xf32>
    %c0_8 = arith.constant 0 : index
    %c0_9 = arith.constant 0 : index
    %24 = vector.load %arg7[%c0_8, %c0_9] : memref<1x128xf32, #tpu.memory_space<vmem>>, vector<1x128xf32>
    %25 = vector.broadcast %24 : vector<1x128xf32> to vector<16x128xf32>
    %26 = arith.addf %23, %25 : vector<16x128xf32>
    %27 = arith.truncf %26 : vector<16x128xf32> to vector<16x128xbf16>
    %c0_10 = arith.constant 0 : index
    %c0_11 = arith.constant 0 : index
    %28 = vector.load %arg9[%c0_10, %c0_11] : memref<16x256xf32, #tpu.memory_space<vmem>>, vector<16x256xf32>
    %c0_12 = arith.constant 0 : index
    %c0_13 = arith.constant 0 : index
    %29 = vector.load %arg4[%c0_12, %c0_13] : memref<128x256xbf16, #tpu.memory_space<vmem>>, vector<128x256xbf16>
    %cst_14 = arith.constant dense<0.000000e+00> : vector<16x256xf32>
    %30 = tpu.matmul %27, %29, %cst_14 {dimension_numbers = #tpu.dot_dimension_numbers<[1], [0], [0], [1], [0, 0, 1, 1], [], []>} : vector<16x128xbf16>, vector<128x256xbf16>, vector<16x256xf32> -> vector<16x256xf32>
    %31 = arith.addf %28, %30 : vector<16x256xf32>
    %c0_15 = arith.constant 0 : index
    %c0_16 = arith.constant 0 : index
    %32 = vector.load %arg9[%c0_15, %c0_16] : memref<16x256xf32, #tpu.memory_space<vmem>>, vector<16x256xf32>
    tpu.vector_store %arg9[%c0_15, %c0_16], %31 {strides = array<i32>} : memref<16x256xf32, #tpu.memory_space<vmem>>, vector<16x256xf32>,
    %c0_i32_17 = arith.constant 0 : i32
    %33 = arith.cmpi eq, %arg2, %c0_i32_17 : i32
    %34 = arith.extui %33 : i1 to i32
    %c0_i32_18 = arith.constant 0 : i32
    %35 = arith.cmpi ne, %34, %c0_i32_18 : i32
    scf.if %35 {
      %c0_19 = arith.constant 0 : index
      %c0_20 = arith.constant 0 : index
      %36 = vector.load %arg9[%c0_19, %c0_20] : memref<16x256xf32, #tpu.memory_space<vmem>>, vector<16x256xf32>
      %c0_21 = arith.constant 0 : index
      %c0_22 = arith.constant 0 : index
      %37 = vector.load %arg5[%c0_21, %c0_22] : memref<1x256xf32, #tpu.memory_space<vmem>>, vector<1x256xf32>
      %38 = vector.broadcast %37 : vector<1x256xf32> to vector<16x256xf32>
      %39 = arith.addf %36, %38 : vector<16x256xf32>
      %40 = arith.mulf %39, %39 : vector<16x256xf32>
      %41 = arith.mulf %39, %40 : vector<16x256xf32>
      %cst_23 = arith.constant 4.471500e-02 : f32
      %42 = vector.broadcast %cst_23 : f32 to vector<16x256xf32>
      %43 = arith.mulf %42, %41 : vector<16x256xf32>
      %44 = arith.addf %39, %43 : vector<16x256xf32>
      %cst_24 = arith.constant 0.797884583 : f32
      %45 = vector.broadcast %cst_24 : f32 to vector<16x256xf32>
      %46 = arith.mulf %45, %44 : vector<16x256xf32>
      %47 = math.tanh %46 : vector<16x256xf32>
      %cst_25 = arith.constant 1.000000e+00 : f32
      %48 = vector.broadcast %cst_25 : f32 to vector<16x256xf32>
      %49 = arith.addf %48, %47 : vector<16x256xf32>
      %cst_26 = arith.constant 5.000000e-01 : f32
      %50 = vector.broadcast %cst_26 : f32 to vector<16x256xf32>
      %51 = arith.mulf %50, %49 : vector<16x256xf32>
      %52 = arith.mulf %39, %51 : vector<16x256xf32>
      %53 = arith.truncf %52 : vector<16x256xf32> to vector<16x256xbf16>
      %c0_27 = arith.constant 0 : index
      %c0_28 = arith.constant 0 : index
      %54 = vector.load %arg8[%c0_27, %c0_28] : memref<16x256xbf16, #tpu.memory_space<vmem>>, vector<16x256xbf16>
      tpu.vector_store %arg8[%c0_27, %c0_28], %53 {strides = array<i32>} : memref<16x256xbf16, #tpu.memory_space<vmem>>, vector<16x256xbf16>,
    } else {
    }
    return
  }
  func.func @transform_0(%arg0: i32, %arg1: i32, %arg2: i32) -> (i32, i32) {
    %c0_i32 = arith.constant 0 : i32
    return %arg0, %arg2 : i32, i32
  }
  func.func @transform_1(%arg0: i32, %arg1: i32, %arg2: i32) -> (i32, i32) {
    %c0_i32 = arith.constant 0 : i32
    return %arg2, %arg1 : i32, i32
  }
  func.func @transform_2(%arg0: i32, %arg1: i32, %arg2: i32) -> (i32, i32) {
    %c0_i32 = arith.constant 0 : i32
    %c0_i32_0 = arith.constant 0 : i32
    return %c0_i32, %arg1 : i32, i32
  }
  func.func @transform_3(%arg0: i32, %arg1: i32, %arg2: i32) -> (i32, i32) {
    %c0_i32 = arith.constant 0 : i32
    %c0_i32_0 = arith.constant 0 : i32
    %c0_i32_1 = arith.constant 0 : i32
    return %c0_i32, %c0_i32_0 : i32, i32
  }
  func.func @transform_4(%arg0: i32, %arg1: i32, %arg2: i32) -> (i32, i32) {
    %c0_i32 = arith.constant 0 : i32
    %c0_i32_0 = arith.constant 0 : i32
    %c0_i32_1 = arith.constant 0 : i32
    return %c0_i32, %c0_i32_0 : i32, i32
  }
  func.func @transform_5(%arg0: i32, %arg1: i32, %arg2: i32) -> (i32, i32) {
    %c0_i32 = arith.constant 0 : i32
    return %arg0, %arg1 : i32, i32
  }
}

module attributes {stable_mosaic.version = 11 : i64} {
  func.func @_fused_linear_kernel(%arg0: i32, %arg1: i32, %arg2: i32, %arg3: memref<16x128xbf16, #tpu.memory_space<vmem>>, %arg4: memref<128x128xbf16, #tpu.memory_space<vmem>>, %arg5: memref<1x128xf32, #tpu.memory_space<vmem>>, %arg6: memref<16x128xbf16, #tpu.memory_space<vmem>>, %arg7: memref<16x128xbf16, #tpu.memory_space<vmem>>, %arg8: memref<16x128xf32, #tpu.memory_space<vmem>>) attributes {dimension_semantics = [#tpu.dimension_semantics<parallel>, #tpu.dimension_semantics<parallel>, #tpu.dimension_semantics<arbitrary>], iteration_bounds = array<i64: 1, 1, 1>, scalar_prefetch = 0 : i64, scratch_operands = 1 : i64, tpu.core_type = #tpu.core_type<tc>, window_params = [{transform_indices = @transform_0, window_bounds = array<i64: 16, 128>}, {transform_indices = @transform_1, window_bounds = array<i64: 128, 128>}, {transform_indices = @transform_2, window_bounds = array<i64: 1, 128>}, {transform_indices = @transform_3, window_bounds = array<i64: 16, 128>}, {transform_indices = @transform_4, window_bounds = array<i64: 16, 128>}]} {
    %c0_i32 = arith.constant 0 : i32
    %0 = arith.cmpi eq, %arg2, %c0_i32 : i32
    %1 = arith.extui %0 : i1 to i32
    %c0_i32_0 = arith.constant 0 : i32
    %2 = arith.cmpi ne, %1, %c0_i32_0 : i32
    scf.if %2 {
      %cst_10 = arith.constant 0.000000e+00 : f32
      %12 = vector.broadcast %cst_10 : f32 to vector<16x128xf32>
      %c0_11 = arith.constant 0 : index
      %c0_12 = arith.constant 0 : index
      %13 = vector.load %arg8[%c0_11, %c0_12] : memref<16x128xf32, #tpu.memory_space<vmem>>, vector<16x128xf32>
      tpu.vector_store %arg8[%c0_11, %c0_12], %12 {strides = array<i32>} : memref<16x128xf32, #tpu.memory_space<vmem>>, vector<16x128xf32>,
    } else {
    }
    %c0 = arith.constant 0 : index
    %c0_1 = arith.constant 0 : index
    %3 = vector.load %arg3[%c0, %c0_1] : memref<16x128xbf16, #tpu.memory_space<vmem>>, vector<16x128xbf16>
    %c0_2 = arith.constant 0 : index
    %c0_3 = arith.constant 0 : index
    %4 = vector.load %arg8[%c0_2, %c0_3] : memref<16x128xf32, #tpu.memory_space<vmem>>, vector<16x128xf32>
    %c0_4 = arith.constant 0 : index
    %c0_5 = arith.constant 0 : index
    %5 = vector.load %arg4[%c0_4, %c0_5] : memref<128x128xbf16, #tpu.memory_space<vmem>>, vector<128x128xbf16>
    %cst = arith.constant dense<0.000000e+00> : vector<16x128xf32>
    %6 = tpu.matmul %3, %5, %cst {dimension_numbers = #tpu.dot_dimension_numbers<[1], [0], [0], [1], [0, 0, 1, 1], [], []>} : vector<16x128xbf16>, vector<128x128xbf16>, vector<16x128xf32> -> vector<16x128xf32>
    %7 = arith.addf %4, %6 : vector<16x128xf32>
    %c0_6 = arith.constant 0 : index
    %c0_7 = arith.constant 0 : index
    %8 = vector.load %arg8[%c0_6, %c0_7] : memref<16x128xf32, #tpu.memory_space<vmem>>, vector<16x128xf32>
    tpu.vector_store %arg8[%c0_6, %c0_7], %7 {strides = array<i32>} : memref<16x128xf32, #tpu.memory_space<vmem>>, vector<16x128xf32>,
    %c0_i32_8 = arith.constant 0 : i32
    %9 = arith.cmpi eq, %arg2, %c0_i32_8 : i32
    %10 = arith.extui %9 : i1 to i32
    %c0_i32_9 = arith.constant 0 : i32
    %11 = arith.cmpi ne, %10, %c0_i32_9 : i32
    scf.if %11 {
      %c0_10 = arith.constant 0 : index
      %c0_11 = arith.constant 0 : index
      %12 = vector.load %arg8[%c0_10, %c0_11] : memref<16x128xf32, #tpu.memory_space<vmem>>, vector<16x128xf32>
      %c0_12 = arith.constant 0 : index
      %c0_13 = arith.constant 0 : index
      %13 = vector.load %arg5[%c0_12, %c0_13] : memref<1x128xf32, #tpu.memory_space<vmem>>, vector<1x128xf32>
      %14 = vector.broadcast %13 : vector<1x128xf32> to vector<16x128xf32>
      %15 = arith.addf %12, %14 : vector<16x128xf32>
      %c0_14 = arith.constant 0 : index
      %c0_15 = arith.constant 0 : index
      %16 = vector.load %arg6[%c0_14, %c0_15] : memref<16x128xbf16, #tpu.memory_space<vmem>>, vector<16x128xbf16>
      %17 = arith.extf %16 : vector<16x128xbf16> to vector<16x128xf32>
      %18 = arith.addf %15, %17 : vector<16x128xf32>
      %19 = arith.truncf %18 : vector<16x128xf32> to vector<16x128xbf16>
      %c0_16 = arith.constant 0 : index
      %c0_17 = arith.constant 0 : index
      %20 = vector.load %arg7[%c0_16, %c0_17] : memref<16x128xbf16, #tpu.memory_space<vmem>>, vector<16x128xbf16>
      tpu.vector_store %arg7[%c0_16, %c0_17], %19 {strides = array<i32>} : memref<16x128xbf16, #tpu.memory_space<vmem>>, vector<16x128xbf16>,
    } else {
    }
    return
  }
  func.func @transform_0(%arg0: i32, %arg1: i32, %arg2: i32) -> (i32, i32) {
    %c0_i32 = arith.constant 0 : i32
    return %arg0, %arg2 : i32, i32
  }
  func.func @transform_1(%arg0: i32, %arg1: i32, %arg2: i32) -> (i32, i32) {
    %c0_i32 = arith.constant 0 : i32
    return %arg2, %arg1 : i32, i32
  }
  func.func @transform_2(%arg0: i32, %arg1: i32, %arg2: i32) -> (i32, i32) {
    %c0_i32 = arith.constant 0 : i32
    %c0_i32_0 = arith.constant 0 : i32
    return %c0_i32, %arg1 : i32, i32
  }
  func.func @transform_3(%arg0: i32, %arg1: i32, %arg2: i32) -> (i32, i32) {
    %c0_i32 = arith.constant 0 : i32
    return %arg0, %arg1 : i32, i32
  }
  func.func @transform_4(%arg0: i32, %arg1: i32, %arg2: i32) -> (i32, i32) {
    %c0_i32 = arith.constant 0 : i32
    return %arg0, %arg1 : i32, i32
  }
}

module attributes {stable_mosaic.version = 11 : i64} {
  func.func @_fused_linear_kernel(%arg0: i32, %arg1: i32, %arg2: i32, %arg3: memref<16x256xbf16, #tpu.memory_space<vmem>>, %arg4: memref<256x128xbf16, #tpu.memory_space<vmem>>, %arg5: memref<1x128xf32, #tpu.memory_space<vmem>>, %arg6: memref<16x128xbf16, #tpu.memory_space<vmem>>, %arg7: memref<16x128xbf16, #tpu.memory_space<vmem>>, %arg8: memref<16x128xf32, #tpu.memory_space<vmem>>) attributes {dimension_semantics = [#tpu.dimension_semantics<parallel>, #tpu.dimension_semantics<parallel>, #tpu.dimension_semantics<arbitrary>], iteration_bounds = array<i64: 1, 1, 2>, scalar_prefetch = 0 : i64, scratch_operands = 1 : i64, tpu.core_type = #tpu.core_type<tc>, window_params = [{transform_indices = @transform_0, window_bounds = array<i64: 16, 256>}, {transform_indices = @transform_1, window_bounds = array<i64: 256, 128>}, {transform_indices = @transform_2, window_bounds = array<i64: 1, 128>}, {transform_indices = @transform_3, window_bounds = array<i64: 16, 128>}, {transform_indices = @transform_4, window_bounds = array<i64: 16, 128>}]} {
    %c0_i32 = arith.constant 0 : i32
    %0 = arith.cmpi eq, %arg2, %c0_i32 : i32
    %1 = arith.extui %0 : i1 to i32
    %c0_i32_0 = arith.constant 0 : i32
    %2 = arith.cmpi ne, %1, %c0_i32_0 : i32
    scf.if %2 {
      %cst_9 = arith.constant 0.000000e+00 : f32
      %12 = vector.broadcast %cst_9 : f32 to vector<16x128xf32>
      %c0_10 = arith.constant 0 : index
      %c0_11 = arith.constant 0 : index
      %13 = vector.load %arg8[%c0_10, %c0_11] : memref<16x128xf32, #tpu.memory_space<vmem>>, vector<16x128xf32>
      tpu.vector_store %arg8[%c0_10, %c0_11], %12 {strides = array<i32>} : memref<16x128xf32, #tpu.memory_space<vmem>>, vector<16x128xf32>,
    } else {
    }
    %c0 = arith.constant 0 : index
    %c0_1 = arith.constant 0 : index
    %3 = vector.load %arg3[%c0, %c0_1] : memref<16x256xbf16, #tpu.memory_space<vmem>>, vector<16x256xbf16>
    %c0_2 = arith.constant 0 : index
    %c0_3 = arith.constant 0 : index
    %4 = vector.load %arg8[%c0_2, %c0_3] : memref<16x128xf32, #tpu.memory_space<vmem>>, vector<16x128xf32>
    %c0_4 = arith.constant 0 : index
    %c0_5 = arith.constant 0 : index
    %5 = vector.load %arg4[%c0_4, %c0_5] : memref<256x128xbf16, #tpu.memory_space<vmem>>, vector<256x128xbf16>
    %cst = arith.constant dense<0.000000e+00> : vector<16x128xf32>
    %6 = tpu.matmul %3, %5, %cst {dimension_numbers = #tpu.dot_dimension_numbers<[1], [0], [0], [1], [0, 0, 1, 1], [], []>} : vector<16x256xbf16>, vector<256x128xbf16>, vector<16x128xf32> -> vector<16x128xf32>
    %7 = arith.addf %4, %6 : vector<16x128xf32>
    %c0_6 = arith.constant 0 : index
    %c0_7 = arith.constant 0 : index
    %8 = vector.load %arg8[%c0_6, %c0_7] : memref<16x128xf32, #tpu.memory_space<vmem>>, vector<16x128xf32>
    tpu.vector_store %arg8[%c0_6, %c0_7], %7 {strides = array<i32>} : memref<16x128xf32, #tpu.memory_space<vmem>>, vector<16x128xf32>,
    %c1_i32 = arith.constant 1 : i32
    %9 = arith.cmpi eq, %arg2, %c1_i32 : i32
    %10 = arith.extui %9 : i1 to i32
    %c0_i32_8 = arith.constant 0 : i32
    %11 = arith.cmpi ne, %10, %c0_i32_8 : i32
    scf.if %11 {
      %c0_9 = arith.constant 0 : index
      %c0_10 = arith.constant 0 : index
      %12 = vector.load %arg8[%c0_9, %c0_10] : memref<16x128xf32, #tpu.memory_space<vmem>>, vector<16x128xf32>
      %c0_11 = arith.constant 0 : index
      %c0_12 = arith.constant 0 : index
      %13 = vector.load %arg5[%c0_11, %c0_12] : memref<1x128xf32, #tpu.memory_space<vmem>>, vector<1x128xf32>
      %14 = vector.broadcast %13 : vector<1x128xf32> to vector<16x128xf32>
      %15 = arith.addf %12, %14 : vector<16x128xf32>
      %c0_13 = arith.constant 0 : index
      %c0_14 = arith.constant 0 : index
      %16 = vector.load %arg6[%c0_13, %c0_14] : memref<16x128xbf16, #tpu.memory_space<vmem>>, vector<16x128xbf16>
      %17 = arith.extf %16 : vector<16x128xbf16> to vector<16x128xf32>
      %18 = arith.addf %15, %17 : vector<16x128xf32>
      %19 = arith.truncf %18 : vector<16x128xf32> to vector<16x128xbf16>
      %c0_15 = arith.constant 0 : index
      %c0_16 = arith.constant 0 : index
      %20 = vector.load %arg7[%c0_15, %c0_16] : memref<16x128xbf16, #tpu.memory_space<vmem>>, vector<16x128xbf16>
      tpu.vector_store %arg7[%c0_15, %c0_16], %19 {strides = array<i32>} : memref<16x128xbf16, #tpu.memory_space<vmem>>, vector<16x128xbf16>,
    } else {
    }
    return
  }
  func.func @transform_0(%arg0: i32, %arg1: i32, %arg2: i32) -> (i32, i32) {
    %c0_i32 = arith.constant 0 : i32
    return %arg0, %arg2 : i32, i32
  }
  func.func @transform_1(%arg0: i32, %arg1: i32, %arg2: i32) -> (i32, i32) {
    %c0_i32 = arith.constant 0 : i32
    return %arg2, %arg1 : i32, i32
  }
  func.func @transform_2(%arg0: i32, %arg1: i32, %arg2: i32) -> (i32, i32) {
    %c0_i32 = arith.constant 0 : i32
    %c0_i32_0 = arith.constant 0 : i32
    return %c0_i32, %arg1 : i32, i32
  }
  func.func @transform_3(%arg0: i32, %arg1: i32, %arg2: i32) -> (i32, i32) {
    %c0_i32 = arith.constant 0 : i32
    return %arg0, %arg1 : i32, i32
  }
  func.func @transform_4(%arg0: i32, %arg1: i32, %arg2: i32) -> (i32, i32) {
    %c0_i32 = arith.constant 0 : i32
    return %arg0, %arg1 : i32, i32
  }
}

module attributes {stable_mosaic.version = 11 : i64} {
  func.func @_fused_linear_kernel(%arg0: i32, %arg1: i32, %arg2: i32, %arg3: memref<16x128xbf16, #tpu.memory_space<vmem>>, %arg4: memref<128x128xbf16, #tpu.memory_space<vmem>>, %arg5: memref<1x128xf32, #tpu.memory_space<vmem>>, %arg6: memref<1x128xf32, #tpu.memory_space<vmem>>, %arg7: memref<1x128xf32, #tpu.memory_space<vmem>>, %arg8: memref<16x128xbf16, #tpu.memory_space<vmem>>, %arg9: memref<16x128xf32, #tpu.memory_space<vmem>>) attributes {dimension_semantics = [#tpu.dimension_semantics<parallel>, #tpu.dimension_semantics<parallel>, #tpu.dimension_semantics<arbitrary>], iteration_bounds = array<i64: 1, 1, 1>, scalar_prefetch = 0 : i64, scratch_operands = 1 : i64, tpu.core_type = #tpu.core_type<tc>, window_params = [{transform_indices = @transform_0, window_bounds = array<i64: 16, 128>}, {transform_indices = @transform_1, window_bounds = array<i64: 128, 128>}, {transform_indices = @transform_2, window_bounds = array<i64: 1, 128>}, {pipeline_mode = #tpu.pipeline_mode<synchronous>, transform_indices = @transform_3, window_bounds = array<i64: 1, 128>}, {pipeline_mode = #tpu.pipeline_mode<synchronous>, transform_indices = @transform_4, window_bounds = array<i64: 1, 128>}, {transform_indices = @transform_5, window_bounds = array<i64: 16, 128>}]} {
    %c0_i32 = arith.constant 0 : i32
    %0 = arith.cmpi eq, %arg2, %c0_i32 : i32
    %1 = arith.extui %0 : i1 to i32
    %c0_i32_0 = arith.constant 0 : i32
    %2 = arith.cmpi ne, %1, %c0_i32_0 : i32
    scf.if %2 {
      %cst_19 = arith.constant 0.000000e+00 : f32
      %36 = vector.broadcast %cst_19 : f32 to vector<16x128xf32>
      %c0_20 = arith.constant 0 : index
      %c0_21 = arith.constant 0 : index
      %37 = vector.load %arg9[%c0_20, %c0_21] : memref<16x128xf32, #tpu.memory_space<vmem>>, vector<16x128xf32>
      tpu.vector_store %arg9[%c0_20, %c0_21], %36 {strides = array<i32>} : memref<16x128xf32, #tpu.memory_space<vmem>>, vector<16x128xf32>,
    } else {
    }
    %c0 = arith.constant 0 : index
    %c0_1 = arith.constant 0 : index
    %3 = vector.load %arg3[%c0, %c0_1] : memref<16x128xbf16, #tpu.memory_space<vmem>>, vector<16x128xbf16>
    %4 = arith.extf %3 : vector<16x128xbf16> to vector<16x128xf32>
    %cst = arith.constant dense<0.000000e+00> : vector<16xf32>
    %5 = vector.multi_reduction <add>, %4, %cst [1] : vector<16x128xf32> to vector<16xf32>
    %6 = vector.shape_cast %5 : vector<16xf32> to vector<16x1xf32>
    %cst_2 = arith.constant 1.280000e+02 : f32
    %7 = vector.broadcast %cst_2 : f32 to vector<16x1xf32>
    %8 = arith.divf %6, %7 : vector<16x1xf32>
    %9 = vector.broadcast %8 : vector<16x1xf32> to vector<16x128xf32>
    %10 = arith.subf %4, %9 : vector<16x128xf32>
    %11 = arith.mulf %10, %10 : vector<16x128xf32>
    %cst_3 = arith.constant dense<0.000000e+00> : vector<16xf32>
    %12 = vector.multi_reduction <add>, %11, %cst_3 [1] : vector<16x128xf32> to vector<16xf32>
    %13 = vector.shape_cast %12 : vector<16xf32> to vector<16x1xf32>
    %cst_4 = arith.constant 1.280000e+02 : f32
    %14 = vector.broadcast %cst_4 : f32 to vector<16x1xf32>
    %15 = arith.divf %13, %14 : vector<16x1xf32>
    %cst_5 = arith.constant 9.99999974E-6 : f32
    %16 = vector.broadcast %cst_5 : f32 to vector<16x1xf32>
    %17 = arith.addf %15, %16 : vector<16x1xf32>
    %18 = math.rsqrt %17 : vector<16x1xf32>
    %19 = vector.broadcast %18 : vector<16x1xf32> to vector<16x128xf32>
    %20 = arith.mulf %10, %19 : vector<16x128xf32>
    %c0_6 = arith.constant 0 : index
    %c0_7 = arith.constant 0 : index
    %21 = vector.load %arg6[%c0_6, %c0_7] : memref<1x128xf32, #tpu.memory_space<vmem>>, vector<1x128xf32>
    %22 = vector.broadcast %21 : vector<1x128xf32> to vector<16x128xf32>
    %23 = arith.mulf %20, %22 : vector<16x128xf32>
    %c0_8 = arith.constant 0 : index
    %c0_9 = arith.constant 0 : index
    %24 = vector.load %arg7[%c0_8, %c0_9] : memref<1x128xf32, #tpu.memory_space<vmem>>, vector<1x128xf32>
    %25 = vector.broadcast %24 : vector<1x128xf32> to vector<16x128xf32>
    %26 = arith.addf %23, %25 : vector<16x128xf32>
    %27 = arith.truncf %26 : vector<16x128xf32> to vector<16x128xbf16>
    %c0_10 = arith.constant 0 : index
    %c0_11 = arith.constant 0 : index
    %28 = vector.load %arg9[%c0_10, %c0_11] : memref<16x128xf32, #tpu.memory_space<vmem>>, vector<16x128xf32>
    %c0_12 = arith.constant 0 : index
    %c0_13 = arith.constant 0 : index
    %29 = vector.load %arg4[%c0_12, %c0_13] : memref<128x128xbf16, #tpu.memory_space<vmem>>, vector<128x128xbf16>
    %cst_14 = arith.constant dense<0.000000e+00> : vector<16x128xf32>
    %30 = tpu.matmul %27, %29, %cst_14 {dimension_numbers = #tpu.dot_dimension_numbers<[1], [0], [0], [1], [0, 0, 1, 1], [], []>} : vector<16x128xbf16>, vector<128x128xbf16>, vector<16x128xf32> -> vector<16x128xf32>
    %31 = arith.addf %28, %30 : vector<16x128xf32>
    %c0_15 = arith.constant 0 : index
    %c0_16 = arith.constant 0 : index
    %32 = vector.load %arg9[%c0_15, %c0_16] : memref<16x128xf32, #tpu.memory_space<vmem>>, vector<16x128xf32>
    tpu.vector_store %arg9[%c0_15, %c0_16], %31 {strides = array<i32>} : memref<16x128xf32, #tpu.memory_space<vmem>>, vector<16x128xf32>,
    %c0_i32_17 = arith.constant 0 : i32
    %33 = arith.cmpi eq, %arg2, %c0_i32_17 : i32
    %34 = arith.extui %33 : i1 to i32
    %c0_i32_18 = arith.constant 0 : i32
    %35 = arith.cmpi ne, %34, %c0_i32_18 : i32
    scf.if %35 {
      %c0_19 = arith.constant 0 : index
      %c0_20 = arith.constant 0 : index
      %36 = vector.load %arg9[%c0_19, %c0_20] : memref<16x128xf32, #tpu.memory_space<vmem>>, vector<16x128xf32>
      %c0_21 = arith.constant 0 : index
      %c0_22 = arith.constant 0 : index
      %37 = vector.load %arg5[%c0_21, %c0_22] : memref<1x128xf32, #tpu.memory_space<vmem>>, vector<1x128xf32>
      %38 = vector.broadcast %37 : vector<1x128xf32> to vector<16x128xf32>
      %39 = arith.addf %36, %38 : vector<16x128xf32>
      %40 = arith.truncf %39 : vector<16x128xf32> to vector<16x128xbf16>
      %c0_23 = arith.constant 0 : index
      %c0_24 = arith.constant 0 : index
      %41 = vector.load %arg8[%c0_23, %c0_24] : memref<16x128xbf16, #tpu.memory_space<vmem>>, vector<16x128xbf16>
      tpu.vector_store %arg8[%c0_23, %c0_24], %40 {strides = array<i32>} : memref<16x128xbf16, #tpu.memory_space<vmem>>, vector<16x128xbf16>,
    } else {
    }
    return
  }
  func.func @transform_0(%arg0: i32, %arg1: i32, %arg2: i32) -> (i32, i32) {
    %c0_i32 = arith.constant 0 : i32
    return %arg0, %arg2 : i32, i32
  }
  func.func @transform_1(%arg0: i32, %arg1: i32, %arg2: i32) -> (i32, i32) {
    %c0_i32 = arith.constant 0 : i32
    return %arg2, %arg1 : i32, i32
  }
  func.func @transform_2(%arg0: i32, %arg1: i32, %arg2: i32) -> (i32, i32) {
    %c0_i32 = arith.constant 0 : i32
    %c0_i32_0 = arith.constant 0 : i32
    return %c0_i32, %arg1 : i32, i32
  }
  func.func @transform_3(%arg0: i32, %arg1: i32, %arg2: i32) -> (i32, i32) {
    %c0_i32 = arith.constant 0 : i32
    %c0_i32_0 = arith.constant 0 : i32
    %c0_i32_1 = arith.constant 0 : i32
    return %c0_i32, %c0_i32_0 : i32, i32
  }
  func.func @transform_4(%arg0: i32, %arg1: i32, %arg2: i32) -> (i32, i32) {
    %c0_i32 = arith.constant 0 : i32
    %c0_i32_0 = arith.constant 0 : i32
    %c0_i32_1 = arith.constant 0 : i32
    return %c0_i32, %c0_i32_0 : i32, i32
  }
  func.func @transform_5(%arg0: i32, %arg1: i32, %arg2: i32) -> (i32, i32) {
    %c0_i32 = arith.constant 0 : i32
    return %arg0, %arg1 : i32, i32
  }
}

module attributes {stable_mosaic.version = 11 : i64} {
  func.func @_fused_linear_kernel(%arg0: i32, %arg1: i32, %arg2: i32, %arg3: memref<8x588xbf16, #tpu.memory_space<vmem>>, %arg4: memref<588x128xbf16, #tpu.memory_space<vmem>>, %arg5: memref<1x128xf32, #tpu.memory_space<vmem>>, %arg6: memref<8x128xbf16, #tpu.memory_space<vmem>>, %arg7: memref<8x128xf32, #tpu.memory_space<vmem>>) attributes {dimension_semantics = [#tpu.dimension_semantics<parallel>, #tpu.dimension_semantics<parallel>, #tpu.dimension_semantics<arbitrary>], iteration_bounds = array<i64: 1, 3, 1>, scalar_prefetch = 0 : i64, scratch_operands = 1 : i64, tpu.core_type = #tpu.core_type<tc>, window_params = [{transform_indices = @transform_0, window_bounds = array<i64: 8, 588>}, {transform_indices = @transform_1, window_bounds = array<i64: 588, 128>}, {transform_indices = @transform_2, window_bounds = array<i64: 1, 128>}, {transform_indices = @transform_3, window_bounds = array<i64: 8, 128>}]} {
    %c0_i32 = arith.constant 0 : i32
    %0 = arith.cmpi eq, %arg2, %c0_i32 : i32
    %1 = arith.extui %0 : i1 to i32
    %c0_i32_0 = arith.constant 0 : i32
    %2 = arith.cmpi ne, %1, %c0_i32_0 : i32
    scf.if %2 {
      %cst_10 = arith.constant 0.000000e+00 : f32
      %12 = vector.broadcast %cst_10 : f32 to vector<8x128xf32>
      %c0_11 = arith.constant 0 : index
      %c0_12 = arith.constant 0 : index
      %13 = vector.load %arg7[%c0_11, %c0_12] : memref<8x128xf32, #tpu.memory_space<vmem>>, vector<8x128xf32>
      tpu.vector_store %arg7[%c0_11, %c0_12], %12 {strides = array<i32>} : memref<8x128xf32, #tpu.memory_space<vmem>>, vector<8x128xf32>,
    } else {
    }
    %c0 = arith.constant 0 : index
    %c0_1 = arith.constant 0 : index
    %3 = vector.load %arg3[%c0, %c0_1] : memref<8x588xbf16, #tpu.memory_space<vmem>>, vector<8x588xbf16>
    %c0_2 = arith.constant 0 : index
    %c0_3 = arith.constant 0 : index
    %4 = vector.load %arg7[%c0_2, %c0_3] : memref<8x128xf32, #tpu.memory_space<vmem>>, vector<8x128xf32>
    %c0_4 = arith.constant 0 : index
    %c0_5 = arith.constant 0 : index
    %5 = vector.load %arg4[%c0_4, %c0_5] : memref<588x128xbf16, #tpu.memory_space<vmem>>, vector<588x128xbf16>
    %cst = arith.constant dense<0.000000e+00> : vector<8x128xf32>
    %6 = tpu.matmul %3, %5, %cst {dimension_numbers = #tpu.dot_dimension_numbers<[1], [0], [0], [1], [0, 0, 1, 1], [], []>} : vector<8x588xbf16>, vector<588x128xbf16>, vector<8x128xf32> -> vector<8x128xf32>
    %7 = arith.addf %4, %6 : vector<8x128xf32>
    %c0_6 = arith.constant 0 : index
    %c0_7 = arith.constant 0 : index
    %8 = vector.load %arg7[%c0_6, %c0_7] : memref<8x128xf32, #tpu.memory_space<vmem>>, vector<8x128xf32>
    tpu.vector_store %arg7[%c0_6, %c0_7], %7 {strides = array<i32>} : memref<8x128xf32, #tpu.memory_space<vmem>>, vector<8x128xf32>,
    %c0_i32_8 = arith.constant 0 : i32
    %9 = arith.cmpi eq, %arg2, %c0_i32_8 : i32
    %10 = arith.extui %9 : i1 to i32
    %c0_i32_9 = arith.constant 0 : i32
    %11 = arith.cmpi ne, %10, %c0_i32_9 : i32
    scf.if %11 {
      %c0_10 = arith.constant 0 : index
      %c0_11 = arith.constant 0 : index
      %12 = vector.load %arg7[%c0_10, %c0_11] : memref<8x128xf32, #tpu.memory_space<vmem>>, vector<8x128xf32>
      %c0_12 = arith.constant 0 : index
      %c0_13 = arith.constant 0 : index
      %13 = vector.load %arg5[%c0_12, %c0_13] : memref<1x128xf32, #tpu.memory_space<vmem>>, vector<1x128xf32>
      %14 = vector.broadcast %13 : vector<1x128xf32> to vector<8x128xf32>
      %15 = arith.addf %12, %14 : vector<8x128xf32>
      %16 = arith.truncf %15 : vector<8x128xf32> to vector<8x128xbf16>
      %c0_14 = arith.constant 0 : index
      %c0_15 = arith.constant 0 : index
      %17 = vector.load %arg6[%c0_14, %c0_15] : memref<8x128xbf16, #tpu.memory_space<vmem>>, vector<8x128xbf16>
      tpu.vector_store %arg6[%c0_14, %c0_15], %16 {strides = array<i32>} : memref<8x128xbf16, #tpu.memory_space<vmem>>, vector<8x128xbf16>,
    } else {
    }
    return
  }
  func.func @transform_0(%arg0: i32, %arg1: i32, %arg2: i32) -> (i32, i32) {
    %c0_i32 = arith.constant 0 : i32
    return %arg0, %arg2 : i32, i32
  }
  func.func @transform_1(%arg0: i32, %arg1: i32, %arg2: i32) -> (i32, i32) {
    %c0_i32 = arith.constant 0 : i32
    return %arg2, %arg1 : i32, i32
  }
  func.func @transform_2(%arg0: i32, %arg1: i32, %arg2: i32) -> (i32, i32) {
    %c0_i32 = arith.constant 0 : i32
    %c0_i32_0 = arith.constant 0 : i32
    return %c0_i32, %arg1 : i32, i32
  }
  func.func @transform_3(%arg0: i32, %arg1: i32, %arg2: i32) -> (i32, i32) {
    %c0_i32 = arith.constant 0 : i32
    return %arg0, %arg1 : i32, i32
  }
}

module attributes {stable_mosaic.version = 11 : i64} {
  func.func @_fused_linear_kernel(%arg0: i32, %arg1: i32, %arg2: i32, %arg3: memref<8x128xbf16, #tpu.memory_space<vmem>>, %arg4: memref<128x128xbf16, #tpu.memory_space<vmem>>, %arg5: memref<1x128xf32, #tpu.memory_space<vmem>>, %arg6: memref<8x128xbf16, #tpu.memory_space<vmem>>, %arg7: memref<8x128xf32, #tpu.memory_space<vmem>>) attributes {dimension_semantics = [#tpu.dimension_semantics<parallel>, #tpu.dimension_semantics<parallel>, #tpu.dimension_semantics<arbitrary>], iteration_bounds = array<i64: 1, 1, 3>, scalar_prefetch = 0 : i64, scratch_operands = 1 : i64, tpu.core_type = #tpu.core_type<tc>, window_params = [{transform_indices = @transform_0, window_bounds = array<i64: 8, 128>}, {transform_indices = @transform_1, window_bounds = array<i64: 128, 128>}, {transform_indices = @transform_2, window_bounds = array<i64: 1, 128>}, {transform_indices = @transform_3, window_bounds = array<i64: 8, 128>}]} {
    %c0_i32 = arith.constant 0 : i32
    %0 = arith.cmpi eq, %arg2, %c0_i32 : i32
    %1 = arith.extui %0 : i1 to i32
    %c0_i32_0 = arith.constant 0 : i32
    %2 = arith.cmpi ne, %1, %c0_i32_0 : i32
    scf.if %2 {
      %cst_9 = arith.constant 0.000000e+00 : f32
      %12 = vector.broadcast %cst_9 : f32 to vector<8x128xf32>
      %c0_10 = arith.constant 0 : index
      %c0_11 = arith.constant 0 : index
      %13 = vector.load %arg7[%c0_10, %c0_11] : memref<8x128xf32, #tpu.memory_space<vmem>>, vector<8x128xf32>
      tpu.vector_store %arg7[%c0_10, %c0_11], %12 {strides = array<i32>} : memref<8x128xf32, #tpu.memory_space<vmem>>, vector<8x128xf32>,
    } else {
    }
    %c0 = arith.constant 0 : index
    %c0_1 = arith.constant 0 : index
    %3 = vector.load %arg3[%c0, %c0_1] : memref<8x128xbf16, #tpu.memory_space<vmem>>, vector<8x128xbf16>
    %c0_2 = arith.constant 0 : index
    %c0_3 = arith.constant 0 : index
    %4 = vector.load %arg7[%c0_2, %c0_3] : memref<8x128xf32, #tpu.memory_space<vmem>>, vector<8x128xf32>
    %c0_4 = arith.constant 0 : index
    %c0_5 = arith.constant 0 : index
    %5 = vector.load %arg4[%c0_4, %c0_5] : memref<128x128xbf16, #tpu.memory_space<vmem>>, vector<128x128xbf16>
    %cst = arith.constant dense<0.000000e+00> : vector<8x128xf32>
    %6 = tpu.matmul %3, %5, %cst {dimension_numbers = #tpu.dot_dimension_numbers<[1], [0], [0], [1], [0, 0, 1, 1], [], []>} : vector<8x128xbf16>, vector<128x128xbf16>, vector<8x128xf32> -> vector<8x128xf32>
    %7 = arith.addf %4, %6 : vector<8x128xf32>
    %c0_6 = arith.constant 0 : index
    %c0_7 = arith.constant 0 : index
    %8 = vector.load %arg7[%c0_6, %c0_7] : memref<8x128xf32, #tpu.memory_space<vmem>>, vector<8x128xf32>
    tpu.vector_store %arg7[%c0_6, %c0_7], %7 {strides = array<i32>} : memref<8x128xf32, #tpu.memory_space<vmem>>, vector<8x128xf32>,
    %c2_i32 = arith.constant 2 : i32
    %9 = arith.cmpi eq, %arg2, %c2_i32 : i32
    %10 = arith.extui %9 : i1 to i32
    %c0_i32_8 = arith.constant 0 : i32
    %11 = arith.cmpi ne, %10, %c0_i32_8 : i32
    scf.if %11 {
      %c0_9 = arith.constant 0 : index
      %c0_10 = arith.constant 0 : index
      %12 = vector.load %arg7[%c0_9, %c0_10] : memref<8x128xf32, #tpu.memory_space<vmem>>, vector<8x128xf32>
      %c0_11 = arith.constant 0 : index
      %c0_12 = arith.constant 0 : index
      %13 = vector.load %arg5[%c0_11, %c0_12] : memref<1x128xf32, #tpu.memory_space<vmem>>, vector<1x128xf32>
      %14 = vector.broadcast %13 : vector<1x128xf32> to vector<8x128xf32>
      %15 = arith.addf %12, %14 : vector<8x128xf32>
      %16 = arith.truncf %15 : vector<8x128xf32> to vector<8x128xbf16>
      %c0_13 = arith.constant 0 : index
      %c0_14 = arith.constant 0 : index
      %17 = vector.load %arg6[%c0_13, %c0_14] : memref<8x128xbf16, #tpu.memory_space<vmem>>, vector<8x128xbf16>
      tpu.vector_store %arg6[%c0_13, %c0_14], %16 {strides = array<i32>} : memref<8x128xbf16, #tpu.memory_space<vmem>>, vector<8x128xbf16>,
    } else {
    }
    return
  }
  func.func @transform_0(%arg0: i32, %arg1: i32, %arg2: i32) -> (i32, i32) {
    %c0_i32 = arith.constant 0 : i32
    return %arg0, %arg2 : i32, i32
  }
  func.func @transform_1(%arg0: i32, %arg1: i32, %arg2: i32) -> (i32, i32) {
    %c0_i32 = arith.constant 0 : i32
    return %arg2, %arg1 : i32, i32
  }
  func.func @transform_2(%arg0: i32, %arg1: i32, %arg2: i32) -> (i32, i32) {
    %c0_i32 = arith.constant 0 : i32
    %c0_i32_0 = arith.constant 0 : i32
    return %c0_i32, %arg1 : i32, i32
  }
  func.func @transform_3(%arg0: i32, %arg1: i32, %arg2: i32) -> (i32, i32) {
    %c0_i32 = arith.constant 0 : i32
    return %arg0, %arg1 : i32, i32
  }
}

module attributes {stable_mosaic.version = 11 : i64} {
  func.func @_fused_linear_kernel(%arg0: i32, %arg1: i32, %arg2: i32, %arg3: memref<8x128xbf16, #tpu.memory_space<vmem>>, %arg4: memref<128x256xbf16, #tpu.memory_space<vmem>>, %arg5: memref<1x256xf32, #tpu.memory_space<vmem>>, %arg6: memref<1x128xf32, #tpu.memory_space<vmem>>, %arg7: memref<1x128xf32, #tpu.memory_space<vmem>>, %arg8: memref<8x256xbf16, #tpu.memory_space<vmem>>, %arg9: memref<8x256xf32, #tpu.memory_space<vmem>>) attributes {dimension_semantics = [#tpu.dimension_semantics<parallel>, #tpu.dimension_semantics<parallel>, #tpu.dimension_semantics<arbitrary>], iteration_bounds = array<i64: 1, 1, 1>, scalar_prefetch = 0 : i64, scratch_operands = 1 : i64, tpu.core_type = #tpu.core_type<tc>, window_params = [{transform_indices = @transform_0, window_bounds = array<i64: 8, 128>}, {transform_indices = @transform_1, window_bounds = array<i64: 128, 256>}, {transform_indices = @transform_2, window_bounds = array<i64: 1, 256>}, {pipeline_mode = #tpu.pipeline_mode<synchronous>, transform_indices = @transform_3, window_bounds = array<i64: 1, 128>}, {pipeline_mode = #tpu.pipeline_mode<synchronous>, transform_indices = @transform_4, window_bounds = array<i64: 1, 128>}, {transform_indices = @transform_5, window_bounds = array<i64: 8, 256>}]} {
    %c0_i32 = arith.constant 0 : i32
    %0 = arith.cmpi eq, %arg2, %c0_i32 : i32
    %1 = arith.extui %0 : i1 to i32
    %c0_i32_0 = arith.constant 0 : i32
    %2 = arith.cmpi ne, %1, %c0_i32_0 : i32
    scf.if %2 {
      %cst_19 = arith.constant 0.000000e+00 : f32
      %36 = vector.broadcast %cst_19 : f32 to vector<8x256xf32>
      %c0_20 = arith.constant 0 : index
      %c0_21 = arith.constant 0 : index
      %37 = vector.load %arg9[%c0_20, %c0_21] : memref<8x256xf32, #tpu.memory_space<vmem>>, vector<8x256xf32>
      tpu.vector_store %arg9[%c0_20, %c0_21], %36 {strides = array<i32>} : memref<8x256xf32, #tpu.memory_space<vmem>>, vector<8x256xf32>,
    } else {
    }
    %c0 = arith.constant 0 : index
    %c0_1 = arith.constant 0 : index
    %3 = vector.load %arg3[%c0, %c0_1] : memref<8x128xbf16, #tpu.memory_space<vmem>>, vector<8x128xbf16>
    %4 = arith.extf %3 : vector<8x128xbf16> to vector<8x128xf32>
    %cst = arith.constant dense<0.000000e+00> : vector<8xf32>
    %5 = vector.multi_reduction <add>, %4, %cst [1] : vector<8x128xf32> to vector<8xf32>
    %6 = vector.shape_cast %5 : vector<8xf32> to vector<8x1xf32>
    %cst_2 = arith.constant 1.280000e+02 : f32
    %7 = vector.broadcast %cst_2 : f32 to vector<8x1xf32>
    %8 = arith.divf %6, %7 : vector<8x1xf32>
    %9 = vector.broadcast %8 : vector<8x1xf32> to vector<8x128xf32>
    %10 = arith.subf %4, %9 : vector<8x128xf32>
    %11 = arith.mulf %10, %10 : vector<8x128xf32>
    %cst_3 = arith.constant dense<0.000000e+00> : vector<8xf32>
    %12 = vector.multi_reduction <add>, %11, %cst_3 [1] : vector<8x128xf32> to vector<8xf32>
    %13 = vector.shape_cast %12 : vector<8xf32> to vector<8x1xf32>
    %cst_4 = arith.constant 1.280000e+02 : f32
    %14 = vector.broadcast %cst_4 : f32 to vector<8x1xf32>
    %15 = arith.divf %13, %14 : vector<8x1xf32>
    %cst_5 = arith.constant 9.99999974E-6 : f32
    %16 = vector.broadcast %cst_5 : f32 to vector<8x1xf32>
    %17 = arith.addf %15, %16 : vector<8x1xf32>
    %18 = math.rsqrt %17 : vector<8x1xf32>
    %19 = vector.broadcast %18 : vector<8x1xf32> to vector<8x128xf32>
    %20 = arith.mulf %10, %19 : vector<8x128xf32>
    %c0_6 = arith.constant 0 : index
    %c0_7 = arith.constant 0 : index
    %21 = vector.load %arg6[%c0_6, %c0_7] : memref<1x128xf32, #tpu.memory_space<vmem>>, vector<1x128xf32>
    %22 = vector.broadcast %21 : vector<1x128xf32> to vector<8x128xf32>
    %23 = arith.mulf %20, %22 : vector<8x128xf32>
    %c0_8 = arith.constant 0 : index
    %c0_9 = arith.constant 0 : index
    %24 = vector.load %arg7[%c0_8, %c0_9] : memref<1x128xf32, #tpu.memory_space<vmem>>, vector<1x128xf32>
    %25 = vector.broadcast %24 : vector<1x128xf32> to vector<8x128xf32>
    %26 = arith.addf %23, %25 : vector<8x128xf32>
    %27 = arith.truncf %26 : vector<8x128xf32> to vector<8x128xbf16>
    %c0_10 = arith.constant 0 : index
    %c0_11 = arith.constant 0 : index
    %28 = vector.load %arg9[%c0_10, %c0_11] : memref<8x256xf32, #tpu.memory_space<vmem>>, vector<8x256xf32>
    %c0_12 = arith.constant 0 : index
    %c0_13 = arith.constant 0 : index
    %29 = vector.load %arg4[%c0_12, %c0_13] : memref<128x256xbf16, #tpu.memory_space<vmem>>, vector<128x256xbf16>
    %cst_14 = arith.constant dense<0.000000e+00> : vector<8x256xf32>
    %30 = tpu.matmul %27, %29, %cst_14 {dimension_numbers = #tpu.dot_dimension_numbers<[1], [0], [0], [1], [0, 0, 1, 1], [], []>} : vector<8x128xbf16>, vector<128x256xbf16>, vector<8x256xf32> -> vector<8x256xf32>
    %31 = arith.addf %28, %30 : vector<8x256xf32>
    %c0_15 = arith.constant 0 : index
    %c0_16 = arith.constant 0 : index
    %32 = vector.load %arg9[%c0_15, %c0_16] : memref<8x256xf32, #tpu.memory_space<vmem>>, vector<8x256xf32>
    tpu.vector_store %arg9[%c0_15, %c0_16], %31 {strides = array<i32>} : memref<8x256xf32, #tpu.memory_space<vmem>>, vector<8x256xf32>,
    %c0_i32_17 = arith.constant 0 : i32
    %33 = arith.cmpi eq, %arg2, %c0_i32_17 : i32
    %34 = arith.extui %33 : i1 to i32
    %c0_i32_18 = arith.constant 0 : i32
    %35 = arith.cmpi ne, %34, %c0_i32_18 : i32
    scf.if %35 {
      %c0_19 = arith.constant 0 : index
      %c0_20 = arith.constant 0 : index
      %36 = vector.load %arg9[%c0_19, %c0_20] : memref<8x256xf32, #tpu.memory_space<vmem>>, vector<8x256xf32>
      %c0_21 = arith.constant 0 : index
      %c0_22 = arith.constant 0 : index
      %37 = vector.load %arg5[%c0_21, %c0_22] : memref<1x256xf32, #tpu.memory_space<vmem>>, vector<1x256xf32>
      %38 = vector.broadcast %37 : vector<1x256xf32> to vector<8x256xf32>
      %39 = arith.addf %36, %38 : vector<8x256xf32>
      %40 = arith.truncf %39 : vector<8x256xf32> to vector<8x256xbf16>
      %c0_23 = arith.constant 0 : index
      %c0_24 = arith.constant 0 : index
      %41 = vector.load %arg8[%c0_23, %c0_24] : memref<8x256xbf16, #tpu.memory_space<vmem>>, vector<8x256xbf16>
      tpu.vector_store %arg8[%c0_23, %c0_24], %40 {strides = array<i32>} : memref<8x256xbf16, #tpu.memory_space<vmem>>, vector<8x256xbf16>,
    } else {
    }
    return
  }
  func.func @transform_0(%arg0: i32, %arg1: i32, %arg2: i32) -> (i32, i32) {
    %c0_i32 = arith.constant 0 : i32
    return %arg0, %arg2 : i32, i32
  }
  func.func @transform_1(%arg0: i32, %arg1: i32, %arg2: i32) -> (i32, i32) {
    %c0_i32 = arith.constant 0 : i32
    return %arg2, %arg1 : i32, i32
  }
  func.func @transform_2(%arg0: i32, %arg1: i32, %arg2: i32) -> (i32, i32) {
    %c0_i32 = arith.constant 0 : i32
    %c0_i32_0 = arith.constant 0 : i32
    return %c0_i32, %arg1 : i32, i32
  }
  func.func @transform_3(%arg0: i32, %arg1: i32, %arg2: i32) -> (i32, i32) {
    %c0_i32 = arith.constant 0 : i32
    %c0_i32_0 = arith.constant 0 : i32
    %c0_i32_1 = arith.constant 0 : i32
    return %c0_i32, %c0_i32_0 : i32, i32
  }
  func.func @transform_4(%arg0: i32, %arg1: i32, %arg2: i32) -> (i32, i32) {
    %c0_i32 = arith.constant 0 : i32
    %c0_i32_0 = arith.constant 0 : i32
    %c0_i32_1 = arith.constant 0 : i32
    return %c0_i32, %c0_i32_0 : i32, i32
  }
  func.func @transform_5(%arg0: i32, %arg1: i32, %arg2: i32) -> (i32, i32) {
    %c0_i32 = arith.constant 0 : i32
    return %arg0, %arg1 : i32, i32
  }
}

module attributes {stable_mosaic.version = 11 : i64} {
  func.func @_cross_attn_kernel(%arg0: i32, %arg1: memref<1x8x128xbf16, #tpu.memory_space<vmem>>, %arg2: memref<1x4x256xbf16, #tpu.memory_space<vmem>>, %arg3: memref<1x8x128xbf16, #tpu.memory_space<vmem>>) attributes {dimension_semantics = [#tpu.dimension_semantics<parallel>], iteration_bounds = array<i64: 2>, scalar_prefetch = 0 : i64, scratch_operands = 0 : i64, tpu.core_type = #tpu.core_type<tc>, window_params = [{transform_indices = @transform_0, window_bounds = array<i64: 1, 8, 128>}, {transform_indices = @transform_1, window_bounds = array<i64: 1, 4, 256>}, {transform_indices = @transform_2, window_bounds = array<i64: 1, 8, 128>}]} {
    %c0 = arith.constant 0 : index
    %c0_0 = arith.constant 0 : index
    %c0_1 = arith.constant 0 : index
    %0 = vector.load %arg1[%c0, %c0_0, %c0_1] : memref<1x8x128xbf16, #tpu.memory_space<vmem>>, vector<1x8x128xbf16>
    %1 = vector.shape_cast %0 : vector<1x8x128xbf16> to vector<8x128xbf16>
    %c0_2 = arith.constant 0 : index
    %c0_3 = arith.constant 0 : index
    %c0_4 = arith.constant 0 : index
    %2 = vector.load %arg2[%c0_2, %c0_3, %c0_4] : memref<1x4x256xbf16, #tpu.memory_space<vmem>>, vector<1x4x256xbf16>
    %3 = vector.shape_cast %2 : vector<1x4x256xbf16> to vector<4x256xbf16>
    %4 = vector.extract_strided_slice %3 {offsets = [0, 0], sizes = [4, 128], strides = [1, 1]} : vector<4x256xbf16> to vector<4x128xbf16>
    %5 = vector.extract_strided_slice %3 {offsets = [0, 128], sizes = [4, 128], strides = [1, 1]} : vector<4x256xbf16> to vector<4x128xbf16>
    %cst = arith.constant 1.767580e-01 : bf16
    %6 = vector.broadcast %cst : bf16 to vector<8x128xbf16>
    %7 = arith.mulf %1, %6 : vector<8x128xbf16>
    %8 = vector.extract_strided_slice %7 {offsets = [0, 0], sizes = [8, 32], strides = [1, 1]} : vector<8x128xbf16> to vector<8x32xbf16>
    %9 = vector.extract_strided_slice %4 {offsets = [0, 0], sizes = [4, 32], strides = [1, 1]} : vector<4x128xbf16> to vector<4x32xbf16>
    %cst_5 = arith.constant dense<0.000000e+00> : vector<8x4xf32>
    %10 = tpu.matmul %8, %9, %cst_5 {dimension_numbers = #tpu.dot_dimension_numbers<[1], [1], [0], [0], [0, 0, 1, 0], [], []>} : vector<8x32xbf16>, vector<4x32xbf16>, vector<8x4xf32> -> vector<8x4xf32>
    %cst_6 = arith.constant dense<0xFF800000> : vector<8xf32>
    %11 = vector.multi_reduction <maximumf>, %10, %cst_6 [1] : vector<8x4xf32> to vector<8xf32>
    %12 = vector.shape_cast %11 : vector<8xf32> to vector<8x1xf32>
    %13 = vector.broadcast %12 : vector<8x1xf32> to vector<8x4xf32>
    %14 = arith.subf %10, %13 : vector<8x4xf32>
    %15 = math.exp %14 : vector<8x4xf32>
    %cst_7 = arith.constant dense<0.000000e+00> : vector<8xf32>
    %16 = vector.multi_reduction <add>, %15, %cst_7 [1] : vector<8x4xf32> to vector<8xf32>
    %17 = vector.shape_cast %16 : vector<8xf32> to vector<8x1xf32>
    %18 = tpu.reciprocal %17 {approx = true} : vector<8x1xf32> -> vector<8x1xf32>
    %19 = vector.broadcast %18 : vector<8x1xf32> to vector<8x4xf32>
    %20 = arith.mulf %15, %19 : vector<8x4xf32>
    %21 = arith.truncf %20 : vector<8x4xf32> to vector<8x4xbf16>
    %22 = vector.extract_strided_slice %5 {offsets = [0, 0], sizes = [4, 32], strides = [1, 1]} : vector<4x128xbf16> to vector<4x32xbf16>
    %cst_8 = arith.constant dense<0.000000e+00> : vector<8x32xf32>
    %23 = tpu.matmul %21, %22, %cst_8 {dimension_numbers = #tpu.dot_dimension_numbers<[1], [0], [0], [1], [0, 0, 1, 1], [], []>} : vector<8x4xbf16>, vector<4x32xbf16>, vector<8x32xf32> -> vector<8x32xf32>
    %24 = arith.truncf %23 : vector<8x32xf32> to vector<8x32xbf16>
    %c0_9 = arith.constant 0 : index
    %c0_10 = arith.constant 0 : index
    %c0_11 = arith.constant 0 : index
    %25 = vector.load %arg3[%c0_9, %c0_10, %c0_11] : memref<1x8x128xbf16, #tpu.memory_space<vmem>>, vector<1x8x32xbf16>
    %26 = vector.shape_cast %25 : vector<1x8x32xbf16> to vector<8x32xbf16>
    %27 = vector.shape_cast %24 : vector<8x32xbf16> to vector<1x8x32xbf16>
    tpu.vector_store %arg3[%c0_9, %c0_10, %c0_11], %27 {strides = array<i32>} : memref<1x8x128xbf16, #tpu.memory_space<vmem>>, vector<1x8x32xbf16>,
    %28 = vector.extract_strided_slice %7 {offsets = [0, 32], sizes = [8, 32], strides = [1, 1]} : vector<8x128xbf16> to vector<8x32xbf16>
    %29 = vector.extract_strided_slice %4 {offsets = [0, 32], sizes = [4, 32], strides = [1, 1]} : vector<4x128xbf16> to vector<4x32xbf16>
    %cst_12 = arith.constant dense<0.000000e+00> : vector<8x4xf32>
    %30 = tpu.matmul %28, %29, %cst_12 {dimension_numbers = #tpu.dot_dimension_numbers<[1], [1], [0], [0], [0, 0, 1, 0], [], []>} : vector<8x32xbf16>, vector<4x32xbf16>, vector<8x4xf32> -> vector<8x4xf32>
    %cst_13 = arith.constant dense<0xFF800000> : vector<8xf32>
    %31 = vector.multi_reduction <maximumf>, %30, %cst_13 [1] : vector<8x4xf32> to vector<8xf32>
    %32 = vector.shape_cast %31 : vector<8xf32> to vector<8x1xf32>
    %33 = vector.broadcast %32 : vector<8x1xf32> to vector<8x4xf32>
    %34 = arith.subf %30, %33 : vector<8x4xf32>
    %35 = math.exp %34 : vector<8x4xf32>
    %cst_14 = arith.constant dense<0.000000e+00> : vector<8xf32>
    %36 = vector.multi_reduction <add>, %35, %cst_14 [1] : vector<8x4xf32> to vector<8xf32>
    %37 = vector.shape_cast %36 : vector<8xf32> to vector<8x1xf32>
    %38 = tpu.reciprocal %37 {approx = true} : vector<8x1xf32> -> vector<8x1xf32>
    %39 = vector.broadcast %38 : vector<8x1xf32> to vector<8x4xf32>
    %40 = arith.mulf %35, %39 : vector<8x4xf32>
    %41 = arith.truncf %40 : vector<8x4xf32> to vector<8x4xbf16>
    %42 = vector.extract_strided_slice %5 {offsets = [0, 32], sizes = [4, 32], strides = [1, 1]} : vector<4x128xbf16> to vector<4x32xbf16>
    %cst_15 = arith.constant dense<0.000000e+00> : vector<8x32xf32>
    %43 = tpu.matmul %41, %42, %cst_15 {dimension_numbers = #tpu.dot_dimension_numbers<[1], [0], [0], [1], [0, 0, 1, 1], [], []>} : vector<8x4xbf16>, vector<4x32xbf16>, vector<8x32xf32> -> vector<8x32xf32>
    %44 = arith.truncf %43 : vector<8x32xf32> to vector<8x32xbf16>
    %c0_16 = arith.constant 0 : index
    %c0_17 = arith.constant 0 : index
    %c32 = arith.constant 32 : index
    %45 = vector.load %arg3[%c0_16, %c0_17, %c32] : memref<1x8x128xbf16, #tpu.memory_space<vmem>>, vector<1x8x32xbf16>
    %46 = vector.shape_cast %45 : vector<1x8x32xbf16> to vector<8x32xbf16>
    %47 = vector.shape_cast %44 : vector<8x32xbf16> to vector<1x8x32xbf16>
    tpu.vector_store %arg3[%c0_16, %c0_17, %c32], %47 {strides = array<i32>} : memref<1x8x128xbf16, #tpu.memory_space<vmem>>, vector<1x8x32xbf16>,
    %48 = vector.extract_strided_slice %7 {offsets = [0, 64], sizes = [8, 32], strides = [1, 1]} : vector<8x128xbf16> to vector<8x32xbf16>
    %49 = vector.extract_strided_slice %4 {offsets = [0, 64], sizes = [4, 32], strides = [1, 1]} : vector<4x128xbf16> to vector<4x32xbf16>
    %cst_18 = arith.constant dense<0.000000e+00> : vector<8x4xf32>
    %50 = tpu.matmul %48, %49, %cst_18 {dimension_numbers = #tpu.dot_dimension_numbers<[1], [1], [0], [0], [0, 0, 1, 0], [], []>} : vector<8x32xbf16>, vector<4x32xbf16>, vector<8x4xf32> -> vector<8x4xf32>
    %cst_19 = arith.constant dense<0xFF800000> : vector<8xf32>
    %51 = vector.multi_reduction <maximumf>, %50, %cst_19 [1] : vector<8x4xf32> to vector<8xf32>
    %52 = vector.shape_cast %51 : vector<8xf32> to vector<8x1xf32>
    %53 = vector.broadcast %52 : vector<8x1xf32> to vector<8x4xf32>
    %54 = arith.subf %50, %53 : vector<8x4xf32>
    %55 = math.exp %54 : vector<8x4xf32>
    %cst_20 = arith.constant dense<0.000000e+00> : vector<8xf32>
    %56 = vector.multi_reduction <add>, %55, %cst_20 [1] : vector<8x4xf32> to vector<8xf32>
    %57 = vector.shape_cast %56 : vector<8xf32> to vector<8x1xf32>
    %58 = tpu.reciprocal %57 {approx = true} : vector<8x1xf32> -> vector<8x1xf32>
    %59 = vector.broadcast %58 : vector<8x1xf32> to vector<8x4xf32>
    %60 = arith.mulf %55, %59 : vector<8x4xf32>
    %61 = arith.truncf %60 : vector<8x4xf32> to vector<8x4xbf16>
    %62 = vector.extract_strided_slice %5 {offsets = [0, 64], sizes = [4, 32], strides = [1, 1]} : vector<4x128xbf16> to vector<4x32xbf16>
    %cst_21 = arith.constant dense<0.000000e+00> : vector<8x32xf32>
    %63 = tpu.matmul %61, %62, %cst_21 {dimension_numbers = #tpu.dot_dimension_numbers<[1], [0], [0], [1], [0, 0, 1, 1], [], []>} : vector<8x4xbf16>, vector<4x32xbf16>, vector<8x32xf32> -> vector<8x32xf32>
    %64 = arith.truncf %63 : vector<8x32xf32> to vector<8x32xbf16>
    %c0_22 = arith.constant 0 : index
    %c0_23 = arith.constant 0 : index
    %c64 = arith.constant 64 : index
    %65 = vector.load %arg3[%c0_22, %c0_23, %c64] : memref<1x8x128xbf16, #tpu.memory_space<vmem>>, vector<1x8x32xbf16>
    %66 = vector.shape_cast %65 : vector<1x8x32xbf16> to vector<8x32xbf16>
    %67 = vector.shape_cast %64 : vector<8x32xbf16> to vector<1x8x32xbf16>
    tpu.vector_store %arg3[%c0_22, %c0_23, %c64], %67 {strides = array<i32>} : memref<1x8x128xbf16, #tpu.memory_space<vmem>>, vector<1x8x32xbf16>,
    %68 = vector.extract_strided_slice %7 {offsets = [0, 96], sizes = [8, 32], strides = [1, 1]} : vector<8x128xbf16> to vector<8x32xbf16>
    %69 = vector.extract_strided_slice %4 {offsets = [0, 96], sizes = [4, 32], strides = [1, 1]} : vector<4x128xbf16> to vector<4x32xbf16>
    %cst_24 = arith.constant dense<0.000000e+00> : vector<8x4xf32>
    %70 = tpu.matmul %68, %69, %cst_24 {dimension_numbers = #tpu.dot_dimension_numbers<[1], [1], [0], [0], [0, 0, 1, 0], [], []>} : vector<8x32xbf16>, vector<4x32xbf16>, vector<8x4xf32> -> vector<8x4xf32>
    %cst_25 = arith.constant dense<0xFF800000> : vector<8xf32>
    %71 = vector.multi_reduction <maximumf>, %70, %cst_25 [1] : vector<8x4xf32> to vector<8xf32>
    %72 = vector.shape_cast %71 : vector<8xf32> to vector<8x1xf32>
    %73 = vector.broadcast %72 : vector<8x1xf32> to vector<8x4xf32>
    %74 = arith.subf %70, %73 : vector<8x4xf32>
    %75 = math.exp %74 : vector<8x4xf32>
    %cst_26 = arith.constant dense<0.000000e+00> : vector<8xf32>
    %76 = vector.multi_reduction <add>, %75, %cst_26 [1] : vector<8x4xf32> to vector<8xf32>
    %77 = vector.shape_cast %76 : vector<8xf32> to vector<8x1xf32>
    %78 = tpu.reciprocal %77 {approx = true} : vector<8x1xf32> -> vector<8x1xf32>
    %79 = vector.broadcast %78 : vector<8x1xf32> to vector<8x4xf32>
    %80 = arith.mulf %75, %79 : vector<8x4xf32>
    %81 = arith.truncf %80 : vector<8x4xf32> to vector<8x4xbf16>
    %82 = vector.extract_strided_slice %5 {offsets = [0, 96], sizes = [4, 32], strides = [1, 1]} : vector<4x128xbf16> to vector<4x32xbf16>
    %cst_27 = arith.constant dense<0.000000e+00> : vector<8x32xf32>
    %83 = tpu.matmul %81, %82, %cst_27 {dimension_numbers = #tpu.dot_dimension_numbers<[1], [0], [0], [1], [0, 0, 1, 1], [], []>} : vector<8x4xbf16>, vector<4x32xbf16>, vector<8x32xf32> -> vector<8x32xf32>
    %84 = arith.truncf %83 : vector<8x32xf32> to vector<8x32xbf16>
    %c0_28 = arith.constant 0 : index
    %c0_29 = arith.constant 0 : index
    %c96 = arith.constant 96 : index
    %85 = vector.load %arg3[%c0_28, %c0_29, %c96] : memref<1x8x128xbf16, #tpu.memory_space<vmem>>, vector<1x8x32xbf16>
    %86 = vector.shape_cast %85 : vector<1x8x32xbf16> to vector<8x32xbf16>
    %87 = vector.shape_cast %84 : vector<8x32xbf16> to vector<1x8x32xbf16>
    tpu.vector_store %arg3[%c0_28, %c0_29, %c96], %87 {strides = array<i32>} : memref<1x8x128xbf16, #tpu.memory_space<vmem>>, vector<1x8x32xbf16>,
    return
  }
  func.func @transform_0(%arg0: i32) -> (i32, i32, i32) {
    %c0_i32 = arith.constant 0 : i32
    %c0_i32_0 = arith.constant 0 : i32
    %c0_i32_1 = arith.constant 0 : i32
    return %arg0, %c0_i32, %c0_i32_0 : i32, i32, i32
  }
  func.func @transform_1(%arg0: i32) -> (i32, i32, i32) {
    %c0_i32 = arith.constant 0 : i32
    %c0_i32_0 = arith.constant 0 : i32
    %c0_i32_1 = arith.constant 0 : i32
    return %arg0, %c0_i32, %c0_i32_0 : i32, i32, i32
  }
  func.func @transform_2(%arg0: i32) -> (i32, i32, i32) {
    %c0_i32 = arith.constant 0 : i32
    %c0_i32_0 = arith.constant 0 : i32
    %c0_i32_1 = arith.constant 0 : i32
    return %arg0, %c0_i32, %c0_i32_0 : i32, i32, i32
  }
}

module attributes {stable_mosaic.version = 11 : i64} {
  func.func @_fused_linear_kernel(%arg0: i32, %arg1: i32, %arg2: i32, %arg3: memref<16x128xbf16, #tpu.memory_space<vmem>>, %arg4: memref<128x128xbf16, #tpu.memory_space<vmem>>, %arg5: memref<1x128xf32, #tpu.memory_space<vmem>>, %arg6: memref<16x128xf32, #tpu.memory_space<vmem>>, %arg7: memref<16x128xf32, #tpu.memory_space<vmem>>) attributes {dimension_semantics = [#tpu.dimension_semantics<parallel>, #tpu.dimension_semantics<parallel>, #tpu.dimension_semantics<arbitrary>], iteration_bounds = array<i64: 1, 3, 1>, scalar_prefetch = 0 : i64, scratch_operands = 1 : i64, tpu.core_type = #tpu.core_type<tc>, window_params = [{transform_indices = @transform_0, window_bounds = array<i64: 16, 128>}, {transform_indices = @transform_1, window_bounds = array<i64: 128, 128>}, {transform_indices = @transform_2, window_bounds = array<i64: 1, 128>}, {transform_indices = @transform_3, window_bounds = array<i64: 16, 128>}]} {
    %c0_i32 = arith.constant 0 : i32
    %0 = arith.cmpi eq, %arg2, %c0_i32 : i32
    %1 = arith.extui %0 : i1 to i32
    %c0_i32_0 = arith.constant 0 : i32
    %2 = arith.cmpi ne, %1, %c0_i32_0 : i32
    scf.if %2 {
      %cst_10 = arith.constant 0.000000e+00 : f32
      %12 = vector.broadcast %cst_10 : f32 to vector<16x128xf32>
      %c0_11 = arith.constant 0 : index
      %c0_12 = arith.constant 0 : index
      %13 = vector.load %arg7[%c0_11, %c0_12] : memref<16x128xf32, #tpu.memory_space<vmem>>, vector<16x128xf32>
      tpu.vector_store %arg7[%c0_11, %c0_12], %12 {strides = array<i32>} : memref<16x128xf32, #tpu.memory_space<vmem>>, vector<16x128xf32>,
    } else {
    }
    %c0 = arith.constant 0 : index
    %c0_1 = arith.constant 0 : index
    %3 = vector.load %arg3[%c0, %c0_1] : memref<16x128xbf16, #tpu.memory_space<vmem>>, vector<16x128xbf16>
    %c0_2 = arith.constant 0 : index
    %c0_3 = arith.constant 0 : index
    %4 = vector.load %arg7[%c0_2, %c0_3] : memref<16x128xf32, #tpu.memory_space<vmem>>, vector<16x128xf32>
    %c0_4 = arith.constant 0 : index
    %c0_5 = arith.constant 0 : index
    %5 = vector.load %arg4[%c0_4, %c0_5] : memref<128x128xbf16, #tpu.memory_space<vmem>>, vector<128x128xbf16>
    %cst = arith.constant dense<0.000000e+00> : vector<16x128xf32>
    %6 = tpu.matmul %3, %5, %cst {dimension_numbers = #tpu.dot_dimension_numbers<[1], [0], [0], [1], [0, 0, 1, 1], [], []>} : vector<16x128xbf16>, vector<128x128xbf16>, vector<16x128xf32> -> vector<16x128xf32>
    %7 = arith.addf %4, %6 : vector<16x128xf32>
    %c0_6 = arith.constant 0 : index
    %c0_7 = arith.constant 0 : index
    %8 = vector.load %arg7[%c0_6, %c0_7] : memref<16x128xf32, #tpu.memory_space<vmem>>, vector<16x128xf32>
    tpu.vector_store %arg7[%c0_6, %c0_7], %7 {strides = array<i32>} : memref<16x128xf32, #tpu.memory_space<vmem>>, vector<16x128xf32>,
    %c0_i32_8 = arith.constant 0 : i32
    %9 = arith.cmpi eq, %arg2, %c0_i32_8 : i32
    %10 = arith.extui %9 : i1 to i32
    %c0_i32_9 = arith.constant 0 : i32
    %11 = arith.cmpi ne, %10, %c0_i32_9 : i32
    scf.if %11 {
      %c0_10 = arith.constant 0 : index
      %c0_11 = arith.constant 0 : index
      %12 = vector.load %arg7[%c0_10, %c0_11] : memref<16x128xf32, #tpu.memory_space<vmem>>, vector<16x128xf32>
      %c0_12 = arith.constant 0 : index
      %c0_13 = arith.constant 0 : index
      %13 = vector.load %arg5[%c0_12, %c0_13] : memref<1x128xf32, #tpu.memory_space<vmem>>, vector<1x128xf32>
      %14 = vector.broadcast %13 : vector<1x128xf32> to vector<16x128xf32>
      %15 = arith.addf %12, %14 : vector<16x128xf32>
      %c0_14 = arith.constant 0 : index
      %c0_15 = arith.constant 0 : index
      %16 = vector.load %arg6[%c0_14, %c0_15] : memref<16x128xf32, #tpu.memory_space<vmem>>, vector<16x128xf32>
      tpu.vector_store %arg6[%c0_14, %c0_15], %15 {strides = array<i32>} : memref<16x128xf32, #tpu.memory_space<vmem>>, vector<16x128xf32>,
    } else {
    }
    return
  }
  func.func @transform_0(%arg0: i32, %arg1: i32, %arg2: i32) -> (i32, i32) {
    %c0_i32 = arith.constant 0 : i32
    return %arg0, %arg2 : i32, i32
  }
  func.func @transform_1(%arg0: i32, %arg1: i32, %arg2: i32) -> (i32, i32) {
    %c0_i32 = arith.constant 0 : i32
    return %arg2, %arg1 : i32, i32
  }
  func.func @transform_2(%arg0: i32, %arg1: i32, %arg2: i32) -> (i32, i32) {
    %c0_i32 = arith.constant 0 : i32
    %c0_i32_0 = arith.constant 0 : i32
    return %c0_i32, %arg1 : i32, i32
  }
  func.func @transform_3(%arg0: i32, %arg1: i32, %arg2: i32) -> (i32, i32) {
    %c0_i32 = arith.constant 0 : i32
    return %arg0, %arg1 : i32, i32
  }
}

</mosaic_0001>

<llo_original>
// kernel: ar_straighter_forward.28
$region0: #{ar_straighter_forward.28}
  #allocation0 [shape = 'u32[]', space=smem, size = 0x4, offset = 0x4, fixed_abs, tag = 'smem constant byte address 0x4 - core index']
  #allocation1 [shape = 'u32[72,128]{1,0:T(1,128)}', space=vmem, size = 0x9000, scoped, tag = 'internal scratch']
  #allocation2 [shape = 'f32[16,128]{1,0:T(8,128)}', space=vmem, size = 0x2000, scoped, tag = 'scratch operand']
  %s0 = inlined_call_operand.vmem [shape: bf16[16,128], index: 0, kind: input, shape index: {}]
  %s1 = inlined_call_operand.hbm [shape: bf16[128,128], index: 1, kind: input, shape index: {}]
  %s2 = inlined_call_operand.vmem [shape: f32[1,128], index: 2, kind: input, shape index: {}]
  %s3 = inlined_call_operand.vmem [shape: bf16[16,128], index: 3, kind: output, shape index: {}]
  %s4 = sld [smem:[#allocation0]]
  $region34: #{ar_straighter_forward.28} parent=0
    _
  %s6 = ssub.s32 1, %s4
  %s7 = scalar_select 0, %s6, %s4
  $region1: #{ar_straighter_forward.28} parent=0
    #allocation3 [shape = 'u8[32768]{0}', space=vmem, size = 0x8000, scoped, tag = 'input window, operand 1, single buffered']
    #allocation4 [shape = 's32[1]{0}', space=sflag, size = 0x4, scoped, tag = 'scoped memory for ar_straighter_forward.28']
    %8 = vsyncpa [#allocation4], 0
    // Predicated region
    $region2: #{ar_straighter_forward.28} parent=1 // pred_check
      _
    $region3: #{ar_straighter_forward.28} parent=1 // pred_check_branch
      %10 = sbr.rel (0) target = $region5
    $region4: #{ar_straighter_forward.28} parent=1 // pred_region
      _
    $region5: #{ar_straighter_forward.28} parent=1 // pred_fallthru
      _
    // Predicated region
    $region6: #{ar_straighter_forward.28} parent=1 // pred_check
      _
    $region7: #{ar_straighter_forward.28} parent=1 // pred_check_branch
      %12 = sbr.rel (0) target = $region9
    $region8: #{ar_straighter_forward.28} parent=1 // pred_region
      %14 = vsyncadd [#allocation4], 0
      %s15 = sshll.u32 %s1, 4
      %s16 = int_to_ptr.hbm [resolvable:$true] %s15
      %s17 = sshll.u32 [#allocation3], 4
      %s18 = int_to_ptr.vmem [resolvable:$true] %s17
      %23 = dma.hbm_to_vmem [thread:$0]  %s16, 1024, %s18, [#allocation4], 64, 64, 4
    $region9: #{ar_straighter_forward.28} parent=1 // pred_fallthru
      _
    // Predicated region
    $region10: #{ar_straighter_forward.28} parent=1 // pred_check
      _
    $region11: #{ar_straighter_forward.28} parent=1 // pred_check_branch
      %25 = sbr.rel (0) target = $region13
    $region12: #{ar_straighter_forward.28} parent=1 // pred_region
      _
    $region13: #{ar_straighter_forward.28} parent=1 // pred_fallthru
      _
    // Predicated region
    $region14: #{ar_straighter_forward.28} parent=1 // pred_check
      _
    $region15: #{ar_straighter_forward.28} parent=1 // pred_check_branch
      %27 = sbr.rel (0) target = $region17
    $region16: #{ar_straighter_forward.28} parent=1 // pred_region
      %29 = dma.done [#allocation4], 1024
    $region17: #{ar_straighter_forward.28} parent=1 // pred_fallthru
      _
    %p30 = scmp.eq.s32.totalorder 0, 0
    // Predicated region
    $region18: #{ar_straighter_forward.28} parent=1 // pred_check
      %p31 = pneg %p30
    $region19: #{ar_straighter_forward.28} parent=1 // pred_check_branch
      %33 = sbr.rel (%p31) target = $region21
    $region20: #{ar_straighter_forward.28} parent=1 // pred_region
      %34 = vst [vmem:[#allocation2] sm:$0xff] 0.0
      %35 = vst [vmem:[#allocation2 + $0x8] sm:$0xff] 0.0
    $region21: #{ar_straighter_forward.28} parent=1 // pred_fallthru
      _
    %v36 = vld [vmem:[%s0] sm:$0xf]
    %v37 = vld [vmem:[%s0 + $0x4] sm:$0xf]
    %v38 = vld [vmem:[#allocation2] sm:$0xff]
    %v39 = vld [vmem:[#allocation2 + $0x8] sm:$0xff]
    %v40 = vld [vmem:[#allocation3] sm:$0xf]
    %v41 = vld [vmem:[#allocation3 + $0x4] sm:$0xf]
    %v42 = vld [vmem:[#allocation3 + $0x8] sm:$0xf]
    %v43 = vld [vmem:[#allocation3 + $0xc] sm:$0xf]
    %v44 = vld [vmem:[#allocation3 + $0x10] sm:$0xf]
    %v45 = vld [vmem:[#allocation3 + $0x14] sm:$0xf]
    %v46 = vld [vmem:[#allocation3 + $0x18] sm:$0xf]
    %v47 = vld [vmem:[#allocation3 + $0x1c] sm:$0xf]
    %v48 = vld [vmem:[#allocation3 + $0x20] sm:$0xf]
    %v49 = vld [vmem:[#allocation3 + $0x24] sm:$0xf]
    %v50 = vld [vmem:[#allocation3 + $0x28] sm:$0xf]
    %v51 = vld [vmem:[#allocation3 + $0x2c] sm:$0xf]
    %v52 = vld [vmem:[#allocation3 + $0x30] sm:$0xf]
    %v53 = vld [vmem:[#allocation3 + $0x34] sm:$0xf]
    %v54 = vld [vmem:[#allocation3 + $0x38] sm:$0xf]
    %v55 = vld [vmem:[#allocation3 + $0x3c] sm:$0xf]
    %v58 = vunpack.c.l.b16 %v36
    %v59 = vunpack.c.l.b16 %v37
    %v60 = vpack.c.b16 %v59, %v58
    %v78 = vunpack.c.l.b16 %v40
    %v79 = vunpack.c.l.b16 %v41
    %v80 = vunpack.c.l.b16 %v42
    %v81 = vunpack.c.l.b16 %v43
    %v82 = vunpack.c.l.b16 %v44
    %v83 = vunpack.c.l.b16 %v45
    %v84 = vunpack.c.l.b16 %v46
    %v85 = vunpack.c.l.b16 %v47
    %v86 = vunpack.c.l.b16 %v48
    %v87 = vunpack.c.l.b16 %v49
    %v88 = vunpack.c.l.b16 %v50
    %v89 = vunpack.c.l.b16 %v51
    %v90 = vunpack.c.l.b16 %v52
    %v91 = vunpack.c.l.b16 %v53
    %v92 = vunpack.c.l.b16 %v54
    %v93 = vunpack.c.l.b16 %v55
    %v94 = vpack.c.b16 %v79, %v78
    %v95 = vpack.c.b16 %v81, %v80
    %v96 = vpack.c.b16 %v83, %v82
    %v97 = vpack.c.b16 %v85, %v84
    %v98 = vpack.c.b16 %v87, %v86
    %v99 = vpack.c.b16 %v89, %v88
    %v100 = vpack.c.b16 %v91, %v90
    %v101 = vpack.c.b16 %v93, %v92
    %110 = vmatpush.bf16.msra.mxu0 %v101
    %111 = vmatpush.bf16.msra.mxu0 %v100
    %112 = vmatpush.bf16.msra.mxu0 %v99
    %113 = vmatpush.bf16.msra.mxu0 %v98
    %114 = vmatpush.bf16.msra.mxu0 %v97
    %115 = vmatpush.bf16.msra.mxu0 %v96
    %116 = vmatpush.bf16.msra.mxu0 %v95
    %117 = vmatpush.bf16.msra.mxu0 %v94
    %118 = vmatmul.bf16.gmra.mxu0 %v60
    %v119 = vpop.f32.mrf.mxu0
    %v120 = vadd.f32 0.0, %v119
    %v121 = vpop.f32.mrf.mxu0
    %v122 = vadd.f32 0.0, %v121
    %123 = vdwg.mxu0
    %v124 = vadd.f32 %v38, %v120
    %v125 = vadd.f32 %v39, %v122
    %126 = vst [vmem:[#allocation2] sm:$0xff] %v124
    %127 = vst [vmem:[#allocation2 + $0x8] sm:$0xff] %v125
    // Predicated region
    $region22: #{ar_straighter_forward.28} parent=1 // pred_check
      %p128 = pneg %p30
    $region23: #{ar_straighter_forward.28} parent=1 // pred_check_branch
      %130 = sbr.rel (%p128) target = $region25
    $region24: #{ar_straighter_forward.28} parent=1 // pred_region
      %v131 = vld [vmem:[#allocation2] sm:$0xff]
      %v132 = vld [vmem:[#allocation2 + $0x8] sm:$0xff]
      %v133 = vld [vmem:[%s2] sm:$0x1]
      %v135 = vperm.slane %v133, 0
      %v137 = vadd.f32 %v131, %v135
      %v138 = vadd.f32 %v132, %v135
      %v139 = vpack.c.bf16 %v137, %v137
      %v140 = vpack.c.bf16 %v138, %v138
      %141 = vst [vmem:[%s3] sm:$0xf] %v139
      %142 = vst [vmem:[%s3 + $0x4] sm:$0xf] %v140
    $region25: #{ar_straighter_forward.28} parent=1 // pred_fallthru
      _
    // Predicated region
    $region26: #{ar_straighter_forward.28} parent=1 // pred_check
      _
    $region27: #{ar_straighter_forward.28} parent=1 // pred_check_branch
      %144 = sbr.rel (0) target = $region29
    $region28: #{ar_straighter_forward.28} parent=1 // pred_region
      _
    $region29: #{ar_straighter_forward.28} parent=1 // pred_fallthru
      _
    // Predicated region
    $region30: #{ar_straighter_forward.28} parent=1 // pred_check
      _
    $region31: #{ar_straighter_forward.28} parent=1 // pred_check_branch
      %146 = sbr.rel (0) target = $region33
    $region32: #{ar_straighter_forward.28} parent=1 // pred_region
      _
    $region33: #{ar_straighter_forward.28} parent=1 // pred_fallthru
      _
    %147 = vsyncpa [#allocation4], 1

// kernel: ar_straighter_forward.27
$region0: #{ar_straighter_forward.27}
  #allocation0 [shape = 'u32[]', space=smem, size = 0x4, offset = 0x4, fixed_abs, tag = 'smem constant byte address 0x4 - core index']
  #allocation1 [shape = 'u32[72,128]{1,0:T(1,128)}', space=vmem, size = 0x9000, scoped, tag = 'internal scratch']
  #allocation2 [shape = 'f32[16,128]{1,0:T(8,128)}', space=vmem, size = 0x2000, scoped, tag = 'scratch operand']
  %s0 = inlined_call_operand.vmem [shape: bf16[16,1], index: 0, kind: input, shape index: {}]
  %s1 = inlined_call_operand.vmem [shape: bf16[1,128], index: 1, kind: input, shape index: {}]
  %s2 = inlined_call_operand.vmem [shape: f32[1,128], index: 2, kind: input, shape index: {}]
  %s3 = inlined_call_operand.vmem [shape: bf16[16,128], index: 3, kind: output, shape index: {}]
  %s4 = sld [smem:[#allocation0]]
  $region30: #{ar_straighter_forward.27} parent=0
    _
  %s6 = ssub.s32 1, %s4
  %s7 = scalar_select 0, %s6, %s4
  // Predicated region
  $region2: #{ar_straighter_forward.27} parent=0 // pred_check
    _
  $region3: #{ar_straighter_forward.27} parent=0 // pred_check_branch
    %9 = sbr.rel (0) target = $region5
  $region4: #{ar_straighter_forward.27} parent=0 // pred_region
    _
  $region5: #{ar_straighter_forward.27} parent=0 // pred_fallthru
    _
  // Predicated region
  $region6: #{ar_straighter_forward.27} parent=0 // pred_check
    _
  $region7: #{ar_straighter_forward.27} parent=0 // pred_check_branch
    %11 = sbr.rel (0) target = $region9
  $region8: #{ar_straighter_forward.27} parent=0 // pred_region
    _
  $region9: #{ar_straighter_forward.27} parent=0 // pred_fallthru
    _
  // Predicated region
  $region10: #{ar_straighter_forward.27} parent=0 // pred_check
    _
  $region11: #{ar_straighter_forward.27} parent=0 // pred_check_branch
    %13 = sbr.rel (0) target = $region13
  $region12: #{ar_straighter_forward.27} parent=0 // pred_region
    _
  $region13: #{ar_straighter_forward.27} parent=0 // pred_fallthru
    _
  %p15 = scmp.eq.s32.totalorder 0, 0
  // Predicated region
  $region14: #{ar_straighter_forward.27} parent=0 // pred_check
    %p16 = pneg %p15
  $region15: #{ar_straighter_forward.27} parent=0 // pred_check_branch
    %18 = sbr.rel (%p16) target = $region17
  $region16: #{ar_straighter_forward.27} parent=0 // pred_region
    %19 = vst [vmem:[#allocation2] sm:$0xff] 0.0
    %20 = vst [vmem:[#allocation2 + $0x8] sm:$0xff] 0.0
  $region17: #{ar_straighter_forward.27} parent=0 // pred_fallthru
    _
  %v21 = vld [vmem:[%s0] sm:$0xf]
  %v22 = vld [vmem:[%s0 + $0x4] sm:$0xf]
  %v23 = vld [vmem:[#allocation2] sm:$0xff]
  %v24 = vld [vmem:[#allocation2 + $0x8] sm:$0xff]
  %v25 = vld [vmem:[%s1] sm:$0x1]
  %v28 = vunpack.c.l.b16 %v21
  %v29 = vunpack.c.l.b16 %v22
  %v30 = vpack.c.b16 %v29, %v28
  %vm31 = vcmask 7168
  %v33 = vsel %vm31, %v30, 0
  %vm35 = vcmask 1040384
  %v36 = vsel 0, 4294967295, 65535
  %v37 = vsel %vm35, %v36, 0
  %v39 = vand.u32 %v25, %v37
  %41 = vmatpush.bf16.msra.mxu0 0
  %42 = vmatpush.bf16.msra.mxu0 0
  %43 = vmatpush.bf16.msra.mxu0 0
  %44 = vmatpush.bf16.msra.mxu0 0
  %45 = vmatpush.bf16.msra.mxu0 0
  %46 = vmatpush.bf16.msra.mxu0 0
  %47 = vmatpush.bf16.msra.mxu0 0
  %48 = vmatpush.bf16.msra.mxu0 %v39
  %49 = vmatmul.bf16.gmra.mxu0 %v33
  %v50 = vpop.f32.mrf.mxu0
  %v51 = vadd.f32 0.0, %v50
  %v52 = vpop.f32.mrf.mxu0
  %v53 = vadd.f32 0.0, %v52
  %54 = vdwg.mxu0
  %v55 = vadd.f32 %v23, %v51
  %v56 = vadd.f32 %v24, %v53
  %57 = vst [vmem:[#allocation2] sm:$0xff] %v55
  %58 = vst [vmem:[#allocation2 + $0x8] sm:$0xff] %v56
  // Predicated region
  $region18: #{ar_straighter_forward.27} parent=0 // pred_check
    %p59 = pneg %p15
  $region19: #{ar_straighter_forward.27} parent=0 // pred_check_branch
    %61 = sbr.rel (%p59) target = $region21
  $region20: #{ar_straighter_forward.27} parent=0 // pred_region
    %v62 = vld [vmem:[#allocation2] sm:$0xff]
    %v63 = vld [vmem:[#allocation2 + $0x8] sm:$0xff]
    %v64 = vld [vmem:[%s2] sm:$0x1]
    %v66 = vperm.slane %v64, 0
    %v68 = vadd.f32 %v62, %v66
    %v69 = vadd.f32 %v63, %v66
    %v70 = vxor.u32 %v68, 2147483648
    %v71 = vxor.u32 %v69, 2147483648
    %v72 = vmul.f32 %v70, 1.442695
    %v73 = vpow.pop %v72
    %v74 = vmul.f32 %v71, 1.442695
    %v75 = vpow.pop %v74
    %v76 = vadd.f32 %v73, 1.0
    %v77 = vadd.f32 %v75, 1.0
    %v78 = vrcp.pop %v76
    %v79 = vmul.f32 %v76, %v78
    %v80 = vsub.f32 1.0, %v79
    %v81 = vmul.f32 %v78, %v80
    %v82 = vadd.f32 %v78, %v81
    %vm83 = vweird.f32 %v76
    %vm84 = vweird.f32 %v78
    %vm85 = vmor %vm83, %vm84
    %v86 = vsel %vm85, %v78, %v82
    %v87 = vand.u32 2147483647, %v76
    %vm88 = vcmp.eq.f32.partialorder %v87, 8.507059e+37
    %v89 = vand.u32 %v76, 2147483648
    %v90 = vor.u32 1.1754944e-38, %v89
    %v91 = vsel %vm88, %v90, %v86
    %v92 = vmul.f32 1.0, %v91
    %v93 = vrcp.pop %v77
    %v94 = vmul.f32 %v77, %v93
    %v95 = vsub.f32 1.0, %v94
    %v96 = vmul.f32 %v93, %v95
    %v97 = vadd.f32 %v93, %v96
    %vm98 = vweird.f32 %v77
    %vm99 = vweird.f32 %v93
    %vm100 = vmor %vm98, %vm99
    %v101 = vsel %vm100, %v93, %v97
    %v102 = vand.u32 2147483647, %v77
    %vm103 = vcmp.eq.f32.partialorder %v102, 8.507059e+37
    %v104 = vand.u32 %v77, 2147483648
    %v105 = vor.u32 1.1754944e-38, %v104
    %v106 = vsel %vm103, %v105, %v101
    %v107 = vmul.f32 1.0, %v106
    %v108 = vmul.f32 %v68, %v92
    %v109 = vmul.f32 %v69, %v107
    %v110 = vpack.c.bf16 %v108, %v108
    %v111 = vpack.c.bf16 %v109, %v109
    %112 = vst [vmem:[%s3] sm:$0xf] %v110
    %113 = vst [vmem:[%s3 + $0x4] sm:$0xf] %v111
  $region21: #{ar_straighter_forward.27} parent=0 // pred_fallthru
    _
  // Predicated region
  $region22: #{ar_straighter_forward.27} parent=0 // pred_check
    _
  $region23: #{ar_straighter_forward.27} parent=0 // pred_check_branch
    %115 = sbr.rel (0) target = $region25
  $region24: #{ar_straighter_forward.27} parent=0 // pred_region
    _
  $region25: #{ar_straighter_forward.27} parent=0 // pred_fallthru
    _
  // Predicated region
  $region26: #{ar_straighter_forward.27} parent=0 // pred_check
    _
  $region27: #{ar_straighter_forward.27} parent=0 // pred_check_branch
    %117 = sbr.rel (0) target = $region29
  $region28: #{ar_straighter_forward.27} parent=0 // pred_region
    _
  $region29: #{ar_straighter_forward.27} parent=0 // pred_fallthru
    _

// kernel: ar_straighter_forward.32
$region0: #{ar_straighter_forward.32}
  #allocation0 [shape = 'u32[]', space=smem, size = 0x4, offset = 0x4, fixed_abs, tag = 'smem constant byte address 0x4 - core index']
  #allocation1 [shape = 'u32[72,128]{1,0:T(1,128)}', space=vmem, size = 0x9000, scoped, tag = 'internal scratch']
  %s0 = inlined_call_operand.vmem [shape: bf16[2,8,384], index: 0, kind: input, shape index: {}]
  %s1 = inlined_call_operand.vmem [shape: bf16[2,8,128], index: 1, kind: output, shape index: {}]
  %s2 = sld [smem:[#allocation0]]
  $region37: #{ar_straighter_forward.32} parent=0
    _
  %s4 = ssub.s32 1, %s2
  %s5 = scalar_select 0, %s4, %s2
  loop: start=0, step=1, limit=4
  $region2: #{ar_straighter_forward.32} parent=0 // loop_pre_header
    _
  $region3: #{ar_straighter_forward.32} parent=0 // loop_header
    %s7 = sphi 0, %s11
    %p8 = scmp.ge.s32.totalorder %s7, 4
    %s17 = sphi 0, %s19
    %s20 = sphi 0, %s17
    %s21 = sphi 0, %s20
    %s37 = sphi 0, %s21
    %s43 = sphi 0, %s45
    %s46 = sphi 0, %s43
    %s47 = sphi 0, %s46
    %s63 = sphi 0, %s47
  $region4: #{ar_straighter_forward.32} parent=0 // loop_header_branch
    %10 = sbr.rel (%p8) target = $region8
  $region5: #{ar_straighter_forward.32} parent=0 // loop_body
    %s12 = ssub.s32 %s7, 1
    %s13 = ssub.s32 %s7, 2
    %s14 = sadd.s32 %s7, 1
    %s15 = ssub.s32 %s7, %s14
    %p16 = scmp.eq.s32.totalorder %s15, 0
    %s18 = sadd.s32 %s17, 1
    %s19 = scalar_select %p16, %s17, %s18
    %p22 = pneg %p16
    %p23 = scmp.eq.s32.totalorder %s7, 1
    %p24 = por %p22, %p23
    %p25 = scmp.ne.s32.totalorder %s17, %s20
    %p26 = scmp.eq.s32.totalorder %s7, 0
    %p27 = por %p25, %p26
    %p28 = scmp.ne.s32.totalorder %s17, %s20
    %p29 = scmp.eq.s32.totalorder %s12, 1
    %p30 = por %p28, %p29
    %p31 = scmp.ne.s32.totalorder %s20, %s21
    %p32 = scmp.eq.s32.totalorder %s12, 0
    %p33 = por %p31, %p32
    %p34 = scmp.ne.s32.totalorder %s20, %s21
    %p35 = scmp.eq.s32.totalorder %s13, 1
    %p36 = por %p34, %p35
    %p38 = scmp.ne.s32.totalorder %s21, %s37
    %p39 = scmp.eq.s32.totalorder %s13, 0
    %p40 = por %p38, %p39
    %s41 = ssub.s32 %s7, %s14
    %p42 = scmp.eq.s32.totalorder %s41, 0
    %s44 = sadd.s32 %s43, 1
    %s45 = scalar_select %p42, %s43, %s44
    %p48 = pneg %p42
    %p49 = scmp.eq.s32.totalorder %s7, 1
    %p50 = por %p48, %p49
    %p51 = scmp.ne.s32.totalorder %s43, %s46
    %p52 = scmp.eq.s32.totalorder %s7, 0
    %p53 = por %p51, %p52
    %p54 = scmp.ne.s32.totalorder %s43, %s46
    %p55 = scmp.eq.s32.totalorder %s12, 1
    %p56 = por %p54, %p55
    %p57 = scmp.ne.s32.totalorder %s46, %s47
    %p58 = scmp.eq.s32.totalorder %s12, 0
    %p59 = por %p57, %p58
    %p60 = scmp.ne.s32.totalorder %s46, %s47
    %p61 = scmp.eq.s32.totalorder %s13, 1
    %p62 = por %p60, %p61
    %p64 = scmp.ne.s32.totalorder %s47, %s63
    %p65 = scmp.eq.s32.totalorder %s13, 0
    %p66 = por %p64, %p65
    %p67 = scmp.le.s32.totalorder 1, %s7
    %p68 = scmp.lt.s32.totalorder %s7, 3
    %p69 = pnand %p67, %p68
    %p70 = pneg %p69
    // Predicated region
    $region9: #{ar_straighter_forward.32} parent=5 // pred_check
      _
    $region10: #{ar_straighter_forward.32} parent=5 // pred_check_branch
      %72 = sbr.rel (%p69) target = $region12
    $region11: #{ar_straighter_forward.32} parent=5 // pred_region
      %s73 = ssub.s32 %s7, 1
    $region12: #{ar_straighter_forward.32} parent=5 // pred_fallthru
      _
    %p74 = scmp.lt.s32.totalorder %s7, 2
    // Predicated region
    $region13: #{ar_straighter_forward.32} parent=5 // pred_check
      %p75 = pneg %p74
    $region14: #{ar_straighter_forward.32} parent=5 // pred_check_branch
      %77 = sbr.rel (%p75) target = $region16
    $region15: #{ar_straighter_forward.32} parent=5 // pred_region
      // Predicated region
      $region17: #{ar_straighter_forward.32} parent=15 // pred_check
        %p78 = pneg %p27
      $region18: #{ar_straighter_forward.32} parent=15 // pred_check_branch
        %80 = sbr.rel (%p78) target = $region20
      $region19: #{ar_straighter_forward.32} parent=15 // pred_region
        %p81 = scmp.lt.s32.totalorder %s7, 1
        %s82 = scalar_select %p81, %s7, 1
        %s83 = smul.addr %s82, 3
        %s84 = smul.addr %s83, 4
        %s85 = scalar_lea.vmem %s0, %s84
      $region20: #{ar_straighter_forward.32} parent=15 // pred_fallthru
        _
    $region16: #{ar_straighter_forward.32} parent=5 // pred_fallthru
      _
    %p86 = scmp.le.s32.totalorder 1, %s7
    %p87 = scmp.lt.s32.totalorder %s7, 3
    %p88 = pnand %p86, %p87
    %p89 = pneg %p88
    // Predicated region
    $region21: #{ar_straighter_forward.32} parent=5 // pred_check
      _
    $region22: #{ar_straighter_forward.32} parent=5 // pred_check_branch
      %91 = sbr.rel (%p88) target = $region24
    $region23: #{ar_straighter_forward.32} parent=5 // pred_region
      %s92 = ssub.s32 %s7, 1
      %p93 = scmp.lt.s32.totalorder %s12, 1
      %s94 = scalar_select %p93, %s12, 1
      %s95 = smul.addr %s94, 3
      %s96 = smul.addr %s95, 4
      %s97 = scalar_lea.vmem %s0, %s96
      %p98 = pneg %p33
      %p99 = pneg %p30
      %p100 = pneg %p59
      %p101 = pneg %p56
      %p102 = scmp.lt.s32.totalorder %s12, 1
      %s103 = scalar_select %p102, %s12, 1
      %s104 = smul.addr %s103, 4
      %s105 = scalar_lea.vmem %s1, %s104
      %p106 = scmp.lt.s32.totalorder %s12, 1
      %s107 = scalar_select %p106, %s12, 1
      %s108 = smul.addr %s107, 3
      %s109 = smul.addr %s108, 4
      %s110 = scalar_lea.vmem %s0, %s109
      %p111 = scmp.lt.s32.totalorder %s12, 1
      %s112 = scalar_select %p111, %s12, 1
      %s113 = smul.addr %s112, 4
      %s114 = scalar_lea.vmem %s1, %s113
      %v116 = vld [vmem:[%s110] sm:$0xff]
      %v117 = vld [vmem:[%s110 + $0x8] sm:$0xf]
      %v118 = vunpack.c.l.bf16 %v116
      %v119 = vmul.f32 %v118, 0.17675781
      %v120 = vpack.c.bf16 %v119, %v119
      %v121 = vlaneseq
      %v122 = vshrl.u32 %v121, 7
      %v123 = vlaneseq
      %v124 = vand.u32 %v123, 127
      %vm125 = vcmp.le.s32.totalorder %v124, %v122
      %v127 = vunpack.c.h.b16 %v116
      %v128 = vpack.c.b16 %v127, %v127
      %vm129 = vcmask 261120
      %v131 = vsel %vm129, %v120, 0
      %v134 = vsel %vm129, %v128, 0
      %136 = vmatpush.bf16.xpose.msra.mxu0 0
      %137 = vmatpush.bf16.xpose.msra.mxu0 0
      %138 = vmatpush.bf16.xpose.msra.mxu0 0
      %139 = vmatpush.bf16.xpose.msra.mxu0 0
      %140 = vmatpush.bf16.xpose.msra.mxu0 0
      %141 = vmatpush.bf16.xpose.msra.mxu0 0
      %142 = vmatpush.bf16.xpose.msra.mxu0 0
      %143 = vmatpush.bf16.xpose.msra.mxu0 %v134
      %144 = vmatmul.bf16.gmra.mxu0 %v131
      %v145 = vpop.f32.mrf.mxu0
      %v146 = vadd.f32 0.0, %v145
      %v147 = vpop.f32.mrf.mxu0
      %148 = vdwg.mxu0
      %v149 = vsel %vm125, %v146, -1e+30
      %vm150 = vcmask 64512
      %v151 = vsel %vm150, %v149, -inf
      %152 = vmax.xlane.f32.xlu0 %v151
      %v153 = vpop.xlane.xlu0 %152
      %v154 = vsub.f32 %v149, %v153
      %v155 = vmul.f32 %v154, 1.442695
      %v156 = vpow.pop %v155
      %v157 = vsel %vm150, %v156, 0.0
      %158 = vadd.xlane.f32.xlu0 %v157
      %v159 = vpop.xlane.xlu0 %158
      %v160 = vrcp.pop %v159
      %v161 = vmul.f32 %v156, %v160
      %v162 = vpack.c.bf16 %v161, %v161
      %v164 = vsel %vm150, %v162, 0
      %vm166 = vcmask 1043456
      %v168 = vsel %vm166, %v117, 0
      %170 = vmatpush.bf16.msra.mxu0 0
      %171 = vmatpush.bf16.msra.mxu0 0
      %172 = vmatpush.bf16.msra.mxu0 0
      %173 = vmatpush.bf16.msra.mxu0 0
      %174 = vmatpush.bf16.msra.mxu0 0
      %175 = vmatpush.bf16.msra.mxu0 0
      %176 = vmatpush.bf16.msra.mxu0 0
      %177 = vmatpush.bf16.msra.mxu0 %v168
      %178 = vmatmul.bf16.gmra.mxu0 %v164
      %v179 = vpop.f32.mrf.mxu0
      %v180 = vadd.f32 0.0, %v179
      %v181 = vpop.f32.mrf.mxu0
      %182 = vdwg.mxu0
      %v183 = vpack.c.bf16 %v180, %v180
      %vm184 = vcmask 257024
      %185 = vst.msk [vmem:[%s114] sm:$0xf] %vm184, %v183
      %v187 = vunpack.c.l.b16 %v120
      %v188 = vpack.c.b16 %v187, %v187
      %189 = vrot.lane.b32.xlu0 %v188, 96
      %v190 = vpop.permute.xlu0 %189
      %191 = vrot.lane.b32.xlu0 %v128, 96
      %v192 = vpop.permute.xlu0 %191
      %v194 = vsel %vm129, %v190, 0
      %v197 = vsel %vm129, %v192, 0
      %199 = vmatpush.bf16.xpose.msra.mxu0 0
      %200 = vmatpush.bf16.xpose.msra.mxu0 0
      %201 = vmatpush.bf16.xpose.msra.mxu0 0
      %202 = vmatpush.bf16.xpose.msra.mxu0 0
      %203 = vmatpush.bf16.xpose.msra.mxu0 0
      %204 = vmatpush.bf16.xpose.msra.mxu0 0
      %205 = vmatpush.bf16.xpose.msra.mxu0 0
      %206 = vmatpush.bf16.xpose.msra.mxu0 %v197
      %207 = vmatmul.bf16.gmra.mxu0 %v194
      %v208 = vpop.f32.mrf.mxu0
      %v209 = vadd.f32 0.0, %v208
      %v210 = vpop.f32.mrf.mxu0
      %211 = vdwg.mxu0
      %v212 = vsel %vm125, %v209, -1e+30
      %v213 = vsel %vm150, %v212, -inf
      %214 = vmax.xlane.f32.xlu0 %v213
      %v215 = vpop.xlane.xlu0 %214
      %v216 = vsub.f32 %v212, %v215
      %v217 = vmul.f32 %v216, 1.442695
      %v218 = vpow.pop %v217
      %v219 = vsel %vm150, %v218, 0.0
      %220 = vadd.xlane.f32.xlu0 %v219
      %v221 = vpop.xlane.xlu0 %220
      %v222 = vrcp.pop %v221
      %v223 = vmul.f32 %v218, %v222
      %v224 = vpack.c.bf16 %v223, %v223
      %v226 = vunpack.c.l.b16 %v117
      %v227 = vpack.c.b16 %v226, %v226
      %228 = vrot.lane.b32.xlu0 %v227, 96
      %v229 = vpop.permute.xlu0 %228
      %v231 = vsel %vm150, %v224, 0
      %v234 = vsel %vm166, %v229, 0
      %236 = vmatpush.bf16.msra.mxu0 0
      %237 = vmatpush.bf16.msra.mxu0 0
      %238 = vmatpush.bf16.msra.mxu0 0
      %239 = vmatpush.bf16.msra.mxu0 0
      %240 = vmatpush.bf16.msra.mxu0 0
      %241 = vmatpush.bf16.msra.mxu0 0
      %242 = vmatpush.bf16.msra.mxu0 0
      %243 = vmatpush.bf16.msra.mxu0 %v234
      %244 = vmatmul.bf16.gmra.mxu0 %v231
      %v245 = vpop.f32.mrf.mxu0
      %v246 = vadd.f32 0.0, %v245
      %v247 = vpop.f32.mrf.mxu0
      %248 = vdwg.mxu0
      %v249 = vpack.c.bf16 %v246, %v246
      %251 = vrot.lane.b32.xlu0 %v249, 32
      %v252 = vpop.permute.xlu0 %251
      %vm254 = vcmask 519424
      %255 = vst.msk [vmem:[%s114] sm:$0xf] %vm254, %v252
      %256 = vrot.lane.b32.xlu0 %v188, 64
      %v257 = vpop.permute.xlu0 %256
      %258 = vrot.lane.b32.xlu0 %v128, 64
      %v259 = vpop.permute.xlu0 %258
      %v261 = vsel %vm129, %v257, 0
      %v264 = vsel %vm129, %v259, 0
      %266 = vmatpush.bf16.xpose.msra.mxu0 0
      %267 = vmatpush.bf16.xpose.msra.mxu0 0
      %268 = vmatpush.bf16.xpose.msra.mxu0 0
      %269 = vmatpush.bf16.xpose.msra.mxu0 0
      %270 = vmatpush.bf16.xpose.msra.mxu0 0
      %271 = vmatpush.bf16.xpose.msra.mxu0 0
      %272 = vmatpush.bf16.xpose.msra.mxu0 0
      %273 = vmatpush.bf16.xpose.msra.mxu0 %v264
      %274 = vmatmul.bf16.gmra.mxu0 %v261
      %v275 = vpop.f32.mrf.mxu0
      %v276 = vadd.f32 0.0, %v275
      %v277 = vpop.f32.mrf.mxu0
      %278 = vdwg.mxu0
      %v279 = vsel %vm125, %v276, -1e+30
      %v280 = vsel %vm150, %v279, -inf
      %281 = vmax.xlane.f32.xlu0 %v280
      %v282 = vpop.xlane.xlu0 %281
      %v283 = vsub.f32 %v279, %v282
      %v284 = vmul.f32 %v283, 1.442695
      %v285 = vpow.pop %v284
      %v286 = vsel %vm150, %v285, 0.0
      %287 = vadd.xlane.f32.xlu0 %v286
      %v288 = vpop.xlane.xlu0 %287
      %v289 = vrcp.pop %v288
      %v290 = vmul.f32 %v285, %v289
      %v291 = vpack.c.bf16 %v290, %v290
      %292 = vrot.lane.b32.xlu0 %v227, 64
      %v293 = vpop.permute.xlu0 %292
      %v295 = vsel %vm150, %v291, 0
      %v298 = vsel %vm166, %v293, 0
      %300 = vmatpush.bf16.msra.mxu0 0
      %301 = vmatpush.bf16.msra.mxu0 0
      %302 = vmatpush.bf16.msra.mxu0 0
      %303 = vmatpush.bf16.msra.mxu0 0
      %304 = vmatpush.bf16.msra.mxu0 0
      %305 = vmatpush.bf16.msra.mxu0 0
      %306 = vmatpush.bf16.msra.mxu0 0
      %307 = vmatpush.bf16.msra.mxu0 %v298
      %308 = vmatmul.bf16.gmra.mxu0 %v295
      %v309 = vpop.f32.mrf.mxu0
      %v310 = vadd.f32 0.0, %v309
      %v311 = vpop.f32.mrf.mxu0
      %312 = vdwg.mxu0
      %v313 = vpack.c.bf16 %v310, %v310
      %315 = vrot.lane.b32.xlu0 %v313, 64
      %v316 = vpop.permute.xlu0 %315
      %vm318 = vcmask 781824
      %319 = vst.msk [vmem:[%s114] sm:$0xf] %vm318, %v316
      %320 = vrot.lane.b32.xlu0 %v188, 32
      %v321 = vpop.permute.xlu0 %320
      %322 = vrot.lane.b32.xlu0 %v128, 32
      %v323 = vpop.permute.xlu0 %322
      %v325 = vsel %vm129, %v321, 0
      %v328 = vsel %vm129, %v323, 0
      %330 = vmatpush.bf16.xpose.msra.mxu0 0
      %331 = vmatpush.bf16.xpose.msra.mxu0 0
      %332 = vmatpush.bf16.xpose.msra.mxu0 0
      %333 = vmatpush.bf16.xpose.msra.mxu0 0
      %334 = vmatpush.bf16.xpose.msra.mxu0 0
      %335 = vmatpush.bf16.xpose.msra.mxu0 0
      %336 = vmatpush.bf16.xpose.msra.mxu0 0
      %337 = vmatpush.bf16.xpose.msra.mxu0 %v328
      %338 = vmatmul.bf16.gmra.mxu0 %v325
      %v339 = vpop.f32.mrf.mxu0
      %v340 = vadd.f32 0.0, %v339
      %v341 = vpop.f32.mrf.mxu0
      %342 = vdwg.mxu0
      %v343 = vsel %vm125, %v340, -1e+30
      %v344 = vsel %vm150, %v343, -inf
      %345 = vmax.xlane.f32.xlu0 %v344
      %v346 = vpop.xlane.xlu0 %345
      %v347 = vsub.f32 %v343, %v346
      %v348 = vmul.f32 %v347, 1.442695
      %v349 = vpow.pop %v348
      %v350 = vsel %vm150, %v349, 0.0
      %351 = vadd.xlane.f32.xlu0 %v350
      %v352 = vpop.xlane.xlu0 %351
      %v353 = vrcp.pop %v352
      %v354 = vmul.f32 %v349, %v353
      %v355 = vpack.c.bf16 %v354, %v354
      %356 = vrot.lane.b32.xlu0 %v227, 32
      %v357 = vpop.permute.xlu0 %356
      %v359 = vsel %vm150, %v355, 0
      %v362 = vsel %vm166, %v357, 0
      %364 = vmatpush.bf16.msra.mxu0 0
      %365 = vmatpush.bf16.msra.mxu0 0
      %366 = vmatpush.bf16.msra.mxu0 0
      %367 = vmatpush.bf16.msra.mxu0 0
      %368 = vmatpush.bf16.msra.mxu0 0
      %369 = vmatpush.bf16.msra.mxu0 0
      %370 = vmatpush.bf16.msra.mxu0 0
      %371 = vmatpush.bf16.msra.mxu0 %v362
      %372 = vmatmul.bf16.gmra.mxu0 %v359
      %v373 = vpop.f32.mrf.mxu0
      %v374 = vadd.f32 0.0, %v373
      %v375 = vpop.f32.mrf.mxu0
      %376 = vdwg.mxu0
      %v377 = vpack.c.bf16 %v374, %v374
      %379 = vrot.lane.b32.xlu0 %v377, 96
      %v380 = vpop.permute.xlu0 %379
      %vm382 = vcmask 1044224
      %383 = vst.msk [vmem:[%s114] sm:$0xf] %vm382, %v380
      %p384 = scmp.lt.s32.totalorder %s12, 1
      %s385 = scalar_select %p384, %s12, 1
      %s386 = smul.addr %s385, 4
      %s387 = scalar_lea.vmem %s1, %s386
      // Predicated region
      $region25: #{ar_straighter_forward.32} parent=23 // pred_check
        %p388 = pneg %p56
      $region26: #{ar_straighter_forward.32} parent=23 // pred_check_branch
        %390 = sbr.rel (%p388) target = $region28
      $region27: #{ar_straighter_forward.32} parent=23 // pred_region
        _
      $region28: #{ar_straighter_forward.32} parent=23 // pred_fallthru
        _
    $region24: #{ar_straighter_forward.32} parent=5 // pred_fallthru
      _
    %p391 = scmp.le.s32.totalorder 2, %s7
    // Predicated region
    $region29: #{ar_straighter_forward.32} parent=5 // pred_check
      %p392 = pneg %p391
    $region30: #{ar_straighter_forward.32} parent=5 // pred_check_branch
      %394 = sbr.rel (%p392) target = $region32
    $region31: #{ar_straighter_forward.32} parent=5 // pred_region
      %s395 = ssub.s32 %s7, 2
      // Predicated region
      $region33: #{ar_straighter_forward.32} parent=31 // pred_check
        %p396 = pneg %p62
      $region34: #{ar_straighter_forward.32} parent=31 // pred_check_branch
        %398 = sbr.rel (%p396) target = $region36
      $region35: #{ar_straighter_forward.32} parent=31 // pred_region
        %p399 = scmp.lt.s32.totalorder %s13, 1
        %s400 = scalar_select %p399, %s13, 1
        %s401 = smul.addr %s400, 4
        %s402 = scalar_lea.vmem %s1, %s401
      $region36: #{ar_straighter_forward.32} parent=31 // pred_fallthru
        _
    $region32: #{ar_straighter_forward.32} parent=5 // pred_fallthru
      _
  $region6: #{ar_straighter_forward.32} parent=0 // loop_footer
    %s11 = sadd.s32 1, %s7
  $region7: #{ar_straighter_forward.32} parent=0 // loop_footer_branch
    %6 = sbr.rel target = $region3
  $region8: #{ar_straighter_forward.32} parent=0 // loop_exit
    _

// kernel: ar_straighter_forward.31
$region0: #{ar_straighter_forward.31}
  #allocation0 [shape = 'u32[]', space=smem, size = 0x4, offset = 0x4, fixed_abs, tag = 'smem constant byte address 0x4 - core index']
  #allocation1 [shape = 'u32[72,128]{1,0:T(1,128)}', space=vmem, size = 0x9000, scoped, tag = 'internal scratch']
  #allocation2 [shape = 'f32[16,128]{1,0:T(8,128)}', space=vmem, size = 0x2000, scoped, tag = 'scratch operand']
  %s0 = inlined_call_operand.vmem [shape: bf16[16,128], index: 0, kind: input, shape index: {}]
  %s1 = inlined_call_operand.hbm [shape: bf16[128,384], index: 1, kind: input, shape index: {}]
  %s2 = inlined_call_operand.vmem [shape: f32[1,384], index: 2, kind: input, shape index: {}]
  %s3 = inlined_call_operand.vmem [shape: f32[1,128], index: 3, kind: input, shape index: {}]
  %s4 = inlined_call_operand.vmem [shape: f32[1,128], index: 4, kind: input, shape index: {}]
  %s5 = inlined_call_operand.vmem [shape: bf16[16,384], index: 5, kind: output, shape index: {}]
  %s6 = sld [smem:[#allocation0]]
  $region102: #{ar_straighter_forward.31} parent=0
    _
  %s8 = ssub.s32 1, %s6
  %s9 = scalar_select 0, %s8, %s6
  $region1: #{ar_straighter_forward.31} parent=0
    #allocation3 [shape = 'u8[65536]{0}', space=vmem, size = 0x10000, scoped, tag = 'input window, operand 1']
    #allocation4 [shape = 's32[2]{0}', space=sflag, size = 0x8, scoped, tag = 'scoped memory for ar_straighter_forward.31']
    #allocation5 [shape = 'u8[8192]{0}', space=vmem, size = 0x2000, scoped, tag = 'output window, operand 0']
    %10 = vsyncpa [#allocation4], 0
    %s11 = scalar_lea.sflag [#allocation4], 1
    %12 = vsyncpa %s11, 0
    loop: start=0, step=1, limit=5
    $region2: #{ar_straighter_forward.31} parent=1 // loop_pre_header
      _
    $region3: #{ar_straighter_forward.31} parent=1 // loop_header
      %s14 = sphi 0, %s18
      %p15 = scmp.ge.s32.totalorder %s14, 5
      %s21 = sphi 0, %s40
      %s22 = sphi 0, %s36
      %s23 = sphi 0, %s32
      %s24 = sphi 0, %s21
      %s25 = sphi 0, %s22
      %s26 = sphi 0, %s23
      %s27 = sphi 0, %s24
      %s28 = sphi 0, %s25
      %s29 = sphi 0, %s26
      %s45 = sphi 0, %s47
      %s48 = sphi 0, %s45
      %s49 = sphi 0, %s48
      %s65 = sphi 0, %s49
      %s73 = sphi 0, %s75
      %s76 = sphi 0, %s73
      %s77 = sphi 0, %s76
      %s93 = sphi 0, %s77
      %s99 = sphi 0, %s101
      %s102 = sphi 0, %s99
      %s103 = sphi 0, %s102
      %s119 = sphi 0, %s103
      %s123 = sphi 0, %s123
      %s125 = sphi 0, %s123
      %s126 = sphi 0, %s125
      %s140 = sphi 0, %s126
      %s144 = sphi 0, %s144
      %s146 = sphi 0, %s144
      %s147 = sphi 0, %s146
      %s161 = sphi 0, %s147
      %s169 = sphi 0, %s171
      %s172 = sphi 0, %s169
      %s173 = sphi 0, %s172
      %s189 = sphi 0, %s173
    $region4: #{ar_straighter_forward.31} parent=1 // loop_header_branch
      %17 = sbr.rel (%p15) target = $region8
    $region5: #{ar_straighter_forward.31} parent=1 // loop_body
      %s19 = ssub.s32 %s14, 1
      %s20 = ssub.s32 %s14, 2
      %s30 = sadd.s32 1, %s23
      %p31 = scmp.ge.s32.totalorder %s30, 1
      %s32 = scalar_select %p31, 0, %s30
      %s33 = sadd.s32 1, %s22
      %s34 = scalar_select %p31, %s33, %s22
      %p35 = scmp.ge.s32.totalorder %s34, 3
      %s36 = scalar_select %p35, 0, %s34
      %s37 = sadd.s32 1, %s21
      %s38 = scalar_select %p35, %s37, %s21
      %p39 = scmp.ge.s32.totalorder %s38, 1
      %s40 = scalar_select %p39, 0, %s38
      %s41 = ssub.s32 %s21, %s40
      %s42 = ssub.s32 %s23, %s32
      %s43 = sor.u32 %s41, %s42
      %p44 = scmp.eq.s32.totalorder %s43, 0
      %s46 = sadd.s32 %s45, 1
      %s47 = scalar_select %p44, %s45, %s46
      %p50 = pneg %p44
      %p51 = scmp.eq.s32.totalorder %s14, 2
      %p52 = por %p50, %p51
      %p53 = scmp.ne.s32.totalorder %s45, %s48
      %p54 = scmp.eq.s32.totalorder %s14, 0
      %p55 = por %p53, %p54
      %p56 = scmp.ne.s32.totalorder %s45, %s48
      %p57 = scmp.eq.s32.totalorder %s19, 2
      %p58 = por %p56, %p57
      %p59 = scmp.ne.s32.totalorder %s48, %s49
      %p60 = scmp.eq.s32.totalorder %s19, 0
      %p61 = por %p59, %p60
      %p62 = scmp.ne.s32.totalorder %s48, %s49
      %p63 = scmp.eq.s32.totalorder %s20, 2
      %p64 = por %p62, %p63
      %p66 = scmp.ne.s32.totalorder %s49, %s65
      %p67 = scmp.eq.s32.totalorder %s20, 0
      %p68 = por %p66, %p67
      %s69 = ssub.s32 %s23, %s32
      %s70 = ssub.s32 %s22, %s36
      %s71 = sor.u32 %s69, %s70
      %p72 = scmp.eq.s32.totalorder %s71, 0
      %s74 = sadd.s32 %s73, 1
      %s75 = scalar_select %p72, %s73, %s74
      %p78 = pneg %p72
      %p79 = scmp.eq.s32.totalorder %s14, 2
      %p80 = por %p78, %p79
      %p81 = scmp.ne.s32.totalorder %s73, %s76
      %p82 = scmp.eq.s32.totalorder %s14, 0
      %p83 = por %p81, %p82
      %p84 = scmp.ne.s32.totalorder %s73, %s76
      %p85 = scmp.eq.s32.totalorder %s19, 2
      %p86 = por %p84, %p85
      %p87 = scmp.ne.s32.totalorder %s76, %s77
      %p88 = scmp.eq.s32.totalorder %s19, 0
      %p89 = por %p87, %p88
      %p90 = scmp.ne.s32.totalorder %s76, %s77
      %p91 = scmp.eq.s32.totalorder %s20, 2
      %p92 = por %p90, %p91
      %p94 = scmp.ne.s32.totalorder %s77, %s93
      %p95 = scmp.eq.s32.totalorder %s20, 0
      %p96 = por %p94, %p95
      %s97 = ssub.s32 %s22, %s36
      %p98 = scmp.eq.s32.totalorder %s97, 0
      %s100 = sadd.s32 %s99, 1
      %s101 = scalar_select %p98, %s99, %s100
      %p104 = pneg %p98
      %p105 = scmp.eq.s32.totalorder %s14, 2
      %p106 = por %p104, %p105
      %p107 = scmp.ne.s32.totalorder %s99, %s102
      %p108 = scmp.eq.s32.totalorder %s14, 0
      %p109 = por %p107, %p108
      %p110 = scmp.ne.s32.totalorder %s99, %s102
      %p111 = scmp.eq.s32.totalorder %s19, 2
      %p112 = por %p110, %p111
      %p113 = scmp.ne.s32.totalorder %s102, %s103
      %p114 = scmp.eq.s32.totalorder %s19, 0
      %p115 = por %p113, %p114
      %p116 = scmp.ne.s32.totalorder %s102, %s103
      %p117 = scmp.eq.s32.totalorder %s20, 2
      %p118 = por %p116, %p117
      %p120 = scmp.ne.s32.totalorder %s103, %s119
      %p121 = scmp.eq.s32.totalorder %s20, 0
      %p122 = por %p120, %p121
      %s124 = sadd.s32 %s123, 1
      %p127 = scmp.eq.s32.totalorder %s14, 2
      %p128 = scmp.ne.s32.totalorder %s123, %s125
      %p129 = scmp.eq.s32.totalorder %s14, 0
      %p130 = por %p128, %p129
      %p131 = scmp.ne.s32.totalorder %s123, %s125
      %p132 = scmp.eq.s32.totalorder %s19, 2
      %p133 = por %p131, %p132
      %p134 = scmp.ne.s32.totalorder %s125, %s126
      %p135 = scmp.eq.s32.totalorder %s19, 0
      %p136 = por %p134, %p135
      %p137 = scmp.ne.s32.totalorder %s125, %s126
      %p138 = scmp.eq.s32.totalorder %s20, 2
      %p139 = por %p137, %p138
      %p141 = scmp.ne.s32.totalorder %s126, %s140
      %p142 = scmp.eq.s32.totalorder %s20, 0
      %p143 = por %p141, %p142
      %s145 = sadd.s32 %s144, 1
      %p148 = scmp.eq.s32.totalorder %s14, 2
      %p149 = scmp.ne.s32.totalorder %s144, %s146
      %p150 = scmp.eq.s32.totalorder %s14, 0
      %p151 = por %p149, %p150
      %p152 = scmp.ne.s32.totalorder %s144, %s146
      %p153 = scmp.eq.s32.totalorder %s19, 2
      %p154 = por %p152, %p153
      %p155 = scmp.ne.s32.totalorder %s146, %s147
      %p156 = scmp.eq.s32.totalorder %s19, 0
      %p157 = por %p155, %p156
      %p158 = scmp.ne.s32.totalorder %s146, %s147
      %p159 = scmp.eq.s32.totalorder %s20, 2
      %p160 = por %p158, %p159
      %p162 = scmp.ne.s32.totalorder %s147, %s161
      %p163 = scmp.eq.s32.totalorder %s20, 0
      %p164 = por %p162, %p163
      %s165 = ssub.s32 %s21, %s40
      %s166 = ssub.s32 %s22, %s36
      %s167 = sor.u32 %s165, %s166
      %p168 = scmp.eq.s32.totalorder %s167, 0
      %s170 = sadd.s32 %s169, 1
      %s171 = scalar_select %p168, %s169, %s170
      %p174 = pneg %p168
      %p175 = scmp.eq.s32.totalorder %s14, 2
      %p176 = por %p174, %p175
      %p177 = scmp.ne.s32.totalorder %s169, %s172
      %p178 = scmp.eq.s32.totalorder %s14, 0
      %p179 = por %p177, %p178
      %p180 = scmp.ne.s32.totalorder %s169, %s172
      %p181 = scmp.eq.s32.totalorder %s19, 2
      %p182 = por %p180, %p181
      %p183 = scmp.ne.s32.totalorder %s172, %s173
      %p184 = scmp.eq.s32.totalorder %s19, 0
      %p185 = por %p183, %p184
      %p186 = scmp.ne.s32.totalorder %s172, %s173
      %p187 = scmp.eq.s32.totalorder %s20, 2
      %p188 = por %p186, %p187
      %p190 = scmp.ne.s32.totalorder %s173, %s189
      %p191 = scmp.eq.s32.totalorder %s20, 0
      %p192 = por %p190, %p191
      %p193 = scmp.le.s32.totalorder 1, %s14
      %p194 = scmp.lt.s32.totalorder %s14, 4
      %p195 = pnand %p193, %p194
      %p196 = pneg %p195
      // Predicated region
      $region9: #{ar_straighter_forward.31} parent=5 // pred_check
        _
      $region10: #{ar_straighter_forward.31} parent=5 // pred_check_branch
        %198 = sbr.rel (%p195) target = $region12
      $region11: #{ar_straighter_forward.31} parent=5 // pred_region
        %s199 = ssub.s32 %s14, 1
        // Predicated region
        $region13: #{ar_straighter_forward.31} parent=11 // pred_check
          %p200 = pneg %p61
        $region14: #{ar_straighter_forward.31} parent=11 // pred_check_branch
          %202 = sbr.rel (%p200) target = $region16
        $region15: #{ar_straighter_forward.31} parent=11 // pred_region
          %s203 = smul.u32 2, %s24
          %p204 = scmp.lt.s32.totalorder %s203, 1
          %s205 = scalar_select %p204, %s203, 1
          %p206 = scmp.lt.s32.totalorder %s26, 0
          %s207 = scalar_select %p206, %s26, 0
          %s208 = sadd.s32 %s207, %s205
          %s209 = smul.addr %s208, 4
          %s210 = scalar_lea.vmem %s0, %s209
          %s211 = smul.u32 2, %s24
        $region16: #{ar_straighter_forward.31} parent=11 // pred_fallthru
          _
        // Predicated region
        $region17: #{ar_straighter_forward.31} parent=11 // pred_check
          %p212 = pneg %p136
        $region18: #{ar_straighter_forward.31} parent=11 // pred_check_branch
          %214 = sbr.rel (%p212) target = $region20
        $region19: #{ar_straighter_forward.31} parent=11 // pred_region
          _
        $region20: #{ar_straighter_forward.31} parent=11 // pred_fallthru
          _
        // Predicated region
        $region21: #{ar_straighter_forward.31} parent=11 // pred_check
          %p215 = pneg %p157
        $region22: #{ar_straighter_forward.31} parent=11 // pred_check_branch
          %217 = sbr.rel (%p215) target = $region24
        $region23: #{ar_straighter_forward.31} parent=11 // pred_region
          _
        $region24: #{ar_straighter_forward.31} parent=11 // pred_fallthru
          _
      $region12: #{ar_straighter_forward.31} parent=5 // pred_fallthru
        _
      %p218 = scmp.lt.s32.totalorder %s14, 3
      // Predicated region
      $region25: #{ar_straighter_forward.31} parent=5 // pred_check
        %p219 = pneg %p218
      $region26: #{ar_straighter_forward.31} parent=5 // pred_check_branch
        %221 = sbr.rel (%p219) target = $region28
      $region27: #{ar_straighter_forward.31} parent=5 // pred_region
        // Predicated region
        $region29: #{ar_straighter_forward.31} parent=27 // pred_check
          %p222 = pneg %p83
        $region30: #{ar_straighter_forward.31} parent=27 // pred_check_branch
          %224 = sbr.rel (%p222) target = $region32
        $region31: #{ar_straighter_forward.31} parent=27 // pred_region
          %s225 = sand.u32 %s73, 1
          %s226 = scalar_lea.sflag [#allocation4], %s225
          %s227 = sand.u32 %s73, 1
          %s228 = smul.addr %s227, 64
          %s229 = scalar_lea.vmem [#allocation3], %s228
          %s230 = smul.u32 16, %s23
          %232 = vsyncadd %s226, 0
          %s233 = smul.addr %s230, 3
          %s234 = sadd.s32 %s22, %s233
          %s235 = smul.addr %s234, 4
          %s236 = scalar_lea.hbm %s1, %s235
          %s237 = sshll.u32 %s236, 4
          %s238 = int_to_ptr.hbm [resolvable:$true] %s237
          %s239 = sshll.u32 %s229, 4
          %s240 = int_to_ptr.vmem [resolvable:$true] %s239
          %245 = dma.hbm_to_vmem [thread:$0]  %s238, 1024, %s240, %s226, 192, 64, 4
        $region32: #{ar_straighter_forward.31} parent=27 // pred_fallthru
          _
        // Predicated region
        $region33: #{ar_straighter_forward.31} parent=27 // pred_check
          %p246 = pneg %p109
        $region34: #{ar_straighter_forward.31} parent=27 // pred_check_branch
          %248 = sbr.rel (%p246) target = $region36
        $region35: #{ar_straighter_forward.31} parent=27 // pred_region
          %p249 = scmp.lt.s32.totalorder %s22, 2
          %s250 = scalar_select %p249, %s22, 2
          %s251 = scalar_lea.vmem %s2, %s250
        $region36: #{ar_straighter_forward.31} parent=27 // pred_fallthru
          _
      $region28: #{ar_straighter_forward.31} parent=5 // pred_fallthru
        _
      %p252 = scmp.le.s32.totalorder 1, %s14
      %p253 = scmp.lt.s32.totalorder %s14, 4
      %p254 = pnand %p252, %p253
      %p255 = pneg %p254
      // Predicated region
      $region37: #{ar_straighter_forward.31} parent=5 // pred_check
        _
      $region38: #{ar_straighter_forward.31} parent=5 // pred_check_branch
        %257 = sbr.rel (%p254) target = $region40
      $region39: #{ar_straighter_forward.31} parent=5 // pred_region
        %s258 = ssub.s32 %s14, 1
        %s259 = sand.u32 %s76, 1
        %s260 = scalar_lea.sflag [#allocation4], %s259
        %s261 = sand.u32 %s76, 1
        %s262 = smul.addr %s261, 64
        %s263 = scalar_lea.vmem [#allocation3], %s262
        // Predicated region
        $region41: #{ar_straighter_forward.31} parent=39 // pred_check
          %p264 = pneg %p89
        $region42: #{ar_straighter_forward.31} parent=39 // pred_check_branch
          %266 = sbr.rel (%p264) target = $region44
        $region43: #{ar_straighter_forward.31} parent=39 // pred_region
          %268 = dma.done %s260, 1024
        $region44: #{ar_straighter_forward.31} parent=39 // pred_fallthru
          _
        %s269 = smul.u32 2, %s24
        %p270 = scmp.lt.s32.totalorder %s269, 1
        %s271 = scalar_select %p270, %s269, 1
        %p272 = scmp.lt.s32.totalorder %s26, 0
        %s273 = scalar_select %p272, %s26, 0
        %s274 = sadd.s32 %s273, %s271
        %s275 = smul.addr %s274, 4
        %s276 = scalar_lea.vmem %s0, %s275
        %p277 = pneg %p61
        %p278 = pneg %p58
        %s279 = sand.u32 %s76, 1
        %s280 = scalar_lea.sflag [#allocation4], %s279
        %s281 = sand.u32 %s76, 1
        %s282 = smul.addr %s281, 64
        %s283 = scalar_lea.vmem [#allocation3], %s282
        %p284 = pneg %p89
        %p285 = pneg %p86
        %p286 = scmp.lt.s32.totalorder %s25, 2
        %s287 = scalar_select %p286, %s25, 2
        %s288 = scalar_lea.vmem %s2, %s287
        %p289 = pneg %p115
        %p290 = pneg %p112
        %p291 = pneg %p136
        %p292 = pneg %p133
        %p293 = pneg %p157
        %p294 = pneg %p154
        %p295 = pneg %p185
        %p296 = pneg %p182
        %s297 = sand.u32 %s172, 1
        %s298 = sand.u32 %s172, 1
        %s299 = smul.addr %s298, 8
        %s300 = scalar_lea.vmem [#allocation5], %s299
        %s301 = smul.u32 2, %s24
        %p302 = scmp.lt.s32.totalorder %s301, 1
        %s303 = scalar_select %p302, %s301, 1
        %p304 = scmp.lt.s32.totalorder %s26, 0
        %s305 = scalar_select %p304, %s26, 0
        %s306 = sadd.s32 %s305, %s303
        %s307 = smul.addr %s306, 4
        %s308 = scalar_lea.vmem %s0, %s307
        %s309 = smul.u32 2, %s24
        %s310 = smul.u32 16, %s26
        %p311 = scmp.lt.s32.totalorder %s25, 2
        %s312 = scalar_select %p311, %s25, 2
        %s313 = scalar_lea.vmem %s2, %s312
        %s314 = smul.u32 2, %s24
        %p315 = scmp.eq.s32.totalorder %s26, 0
        // Predicated region
        $region45: #{ar_straighter_forward.31} parent=39 // pred_check
          %p316 = pneg %p315
        $region46: #{ar_straighter_forward.31} parent=39 // pred_check_branch
          %318 = sbr.rel (%p316) target = $region48
        $region47: #{ar_straighter_forward.31} parent=39 // pred_region
          %319 = vst [vmem:[#allocation2] sm:$0xff] 0.0
          %320 = vst [vmem:[#allocation2 + $0x8] sm:$0xff] 0.0
        $region48: #{ar_straighter_forward.31} parent=39 // pred_fallthru
          _
        %v321 = vld [vmem:[%s308] sm:$0xf]
        %v322 = vld [vmem:[%s308 + $0x4] sm:$0xf]
        %v323 = vunpack.c.l.bf16 %v321
        %v324 = vunpack.c.l.bf16 %v322
        %325 = vadd.xlane.f32.xlu0 %v323
        %v326 = vpop.xlane.xlu0 %325
        %327 = vadd.xlane.f32.xlu0 %v324
        %v328 = vpop.xlane.xlu0 %327
        %v329 = vrcp.pop 128.0
        %v330 = vmul.f32 128.0, %v329
        %v331 = vsub.f32 1.0, %v330
        %v332 = vmul.f32 %v329, %v331
        %v333 = vadd.f32 %v329, %v332
        %vm334 = vweird.f32 %v329
        %v335 = vsel %vm334, %v329, %v333
        %v336 = vmul.f32 %v326, %v335
        %v337 = vmul.f32 %v328, %v335
        %v338 = vsub.f32 %v323, %v336
        %v339 = vsub.f32 %v324, %v337
        %v340 = vmul.f32 %v338, %v338
        %v341 = vmul.f32 %v339, %v339
        %342 = vadd.xlane.f32.xlu0 %v340
        %v343 = vpop.xlane.xlu0 %342
        %344 = vadd.xlane.f32.xlu0 %v341
        %v345 = vpop.xlane.xlu0 %344
        %v346 = vmul.f32 %v343, %v335
        %v347 = vmul.f32 %v345, %v335
        %v348 = vadd.f32 %v346, 1e-05
        %v349 = vadd.f32 %v347, 1e-05
        %v350 = vrsqrt.pop %v348
        %v351 = vmul.f32 %v350, %v348
        %v352 = vmul.f32 %v351, %v350
        %v353 = vmul.f32 0.5, %v352
        %v354 = vsub.f32 1.5, %v353
        %v355 = vmul.f32 %v350, %v354
        %vm356 = vweird.f32 %v348
        %vm357 = vweird.f32 %v350
        %vm358 = vmor %vm356, %vm357
        %v359 = vsel %vm358, %v350, %v355
        %v360 = vrsqrt.pop %v349
        %v361 = vmul.f32 %v360, %v349
        %v362 = vmul.f32 %v361, %v360
        %v363 = vmul.f32 0.5, %v362
        %v364 = vsub.f32 1.5, %v363
        %v365 = vmul.f32 %v360, %v364
        %vm366 = vweird.f32 %v349
        %vm367 = vweird.f32 %v360
        %vm368 = vmor %vm366, %vm367
        %v369 = vsel %vm368, %v360, %v365
        %v370 = vmul.f32 %v338, %v359
        %v371 = vmul.f32 %v339, %v369
        %v372 = vld [vmem:[%s3] sm:$0x1]
        %v374 = vperm.slane %v372, 0
        %v376 = vmul.f32 %v370, %v374
        %v377 = vmul.f32 %v371, %v374
        %v378 = vld [vmem:[%s4] sm:$0x1]
        %v380 = vperm.slane %v378, 0
        %v382 = vadd.f32 %v376, %v380
        %v383 = vadd.f32 %v377, %v380
        %v384 = vpack.c.bf16 %v383, %v382
        %v385 = vld [vmem:[#allocation2] sm:$0xff]
        %v386 = vld [vmem:[#allocation2 + $0x8] sm:$0xff]
        %v387 = vld [vmem:[%s263] sm:$0xf]
        %v388 = vld [vmem:[%s263 + $0x4] sm:$0xf]
        %v389 = vld [vmem:[%s263 + $0x8] sm:$0xf]
        %v390 = vld [vmem:[%s263 + $0xc] sm:$0xf]
        %v391 = vld [vmem:[%s263 + $0x10] sm:$0xf]
        %v392 = vld [vmem:[%s263 + $0x14] sm:$0xf]
        %v393 = vld [vmem:[%s263 + $0x18] sm:$0xf]
        %v394 = vld [vmem:[%s263 + $0x1c] sm:$0xf]
        %v395 = vld [vmem:[%s263 + $0x20] sm:$0xf]
        %v396 = vld [vmem:[%s263 + $0x24] sm:$0xf]
        %v397 = vld [vmem:[%s263 + $0x28] sm:$0xf]
        %v398 = vld [vmem:[%s263 + $0x2c] sm:$0xf]
        %v399 = vld [vmem:[%s263 + $0x30] sm:$0xf]
        %v400 = vld [vmem:[%s263 + $0x34] sm:$0xf]
        %v401 = vld [vmem:[%s263 + $0x38] sm:$0xf]
        %v402 = vld [vmem:[%s263 + $0x3c] sm:$0xf]
        %v419 = vunpack.c.l.b16 %v387
        %v420 = vunpack.c.l.b16 %v388
        %v421 = vunpack.c.l.b16 %v389
        %v422 = vunpack.c.l.b16 %v390
        %v423 = vunpack.c.l.b16 %v391
        %v424 = vunpack.c.l.b16 %v392
        %v425 = vunpack.c.l.b16 %v393
        %v426 = vunpack.c.l.b16 %v394
        %v427 = vunpack.c.l.b16 %v395
        %v428 = vunpack.c.l.b16 %v396
        %v429 = vunpack.c.l.b16 %v397
        %v430 = vunpack.c.l.b16 %v398
        %v431 = vunpack.c.l.b16 %v399
        %v432 = vunpack.c.l.b16 %v400
        %v433 = vunpack.c.l.b16 %v401
        %v434 = vunpack.c.l.b16 %v402
        %v435 = vpack.c.b16 %v420, %v419
        %v436 = vpack.c.b16 %v422, %v421
        %v437 = vpack.c.b16 %v424, %v423
        %v438 = vpack.c.b16 %v426, %v425
        %v439 = vpack.c.b16 %v428, %v427
        %v440 = vpack.c.b16 %v430, %v429
        %v441 = vpack.c.b16 %v432, %v431
        %v442 = vpack.c.b16 %v434, %v433
        %451 = vmatpush.bf16.msra.mxu0 %v442
        %452 = vmatpush.bf16.msra.mxu0 %v441
        %453 = vmatpush.bf16.msra.mxu0 %v440
        %454 = vmatpush.bf16.msra.mxu0 %v439
        %455 = vmatpush.bf16.msra.mxu0 %v438
        %456 = vmatpush.bf16.msra.mxu0 %v437
        %457 = vmatpush.bf16.msra.mxu0 %v436
        %458 = vmatpush.bf16.msra.mxu0 %v435
        %459 = vmatmul.bf16.gmra.mxu0 %v384
        %v460 = vpop.f32.mrf.mxu0
        %v461 = vadd.f32 0.0, %v460
        %v462 = vpop.f32.mrf.mxu0
        %v463 = vadd.f32 0.0, %v462
        %464 = vdwg.mxu0
        %v465 = vadd.f32 %v385, %v461
        %v466 = vadd.f32 %v386, %v463
        %467 = vst [vmem:[#allocation2] sm:$0xff] %v465
        %468 = vst [vmem:[#allocation2 + $0x8] sm:$0xff] %v466
        // Predicated region
        $region49: #{ar_straighter_forward.31} parent=39 // pred_check
          %p469 = pneg %p315
        $region50: #{ar_straighter_forward.31} parent=39 // pred_check_branch
          %471 = sbr.rel (%p469) target = $region52
        $region51: #{ar_straighter_forward.31} parent=39 // pred_region
          %v472 = vld [vmem:[#allocation2] sm:$0xff]
          %v473 = vld [vmem:[#allocation2 + $0x8] sm:$0xff]
          %v474 = vld [vmem:[%s313] sm:$0x1]
          %v476 = vperm.slane %v474, 0
          %v478 = vadd.f32 %v472, %v476
          %v479 = vadd.f32 %v473, %v476
          %v480 = vpack.c.bf16 %v478, %v478
          %v481 = vpack.c.bf16 %v479, %v479
          %482 = vst [vmem:[%s300] sm:$0xf] %v480
          %483 = vst [vmem:[%s300 + $0x4] sm:$0xf] %v481
        $region52: #{ar_straighter_forward.31} parent=39 // pred_fallthru
          _
        %s484 = sand.u32 %s172, 1
        %s485 = sand.u32 %s172, 1
        %s486 = smul.addr %s485, 8
        %s487 = scalar_lea.vmem [#allocation5], %s486
        // Predicated region
        $region53: #{ar_straighter_forward.31} parent=39 // pred_check
          %p488 = pneg %p182
        $region54: #{ar_straighter_forward.31} parent=39 // pred_check_branch
          %490 = sbr.rel (%p488) target = $region56
        $region55: #{ar_straighter_forward.31} parent=39 // pred_region
          %s491 = smul.u32 2, %s24
          %s492 = smul.addr %s491, 3
          %s493 = sadd.s32 %s25, %s492
          %s494 = smul.addr %s493, 4
          %s495 = scalar_lea.vmem %s5, %s494
          // Predicated region
          $region57: #{ar_straighter_forward.31} parent=55 // pred_check
            _
          $region58: #{ar_straighter_forward.31} parent=55 // pred_check_branch
            %497 = sbr.rel (0) target = $region60
          $region59: #{ar_straighter_forward.31} parent=55 // pred_region
            // Predicated region
            $region61: #{ar_straighter_forward.31} parent=59 // pred_check
              _
            $region62: #{ar_straighter_forward.31} parent=59 // pred_check_branch
              %499 = sbr.rel target = $region64
            $region63: #{ar_straighter_forward.31} parent=59 // pred_region
              // Predicated region
              $region76: #{ar_straighter_forward.31} parent=63 // pred_check
                _
              $region77: #{ar_straighter_forward.31} parent=63 // pred_check_branch
                %517 = sbr.rel (0) target = $region79
              $region78: #{ar_straighter_forward.31} parent=63 // pred_region
                loop: start=0, step=1, limit=1
                $region80: #{ar_straighter_forward.31} parent=78 // loop_pre_header
                  _
                $region81: #{ar_straighter_forward.31} parent=78 // loop_header
                  %s519 = sphi 0, %s523
                  %p520 = scmp.ge.s32.totalorder %s519, 1
                  %s524 = sphi %s487, %s487
                  %s525 = sphi %s495, %s495
                $region82: #{ar_straighter_forward.31} parent=78 // loop_header_branch
                  %522 = sbr.rel (%p520) target = $region86
                $region83: #{ar_straighter_forward.31} parent=78 // loop_body
                  _
                $region84: #{ar_straighter_forward.31} parent=78 // loop_footer
                  %s523 = sadd.s32 1, %s519
                $region85: #{ar_straighter_forward.31} parent=78 // loop_footer_branch
                  %518 = sbr.rel target = $region81
                $region86: #{ar_straighter_forward.31} parent=78 // loop_exit
                  _
                %s527 = ssub.s32 16, 1
                loop: start=0, step=1, limit=1
                $region87: #{ar_straighter_forward.31} parent=78 // loop_pre_header
                  _
                $region88: #{ar_straighter_forward.31} parent=78 // loop_header
                  %s529 = sphi 0, %s533
                  %p530 = scmp.ge.s32.totalorder %s529, 1
                  %s534 = sphi %s487, %s487
                  %s535 = sphi %s495, %s495
                $region89: #{ar_straighter_forward.31} parent=78 // loop_header_branch
                  %532 = sbr.rel (%p530) target = $region93
                $region90: #{ar_straighter_forward.31} parent=78 // loop_body
                  %v536 = vld [vmem:[%s534] sm:%s527]
                  %537 = vst [vmem:[%s535] sm:%s527] %v536
                  %v538 = vld [vmem:[%s534 + $0x4] sm:%s527]
                  %539 = vst [vmem:[%s535 + $0xc] sm:%s527] %v538
                $region91: #{ar_straighter_forward.31} parent=78 // loop_footer
                  %s533 = sadd.s32 1, %s529
                $region92: #{ar_straighter_forward.31} parent=78 // loop_footer_branch
                  %528 = sbr.rel target = $region88
                $region93: #{ar_straighter_forward.31} parent=78 // loop_exit
                  _
              $region79: #{ar_straighter_forward.31} parent=63 // pred_fallthru
                _
            $region64: #{ar_straighter_forward.31} parent=59 // pred_fallthru
              _
            // Predicated region
            $region65: #{ar_straighter_forward.31} parent=59 // pred_check
              _
            $region66: #{ar_straighter_forward.31} parent=59 // pred_check_branch
              %501 = sbr.rel (0) target = $region68
            $region67: #{ar_straighter_forward.31} parent=59 // pred_region
              %s503 = ssub.s32 16, 1
              loop: start=0, step=1, limit=1
              $region69: #{ar_straighter_forward.31} parent=67 // loop_pre_header
                _
              $region70: #{ar_straighter_forward.31} parent=67 // loop_header
                %s505 = sphi 0, %s509
                %p506 = scmp.ge.s32.totalorder %s505, 1
                %s510 = sphi %s487, %s487
                %s511 = sphi %s495, %s495
              $region71: #{ar_straighter_forward.31} parent=67 // loop_header_branch
                %508 = sbr.rel (%p506) target = $region75
              $region72: #{ar_straighter_forward.31} parent=67 // loop_body
                %v512 = vld [vmem:[%s510] sm:%s503]
                %513 = vst [vmem:[%s511] sm:%s503] %v512
                %v514 = vld [vmem:[%s510 + $0x4] sm:%s503]
                %515 = vst [vmem:[%s511 + $0xc] sm:%s503] %v514
              $region73: #{ar_straighter_forward.31} parent=67 // loop_footer
                %s509 = sadd.s32 1, %s505
              $region74: #{ar_straighter_forward.31} parent=67 // loop_footer_branch
                %504 = sbr.rel target = $region70
              $region75: #{ar_straighter_forward.31} parent=67 // loop_exit
                _
            $region68: #{ar_straighter_forward.31} parent=59 // pred_fallthru
              _
          $region60: #{ar_straighter_forward.31} parent=55 // pred_fallthru
            _
          %540 = vnop
        $region56: #{ar_straighter_forward.31} parent=39 // pred_fallthru
          _
      $region40: #{ar_straighter_forward.31} parent=5 // pred_fallthru
        _
      %p541 = scmp.le.s32.totalorder 2, %s14
      // Predicated region
      $region94: #{ar_straighter_forward.31} parent=5 // pred_check
        %p542 = pneg %p541
      $region95: #{ar_straighter_forward.31} parent=5 // pred_check_branch
        %544 = sbr.rel (%p542) target = $region97
      $region96: #{ar_straighter_forward.31} parent=5 // pred_region
        %s545 = ssub.s32 %s14, 2
        // Predicated region
        $region98: #{ar_straighter_forward.31} parent=96 // pred_check
          %p546 = pneg %p188
        $region99: #{ar_straighter_forward.31} parent=96 // pred_check_branch
          %548 = sbr.rel (%p546) target = $region101
        $region100: #{ar_straighter_forward.31} parent=96 // pred_region
          %s549 = sand.u32 %s173, 1
          %s550 = sand.u32 %s173, 1
          %s551 = smul.addr %s550, 8
          %s552 = scalar_lea.vmem [#allocation5], %s551
        $region101: #{ar_straighter_forward.31} parent=96 // pred_fallthru
          _
      $region97: #{ar_straighter_forward.31} parent=5 // pred_fallthru
        _
    $region6: #{ar_straighter_forward.31} parent=1 // loop_footer
      %s18 = sadd.s32 1, %s14
    $region7: #{ar_straighter_forward.31} parent=1 // loop_footer_branch
      %13 = sbr.rel target = $region3
    $region8: #{ar_straighter_forward.31} parent=1 // loop_exit
      _
    %553 = vsyncpa [#allocation4], 1
    %s554 = scalar_lea.sflag [#allocation4], 1
    %555 = vsyncpa %s554, 1

// kernel: ar_straighter_forward.33
$region0: #{ar_straighter_forward.33}
  #allocation0 [shape = 'u32[]', space=smem, size = 0x4, offset = 0x4, fixed_abs, tag = 'smem constant byte address 0x4 - core index']
  #allocation1 [shape = 'u32[72,128]{1,0:T(1,128)}', space=vmem, size = 0x9000, scoped, tag = 'internal scratch']
  #allocation2 [shape = 'f32[16,128]{1,0:T(8,128)}', space=vmem, size = 0x2000, scoped, tag = 'scratch operand']
  %s0 = inlined_call_operand.vmem [shape: bf16[16,128], index: 0, kind: input, shape index: {}]
  %s1 = inlined_call_operand.hbm [shape: bf16[128,128], index: 1, kind: input, shape index: {}]
  %s2 = inlined_call_operand.vmem [shape: f32[1,128], index: 2, kind: input, shape index: {}]
  %s3 = inlined_call_operand.vmem [shape: bf16[16,128], index: 3, kind: input, shape index: {}]
  %s4 = inlined_call_operand.vmem [shape: bf16[16,128], index: 4, kind: output, shape index: {}]
  %s5 = sld [smem:[#allocation0]]
  $region38: #{ar_straighter_forward.33} parent=0
    _
  %s7 = ssub.s32 1, %s5
  %s8 = scalar_select 0, %s7, %s5
  $region1: #{ar_straighter_forward.33} parent=0
    #allocation3 [shape = 'u8[32768]{0}', space=vmem, size = 0x8000, scoped, tag = 'input window, operand 1, single buffered']
    #allocation4 [shape = 's32[1]{0}', space=sflag, size = 0x4, scoped, tag = 'scoped memory for ar_straighter_forward.33']
    %9 = vsyncpa [#allocation4], 0
    // Predicated region
    $region2: #{ar_straighter_forward.33} parent=1 // pred_check
      _
    $region3: #{ar_straighter_forward.33} parent=1 // pred_check_branch
      %11 = sbr.rel (0) target = $region5
    $region4: #{ar_straighter_forward.33} parent=1 // pred_region
      _
    $region5: #{ar_straighter_forward.33} parent=1 // pred_fallthru
      _
    // Predicated region
    $region6: #{ar_straighter_forward.33} parent=1 // pred_check
      _
    $region7: #{ar_straighter_forward.33} parent=1 // pred_check_branch
      %13 = sbr.rel (0) target = $region9
    $region8: #{ar_straighter_forward.33} parent=1 // pred_region
      %15 = vsyncadd [#allocation4], 0
      %s16 = sshll.u32 %s1, 4
      %s17 = int_to_ptr.hbm [resolvable:$true] %s16
      %s18 = sshll.u32 [#allocation3], 4
      %s19 = int_to_ptr.vmem [resolvable:$true] %s18
      %24 = dma.hbm_to_vmem [thread:$0]  %s17, 1024, %s19, [#allocation4], 64, 64, 4
    $region9: #{ar_straighter_forward.33} parent=1 // pred_fallthru
      _
    // Predicated region
    $region10: #{ar_straighter_forward.33} parent=1 // pred_check
      _
    $region11: #{ar_straighter_forward.33} parent=1 // pred_check_branch
      %26 = sbr.rel (0) target = $region13
    $region12: #{ar_straighter_forward.33} parent=1 // pred_region
      _
    $region13: #{ar_straighter_forward.33} parent=1 // pred_fallthru
      _
    // Predicated region
    $region14: #{ar_straighter_forward.33} parent=1 // pred_check
      _
    $region15: #{ar_straighter_forward.33} parent=1 // pred_check_branch
      %28 = sbr.rel (0) target = $region17
    $region16: #{ar_straighter_forward.33} parent=1 // pred_region
      _
    $region17: #{ar_straighter_forward.33} parent=1 // pred_fallthru
      _
    // Predicated region
    $region18: #{ar_straighter_forward.33} parent=1 // pred_check
      _
    $region19: #{ar_straighter_forward.33} parent=1 // pred_check_branch
      %30 = sbr.rel (0) target = $region21
    $region20: #{ar_straighter_forward.33} parent=1 // pred_region
      %32 = dma.done [#allocation4], 1024
    $region21: #{ar_straighter_forward.33} parent=1 // pred_fallthru
      _
    %p33 = scmp.eq.s32.totalorder 0, 0
    // Predicated region
    $region22: #{ar_straighter_forward.33} parent=1 // pred_check
      %p34 = pneg %p33
    $region23: #{ar_straighter_forward.33} parent=1 // pred_check_branch
      %36 = sbr.rel (%p34) target = $region25
    $region24: #{ar_straighter_forward.33} parent=1 // pred_region
      %37 = vst [vmem:[#allocation2] sm:$0xff] 0.0
      %38 = vst [vmem:[#allocation2 + $0x8] sm:$0xff] 0.0
    $region25: #{ar_straighter_forward.33} parent=1 // pred_fallthru
      _
    %v39 = vld [vmem:[%s0] sm:$0xf]
    %v40 = vld [vmem:[%s0 + $0x4] sm:$0xf]
    %v41 = vld [vmem:[#allocation2] sm:$0xff]
    %v42 = vld [vmem:[#allocation2 + $0x8] sm:$0xff]
    %v43 = vld [vmem:[#allocation3] sm:$0xf]
    %v44 = vld [vmem:[#allocation3 + $0x4] sm:$0xf]
    %v45 = vld [vmem:[#allocation3 + $0x8] sm:$0xf]
    %v46 = vld [vmem:[#allocation3 + $0xc] sm:$0xf]
    %v47 = vld [vmem:[#allocation3 + $0x10] sm:$0xf]
    %v48 = vld [vmem:[#allocation3 + $0x14] sm:$0xf]
    %v49 = vld [vmem:[#allocation3 + $0x18] sm:$0xf]
    %v50 = vld [vmem:[#allocation3 + $0x1c] sm:$0xf]
    %v51 = vld [vmem:[#allocation3 + $0x20] sm:$0xf]
    %v52 = vld [vmem:[#allocation3 + $0x24] sm:$0xf]
    %v53 = vld [vmem:[#allocation3 + $0x28] sm:$0xf]
    %v54 = vld [vmem:[#allocation3 + $0x2c] sm:$0xf]
    %v55 = vld [vmem:[#allocation3 + $0x30] sm:$0xf]
    %v56 = vld [vmem:[#allocation3 + $0x34] sm:$0xf]
    %v57 = vld [vmem:[#allocation3 + $0x38] sm:$0xf]
    %v58 = vld [vmem:[#allocation3 + $0x3c] sm:$0xf]
    %v61 = vunpack.c.l.b16 %v39
    %v62 = vunpack.c.l.b16 %v40
    %v63 = vpack.c.b16 %v62, %v61
    %v81 = vunpack.c.l.b16 %v43
    %v82 = vunpack.c.l.b16 %v44
    %v83 = vunpack.c.l.b16 %v45
    %v84 = vunpack.c.l.b16 %v46
    %v85 = vunpack.c.l.b16 %v47
    %v86 = vunpack.c.l.b16 %v48
    %v87 = vunpack.c.l.b16 %v49
    %v88 = vunpack.c.l.b16 %v50
    %v89 = vunpack.c.l.b16 %v51
    %v90 = vunpack.c.l.b16 %v52
    %v91 = vunpack.c.l.b16 %v53
    %v92 = vunpack.c.l.b16 %v54
    %v93 = vunpack.c.l.b16 %v55
    %v94 = vunpack.c.l.b16 %v56
    %v95 = vunpack.c.l.b16 %v57
    %v96 = vunpack.c.l.b16 %v58
    %v97 = vpack.c.b16 %v82, %v81
    %v98 = vpack.c.b16 %v84, %v83
    %v99 = vpack.c.b16 %v86, %v85
    %v100 = vpack.c.b16 %v88, %v87
    %v101 = vpack.c.b16 %v90, %v89
    %v102 = vpack.c.b16 %v92, %v91
    %v103 = vpack.c.b16 %v94, %v93
    %v104 = vpack.c.b16 %v96, %v95
    %113 = vmatpush.bf16.msra.mxu0 %v104
    %114 = vmatpush.bf16.msra.mxu0 %v103
    %115 = vmatpush.bf16.msra.mxu0 %v102
    %116 = vmatpush.bf16.msra.mxu0 %v101
    %117 = vmatpush.bf16.msra.mxu0 %v100
    %118 = vmatpush.bf16.msra.mxu0 %v99
    %119 = vmatpush.bf16.msra.mxu0 %v98
    %120 = vmatpush.bf16.msra.mxu0 %v97
    %121 = vmatmul.bf16.gmra.mxu0 %v63
    %v122 = vpop.f32.mrf.mxu0
    %v123 = vadd.f32 0.0, %v122
    %v124 = vpop.f32.mrf.mxu0
    %v125 = vadd.f32 0.0, %v124
    %126 = vdwg.mxu0
    %v127 = vadd.f32 %v41, %v123
    %v128 = vadd.f32 %v42, %v125
    %129 = vst [vmem:[#allocation2] sm:$0xff] %v127
    %130 = vst [vmem:[#allocation2 + $0x8] sm:$0xff] %v128
    // Predicated region
    $region26: #{ar_straighter_forward.33} parent=1 // pred_check
      %p131 = pneg %p33
    $region27: #{ar_straighter_forward.33} parent=1 // pred_check_branch
      %133 = sbr.rel (%p131) target = $region29
    $region28: #{ar_straighter_forward.33} parent=1 // pred_region
      %v134 = vld [vmem:[#allocation2] sm:$0xff]
      %v135 = vld [vmem:[#allocation2 + $0x8] sm:$0xff]
      %v136 = vld [vmem:[%s2] sm:$0x1]
      %v138 = vperm.slane %v136, 0
      %v140 = vadd.f32 %v134, %v138
      %v141 = vadd.f32 %v135, %v138
      %v142 = vld [vmem:[%s3] sm:$0xf]
      %v143 = vld [vmem:[%s3 + $0x4] sm:$0xf]
      %v144 = vunpack.c.l.bf16 %v142
      %v145 = vunpack.c.l.bf16 %v143
      %v146 = vadd.f32 %v140, %v144
      %v147 = vadd.f32 %v141, %v145
      %v148 = vpack.c.bf16 %v146, %v146
      %v149 = vpack.c.bf16 %v147, %v147
      %150 = vst [vmem:[%s4] sm:$0xf] %v148
      %151 = vst [vmem:[%s4 + $0x4] sm:$0xf] %v149
    $region29: #{ar_straighter_forward.33} parent=1 // pred_fallthru
      _
    // Predicated region
    $region30: #{ar_straighter_forward.33} parent=1 // pred_check
      _
    $region31: #{ar_straighter_forward.33} parent=1 // pred_check_branch
      %153 = sbr.rel (0) target = $region33
    $region32: #{ar_straighter_forward.33} parent=1 // pred_region
      _
    $region33: #{ar_straighter_forward.33} parent=1 // pred_fallthru
      _
    // Predicated region
    $region34: #{ar_straighter_forward.33} parent=1 // pred_check
      _
    $region35: #{ar_straighter_forward.33} parent=1 // pred_check_branch
      %155 = sbr.rel (0) target = $region37
    $region36: #{ar_straighter_forward.33} parent=1 // pred_region
      _
    $region37: #{ar_straighter_forward.33} parent=1 // pred_fallthru
      _
    %156 = vsyncpa [#allocation4], 1

// kernel: ar_straighter_forward.34
$region0: #{ar_straighter_forward.34}
  #allocation0 [shape = 'u32[]', space=smem, size = 0x4, offset = 0x4, fixed_abs, tag = 'smem constant byte address 0x4 - core index']
  #allocation1 [shape = 'u32[72,128]{1,0:T(1,128)}', space=vmem, size = 0x9000, scoped, tag = 'internal scratch']
  #allocation2 [shape = 'f32[16,256]{1,0:T(8,128)}', space=vmem, size = 0x4000, scoped, tag = 'scratch operand']
  %s0 = inlined_call_operand.vmem [shape: bf16[16,128], index: 0, kind: input, shape index: {}]
  %s1 = inlined_call_operand.hbm [shape: bf16[128,512], index: 1, kind: input, shape index: {}]
  %s2 = inlined_call_operand.vmem [shape: f32[1,512], index: 2, kind: input, shape index: {}]
  %s3 = inlined_call_operand.vmem [shape: f32[1,128], index: 3, kind: input, shape index: {}]
  %s4 = inlined_call_operand.vmem [shape: f32[1,128], index: 4, kind: input, shape index: {}]
  %s5 = inlined_call_operand.vmem [shape: bf16[16,512], index: 5, kind: output, shape index: {}]
  %s6 = sld [smem:[#allocation0]]
  $region99: #{ar_straighter_forward.34} parent=0
    _
  %s8 = ssub.s32 1, %s6
  %s9 = scalar_select 0, %s8, %s6
  $region1: #{ar_straighter_forward.34} parent=0
    #allocation3 [shape = 'u8[131072]{0}', space=vmem, size = 0x20000, scoped, tag = 'input window, operand 1']
    #allocation4 [shape = 's32[2]{0}', space=sflag, size = 0x8, scoped, tag = 'scoped memory for ar_straighter_forward.34']
    #allocation5 [shape = 'u8[16384]{0}', space=vmem, size = 0x4000, scoped, tag = 'output window, operand 0']
    %10 = vsyncpa [#allocation4], 0
    %s11 = scalar_lea.sflag [#allocation4], 1
    %12 = vsyncpa %s11, 0
    loop: start=0, step=1, limit=4
    $region2: #{ar_straighter_forward.34} parent=1 // loop_pre_header
      _
    $region3: #{ar_straighter_forward.34} parent=1 // loop_header
      %s14 = sphi 0, %s18
      %p15 = scmp.ge.s32.totalorder %s14, 4
      %s21 = sphi 0, %s40
      %s22 = sphi 0, %s36
      %s23 = sphi 0, %s32
      %s24 = sphi 0, %s21
      %s25 = sphi 0, %s22
      %s26 = sphi 0, %s23
      %s27 = sphi 0, %s24
      %s28 = sphi 0, %s25
      %s29 = sphi 0, %s26
      %s45 = sphi 0, %s47
      %s48 = sphi 0, %s45
      %s49 = sphi 0, %s48
      %s65 = sphi 0, %s49
      %s73 = sphi 0, %s75
      %s76 = sphi 0, %s73
      %s77 = sphi 0, %s76
      %s93 = sphi 0, %s77
      %s99 = sphi 0, %s101
      %s102 = sphi 0, %s99
      %s103 = sphi 0, %s102
      %s119 = sphi 0, %s103
      %s123 = sphi 0, %s123
      %s125 = sphi 0, %s123
      %s126 = sphi 0, %s125
      %s140 = sphi 0, %s126
      %s144 = sphi 0, %s144
      %s146 = sphi 0, %s144
      %s147 = sphi 0, %s146
      %s161 = sphi 0, %s147
      %s169 = sphi 0, %s171
      %s172 = sphi 0, %s169
      %s173 = sphi 0, %s172
      %s189 = sphi 0, %s173
    $region4: #{ar_straighter_forward.34} parent=1 // loop_header_branch
      %17 = sbr.rel (%p15) target = $region8
    $region5: #{ar_straighter_forward.34} parent=1 // loop_body
      %s19 = ssub.s32 %s14, 1
      %s20 = ssub.s32 %s14, 2
      %s30 = sadd.s32 1, %s23
      %p31 = scmp.ge.s32.totalorder %s30, 1
      %s32 = scalar_select %p31, 0, %s30
      %s33 = sadd.s32 1, %s22
      %s34 = scalar_select %p31, %s33, %s22
      %p35 = scmp.ge.s32.totalorder %s34, 2
      %s36 = scalar_select %p35, 0, %s34
      %s37 = sadd.s32 1, %s21
      %s38 = scalar_select %p35, %s37, %s21
      %p39 = scmp.ge.s32.totalorder %s38, 1
      %s40 = scalar_select %p39, 0, %s38
      %s41 = ssub.s32 %s21, %s40
      %s42 = ssub.s32 %s23, %s32
      %s43 = sor.u32 %s41, %s42
      %p44 = scmp.eq.s32.totalorder %s43, 0
      %s46 = sadd.s32 %s45, 1
      %s47 = scalar_select %p44, %s45, %s46
      %p50 = pneg %p44
      %p51 = scmp.eq.s32.totalorder %s14, 1
      %p52 = por %p50, %p51
      %p53 = scmp.ne.s32.totalorder %s45, %s48
      %p54 = scmp.eq.s32.totalorder %s14, 0
      %p55 = por %p53, %p54
      %p56 = scmp.ne.s32.totalorder %s45, %s48
      %p57 = scmp.eq.s32.totalorder %s19, 1
      %p58 = por %p56, %p57
      %p59 = scmp.ne.s32.totalorder %s48, %s49
      %p60 = scmp.eq.s32.totalorder %s19, 0
      %p61 = por %p59, %p60
      %p62 = scmp.ne.s32.totalorder %s48, %s49
      %p63 = scmp.eq.s32.totalorder %s20, 1
      %p64 = por %p62, %p63
      %p66 = scmp.ne.s32.totalorder %s49, %s65
      %p67 = scmp.eq.s32.totalorder %s20, 0
      %p68 = por %p66, %p67
      %s69 = ssub.s32 %s23, %s32
      %s70 = ssub.s32 %s22, %s36
      %s71 = sor.u32 %s69, %s70
      %p72 = scmp.eq.s32.totalorder %s71, 0
      %s74 = sadd.s32 %s73, 1
      %s75 = scalar_select %p72, %s73, %s74
      %p78 = pneg %p72
      %p79 = scmp.eq.s32.totalorder %s14, 1
      %p80 = por %p78, %p79
      %p81 = scmp.ne.s32.totalorder %s73, %s76
      %p82 = scmp.eq.s32.totalorder %s14, 0
      %p83 = por %p81, %p82
      %p84 = scmp.ne.s32.totalorder %s73, %s76
      %p85 = scmp.eq.s32.totalorder %s19, 1
      %p86 = por %p84, %p85
      %p87 = scmp.ne.s32.totalorder %s76, %s77
      %p88 = scmp.eq.s32.totalorder %s19, 0
      %p89 = por %p87, %p88
      %p90 = scmp.ne.s32.totalorder %s76, %s77
      %p91 = scmp.eq.s32.totalorder %s20, 1
      %p92 = por %p90, %p91
      %p94 = scmp.ne.s32.totalorder %s77, %s93
      %p95 = scmp.eq.s32.totalorder %s20, 0
      %p96 = por %p94, %p95
      %s97 = ssub.s32 %s22, %s36
      %p98 = scmp.eq.s32.totalorder %s97, 0
      %s100 = sadd.s32 %s99, 1
      %s101 = scalar_select %p98, %s99, %s100
      %p104 = pneg %p98
      %p105 = scmp.eq.s32.totalorder %s14, 1
      %p106 = por %p104, %p105
      %p107 = scmp.ne.s32.totalorder %s99, %s102
      %p108 = scmp.eq.s32.totalorder %s14, 0
      %p109 = por %p107, %p108
      %p110 = scmp.ne.s32.totalorder %s99, %s102
      %p111 = scmp.eq.s32.totalorder %s19, 1
      %p112 = por %p110, %p111
      %p113 = scmp.ne.s32.totalorder %s102, %s103
      %p114 = scmp.eq.s32.totalorder %s19, 0
      %p115 = por %p113, %p114
      %p116 = scmp.ne.s32.totalorder %s102, %s103
      %p117 = scmp.eq.s32.totalorder %s20, 1
      %p118 = por %p116, %p117
      %p120 = scmp.ne.s32.totalorder %s103, %s119
      %p121 = scmp.eq.s32.totalorder %s20, 0
      %p122 = por %p120, %p121
      %s124 = sadd.s32 %s123, 1
      %p127 = scmp.eq.s32.totalorder %s14, 1
      %p128 = scmp.ne.s32.totalorder %s123, %s125
      %p129 = scmp.eq.s32.totalorder %s14, 0
      %p130 = por %p128, %p129
      %p131 = scmp.ne.s32.totalorder %s123, %s125
      %p132 = scmp.eq.s32.totalorder %s19, 1
      %p133 = por %p131, %p132
      %p134 = scmp.ne.s32.totalorder %s125, %s126
      %p135 = scmp.eq.s32.totalorder %s19, 0
      %p136 = por %p134, %p135
      %p137 = scmp.ne.s32.totalorder %s125, %s126
      %p138 = scmp.eq.s32.totalorder %s20, 1
      %p139 = por %p137, %p138
      %p141 = scmp.ne.s32.totalorder %s126, %s140
      %p142 = scmp.eq.s32.totalorder %s20, 0
      %p143 = por %p141, %p142
      %s145 = sadd.s32 %s144, 1
      %p148 = scmp.eq.s32.totalorder %s14, 1
      %p149 = scmp.ne.s32.totalorder %s144, %s146
      %p150 = scmp.eq.s32.totalorder %s14, 0
      %p151 = por %p149, %p150
      %p152 = scmp.ne.s32.totalorder %s144, %s146
      %p153 = scmp.eq.s32.totalorder %s19, 1
      %p154 = por %p152, %p153
      %p155 = scmp.ne.s32.totalorder %s146, %s147
      %p156 = scmp.eq.s32.totalorder %s19, 0
      %p157 = por %p155, %p156
      %p158 = scmp.ne.s32.totalorder %s146, %s147
      %p159 = scmp.eq.s32.totalorder %s20, 1
      %p160 = por %p158, %p159
      %p162 = scmp.ne.s32.totalorder %s147, %s161
      %p163 = scmp.eq.s32.totalorder %s20, 0
      %p164 = por %p162, %p163
      %s165 = ssub.s32 %s21, %s40
      %s166 = ssub.s32 %s22, %s36
      %s167 = sor.u32 %s165, %s166
      %p168 = scmp.eq.s32.totalorder %s167, 0
      %s170 = sadd.s32 %s169, 1
      %s171 = scalar_select %p168, %s169, %s170
      %p174 = pneg %p168
      %p175 = scmp.eq.s32.totalorder %s14, 1
      %p176 = por %p174, %p175
      %p177 = scmp.ne.s32.totalorder %s169, %s172
      %p178 = scmp.eq.s32.totalorder %s14, 0
      %p179 = por %p177, %p178
      %p180 = scmp.ne.s32.totalorder %s169, %s172
      %p181 = scmp.eq.s32.totalorder %s19, 1
      %p182 = por %p180, %p181
      %p183 = scmp.ne.s32.totalorder %s172, %s173
      %p184 = scmp.eq.s32.totalorder %s19, 0
      %p185 = por %p183, %p184
      %p186 = scmp.ne.s32.totalorder %s172, %s173
      %p187 = scmp.eq.s32.totalorder %s20, 1
      %p188 = por %p186, %p187
      %p190 = scmp.ne.s32.totalorder %s173, %s189
      %p191 = scmp.eq.s32.totalorder %s20, 0
      %p192 = por %p190, %p191
      %p193 = scmp.le.s32.totalorder 1, %s14
      %p194 = scmp.lt.s32.totalorder %s14, 3
      %p195 = pnand %p193, %p194
      %p196 = pneg %p195
      // Predicated region
      $region9: #{ar_straighter_forward.34} parent=5 // pred_check
        _
      $region10: #{ar_straighter_forward.34} parent=5 // pred_check_branch
        %198 = sbr.rel (%p195) target = $region12
      $region11: #{ar_straighter_forward.34} parent=5 // pred_region
        %s199 = ssub.s32 %s14, 1
        // Predicated region
        $region13: #{ar_straighter_forward.34} parent=11 // pred_check
          %p200 = pneg %p61
        $region14: #{ar_straighter_forward.34} parent=11 // pred_check_branch
          %202 = sbr.rel (%p200) target = $region16
        $region15: #{ar_straighter_forward.34} parent=11 // pred_region
          %s203 = smul.u32 2, %s24
          %p204 = scmp.lt.s32.totalorder %s203, 1
          %s205 = scalar_select %p204, %s203, 1
          %p206 = scmp.lt.s32.totalorder %s26, 0
          %s207 = scalar_select %p206, %s26, 0
          %s208 = sadd.s32 %s207, %s205
          %s209 = smul.addr %s208, 4
          %s210 = scalar_lea.vmem %s0, %s209
          %s211 = smul.u32 2, %s24
        $region16: #{ar_straighter_forward.34} parent=11 // pred_fallthru
          _
        // Predicated region
        $region17: #{ar_straighter_forward.34} parent=11 // pred_check
          %p212 = pneg %p136
        $region18: #{ar_straighter_forward.34} parent=11 // pred_check_branch
          %214 = sbr.rel (%p212) target = $region20
        $region19: #{ar_straighter_forward.34} parent=11 // pred_region
          _
        $region20: #{ar_straighter_forward.34} parent=11 // pred_fallthru
          _
        // Predicated region
        $region21: #{ar_straighter_forward.34} parent=11 // pred_check
          %p215 = pneg %p157
        $region22: #{ar_straighter_forward.34} parent=11 // pred_check_branch
          %217 = sbr.rel (%p215) target = $region24
        $region23: #{ar_straighter_forward.34} parent=11 // pred_region
          _
        $region24: #{ar_straighter_forward.34} parent=11 // pred_fallthru
          _
      $region12: #{ar_straighter_forward.34} parent=5 // pred_fallthru
        _
      %p218 = scmp.lt.s32.totalorder %s14, 2
      // Predicated region
      $region25: #{ar_straighter_forward.34} parent=5 // pred_check
        %p219 = pneg %p218
      $region26: #{ar_straighter_forward.34} parent=5 // pred_check_branch
        %221 = sbr.rel (%p219) target = $region28
      $region27: #{ar_straighter_forward.34} parent=5 // pred_region
        // Predicated region
        $region29: #{ar_straighter_forward.34} parent=27 // pred_check
          %p222 = pneg %p83
        $region30: #{ar_straighter_forward.34} parent=27 // pred_check_branch
          %224 = sbr.rel (%p222) target = $region32
        $region31: #{ar_straighter_forward.34} parent=27 // pred_region
          %s225 = sand.u32 %s73, 1
          %s226 = scalar_lea.sflag [#allocation4], %s225
          %s227 = sand.u32 %s73, 1
          %s228 = smul.addr %s227, 128
          %s229 = scalar_lea.vmem [#allocation3], %s228
          %s230 = smul.u32 16, %s23
          %s231 = smul.u32 2, %s22
          %233 = vsyncadd %s226, 0
          %s234 = smul.addr %s230, 4
          %s235 = sadd.s32 %s231, %s234
          %s236 = smul.addr %s235, 4
          %s237 = scalar_lea.hbm %s1, %s236
          %s238 = sshll.u32 %s237, 4
          %s239 = int_to_ptr.hbm [resolvable:$true] %s238
          %s240 = sshll.u32 %s229, 4
          %s241 = int_to_ptr.vmem [resolvable:$true] %s240
          %246 = dma.hbm_to_vmem [thread:$0]  %s239, 2048, %s241, %s226, 256, 128, 8
        $region32: #{ar_straighter_forward.34} parent=27 // pred_fallthru
          _
        // Predicated region
        $region33: #{ar_straighter_forward.34} parent=27 // pred_check
          %p247 = pneg %p109
        $region34: #{ar_straighter_forward.34} parent=27 // pred_check_branch
          %249 = sbr.rel (%p247) target = $region36
        $region35: #{ar_straighter_forward.34} parent=27 // pred_region
          %s250 = smul.u32 2, %s22
          %p251 = scmp.lt.s32.totalorder %s250, 3
          %s252 = scalar_select %p251, %s250, 3
          %s253 = scalar_lea.vmem %s2, %s252
          %s254 = smul.u32 2, %s22
        $region36: #{ar_straighter_forward.34} parent=27 // pred_fallthru
          _
      $region28: #{ar_straighter_forward.34} parent=5 // pred_fallthru
        _
      %p255 = scmp.le.s32.totalorder 1, %s14
      %p256 = scmp.lt.s32.totalorder %s14, 3
      %p257 = pnand %p255, %p256
      %p258 = pneg %p257
      // Predicated region
      $region37: #{ar_straighter_forward.34} parent=5 // pred_check
        _
      $region38: #{ar_straighter_forward.34} parent=5 // pred_check_branch
        %260 = sbr.rel (%p257) target = $region40
      $region39: #{ar_straighter_forward.34} parent=5 // pred_region
        %s261 = ssub.s32 %s14, 1
        %s262 = sand.u32 %s76, 1
        %s263 = scalar_lea.sflag [#allocation4], %s262
        %s264 = sand.u32 %s76, 1
        %s265 = smul.addr %s264, 128
        %s266 = scalar_lea.vmem [#allocation3], %s265
        // Predicated region
        $region41: #{ar_straighter_forward.34} parent=39 // pred_check
          %p267 = pneg %p89
        $region42: #{ar_straighter_forward.34} parent=39 // pred_check_branch
          %269 = sbr.rel (%p267) target = $region44
        $region43: #{ar_straighter_forward.34} parent=39 // pred_region
          %271 = dma.done %s263, 2048
        $region44: #{ar_straighter_forward.34} parent=39 // pred_fallthru
          _
        %s272 = smul.u32 2, %s24
        %p273 = scmp.lt.s32.totalorder %s272, 1
        %s274 = scalar_select %p273, %s272, 1
        %p275 = scmp.lt.s32.totalorder %s26, 0
        %s276 = scalar_select %p275, %s26, 0
        %s277 = sadd.s32 %s276, %s274
        %s278 = smul.addr %s277, 4
        %s279 = scalar_lea.vmem %s0, %s278
        %p280 = pneg %p61
        %p281 = pneg %p58
        %s282 = sand.u32 %s76, 1
        %s283 = scalar_lea.sflag [#allocation4], %s282
        %s284 = sand.u32 %s76, 1
        %s285 = smul.addr %s284, 128
        %s286 = scalar_lea.vmem [#allocation3], %s285
        %p287 = pneg %p89
        %p288 = pneg %p86
        %s289 = smul.u32 2, %s25
        %p290 = scmp.lt.s32.totalorder %s289, 3
        %s291 = scalar_select %p290, %s289, 3
        %s292 = scalar_lea.vmem %s2, %s291
        %p293 = pneg %p115
        %p294 = pneg %p112
        %p295 = pneg %p136
        %p296 = pneg %p133
        %p297 = pneg %p157
        %p298 = pneg %p154
        %p299 = pneg %p185
        %p300 = pneg %p182
        %s301 = sand.u32 %s172, 1
        %s302 = sand.u32 %s172, 1
        %s303 = smul.addr %s302, 16
        %s304 = scalar_lea.vmem [#allocation5], %s303
        %s305 = smul.u32 2, %s24
        %p306 = scmp.lt.s32.totalorder %s305, 1
        %s307 = scalar_select %p306, %s305, 1
        %p308 = scmp.lt.s32.totalorder %s26, 0
        %s309 = scalar_select %p308, %s26, 0
        %s310 = sadd.s32 %s309, %s307
        %s311 = smul.addr %s310, 4
        %s312 = scalar_lea.vmem %s0, %s311
        %s313 = smul.u32 2, %s24
        %s314 = smul.u32 16, %s26
        %s315 = smul.u32 2, %s25
        %s316 = smul.u32 2, %s25
        %p317 = scmp.lt.s32.totalorder %s316, 3
        %s318 = scalar_select %p317, %s316, 3
        %s319 = scalar_lea.vmem %s2, %s318
        %s320 = smul.u32 2, %s25
        %s321 = smul.u32 2, %s24
        %s322 = smul.u32 2, %s25
        %p323 = scmp.eq.s32.totalorder %s26, 0
        // Predicated region
        $region45: #{ar_straighter_forward.34} parent=39 // pred_check
          %p324 = pneg %p323
        $region46: #{ar_straighter_forward.34} parent=39 // pred_check_branch
          %326 = sbr.rel (%p324) target = $region48
        $region47: #{ar_straighter_forward.34} parent=39 // pred_region
          %327 = vst [vmem:[#allocation2] sm:$0xff] 0.0
          %328 = vst [vmem:[#allocation2 + $0x8] sm:$0xff] 0.0
          %329 = vst [vmem:[#allocation2 + $0x10] sm:$0xff] 0.0
          %330 = vst [vmem:[#allocation2 + $0x18] sm:$0xff] 0.0
        $region48: #{ar_straighter_forward.34} parent=39 // pred_fallthru
          _
        %v331 = vld [vmem:[%s312] sm:$0xf]
        %v332 = vld [vmem:[%s312 + $0x4] sm:$0xf]
        %v333 = vunpack.c.l.bf16 %v331
        %v334 = vunpack.c.l.bf16 %v332
        %335 = vadd.xlane.f32.xlu0 %v333
        %v336 = vpop.xlane.xlu0 %335
        %337 = vadd.xlane.f32.xlu0 %v334
        %v338 = vpop.xlane.xlu0 %337
        %v339 = vrcp.pop 128.0
        %v340 = vmul.f32 128.0, %v339
        %v341 = vsub.f32 1.0, %v340
        %v342 = vmul.f32 %v339, %v341
        %v343 = vadd.f32 %v339, %v342
        %vm344 = vweird.f32 %v339
        %v345 = vsel %vm344, %v339, %v343
        %v346 = vmul.f32 %v336, %v345
        %v347 = vmul.f32 %v338, %v345
        %v348 = vsub.f32 %v333, %v346
        %v349 = vsub.f32 %v334, %v347
        %v350 = vmul.f32 %v348, %v348
        %v351 = vmul.f32 %v349, %v349
        %352 = vadd.xlane.f32.xlu0 %v350
        %v353 = vpop.xlane.xlu0 %352
        %354 = vadd.xlane.f32.xlu0 %v351
        %v355 = vpop.xlane.xlu0 %354
        %v356 = vmul.f32 %v353, %v345
        %v357 = vmul.f32 %v355, %v345
        %v358 = vadd.f32 %v356, 1e-05
        %v359 = vadd.f32 %v357, 1e-05
        %v360 = vrsqrt.pop %v358
        %v361 = vmul.f32 %v360, %v358
        %v362 = vmul.f32 %v361, %v360
        %v363 = vmul.f32 0.5, %v362
        %v364 = vsub.f32 1.5, %v363
        %v365 = vmul.f32 %v360, %v364
        %vm366 = vweird.f32 %v358
        %vm367 = vweird.f32 %v360
        %vm368 = vmor %vm366, %vm367
        %v369 = vsel %vm368, %v360, %v365
        %v370 = vrsqrt.pop %v359
        %v371 = vmul.f32 %v370, %v359
        %v372 = vmul.f32 %v371, %v370
        %v373 = vmul.f32 0.5, %v372
        %v374 = vsub.f32 1.5, %v373
        %v375 = vmul.f32 %v370, %v374
        %vm376 = vweird.f32 %v359
        %vm377 = vweird.f32 %v370
        %vm378 = vmor %vm376, %vm377
        %v379 = vsel %vm378, %v370, %v375
        %v380 = vmul.f32 %v348, %v369
        %v381 = vmul.f32 %v349, %v379
        %v382 = vld [vmem:[%s3] sm:$0x1]
        %v384 = vperm.slane %v382, 0
        %v386 = vmul.f32 %v380, %v384
        %v387 = vmul.f32 %v381, %v384
        %v388 = vld [vmem:[%s4] sm:$0x1]
        %v390 = vperm.slane %v388, 0
        %v392 = vadd.f32 %v386, %v390
        %v393 = vadd.f32 %v387, %v390
        %v394 = vpack.c.bf16 %v393, %v392
        %v395 = vld [vmem:[#allocation2] sm:$0xff]
        %v396 = vld [vmem:[#allocation2 + $0x8] sm:$0xff]
        %v397 = vld [vmem:[#allocation2 + $0x10] sm:$0xff]
        %v398 = vld [vmem:[#allocation2 + $0x18] sm:$0xff]
        %v399 = vld [vmem:[%s266] sm:$0xff]
        %v400 = vld [vmem:[%s266 + $0x8] sm:$0xff]
        %v401 = vld [vmem:[%s266 + $0x10] sm:$0xff]
        %v402 = vld [vmem:[%s266 + $0x18] sm:$0xff]
        %v403 = vld [vmem:[%s266 + $0x20] sm:$0xff]
        %v404 = vld [vmem:[%s266 + $0x28] sm:$0xff]
        %v405 = vld [vmem:[%s266 + $0x30] sm:$0xff]
        %v406 = vld [vmem:[%s266 + $0x38] sm:$0xff]
        %v407 = vld [vmem:[%s266 + $0x40] sm:$0xff]
        %v408 = vld [vmem:[%s266 + $0x48] sm:$0xff]
        %v409 = vld [vmem:[%s266 + $0x50] sm:$0xff]
        %v410 = vld [vmem:[%s266 + $0x58] sm:$0xff]
        %v411 = vld [vmem:[%s266 + $0x60] sm:$0xff]
        %v412 = vld [vmem:[%s266 + $0x68] sm:$0xff]
        %v413 = vld [vmem:[%s266 + $0x70] sm:$0xff]
        %v414 = vld [vmem:[%s266 + $0x78] sm:$0xff]
        %v431 = vunpack.c.l.b16 %v399
        %v432 = vunpack.c.h.b16 %v399
        %v433 = vunpack.c.l.b16 %v400
        %v434 = vunpack.c.h.b16 %v400
        %v435 = vunpack.c.l.b16 %v401
        %v436 = vunpack.c.h.b16 %v401
        %v437 = vunpack.c.l.b16 %v402
        %v438 = vunpack.c.h.b16 %v402
        %v439 = vunpack.c.l.b16 %v403
        %v440 = vunpack.c.h.b16 %v403
        %v441 = vunpack.c.l.b16 %v404
        %v442 = vunpack.c.h.b16 %v404
        %v443 = vunpack.c.l.b16 %v405
        %v444 = vunpack.c.h.b16 %v405
        %v445 = vunpack.c.l.b16 %v406
        %v446 = vunpack.c.h.b16 %v406
        %v447 = vunpack.c.l.b16 %v407
        %v448 = vunpack.c.h.b16 %v407
        %v449 = vunpack.c.l.b16 %v408
        %v450 = vunpack.c.h.b16 %v408
        %v451 = vunpack.c.l.b16 %v409
        %v452 = vunpack.c.h.b16 %v409
        %v453 = vunpack.c.l.b16 %v410
        %v454 = vunpack.c.h.b16 %v410
        %v455 = vunpack.c.l.b16 %v411
        %v456 = vunpack.c.h.b16 %v411
        %v457 = vunpack.c.l.b16 %v412
        %v458 = vunpack.c.h.b16 %v412
        %v459 = vunpack.c.l.b16 %v413
        %v460 = vunpack.c.h.b16 %v413
        %v461 = vunpack.c.l.b16 %v414
        %v462 = vunpack.c.h.b16 %v414
        %v463 = vpack.c.b16 %v433, %v431
        %v464 = vpack.c.b16 %v434, %v432
        %v465 = vpack.c.b16 %v437, %v435
        %v466 = vpack.c.b16 %v438, %v436
        %v467 = vpack.c.b16 %v441, %v439
        %v468 = vpack.c.b16 %v442, %v440
        %v469 = vpack.c.b16 %v445, %v443
        %v470 = vpack.c.b16 %v446, %v444
        %v471 = vpack.c.b16 %v449, %v447
        %v472 = vpack.c.b16 %v450, %v448
        %v473 = vpack.c.b16 %v453, %v451
        %v474 = vpack.c.b16 %v454, %v452
        %v475 = vpack.c.b16 %v457, %v455
        %v476 = vpack.c.b16 %v458, %v456
        %v477 = vpack.c.b16 %v461, %v459
        %v478 = vpack.c.b16 %v462, %v460
        %495 = vmatpush.bf16.msra.mxu0 %v477
        %496 = vmatpush.bf16.msra.mxu0 %v475
        %497 = vmatpush.bf16.msra.mxu0 %v473
        %498 = vmatpush.bf16.msra.mxu0 %v471
        %499 = vmatpush.bf16.msra.mxu0 %v469
        %500 = vmatpush.bf16.msra.mxu0 %v467
        %501 = vmatpush.bf16.msra.mxu0 %v465
        %502 = vmatpush.bf16.msra.mxu0 %v463
        %503 = vmatmul.bf16.gmra.mxu0 %v394
        %v504 = vpop.f32.mrf.mxu0
        %v505 = vadd.f32 0.0, %v504
        %v506 = vpop.f32.mrf.mxu0
        %v507 = vadd.f32 0.0, %v506
        %508 = vdwg.mxu0
        %509 = vmatpush.bf16.msra.mxu0 %v478
        %510 = vmatpush.bf16.msra.mxu0 %v476
        %511 = vmatpush.bf16.msra.mxu0 %v474
        %512 = vmatpush.bf16.msra.mxu0 %v472
        %513 = vmatpush.bf16.msra.mxu0 %v470
        %514 = vmatpush.bf16.msra.mxu0 %v468
        %515 = vmatpush.bf16.msra.mxu0 %v466
        %516 = vmatpush.bf16.msra.mxu0 %v464
        %517 = vmatmul.bf16.gmra.mxu0 %v394
        %v518 = vpop.f32.mrf.mxu0
        %v519 = vadd.f32 0.0, %v518
        %v520 = vpop.f32.mrf.mxu0
        %v521 = vadd.f32 0.0, %v520
        %522 = vdwg.mxu0
        %v523 = vadd.f32 %v395, %v505
        %v524 = vadd.f32 %v396, %v519
        %v525 = vadd.f32 %v397, %v507
        %v526 = vadd.f32 %v398, %v521
        %527 = vst [vmem:[#allocation2] sm:$0xff] %v523
        %528 = vst [vmem:[#allocation2 + $0x8] sm:$0xff] %v524
        %529 = vst [vmem:[#allocation2 + $0x10] sm:$0xff] %v525
        %530 = vst [vmem:[#allocation2 + $0x18] sm:$0xff] %v526
        // Predicated region
        $region49: #{ar_straighter_forward.34} parent=39 // pred_check
          %p531 = pneg %p323
        $region50: #{ar_straighter_forward.34} parent=39 // pred_check_branch
          %533 = sbr.rel (%p531) target = $region52
        $region51: #{ar_straighter_forward.34} parent=39 // pred_region
          %v534 = vld [vmem:[#allocation2] sm:$0xff]
          %v535 = vld [vmem:[#allocation2 + $0x8] sm:$0xff]
          %v536 = vld [vmem:[#allocation2 + $0x10] sm:$0xff]
          %v537 = vld [vmem:[#allocation2 + $0x18] sm:$0xff]
          %v538 = vld [vmem:[%s319] sm:$0x3]
          %v540 = vperm.slane %v538, 0
          %v541 = vperm.slane %v538, 1
          %v544 = vadd.f32 %v534, %v540
          %v545 = vadd.f32 %v535, %v541
          %v546 = vadd.f32 %v536, %v540
          %v547 = vadd.f32 %v537, %v541
          %v548 = vmul.f32 %v544, %v544
          %v549 = vmul.f32 %v545, %v545
          %v550 = vmul.f32 %v546, %v546
          %v551 = vmul.f32 %v547, %v547
          %v552 = vmul.f32 %v544, %v548
          %v553 = vmul.f32 %v545, %v549
          %v554 = vmul.f32 %v546, %v550
          %v555 = vmul.f32 %v547, %v551
          %v556 = vmul.f32 %v552, 0.044715
          %v557 = vmul.f32 %v553, 0.044715
          %v558 = vmul.f32 %v554, 0.044715
          %v559 = vmul.f32 %v555, 0.044715
          %v560 = vadd.f32 %v544, %v556
          %v561 = vadd.f32 %v545, %v557
          %v562 = vadd.f32 %v546, %v558
          %v563 = vadd.f32 %v547, %v559
          %v564 = vmul.f32 %v560, 0.7978846
          %v565 = vmul.f32 %v561, 0.7978846
          %v566 = vmul.f32 %v562, 0.7978846
          %v567 = vmul.f32 %v563, 0.7978846
          %v568 = vtanh.pop %v564
          %v569 = vtanh.pop %v565
          %v570 = vtanh.pop %v566
          %v571 = vtanh.pop %v567
          %v572 = vadd.f32 %v568, 1.0
          %v573 = vadd.f32 %v569, 1.0
          %v574 = vadd.f32 %v570, 1.0
          %v575 = vadd.f32 %v571, 1.0
          %v576 = vmul.f32 %v572, 0.5
          %v577 = vmul.f32 %v573, 0.5
          %v578 = vmul.f32 %v574, 0.5
          %v579 = vmul.f32 %v575, 0.5
          %v580 = vmul.f32 %v544, %v576
          %v581 = vmul.f32 %v545, %v577
          %v582 = vmul.f32 %v546, %v578
          %v583 = vmul.f32 %v547, %v579
          %v584 = vpack.c.bf16 %v581, %v580
          %v585 = vpack.c.bf16 %v583, %v582
          %586 = vst [vmem:[%s304] sm:$0xff] %v584
          %587 = vst [vmem:[%s304 + $0x8] sm:$0xff] %v585
        $region52: #{ar_straighter_forward.34} parent=39 // pred_fallthru
          _
        %s588 = sand.u32 %s172, 1
        %s589 = sand.u32 %s172, 1
        %s590 = smul.addr %s589, 16
        %s591 = scalar_lea.vmem [#allocation5], %s590
        // Predicated region
        $region53: #{ar_straighter_forward.34} parent=39 // pred_check
          %p592 = pneg %p182
        $region54: #{ar_straighter_forward.34} parent=39 // pred_check_branch
          %594 = sbr.rel (%p592) target = $region56
        $region55: #{ar_straighter_forward.34} parent=39 // pred_region
          %s595 = smul.u32 2, %s24
          %s596 = smul.u32 2, %s25
          %s597 = smul.addr %s595, 4
          %s598 = sadd.s32 %s596, %s597
          %s599 = smul.addr %s598, 4
          %s600 = scalar_lea.vmem %s5, %s599
          // Predicated region
          $region57: #{ar_straighter_forward.34} parent=55 // pred_check
            _
          $region58: #{ar_straighter_forward.34} parent=55 // pred_check_branch
            %602 = sbr.rel (0) target = $region60
          $region59: #{ar_straighter_forward.34} parent=55 // pred_region
            // Predicated region
            $region61: #{ar_straighter_forward.34} parent=59 // pred_check
              _
            $region62: #{ar_straighter_forward.34} parent=59 // pred_check_branch
              %604 = sbr.rel (0) target = $region64
            $region63: #{ar_straighter_forward.34} parent=59 // pred_region
              // Predicated region
              $region76: #{ar_straighter_forward.34} parent=63 // pred_check
                _
              $region77: #{ar_straighter_forward.34} parent=63 // pred_check_branch
                %622 = sbr.rel (0) target = $region79
              $region78: #{ar_straighter_forward.34} parent=63 // pred_region
                loop: start=0, step=1, limit=1
                $region80: #{ar_straighter_forward.34} parent=78 // loop_pre_header
                  _
                $region81: #{ar_straighter_forward.34} parent=78 // loop_header
                  %s624 = sphi 0, %s628
                  %p625 = scmp.ge.s32.totalorder %s624, 1
                  %s629 = sphi %s591, %s591
                  %s630 = sphi %s600, %s600
                $region82: #{ar_straighter_forward.34} parent=78 // loop_header_branch
                  %627 = sbr.rel (%p625) target = $region86
                $region83: #{ar_straighter_forward.34} parent=78 // loop_body
                  %v631 = vld [vmem:[%s629] sm:$0xff]
                  %632 = vst [vmem:[%s630] sm:$0xff] %v631
                  %v633 = vld [vmem:[%s629 + $0x8] sm:$0xff]
                  %634 = vst [vmem:[%s630 + $0x10] sm:$0xff] %v633
                $region84: #{ar_straighter_forward.34} parent=78 // loop_footer
                  %s628 = sadd.s32 1, %s624
                $region85: #{ar_straighter_forward.34} parent=78 // loop_footer_branch
                  %623 = sbr.rel target = $region81
                $region86: #{ar_straighter_forward.34} parent=78 // loop_exit
                  _
              $region79: #{ar_straighter_forward.34} parent=63 // pred_fallthru
                _
              // Predicated region
              $region87: #{ar_straighter_forward.34} parent=63 // pred_check
                _
              $region88: #{ar_straighter_forward.34} parent=63 // pred_check_branch
                %636 = sbr.rel target = $region90
              $region89: #{ar_straighter_forward.34} parent=63 // pred_region
                _
              $region90: #{ar_straighter_forward.34} parent=63 // pred_fallthru
                _
            $region64: #{ar_straighter_forward.34} parent=59 // pred_fallthru
              _
            // Predicated region
            $region65: #{ar_straighter_forward.34} parent=59 // pred_check
              _
            $region66: #{ar_straighter_forward.34} parent=59 // pred_check_branch
              %606 = sbr.rel target = $region68
            $region67: #{ar_straighter_forward.34} parent=59 // pred_region
              %s608 = ssub.s32 256, 1
              loop: start=0, step=1, limit=1
              $region69: #{ar_straighter_forward.34} parent=67 // loop_pre_header
                _
              $region70: #{ar_straighter_forward.34} parent=67 // loop_header
                %s610 = sphi 0, %s614
                %p611 = scmp.ge.s32.totalorder %s610, 1
                %s615 = sphi %s591, %s591
                %s616 = sphi %s600, %s600
              $region71: #{ar_straighter_forward.34} parent=67 // loop_header_branch
                %613 = sbr.rel (%p611) target = $region75
              $region72: #{ar_straighter_forward.34} parent=67 // loop_body
                %v617 = vld [vmem:[%s615] sm:%s608]
                %618 = vst [vmem:[%s616] sm:%s608] %v617
                %v619 = vld [vmem:[%s615 + $0x8] sm:%s608]
                %620 = vst [vmem:[%s616 + $0x10] sm:%s608] %v619
              $region73: #{ar_straighter_forward.34} parent=67 // loop_footer
                %s614 = sadd.s32 1, %s610
              $region74: #{ar_straighter_forward.34} parent=67 // loop_footer_branch
                %609 = sbr.rel target = $region70
              $region75: #{ar_straighter_forward.34} parent=67 // loop_exit
                _
            $region68: #{ar_straighter_forward.34} parent=59 // pred_fallthru
              _
          $region60: #{ar_straighter_forward.34} parent=55 // pred_fallthru
            _
          %637 = vnop
        $region56: #{ar_straighter_forward.34} parent=39 // pred_fallthru
          _
      $region40: #{ar_straighter_forward.34} parent=5 // pred_fallthru
        _
      %p638 = scmp.le.s32.totalorder 2, %s14
      // Predicated region
      $region91: #{ar_straighter_forward.34} parent=5 // pred_check
        %p639 = pneg %p638
      $region92: #{ar_straighter_forward.34} parent=5 // pred_check_branch
        %641 = sbr.rel (%p639) target = $region94
      $region93: #{ar_straighter_forward.34} parent=5 // pred_region
        %s642 = ssub.s32 %s14, 2
        // Predicated region
        $region95: #{ar_straighter_forward.34} parent=93 // pred_check
          %p643 = pneg %p188
        $region96: #{ar_straighter_forward.34} parent=93 // pred_check_branch
          %645 = sbr.rel (%p643) target = $region98
        $region97: #{ar_straighter_forward.34} parent=93 // pred_region
          %s646 = sand.u32 %s173, 1
          %s647 = sand.u32 %s173, 1
          %s648 = smul.addr %s647, 16
          %s649 = scalar_lea.vmem [#allocation5], %s648
        $region98: #{ar_straighter_forward.34} parent=93 // pred_fallthru
          _
      $region94: #{ar_straighter_forward.34} parent=5 // pred_fallthru
        _
    $region6: #{ar_straighter_forward.34} parent=1 // loop_footer
      %s18 = sadd.s32 1, %s14
    $region7: #{ar_straighter_forward.34} parent=1 // loop_footer_branch
      %13 = sbr.rel target = $region3
    $region8: #{ar_straighter_forward.34} parent=1 // loop_exit
      _
    %650 = vsyncpa [#allocation4], 1
    %s651 = scalar_lea.sflag [#allocation4], 1
    %652 = vsyncpa %s651, 1

// kernel: ar_straighter_forward.35
$region0: #{ar_straighter_forward.35}
  #allocation0 [shape = 'u32[]', space=smem, size = 0x4, offset = 0x4, fixed_abs, tag = 'smem constant byte address 0x4 - core index']
  #allocation1 [shape = 'u32[72,128]{1,0:T(1,128)}', space=vmem, size = 0x9000, scoped, tag = 'internal scratch']
  #allocation2 [shape = 'f32[16,128]{1,0:T(8,128)}', space=vmem, size = 0x2000, scoped, tag = 'scratch operand']
  %s0 = inlined_call_operand.vmem [shape: bf16[16,512], index: 0, kind: input, shape index: {}]
  %s1 = inlined_call_operand.hbm [shape: bf16[512,128], index: 1, kind: input, shape index: {}]
  %s2 = inlined_call_operand.vmem [shape: f32[1,128], index: 2, kind: input, shape index: {}]
  %s3 = inlined_call_operand.vmem [shape: bf16[16,128], index: 3, kind: input, shape index: {}]
  %s4 = inlined_call_operand.vmem [shape: bf16[16,128], index: 4, kind: output, shape index: {}]
  %s5 = sld [smem:[#allocation0]]
  $region99: #{ar_straighter_forward.35} parent=0
    _
  %s7 = ssub.s32 1, %s5
  %s8 = scalar_select 0, %s7, %s5
  $region1: #{ar_straighter_forward.35} parent=0
    #allocation3 [shape = 'u8[16384]{0}', space=vmem, size = 0x4000, scoped, tag = 'input window, operand 0']
    #allocation4 [shape = 'u8[131072]{0}', space=vmem, size = 0x20000, scoped, tag = 'input window, operand 1']
    #allocation5 [shape = 's32[2]{0}', space=sflag, size = 0x8, scoped, tag = 'scoped memory for ar_straighter_forward.35']
    %9 = vsyncpa [#allocation5], 0
    %s10 = scalar_lea.sflag [#allocation5], 1
    %11 = vsyncpa %s10, 0
    loop: start=0, step=1, limit=4
    $region2: #{ar_straighter_forward.35} parent=1 // loop_pre_header
      _
    $region3: #{ar_straighter_forward.35} parent=1 // loop_header
      %s13 = sphi 0, %s17
      %p14 = scmp.ge.s32.totalorder %s13, 4
      %s20 = sphi 0, %s39
      %s21 = sphi 0, %s35
      %s22 = sphi 0, %s31
      %s23 = sphi 0, %s20
      %s24 = sphi 0, %s21
      %s25 = sphi 0, %s22
      %s26 = sphi 0, %s23
      %s27 = sphi 0, %s24
      %s28 = sphi 0, %s25
      %s44 = sphi 0, %s46
      %s47 = sphi 0, %s44
      %s48 = sphi 0, %s47
      %s64 = sphi 0, %s48
      %s72 = sphi 0, %s74
      %s75 = sphi 0, %s72
      %s76 = sphi 0, %s75
      %s92 = sphi 0, %s76
      %s98 = sphi 0, %s100
      %s101 = sphi 0, %s98
      %s102 = sphi 0, %s101
      %s118 = sphi 0, %s102
      %s126 = sphi 0, %s128
      %s129 = sphi 0, %s126
      %s130 = sphi 0, %s129
      %s146 = sphi 0, %s130
      %s154 = sphi 0, %s156
      %s157 = sphi 0, %s154
      %s158 = sphi 0, %s157
      %s174 = sphi 0, %s158
    $region4: #{ar_straighter_forward.35} parent=1 // loop_header_branch
      %16 = sbr.rel (%p14) target = $region8
    $region5: #{ar_straighter_forward.35} parent=1 // loop_body
      %s18 = ssub.s32 %s13, 1
      %s19 = ssub.s32 %s13, 2
      %s29 = sadd.s32 1, %s22
      %p30 = scmp.ge.s32.totalorder %s29, 2
      %s31 = scalar_select %p30, 0, %s29
      %s32 = sadd.s32 1, %s21
      %s33 = scalar_select %p30, %s32, %s21
      %p34 = scmp.ge.s32.totalorder %s33, 1
      %s35 = scalar_select %p34, 0, %s33
      %s36 = sadd.s32 1, %s20
      %s37 = scalar_select %p34, %s36, %s20
      %p38 = scmp.ge.s32.totalorder %s37, 1
      %s39 = scalar_select %p38, 0, %s37
      %s40 = ssub.s32 %s20, %s39
      %s41 = ssub.s32 %s22, %s31
      %s42 = sor.u32 %s40, %s41
      %p43 = scmp.eq.s32.totalorder %s42, 0
      %s45 = sadd.s32 %s44, 1
      %s46 = scalar_select %p43, %s44, %s45
      %p49 = pneg %p43
      %p50 = scmp.eq.s32.totalorder %s13, 1
      %p51 = por %p49, %p50
      %p52 = scmp.ne.s32.totalorder %s44, %s47
      %p53 = scmp.eq.s32.totalorder %s13, 0
      %p54 = por %p52, %p53
      %p55 = scmp.ne.s32.totalorder %s44, %s47
      %p56 = scmp.eq.s32.totalorder %s18, 1
      %p57 = por %p55, %p56
      %p58 = scmp.ne.s32.totalorder %s47, %s48
      %p59 = scmp.eq.s32.totalorder %s18, 0
      %p60 = por %p58, %p59
      %p61 = scmp.ne.s32.totalorder %s47, %s48
      %p62 = scmp.eq.s32.totalorder %s19, 1
      %p63 = por %p61, %p62
      %p65 = scmp.ne.s32.totalorder %s48, %s64
      %p66 = scmp.eq.s32.totalorder %s19, 0
      %p67 = por %p65, %p66
      %s68 = ssub.s32 %s22, %s31
      %s69 = ssub.s32 %s21, %s35
      %s70 = sor.u32 %s68, %s69
      %p71 = scmp.eq.s32.totalorder %s70, 0
      %s73 = sadd.s32 %s72, 1
      %s74 = scalar_select %p71, %s72, %s73
      %p77 = pneg %p71
      %p78 = scmp.eq.s32.totalorder %s13, 1
      %p79 = por %p77, %p78
      %p80 = scmp.ne.s32.totalorder %s72, %s75
      %p81 = scmp.eq.s32.totalorder %s13, 0
      %p82 = por %p80, %p81
      %p83 = scmp.ne.s32.totalorder %s72, %s75
      %p84 = scmp.eq.s32.totalorder %s18, 1
      %p85 = por %p83, %p84
      %p86 = scmp.ne.s32.totalorder %s75, %s76
      %p87 = scmp.eq.s32.totalorder %s18, 0
      %p88 = por %p86, %p87
      %p89 = scmp.ne.s32.totalorder %s75, %s76
      %p90 = scmp.eq.s32.totalorder %s19, 1
      %p91 = por %p89, %p90
      %p93 = scmp.ne.s32.totalorder %s76, %s92
      %p94 = scmp.eq.s32.totalorder %s19, 0
      %p95 = por %p93, %p94
      %s96 = ssub.s32 %s21, %s35
      %p97 = scmp.eq.s32.totalorder %s96, 0
      %s99 = sadd.s32 %s98, 1
      %s100 = scalar_select %p97, %s98, %s99
      %p103 = pneg %p97
      %p104 = scmp.eq.s32.totalorder %s13, 1
      %p105 = por %p103, %p104
      %p106 = scmp.ne.s32.totalorder %s98, %s101
      %p107 = scmp.eq.s32.totalorder %s13, 0
      %p108 = por %p106, %p107
      %p109 = scmp.ne.s32.totalorder %s98, %s101
      %p110 = scmp.eq.s32.totalorder %s18, 1
      %p111 = por %p109, %p110
      %p112 = scmp.ne.s32.totalorder %s101, %s102
      %p113 = scmp.eq.s32.totalorder %s18, 0
      %p114 = por %p112, %p113
      %p115 = scmp.ne.s32.totalorder %s101, %s102
      %p116 = scmp.eq.s32.totalorder %s19, 1
      %p117 = por %p115, %p116
      %p119 = scmp.ne.s32.totalorder %s102, %s118
      %p120 = scmp.eq.s32.totalorder %s19, 0
      %p121 = por %p119, %p120
      %s122 = ssub.s32 %s20, %s39
      %s123 = ssub.s32 %s21, %s35
      %s124 = sor.u32 %s122, %s123
      %p125 = scmp.eq.s32.totalorder %s124, 0
      %s127 = sadd.s32 %s126, 1
      %s128 = scalar_select %p125, %s126, %s127
      %p131 = pneg %p125
      %p132 = scmp.eq.s32.totalorder %s13, 1
      %p133 = por %p131, %p132
      %p134 = scmp.ne.s32.totalorder %s126, %s129
      %p135 = scmp.eq.s32.totalorder %s13, 0
      %p136 = por %p134, %p135
      %p137 = scmp.ne.s32.totalorder %s126, %s129
      %p138 = scmp.eq.s32.totalorder %s18, 1
      %p139 = por %p137, %p138
      %p140 = scmp.ne.s32.totalorder %s129, %s130
      %p141 = scmp.eq.s32.totalorder %s18, 0
      %p142 = por %p140, %p141
      %p143 = scmp.ne.s32.totalorder %s129, %s130
      %p144 = scmp.eq.s32.totalorder %s19, 1
      %p145 = por %p143, %p144
      %p147 = scmp.ne.s32.totalorder %s130, %s146
      %p148 = scmp.eq.s32.totalorder %s19, 0
      %p149 = por %p147, %p148
      %s150 = ssub.s32 %s20, %s39
      %s151 = ssub.s32 %s21, %s35
      %s152 = sor.u32 %s150, %s151
      %p153 = scmp.eq.s32.totalorder %s152, 0
      %s155 = sadd.s32 %s154, 1
      %s156 = scalar_select %p153, %s154, %s155
      %p159 = pneg %p153
      %p160 = scmp.eq.s32.totalorder %s13, 1
      %p161 = por %p159, %p160
      %p162 = scmp.ne.s32.totalorder %s154, %s157
      %p163 = scmp.eq.s32.totalorder %s13, 0
      %p164 = por %p162, %p163
      %p165 = scmp.ne.s32.totalorder %s154, %s157
      %p166 = scmp.eq.s32.totalorder %s18, 1
      %p167 = por %p165, %p166
      %p168 = scmp.ne.s32.totalorder %s157, %s158
      %p169 = scmp.eq.s32.totalorder %s18, 0
      %p170 = por %p168, %p169
      %p171 = scmp.ne.s32.totalorder %s157, %s158
      %p172 = scmp.eq.s32.totalorder %s19, 1
      %p173 = por %p171, %p172
      %p175 = scmp.ne.s32.totalorder %s158, %s174
      %p176 = scmp.eq.s32.totalorder %s19, 0
      %p177 = por %p175, %p176
      %p178 = scmp.le.s32.totalorder 1, %s13
      %p179 = scmp.lt.s32.totalorder %s13, 3
      %p180 = pnand %p178, %p179
      %p181 = pneg %p180
      // Predicated region
      $region9: #{ar_straighter_forward.35} parent=5 // pred_check
        _
      $region10: #{ar_straighter_forward.35} parent=5 // pred_check_branch
        %183 = sbr.rel (%p180) target = $region12
      $region11: #{ar_straighter_forward.35} parent=5 // pred_region
        %s184 = ssub.s32 %s13, 1
        // Predicated region
        $region13: #{ar_straighter_forward.35} parent=11 // pred_check
          %p185 = pneg %p114
        $region14: #{ar_straighter_forward.35} parent=11 // pred_check_branch
          %187 = sbr.rel (%p185) target = $region16
        $region15: #{ar_straighter_forward.35} parent=11 // pred_region
          %p188 = scmp.lt.s32.totalorder %s24, 0
          %s189 = scalar_select %p188, %s24, 0
          %s190 = scalar_lea.vmem %s2, %s189
        $region16: #{ar_straighter_forward.35} parent=11 // pred_fallthru
          _
        // Predicated region
        $region17: #{ar_straighter_forward.35} parent=11 // pred_check
          %p191 = pneg %p142
        $region18: #{ar_straighter_forward.35} parent=11 // pred_check_branch
          %193 = sbr.rel (%p191) target = $region20
        $region19: #{ar_straighter_forward.35} parent=11 // pred_region
          %s194 = smul.u32 2, %s23
          %p195 = scmp.lt.s32.totalorder %s194, 1
          %s196 = scalar_select %p195, %s194, 1
          %p197 = scmp.lt.s32.totalorder %s24, 0
          %s198 = scalar_select %p197, %s24, 0
          %s199 = sadd.s32 %s198, %s196
          %s200 = smul.addr %s199, 4
          %s201 = scalar_lea.vmem %s3, %s200
          %s202 = smul.u32 2, %s23
        $region20: #{ar_straighter_forward.35} parent=11 // pred_fallthru
          _
      $region12: #{ar_straighter_forward.35} parent=5 // pred_fallthru
        _
      %p203 = scmp.lt.s32.totalorder %s13, 2
      // Predicated region
      $region21: #{ar_straighter_forward.35} parent=5 // pred_check
        %p204 = pneg %p203
      $region22: #{ar_straighter_forward.35} parent=5 // pred_check_branch
        %206 = sbr.rel (%p204) target = $region24
      $region23: #{ar_straighter_forward.35} parent=5 // pred_region
        // Predicated region
        $region25: #{ar_straighter_forward.35} parent=23 // pred_check
          %p207 = pneg %p54
        $region26: #{ar_straighter_forward.35} parent=23 // pred_check_branch
          %209 = sbr.rel (%p207) target = $region28
        $region27: #{ar_straighter_forward.35} parent=23 // pred_region
          %s210 = sand.u32 %s44, 1
          %s211 = sand.u32 %s44, 1
          %s212 = smul.addr %s211, 16
          %s213 = scalar_lea.vmem [#allocation3], %s212
          %s214 = smul.u32 2, %s20
          %s215 = smul.u32 2, %s22
          %s216 = smul.addr %s214, 4
          %s217 = sadd.s32 %s215, %s216
          %s218 = smul.addr %s217, 4
          %s219 = scalar_lea.vmem %s0, %s218
          // Predicated region
          $region29: #{ar_straighter_forward.35} parent=27 // pred_check
            _
          $region30: #{ar_straighter_forward.35} parent=27 // pred_check_branch
            %221 = sbr.rel (0) target = $region32
          $region31: #{ar_straighter_forward.35} parent=27 // pred_region
            // Predicated region
            $region33: #{ar_straighter_forward.35} parent=31 // pred_check
              _
            $region34: #{ar_straighter_forward.35} parent=31 // pred_check_branch
              %223 = sbr.rel (0) target = $region36
            $region35: #{ar_straighter_forward.35} parent=31 // pred_region
              // Predicated region
              $region48: #{ar_straighter_forward.35} parent=35 // pred_check
                _
              $region49: #{ar_straighter_forward.35} parent=35 // pred_check_branch
                %241 = sbr.rel (0) target = $region51
              $region50: #{ar_straighter_forward.35} parent=35 // pred_region
                loop: start=0, step=1, limit=1
                $region52: #{ar_straighter_forward.35} parent=50 // loop_pre_header
                  _
                $region53: #{ar_straighter_forward.35} parent=50 // loop_header
                  %s243 = sphi 0, %s247
                  %p244 = scmp.ge.s32.totalorder %s243, 1
                  %s248 = sphi %s219, %s219
                  %s249 = sphi %s213, %s213
                $region54: #{ar_straighter_forward.35} parent=50 // loop_header_branch
                  %246 = sbr.rel (%p244) target = $region58
                $region55: #{ar_straighter_forward.35} parent=50 // loop_body
                  %v250 = vld [vmem:[%s248] sm:$0xff]
                  %251 = vst [vmem:[%s249] sm:$0xff] %v250
                  %v252 = vld [vmem:[%s248 + $0x10] sm:$0xff]
                  %253 = vst [vmem:[%s249 + $0x8] sm:$0xff] %v252
                $region56: #{ar_straighter_forward.35} parent=50 // loop_footer
                  %s247 = sadd.s32 1, %s243
                $region57: #{ar_straighter_forward.35} parent=50 // loop_footer_branch
                  %242 = sbr.rel target = $region53
                $region58: #{ar_straighter_forward.35} parent=50 // loop_exit
                  _
              $region51: #{ar_straighter_forward.35} parent=35 // pred_fallthru
                _
              // Predicated region
              $region59: #{ar_straighter_forward.35} parent=35 // pred_check
                _
              $region60: #{ar_straighter_forward.35} parent=35 // pred_check_branch
                %255 = sbr.rel target = $region62
              $region61: #{ar_straighter_forward.35} parent=35 // pred_region
                _
              $region62: #{ar_straighter_forward.35} parent=35 // pred_fallthru
                _
            $region36: #{ar_straighter_forward.35} parent=31 // pred_fallthru
              _
            // Predicated region
            $region37: #{ar_straighter_forward.35} parent=31 // pred_check
              _
            $region38: #{ar_straighter_forward.35} parent=31 // pred_check_branch
              %225 = sbr.rel target = $region40
            $region39: #{ar_straighter_forward.35} parent=31 // pred_region
              %s227 = ssub.s32 256, 1
              loop: start=0, step=1, limit=1
              $region41: #{ar_straighter_forward.35} parent=39 // loop_pre_header
                _
              $region42: #{ar_straighter_forward.35} parent=39 // loop_header
                %s229 = sphi 0, %s233
                %p230 = scmp.ge.s32.totalorder %s229, 1
                %s234 = sphi %s219, %s219
                %s235 = sphi %s213, %s213
              $region43: #{ar_straighter_forward.35} parent=39 // loop_header_branch
                %232 = sbr.rel (%p230) target = $region47
              $region44: #{ar_straighter_forward.35} parent=39 // loop_body
                %v236 = vld [vmem:[%s234] sm:%s227]
                %237 = vst [vmem:[%s235] sm:%s227] %v236
                %v238 = vld [vmem:[%s234 + $0x10] sm:%s227]
                %239 = vst [vmem:[%s235 + $0x8] sm:%s227] %v238
              $region45: #{ar_straighter_forward.35} parent=39 // loop_footer
                %s233 = sadd.s32 1, %s229
              $region46: #{ar_straighter_forward.35} parent=39 // loop_footer_branch
                %228 = sbr.rel target = $region42
              $region47: #{ar_straighter_forward.35} parent=39 // loop_exit
                _
            $region40: #{ar_straighter_forward.35} parent=31 // pred_fallthru
              _
          $region32: #{ar_straighter_forward.35} parent=27 // pred_fallthru
            _
          %256 = vnop
        $region28: #{ar_straighter_forward.35} parent=23 // pred_fallthru
          _
        // Predicated region
        $region63: #{ar_straighter_forward.35} parent=23 // pred_check
          %p257 = pneg %p82
        $region64: #{ar_straighter_forward.35} parent=23 // pred_check_branch
          %259 = sbr.rel (%p257) target = $region66
        $region65: #{ar_straighter_forward.35} parent=23 // pred_region
          %s260 = sand.u32 %s72, 1
          %s261 = scalar_lea.sflag [#allocation5], %s260
          %s262 = sand.u32 %s72, 1
          %s263 = smul.addr %s262, 128
          %s264 = scalar_lea.vmem [#allocation4], %s263
          %s265 = smul.u32 32, %s22
          %267 = vsyncadd %s261, 0
          %s268 = sadd.s32 %s21, %s265
          %s269 = smul.addr %s268, 4
          %s270 = scalar_lea.hbm %s1, %s269
          %s271 = sshll.u32 %s270, 4
          %s272 = int_to_ptr.hbm [resolvable:$true] %s271
          %s273 = sshll.u32 %s264, 4
          %s274 = int_to_ptr.vmem [resolvable:$true] %s273
          %279 = dma.hbm_to_vmem [thread:$0]  %s272, 2048, %s274, %s261, 64, 64, 4
        $region66: #{ar_straighter_forward.35} parent=23 // pred_fallthru
          _
      $region24: #{ar_straighter_forward.35} parent=5 // pred_fallthru
        _
      %p280 = scmp.le.s32.totalorder 1, %s13
      %p281 = scmp.lt.s32.totalorder %s13, 3
      %p282 = pnand %p280, %p281
      %p283 = pneg %p282
      // Predicated region
      $region67: #{ar_straighter_forward.35} parent=5 // pred_check
        _
      $region68: #{ar_straighter_forward.35} parent=5 // pred_check_branch
        %285 = sbr.rel (%p282) target = $region70
      $region69: #{ar_straighter_forward.35} parent=5 // pred_region
        %s286 = ssub.s32 %s13, 1
        %s287 = sand.u32 %s47, 1
        %s288 = sand.u32 %s47, 1
        %s289 = smul.addr %s288, 16
        %s290 = scalar_lea.vmem [#allocation3], %s289
        // Predicated region
        $region71: #{ar_straighter_forward.35} parent=69 // pred_check
          %p291 = pneg %p60
        $region72: #{ar_straighter_forward.35} parent=69 // pred_check_branch
          %293 = sbr.rel (%p291) target = $region74
        $region73: #{ar_straighter_forward.35} parent=69 // pred_region
          _
        $region74: #{ar_straighter_forward.35} parent=69 // pred_fallthru
          _
        %s294 = sand.u32 %s75, 1
        %s295 = scalar_lea.sflag [#allocation5], %s294
        %s296 = sand.u32 %s75, 1
        %s297 = smul.addr %s296, 128
        %s298 = scalar_lea.vmem [#allocation4], %s297
        // Predicated region
        $region75: #{ar_straighter_forward.35} parent=69 // pred_check
          %p299 = pneg %p88
        $region76: #{ar_straighter_forward.35} parent=69 // pred_check_branch
          %301 = sbr.rel (%p299) target = $region78
        $region77: #{ar_straighter_forward.35} parent=69 // pred_region
          %303 = dma.done %s295, 2048
        $region78: #{ar_straighter_forward.35} parent=69 // pred_fallthru
          _
        %s304 = sand.u32 %s47, 1
        %s305 = sand.u32 %s47, 1
        %s306 = smul.addr %s305, 16
        %s307 = scalar_lea.vmem [#allocation3], %s306
        %p308 = pneg %p60
        %p309 = pneg %p57
        %s310 = sand.u32 %s75, 1
        %s311 = scalar_lea.sflag [#allocation5], %s310
        %s312 = sand.u32 %s75, 1
        %s313 = smul.addr %s312, 128
        %s314 = scalar_lea.vmem [#allocation4], %s313
        %p315 = pneg %p88
        %p316 = pneg %p85
        %p317 = scmp.lt.s32.totalorder %s24, 0
        %s318 = scalar_select %p317, %s24, 0
        %s319 = scalar_lea.vmem %s2, %s318
        %p320 = pneg %p114
        %p321 = pneg %p111
        %s322 = smul.u32 2, %s23
        %p323 = scmp.lt.s32.totalorder %s322, 1
        %s324 = scalar_select %p323, %s322, 1
        %p325 = scmp.lt.s32.totalorder %s24, 0
        %s326 = scalar_select %p325, %s24, 0
        %s327 = sadd.s32 %s326, %s324
        %s328 = smul.addr %s327, 4
        %s329 = scalar_lea.vmem %s3, %s328
        %p330 = pneg %p142
        %p331 = pneg %p139
        %p332 = pneg %p170
        %p333 = pneg %p167
        %s334 = smul.u32 2, %s23
        %p335 = scmp.lt.s32.totalorder %s334, 1
        %s336 = scalar_select %p335, %s334, 1
        %p337 = scmp.lt.s32.totalorder %s24, 0
        %s338 = scalar_select %p337, %s24, 0
        %s339 = sadd.s32 %s338, %s336
        %s340 = smul.addr %s339, 4
        %s341 = scalar_lea.vmem %s4, %s340
        %s342 = smul.u32 2, %s23
        %s343 = smul.u32 2, %s25
        %s344 = smul.u32 32, %s25
        %p345 = scmp.lt.s32.totalorder %s24, 0
        %s346 = scalar_select %p345, %s24, 0
        %s347 = scalar_lea.vmem %s2, %s346
        %s348 = smul.u32 2, %s23
        %p349 = scmp.lt.s32.totalorder %s348, 1
        %s350 = scalar_select %p349, %s348, 1
        %p351 = scmp.lt.s32.totalorder %s24, 0
        %s352 = scalar_select %p351, %s24, 0
        %s353 = sadd.s32 %s352, %s350
        %s354 = smul.addr %s353, 4
        %s355 = scalar_lea.vmem %s3, %s354
        %s356 = smul.u32 2, %s23
        %s357 = smul.u32 2, %s23
        %p358 = scmp.lt.s32.totalorder %s357, 1
        %s359 = scalar_select %p358, %s357, 1
        %p360 = scmp.lt.s32.totalorder %s24, 0
        %s361 = scalar_select %p360, %s24, 0
        %s362 = sadd.s32 %s361, %s359
        %s363 = smul.addr %s362, 4
        %s364 = scalar_lea.vmem %s4, %s363
        %s365 = smul.u32 2, %s23
        %p366 = scmp.eq.s32.totalorder %s25, 0
        // Predicated region
        $region79: #{ar_straighter_forward.35} parent=69 // pred_check
          %p367 = pneg %p366
        $region80: #{ar_straighter_forward.35} parent=69 // pred_check_branch
          %369 = sbr.rel (%p367) target = $region82
        $region81: #{ar_straighter_forward.35} parent=69 // pred_region
          %370 = vst [vmem:[#allocation2] sm:$0xff] 0.0
          %371 = vst [vmem:[#allocation2 + $0x8] sm:$0xff] 0.0
        $region82: #{ar_straighter_forward.35} parent=69 // pred_fallthru
          _
        %v372 = vld [vmem:[%s290] sm:$0xff]
        %v373 = vld [vmem:[%s290 + $0x8] sm:$0xff]
        %v374 = vld [vmem:[#allocation2] sm:$0xff]
        %v375 = vld [vmem:[#allocation2 + $0x8] sm:$0xff]
        %v376 = vld [vmem:[%s298] sm:$0xf]
        %v377 = vld [vmem:[%s298 + $0x4] sm:$0xf]
        %v378 = vld [vmem:[%s298 + $0x8] sm:$0xf]
        %v379 = vld [vmem:[%s298 + $0xc] sm:$0xf]
        %v380 = vld [vmem:[%s298 + $0x10] sm:$0xf]
        %v381 = vld [vmem:[%s298 + $0x14] sm:$0xf]
        %v382 = vld [vmem:[%s298 + $0x18] sm:$0xf]
        %v383 = vld [vmem:[%s298 + $0x1c] sm:$0xf]
        %v384 = vld [vmem:[%s298 + $0x20] sm:$0xf]
        %v385 = vld [vmem:[%s298 + $0x24] sm:$0xf]
        %v386 = vld [vmem:[%s298 + $0x28] sm:$0xf]
        %v387 = vld [vmem:[%s298 + $0x2c] sm:$0xf]
        %v388 = vld [vmem:[%s298 + $0x30] sm:$0xf]
        %v389 = vld [vmem:[%s298 + $0x34] sm:$0xf]
        %v390 = vld [vmem:[%s298 + $0x38] sm:$0xf]
        %v391 = vld [vmem:[%s298 + $0x3c] sm:$0xf]
        %v392 = vld [vmem:[%s298 + $0x40] sm:$0xf]
        %v393 = vld [vmem:[%s298 + $0x44] sm:$0xf]
        %v394 = vld [vmem:[%s298 + $0x48] sm:$0xf]
        %v395 = vld [vmem:[%s298 + $0x4c] sm:$0xf]
        %v396 = vld [vmem:[%s298 + $0x50] sm:$0xf]
        %v397 = vld [vmem:[%s298 + $0x54] sm:$0xf]
        %v398 = vld [vmem:[%s298 + $0x58] sm:$0xf]
        %v399 = vld [vmem:[%s298 + $0x5c] sm:$0xf]
        %v400 = vld [vmem:[%s298 + $0x60] sm:$0xf]
        %v401 = vld [vmem:[%s298 + $0x64] sm:$0xf]
        %v402 = vld [vmem:[%s298 + $0x68] sm:$0xf]
        %v403 = vld [vmem:[%s298 + $0x6c] sm:$0xf]
        %v404 = vld [vmem:[%s298 + $0x70] sm:$0xf]
        %v405 = vld [vmem:[%s298 + $0x74] sm:$0xf]
        %v406 = vld [vmem:[%s298 + $0x78] sm:$0xf]
        %v407 = vld [vmem:[%s298 + $0x7c] sm:$0xf]
        %v410 = vunpack.c.l.b16 %v372
        %v411 = vunpack.c.h.b16 %v372
        %v412 = vunpack.c.l.b16 %v373
        %v413 = vunpack.c.h.b16 %v373
        %v414 = vpack.c.b16 %v412, %v410
        %v415 = vpack.c.b16 %v413, %v411
        %v450 = vunpack.c.l.b16 %v376
        %v451 = vunpack.c.l.b16 %v377
        %v452 = vunpack.c.l.b16 %v378
        %v453 = vunpack.c.l.b16 %v379
        %v454 = vunpack.c.l.b16 %v380
        %v455 = vunpack.c.l.b16 %v381
        %v456 = vunpack.c.l.b16 %v382
        %v457 = vunpack.c.l.b16 %v383
        %v458 = vunpack.c.l.b16 %v384
        %v459 = vunpack.c.l.b16 %v385
        %v460 = vunpack.c.l.b16 %v386
        %v461 = vunpack.c.l.b16 %v387
        %v462 = vunpack.c.l.b16 %v388
        %v463 = vunpack.c.l.b16 %v389
        %v464 = vunpack.c.l.b16 %v390
        %v465 = vunpack.c.l.b16 %v391
        %v466 = vunpack.c.l.b16 %v392
        %v467 = vunpack.c.l.b16 %v393
        %v468 = vunpack.c.l.b16 %v394
        %v469 = vunpack.c.l.b16 %v395
        %v470 = vunpack.c.l.b16 %v396
        %v471 = vunpack.c.l.b16 %v397
        %v472 = vunpack.c.l.b16 %v398
        %v473 = vunpack.c.l.b16 %v399
        %v474 = vunpack.c.l.b16 %v400
        %v475 = vunpack.c.l.b16 %v401
        %v476 = vunpack.c.l.b16 %v402
        %v477 = vunpack.c.l.b16 %v403
        %v478 = vunpack.c.l.b16 %v404
        %v479 = vunpack.c.l.b16 %v405
        %v480 = vunpack.c.l.b16 %v406
        %v481 = vunpack.c.l.b16 %v407
        %v482 = vpack.c.b16 %v451, %v450
        %v483 = vpack.c.b16 %v453, %v452
        %v484 = vpack.c.b16 %v455, %v454
        %v485 = vpack.c.b16 %v457, %v456
        %v486 = vpack.c.b16 %v459, %v458
        %v487 = vpack.c.b16 %v461, %v460
        %v488 = vpack.c.b16 %v463, %v462
        %v489 = vpack.c.b16 %v465, %v464
        %v490 = vpack.c.b16 %v467, %v466
        %v491 = vpack.c.b16 %v469, %v468
        %v492 = vpack.c.b16 %v471, %v470
        %v493 = vpack.c.b16 %v473, %v472
        %v494 = vpack.c.b16 %v475, %v474
        %v495 = vpack.c.b16 %v477, %v476
        %v496 = vpack.c.b16 %v479, %v478
        %v497 = vpack.c.b16 %v481, %v480
        %514 = vmatpush.bf16.msra.mxu0 %v489
        %515 = vmatpush.bf16.msra.mxu0 %v488
        %516 = vmatpush.bf16.msra.mxu0 %v487
        %517 = vmatpush.bf16.msra.mxu0 %v486
        %518 = vmatpush.bf16.msra.mxu0 %v485
        %519 = vmatpush.bf16.msra.mxu0 %v484
        %520 = vmatpush.bf16.msra.mxu0 %v483
        %521 = vmatpush.bf16.msra.mxu0 %v482
        %522 = vmatmul.bf16.gmra.mxu0 %v414
        %v523 = vpop.f32.mrf.mxu0
        %v524 = vadd.f32 0.0, %v523
        %v525 = vpop.f32.mrf.mxu0
        %v526 = vadd.f32 0.0, %v525
        %527 = vdwg.mxu0
        %528 = vmatpush.bf16.msra.mxu0 %v497
        %529 = vmatpush.bf16.msra.mxu0 %v496
        %530 = vmatpush.bf16.msra.mxu0 %v495
        %531 = vmatpush.bf16.msra.mxu0 %v494
        %532 = vmatpush.bf16.msra.mxu0 %v493
        %533 = vmatpush.bf16.msra.mxu0 %v492
        %534 = vmatpush.bf16.msra.mxu0 %v491
        %535 = vmatpush.bf16.msra.mxu0 %v490
        %536 = vmatmul.bf16.gmra.mxu0 %v415
        %v537 = vpop.f32.mrf.mxu0
        %v538 = vadd.f32 %v524, %v537
        %v539 = vpop.f32.mrf.mxu0
        %v540 = vadd.f32 %v526, %v539
        %541 = vdwg.mxu0
        %v542 = vadd.f32 %v374, %v538
        %v543 = vadd.f32 %v375, %v540
        %544 = vst [vmem:[#allocation2] sm:$0xff] %v542
        %545 = vst [vmem:[#allocation2 + $0x8] sm:$0xff] %v543
        %p546 = scmp.eq.s32.totalorder %s25, 1
        // Predicated region
        $region83: #{ar_straighter_forward.35} parent=69 // pred_check
          %p547 = pneg %p546
        $region84: #{ar_straighter_forward.35} parent=69 // pred_check_branch
          %549 = sbr.rel (%p547) target = $region86
        $region85: #{ar_straighter_forward.35} parent=69 // pred_region
          %v550 = vld [vmem:[#allocation2] sm:$0xff]
          %v551 = vld [vmem:[#allocation2 + $0x8] sm:$0xff]
          %v552 = vld [vmem:[%s347] sm:$0x1]
          %v554 = vperm.slane %v552, 0
          %v556 = vadd.f32 %v550, %v554
          %v557 = vadd.f32 %v551, %v554
          %v558 = vld [vmem:[%s355] sm:$0xf]
          %v559 = vld [vmem:[%s355 + $0x4] sm:$0xf]
          %v560 = vunpack.c.l.bf16 %v558
          %v561 = vunpack.c.l.bf16 %v559
          %v562 = vadd.f32 %v556, %v560
          %v563 = vadd.f32 %v557, %v561
          %v564 = vpack.c.bf16 %v562, %v562
          %v565 = vpack.c.bf16 %v563, %v563
          %566 = vst [vmem:[%s364] sm:$0xf] %v564
          %567 = vst [vmem:[%s364 + $0x4] sm:$0xf] %v565
        $region86: #{ar_straighter_forward.35} parent=69 // pred_fallthru
          _
        %s568 = smul.u32 2, %s23
        %p569 = scmp.lt.s32.totalorder %s568, 1
        %s570 = scalar_select %p569, %s568, 1
        %p571 = scmp.lt.s32.totalorder %s24, 0
        %s572 = scalar_select %p571, %s24, 0
        %s573 = sadd.s32 %s572, %s570
        %s574 = smul.addr %s573, 4
        %s575 = scalar_lea.vmem %s4, %s574
        // Predicated region
        $region87: #{ar_straighter_forward.35} parent=69 // pred_check
          %p576 = pneg %p167
        $region88: #{ar_straighter_forward.35} parent=69 // pred_check_branch
          %578 = sbr.rel (%p576) target = $region90
        $region89: #{ar_straighter_forward.35} parent=69 // pred_region
          %s579 = smul.u32 2, %s23
        $region90: #{ar_straighter_forward.35} parent=69 // pred_fallthru
          _
        // Predicated region
        $region91: #{ar_straighter_forward.35} parent=69 // pred_check
          %p580 = pneg %p167
        $region92: #{ar_straighter_forward.35} parent=69 // pred_check_branch
          %582 = sbr.rel (%p580) target = $region94
        $region93: #{ar_straighter_forward.35} parent=69 // pred_region
          %s583 = smul.u32 2, %s23
          %p584 = scmp.lt.s32.totalorder %s583, 1
          %s585 = scalar_select %p584, %s583, 1
          %p586 = scmp.lt.s32.totalorder %s24, 0
          %s587 = scalar_select %p586, %s24, 0
          %s588 = sadd.s32 %s587, %s585
          %s589 = smul.addr %s588, 4
          %s590 = scalar_lea.vmem %s4, %s589
        $region94: #{ar_straighter_forward.35} parent=69 // pred_fallthru
          _
      $region70: #{ar_straighter_forward.35} parent=5 // pred_fallthru
        _
      %p591 = scmp.le.s32.totalorder 2, %s13
      // Predicated region
      $region95: #{ar_straighter_forward.35} parent=5 // pred_check
        %p592 = pneg %p591
      $region96: #{ar_straighter_forward.35} parent=5 // pred_check_branch
        %594 = sbr.rel (%p592) target = $region98
      $region97: #{ar_straighter_forward.35} parent=5 // pred_region
        %s595 = ssub.s32 %s13, 2
      $region98: #{ar_straighter_forward.35} parent=5 // pred_fallthru
        _
    $region6: #{ar_straighter_forward.35} parent=1 // loop_footer
      %s17 = sadd.s32 1, %s13
    $region7: #{ar_straighter_forward.35} parent=1 // loop_footer_branch
      %12 = sbr.rel target = $region3
    $region8: #{ar_straighter_forward.35} parent=1 // loop_exit
      _
    %596 = vsyncpa [#allocation5], 1
    %s597 = scalar_lea.sflag [#allocation5], 1
    %598 = vsyncpa %s597, 1

// kernel: ar_straighter_forward.36
$region0: #{ar_straighter_forward.36}
  #allocation0 [shape = 'u32[]', space=smem, size = 0x4, offset = 0x4, fixed_abs, tag = 'smem constant byte address 0x4 - core index']
  #allocation1 [shape = 'u32[72,128]{1,0:T(1,128)}', space=vmem, size = 0x9000, scoped, tag = 'internal scratch']
  #allocation2 [shape = 'f32[16,128]{1,0:T(8,128)}', space=vmem, size = 0x2000, scoped, tag = 'scratch operand']
  %s0 = inlined_call_operand.vmem [shape: bf16[16,128], index: 0, kind: input, shape index: {}]
  %s1 = inlined_call_operand.hbm [shape: bf16[128,128], index: 1, kind: input, shape index: {}]
  %s2 = inlined_call_operand.vmem [shape: f32[1,128], index: 2, kind: input, shape index: {}]
  %s3 = inlined_call_operand.vmem [shape: f32[1,128], index: 3, kind: input, shape index: {}]
  %s4 = inlined_call_operand.vmem [shape: f32[1,128], index: 4, kind: input, shape index: {}]
  %s5 = inlined_call_operand.vmem [shape: bf16[16,128], index: 5, kind: output, shape index: {}]
  %s6 = sld [smem:[#allocation0]]
  $region42: #{ar_straighter_forward.36} parent=0
    _
  %s8 = ssub.s32 1, %s6
  %s9 = scalar_select 0, %s8, %s6
  $region1: #{ar_straighter_forward.36} parent=0
    #allocation3 [shape = 'u8[32768]{0}', space=vmem, size = 0x8000, scoped, tag = 'input window, operand 1, single buffered']
    #allocation4 [shape = 's32[1]{0}', space=sflag, size = 0x4, scoped, tag = 'scoped memory for ar_straighter_forward.36']
    %10 = vsyncpa [#allocation4], 0
    // Predicated region
    $region2: #{ar_straighter_forward.36} parent=1 // pred_check
      _
    $region3: #{ar_straighter_forward.36} parent=1 // pred_check_branch
      %12 = sbr.rel (0) target = $region5
    $region4: #{ar_straighter_forward.36} parent=1 // pred_region
      _
    $region5: #{ar_straighter_forward.36} parent=1 // pred_fallthru
      _
    // Predicated region
    $region6: #{ar_straighter_forward.36} parent=1 // pred_check
      _
    $region7: #{ar_straighter_forward.36} parent=1 // pred_check_branch
      %14 = sbr.rel (0) target = $region9
    $region8: #{ar_straighter_forward.36} parent=1 // pred_region
      %16 = vsyncadd [#allocation4], 0
      %s17 = sshll.u32 %s1, 4
      %s18 = int_to_ptr.hbm [resolvable:$true] %s17
      %s19 = sshll.u32 [#allocation3], 4
      %s20 = int_to_ptr.vmem [resolvable:$true] %s19
      %25 = dma.hbm_to_vmem [thread:$0]  %s18, 1024, %s20, [#allocation4], 64, 64, 4
    $region9: #{ar_straighter_forward.36} parent=1 // pred_fallthru
      _
    // Predicated region
    $region10: #{ar_straighter_forward.36} parent=1 // pred_check
      _
    $region11: #{ar_straighter_forward.36} parent=1 // pred_check_branch
      %27 = sbr.rel (0) target = $region13
    $region12: #{ar_straighter_forward.36} parent=1 // pred_region
      _
    $region13: #{ar_straighter_forward.36} parent=1 // pred_fallthru
      _
    // Predicated region
    $region14: #{ar_straighter_forward.36} parent=1 // pred_check
      _
    $region15: #{ar_straighter_forward.36} parent=1 // pred_check_branch
      %29 = sbr.rel (0) target = $region17
    $region16: #{ar_straighter_forward.36} parent=1 // pred_region
      _
    $region17: #{ar_straighter_forward.36} parent=1 // pred_fallthru
      _
    // Predicated region
    $region18: #{ar_straighter_forward.36} parent=1 // pred_check
      _
    $region19: #{ar_straighter_forward.36} parent=1 // pred_check_branch
      %31 = sbr.rel (0) target = $region21
    $region20: #{ar_straighter_forward.36} parent=1 // pred_region
      _
    $region21: #{ar_straighter_forward.36} parent=1 // pred_fallthru
      _
    // Predicated region
    $region22: #{ar_straighter_forward.36} parent=1 // pred_check
      _
    $region23: #{ar_straighter_forward.36} parent=1 // pred_check_branch
      %33 = sbr.rel (0) target = $region25
    $region24: #{ar_straighter_forward.36} parent=1 // pred_region
      %35 = dma.done [#allocation4], 1024
    $region25: #{ar_straighter_forward.36} parent=1 // pred_fallthru
      _
    %p36 = scmp.eq.s32.totalorder 0, 0
    // Predicated region
    $region26: #{ar_straighter_forward.36} parent=1 // pred_check
      %p37 = pneg %p36
    $region27: #{ar_straighter_forward.36} parent=1 // pred_check_branch
      %39 = sbr.rel (%p37) target = $region29
    $region28: #{ar_straighter_forward.36} parent=1 // pred_region
      %40 = vst [vmem:[#allocation2] sm:$0xff] 0.0
      %41 = vst [vmem:[#allocation2 + $0x8] sm:$0xff] 0.0
    $region29: #{ar_straighter_forward.36} parent=1 // pred_fallthru
      _
    %v42 = vld [vmem:[%s0] sm:$0xf]
    %v43 = vld [vmem:[%s0 + $0x4] sm:$0xf]
    %v44 = vunpack.c.l.bf16 %v42
    %v45 = vunpack.c.l.bf16 %v43
    %46 = vadd.xlane.f32.xlu0 %v44
    %v47 = vpop.xlane.xlu0 %46
    %48 = vadd.xlane.f32.xlu0 %v45
    %v49 = vpop.xlane.xlu0 %48
    %v50 = vrcp.pop 128.0
    %v51 = vmul.f32 128.0, %v50
    %v52 = vsub.f32 1.0, %v51
    %v53 = vmul.f32 %v50, %v52
    %v54 = vadd.f32 %v50, %v53
    %vm55 = vweird.f32 %v50
    %v56 = vsel %vm55, %v50, %v54
    %v57 = vmul.f32 %v47, %v56
    %v58 = vmul.f32 %v49, %v56
    %v59 = vsub.f32 %v44, %v57
    %v60 = vsub.f32 %v45, %v58
    %v61 = vmul.f32 %v59, %v59
    %v62 = vmul.f32 %v60, %v60
    %63 = vadd.xlane.f32.xlu0 %v61
    %v64 = vpop.xlane.xlu0 %63
    %65 = vadd.xlane.f32.xlu0 %v62
    %v66 = vpop.xlane.xlu0 %65
    %v67 = vmul.f32 %v64, %v56
    %v68 = vmul.f32 %v66, %v56
    %v69 = vadd.f32 %v67, 1e-05
    %v70 = vadd.f32 %v68, 1e-05
    %v71 = vrsqrt.pop %v69
    %v72 = vmul.f32 %v71, %v69
    %v73 = vmul.f32 %v72, %v71
    %v74 = vmul.f32 0.5, %v73
    %v75 = vsub.f32 1.5, %v74
    %v76 = vmul.f32 %v71, %v75
    %vm77 = vweird.f32 %v69
    %vm78 = vweird.f32 %v71
    %vm79 = vmor %vm77, %vm78
    %v80 = vsel %vm79, %v71, %v76
    %v81 = vrsqrt.pop %v70
    %v82 = vmul.f32 %v81, %v70
    %v83 = vmul.f32 %v82, %v81
    %v84 = vmul.f32 0.5, %v83
    %v85 = vsub.f32 1.5, %v84
    %v86 = vmul.f32 %v81, %v85
    %vm87 = vweird.f32 %v70
    %vm88 = vweird.f32 %v81
    %vm89 = vmor %vm87, %vm88
    %v90 = vsel %vm89, %v81, %v86
    %v91 = vmul.f32 %v59, %v80
    %v92 = vmul.f32 %v60, %v90
    %v93 = vld [vmem:[%s3] sm:$0x1]
    %v95 = vperm.slane %v93, 0
    %v97 = vmul.f32 %v91, %v95
    %v98 = vmul.f32 %v92, %v95
    %v99 = vld [vmem:[%s4] sm:$0x1]
    %v101 = vperm.slane %v99, 0
    %v103 = vadd.f32 %v97, %v101
    %v104 = vadd.f32 %v98, %v101
    %v105 = vpack.c.bf16 %v104, %v103
    %v106 = vld [vmem:[#allocation2] sm:$0xff]
    %v107 = vld [vmem:[#allocation2 + $0x8] sm:$0xff]
    %v108 = vld [vmem:[#allocation3] sm:$0xf]
    %v109 = vld [vmem:[#allocation3 + $0x4] sm:$0xf]
    %v110 = vld [vmem:[#allocation3 + $0x8] sm:$0xf]
    %v111 = vld [vmem:[#allocation3 + $0xc] sm:$0xf]
    %v112 = vld [vmem:[#allocation3 + $0x10] sm:$0xf]
    %v113 = vld [vmem:[#allocation3 + $0x14] sm:$0xf]
    %v114 = vld [vmem:[#allocation3 + $0x18] sm:$0xf]
    %v115 = vld [vmem:[#allocation3 + $0x1c] sm:$0xf]
    %v116 = vld [vmem:[#allocation3 + $0x20] sm:$0xf]
    %v117 = vld [vmem:[#allocation3 + $0x24] sm:$0xf]
    %v118 = vld [vmem:[#allocation3 + $0x28] sm:$0xf]
    %v119 = vld [vmem:[#allocation3 + $0x2c] sm:$0xf]
    %v120 = vld [vmem:[#allocation3 + $0x30] sm:$0xf]
    %v121 = vld [vmem:[#allocation3 + $0x34] sm:$0xf]
    %v122 = vld [vmem:[#allocation3 + $0x38] sm:$0xf]
    %v123 = vld [vmem:[#allocation3 + $0x3c] sm:$0xf]
    %v140 = vunpack.c.l.b16 %v108
    %v141 = vunpack.c.l.b16 %v109
    %v142 = vunpack.c.l.b16 %v110
    %v143 = vunpack.c.l.b16 %v111
    %v144 = vunpack.c.l.b16 %v112
    %v145 = vunpack.c.l.b16 %v113
    %v146 = vunpack.c.l.b16 %v114
    %v147 = vunpack.c.l.b16 %v115
    %v148 = vunpack.c.l.b16 %v116
    %v149 = vunpack.c.l.b16 %v117
    %v150 = vunpack.c.l.b16 %v118
    %v151 = vunpack.c.l.b16 %v119
    %v152 = vunpack.c.l.b16 %v120
    %v153 = vunpack.c.l.b16 %v121
    %v154 = vunpack.c.l.b16 %v122
    %v155 = vunpack.c.l.b16 %v123
    %v156 = vpack.c.b16 %v141, %v140
    %v157 = vpack.c.b16 %v143, %v142
    %v158 = vpack.c.b16 %v145, %v144
    %v159 = vpack.c.b16 %v147, %v146
    %v160 = vpack.c.b16 %v149, %v148
    %v161 = vpack.c.b16 %v151, %v150
    %v162 = vpack.c.b16 %v153, %v152
    %v163 = vpack.c.b16 %v155, %v154
    %172 = vmatpush.bf16.msra.mxu0 %v163
    %173 = vmatpush.bf16.msra.mxu0 %v162
    %174 = vmatpush.bf16.msra.mxu0 %v161
    %175 = vmatpush.bf16.msra.mxu0 %v160
    %176 = vmatpush.bf16.msra.mxu0 %v159
    %177 = vmatpush.bf16.msra.mxu0 %v158
    %178 = vmatpush.bf16.msra.mxu0 %v157
    %179 = vmatpush.bf16.msra.mxu0 %v156
    %180 = vmatmul.bf16.gmra.mxu0 %v105
    %v181 = vpop.f32.mrf.mxu0
    %v182 = vadd.f32 0.0, %v181
    %v183 = vpop.f32.mrf.mxu0
    %v184 = vadd.f32 0.0, %v183
    %185 = vdwg.mxu0
    %v186 = vadd.f32 %v106, %v182
    %v187 = vadd.f32 %v107, %v184
    %188 = vst [vmem:[#allocation2] sm:$0xff] %v186
    %189 = vst [vmem:[#allocation2 + $0x8] sm:$0xff] %v187
    // Predicated region
    $region30: #{ar_straighter_forward.36} parent=1 // pred_check
      %p190 = pneg %p36
    $region31: #{ar_straighter_forward.36} parent=1 // pred_check_branch
      %192 = sbr.rel (%p190) target = $region33
    $region32: #{ar_straighter_forward.36} parent=1 // pred_region
      %v193 = vld [vmem:[#allocation2] sm:$0xff]
      %v194 = vld [vmem:[#allocation2 + $0x8] sm:$0xff]
      %v195 = vld [vmem:[%s2] sm:$0x1]
      %v197 = vperm.slane %v195, 0
      %v199 = vadd.f32 %v193, %v197
      %v200 = vadd.f32 %v194, %v197
      %v201 = vpack.c.bf16 %v199, %v199
      %v202 = vpack.c.bf16 %v200, %v200
      %203 = vst [vmem:[%s5] sm:$0xf] %v201
      %204 = vst [vmem:[%s5 + $0x4] sm:$0xf] %v202
    $region33: #{ar_straighter_forward.36} parent=1 // pred_fallthru
      _
    // Predicated region
    $region34: #{ar_straighter_forward.36} parent=1 // pred_check
      _
    $region35: #{ar_straighter_forward.36} parent=1 // pred_check_branch
      %206 = sbr.rel (0) target = $region37
    $region36: #{ar_straighter_forward.36} parent=1 // pred_region
      _
    $region37: #{ar_straighter_forward.36} parent=1 // pred_fallthru
      _
    // Predicated region
    $region38: #{ar_straighter_forward.36} parent=1 // pred_check
      _
    $region39: #{ar_straighter_forward.36} parent=1 // pred_check_branch
      %208 = sbr.rel (0) target = $region41
    $region40: #{ar_straighter_forward.36} parent=1 // pred_region
      _
    $region41: #{ar_straighter_forward.36} parent=1 // pred_fallthru
      _
    %209 = vsyncpa [#allocation4], 1

// kernel: ar_straighter_forward.30
$region0: #{ar_straighter_forward.30}
  #allocation0 [shape = 'u32[]', space=smem, size = 0x4, offset = 0x4, fixed_abs, tag = 'smem constant byte address 0x4 - core index']
  #allocation1 [shape = 'u32[72,128]{1,0:T(1,128)}', space=vmem, size = 0x9000, scoped, tag = 'internal scratch']
  #allocation2 [shape = 'f32[8,128]{1,0:T(8,128)}', space=vmem, size = 0x1000, scoped, tag = 'scratch operand']
  %s0 = inlined_call_operand.vmem [shape: bf16[8,384], index: 0, kind: input, shape index: {}]
  %s1 = inlined_call_operand.vmem [shape: bf16[384,128], index: 1, kind: input, shape index: {}]
  %s2 = inlined_call_operand.vmem [shape: f32[1,128], index: 2, kind: input, shape index: {}]
  %s3 = inlined_call_operand.vmem [shape: bf16[8,128], index: 3, kind: output, shape index: {}]
  %s4 = sld [smem:[#allocation0]]
  $region53: #{ar_straighter_forward.30} parent=0
    _
  %s6 = ssub.s32 1, %s4
  %s7 = scalar_select 0, %s6, %s4
  loop: start=0, step=1, limit=5
  $region2: #{ar_straighter_forward.30} parent=0 // loop_pre_header
    _
  $region3: #{ar_straighter_forward.30} parent=0 // loop_header
    %s9 = sphi 0, %s13
    %p10 = scmp.ge.s32.totalorder %s9, 5
    %s16 = sphi 0, %s35
    %s17 = sphi 0, %s31
    %s18 = sphi 0, %s27
    %s19 = sphi 0, %s16
    %s20 = sphi 0, %s17
    %s21 = sphi 0, %s18
    %s22 = sphi 0, %s19
    %s23 = sphi 0, %s20
    %s24 = sphi 0, %s21
    %s40 = sphi 0, %s42
    %s43 = sphi 0, %s40
    %s44 = sphi 0, %s43
    %s60 = sphi 0, %s44
    %s68 = sphi 0, %s70
    %s71 = sphi 0, %s68
    %s72 = sphi 0, %s71
    %s88 = sphi 0, %s72
    %s94 = sphi 0, %s96
    %s97 = sphi 0, %s94
    %s98 = sphi 0, %s97
    %s114 = sphi 0, %s98
    %s122 = sphi 0, %s124
    %s125 = sphi 0, %s122
    %s126 = sphi 0, %s125
    %s142 = sphi 0, %s126
  $region4: #{ar_straighter_forward.30} parent=0 // loop_header_branch
    %12 = sbr.rel (%p10) target = $region8
  $region5: #{ar_straighter_forward.30} parent=0 // loop_body
    %s14 = ssub.s32 %s9, 1
    %s15 = ssub.s32 %s9, 2
    %s25 = sadd.s32 1, %s18
    %p26 = scmp.ge.s32.totalorder %s25, 3
    %s27 = scalar_select %p26, 0, %s25
    %s28 = sadd.s32 1, %s17
    %s29 = scalar_select %p26, %s28, %s17
    %p30 = scmp.ge.s32.totalorder %s29, 1
    %s31 = scalar_select %p30, 0, %s29
    %s32 = sadd.s32 1, %s16
    %s33 = scalar_select %p30, %s32, %s16
    %p34 = scmp.ge.s32.totalorder %s33, 1
    %s35 = scalar_select %p34, 0, %s33
    %s36 = ssub.s32 %s16, %s35
    %s37 = ssub.s32 %s18, %s27
    %s38 = sor.u32 %s36, %s37
    %p39 = scmp.eq.s32.totalorder %s38, 0
    %s41 = sadd.s32 %s40, 1
    %s42 = scalar_select %p39, %s40, %s41
    %p45 = pneg %p39
    %p46 = scmp.eq.s32.totalorder %s9, 2
    %p47 = por %p45, %p46
    %p48 = scmp.ne.s32.totalorder %s40, %s43
    %p49 = scmp.eq.s32.totalorder %s9, 0
    %p50 = por %p48, %p49
    %p51 = scmp.ne.s32.totalorder %s40, %s43
    %p52 = scmp.eq.s32.totalorder %s14, 2
    %p53 = por %p51, %p52
    %p54 = scmp.ne.s32.totalorder %s43, %s44
    %p55 = scmp.eq.s32.totalorder %s14, 0
    %p56 = por %p54, %p55
    %p57 = scmp.ne.s32.totalorder %s43, %s44
    %p58 = scmp.eq.s32.totalorder %s15, 2
    %p59 = por %p57, %p58
    %p61 = scmp.ne.s32.totalorder %s44, %s60
    %p62 = scmp.eq.s32.totalorder %s15, 0
    %p63 = por %p61, %p62
    %s64 = ssub.s32 %s18, %s27
    %s65 = ssub.s32 %s17, %s31
    %s66 = sor.u32 %s64, %s65
    %p67 = scmp.eq.s32.totalorder %s66, 0
    %s69 = sadd.s32 %s68, 1
    %s70 = scalar_select %p67, %s68, %s69
    %p73 = pneg %p67
    %p74 = scmp.eq.s32.totalorder %s9, 2
    %p75 = por %p73, %p74
    %p76 = scmp.ne.s32.totalorder %s68, %s71
    %p77 = scmp.eq.s32.totalorder %s9, 0
    %p78 = por %p76, %p77
    %p79 = scmp.ne.s32.totalorder %s68, %s71
    %p80 = scmp.eq.s32.totalorder %s14, 2
    %p81 = por %p79, %p80
    %p82 = scmp.ne.s32.totalorder %s71, %s72
    %p83 = scmp.eq.s32.totalorder %s14, 0
    %p84 = por %p82, %p83
    %p85 = scmp.ne.s32.totalorder %s71, %s72
    %p86 = scmp.eq.s32.totalorder %s15, 2
    %p87 = por %p85, %p86
    %p89 = scmp.ne.s32.totalorder %s72, %s88
    %p90 = scmp.eq.s32.totalorder %s15, 0
    %p91 = por %p89, %p90
    %s92 = ssub.s32 %s17, %s31
    %p93 = scmp.eq.s32.totalorder %s92, 0
    %s95 = sadd.s32 %s94, 1
    %s96 = scalar_select %p93, %s94, %s95
    %p99 = pneg %p93
    %p100 = scmp.eq.s32.totalorder %s9, 2
    %p101 = por %p99, %p100
    %p102 = scmp.ne.s32.totalorder %s94, %s97
    %p103 = scmp.eq.s32.totalorder %s9, 0
    %p104 = por %p102, %p103
    %p105 = scmp.ne.s32.totalorder %s94, %s97
    %p106 = scmp.eq.s32.totalorder %s14, 2
    %p107 = por %p105, %p106
    %p108 = scmp.ne.s32.totalorder %s97, %s98
    %p109 = scmp.eq.s32.totalorder %s14, 0
    %p110 = por %p108, %p109
    %p111 = scmp.ne.s32.totalorder %s97, %s98
    %p112 = scmp.eq.s32.totalorder %s15, 2
    %p113 = por %p111, %p112
    %p115 = scmp.ne.s32.totalorder %s98, %s114
    %p116 = scmp.eq.s32.totalorder %s15, 0
    %p117 = por %p115, %p116
    %s118 = ssub.s32 %s16, %s35
    %s119 = ssub.s32 %s17, %s31
    %s120 = sor.u32 %s118, %s119
    %p121 = scmp.eq.s32.totalorder %s120, 0
    %s123 = sadd.s32 %s122, 1
    %s124 = scalar_select %p121, %s122, %s123
    %p127 = pneg %p121
    %p128 = scmp.eq.s32.totalorder %s9, 2
    %p129 = por %p127, %p128
    %p130 = scmp.ne.s32.totalorder %s122, %s125
    %p131 = scmp.eq.s32.totalorder %s9, 0
    %p132 = por %p130, %p131
    %p133 = scmp.ne.s32.totalorder %s122, %s125
    %p134 = scmp.eq.s32.totalorder %s14, 2
    %p135 = por %p133, %p134
    %p136 = scmp.ne.s32.totalorder %s125, %s126
    %p137 = scmp.eq.s32.totalorder %s14, 0
    %p138 = por %p136, %p137
    %p139 = scmp.ne.s32.totalorder %s125, %s126
    %p140 = scmp.eq.s32.totalorder %s15, 2
    %p141 = por %p139, %p140
    %p143 = scmp.ne.s32.totalorder %s126, %s142
    %p144 = scmp.eq.s32.totalorder %s15, 0
    %p145 = por %p143, %p144
    %p146 = scmp.le.s32.totalorder 1, %s9
    %p147 = scmp.lt.s32.totalorder %s9, 4
    %p148 = pnand %p146, %p147
    %p149 = pneg %p148
    // Predicated region
    $region9: #{ar_straighter_forward.30} parent=5 // pred_check
      _
    $region10: #{ar_straighter_forward.30} parent=5 // pred_check_branch
      %151 = sbr.rel (%p148) target = $region12
    $region11: #{ar_straighter_forward.30} parent=5 // pred_region
      %s152 = ssub.s32 %s9, 1
      // Predicated region
      $region13: #{ar_straighter_forward.30} parent=11 // pred_check
        %p153 = pneg %p110
      $region14: #{ar_straighter_forward.30} parent=11 // pred_check_branch
        %155 = sbr.rel (%p153) target = $region16
      $region15: #{ar_straighter_forward.30} parent=11 // pred_region
        %p156 = scmp.lt.s32.totalorder %s20, 0
        %s157 = scalar_select %p156, %s20, 0
        %s158 = scalar_lea.vmem %s2, %s157
      $region16: #{ar_straighter_forward.30} parent=11 // pred_fallthru
        _
    $region12: #{ar_straighter_forward.30} parent=5 // pred_fallthru
      _
    %p159 = scmp.lt.s32.totalorder %s9, 3
    // Predicated region
    $region17: #{ar_straighter_forward.30} parent=5 // pred_check
      %p160 = pneg %p159
    $region18: #{ar_straighter_forward.30} parent=5 // pred_check_branch
      %162 = sbr.rel (%p160) target = $region20
    $region19: #{ar_straighter_forward.30} parent=5 // pred_region
      // Predicated region
      $region21: #{ar_straighter_forward.30} parent=19 // pred_check
        %p163 = pneg %p50
      $region22: #{ar_straighter_forward.30} parent=19 // pred_check_branch
        %165 = sbr.rel (%p163) target = $region24
      $region23: #{ar_straighter_forward.30} parent=19 // pred_region
        %p166 = scmp.lt.s32.totalorder %s16, 0
        %s167 = scalar_select %p166, %s16, 0
        %p168 = scmp.lt.s32.totalorder %s18, 2
        %s169 = scalar_select %p168, %s18, 2
        %s170 = smul.addr %s167, 3
        %s171 = sadd.s32 %s169, %s170
        %s172 = smul.addr %s171, 4
        %s173 = scalar_lea.vmem %s0, %s172
      $region24: #{ar_straighter_forward.30} parent=19 // pred_fallthru
        _
      // Predicated region
      $region25: #{ar_straighter_forward.30} parent=19 // pred_check
        %p174 = pneg %p78
      $region26: #{ar_straighter_forward.30} parent=19 // pred_check_branch
        %176 = sbr.rel (%p174) target = $region28
      $region27: #{ar_straighter_forward.30} parent=19 // pred_region
        %s177 = smul.u32 16, %s18
        %p178 = scmp.lt.s32.totalorder %s177, 47
        %s179 = scalar_select %p178, %s177, 47
        %p180 = scmp.lt.s32.totalorder %s17, 0
        %s181 = scalar_select %p180, %s17, 0
        %s182 = sadd.s32 %s181, %s179
        %s183 = smul.addr %s182, 4
        %s184 = scalar_lea.vmem %s1, %s183
        %s185 = smul.u32 16, %s18
      $region28: #{ar_straighter_forward.30} parent=19 // pred_fallthru
        _
    $region20: #{ar_straighter_forward.30} parent=5 // pred_fallthru
      _
    %p186 = scmp.le.s32.totalorder 1, %s9
    %p187 = scmp.lt.s32.totalorder %s9, 4
    %p188 = pnand %p186, %p187
    %p189 = pneg %p188
    // Predicated region
    $region29: #{ar_straighter_forward.30} parent=5 // pred_check
      _
    $region30: #{ar_straighter_forward.30} parent=5 // pred_check_branch
      %191 = sbr.rel (%p188) target = $region32
    $region31: #{ar_straighter_forward.30} parent=5 // pred_region
      %s192 = ssub.s32 %s9, 1
      %p193 = scmp.lt.s32.totalorder %s19, 0
      %s194 = scalar_select %p193, %s19, 0
      %p195 = scmp.lt.s32.totalorder %s21, 2
      %s196 = scalar_select %p195, %s21, 2
      %s197 = smul.addr %s194, 3
      %s198 = sadd.s32 %s196, %s197
      %s199 = smul.addr %s198, 4
      %s200 = scalar_lea.vmem %s0, %s199
      %p201 = pneg %p56
      %p202 = pneg %p53
      %s203 = smul.u32 16, %s21
      %p204 = scmp.lt.s32.totalorder %s203, 47
      %s205 = scalar_select %p204, %s203, 47
      %p206 = scmp.lt.s32.totalorder %s20, 0
      %s207 = scalar_select %p206, %s20, 0
      %s208 = sadd.s32 %s207, %s205
      %s209 = smul.addr %s208, 4
      %s210 = scalar_lea.vmem %s1, %s209
      %p211 = pneg %p84
      %p212 = pneg %p81
      %p213 = scmp.lt.s32.totalorder %s20, 0
      %s214 = scalar_select %p213, %s20, 0
      %s215 = scalar_lea.vmem %s2, %s214
      %p216 = pneg %p110
      %p217 = pneg %p107
      %p218 = pneg %p138
      %p219 = pneg %p135
      %p220 = scmp.lt.s32.totalorder %s19, 0
      %s221 = scalar_select %p220, %s19, 0
      %p222 = scmp.lt.s32.totalorder %s20, 0
      %s223 = scalar_select %p222, %s20, 0
      %s224 = sadd.s32 %s223, %s221
      %s225 = smul.addr %s224, 4
      %s226 = scalar_lea.vmem %s3, %s225
      %p227 = scmp.lt.s32.totalorder %s19, 0
      %s228 = scalar_select %p227, %s19, 0
      %p229 = scmp.lt.s32.totalorder %s21, 2
      %s230 = scalar_select %p229, %s21, 2
      %s231 = smul.addr %s228, 3
      %s232 = sadd.s32 %s230, %s231
      %s233 = smul.addr %s232, 4
      %s234 = scalar_lea.vmem %s0, %s233
      %s235 = smul.u32 16, %s21
      %p236 = scmp.lt.s32.totalorder %s235, 47
      %s237 = scalar_select %p236, %s235, 47
      %p238 = scmp.lt.s32.totalorder %s20, 0
      %s239 = scalar_select %p238, %s20, 0
      %s240 = sadd.s32 %s239, %s237
      %s241 = smul.addr %s240, 4
      %s242 = scalar_lea.vmem %s1, %s241
      %s243 = smul.u32 16, %s21
      %p244 = scmp.lt.s32.totalorder %s20, 0
      %s245 = scalar_select %p244, %s20, 0
      %s246 = scalar_lea.vmem %s2, %s245
      %p247 = scmp.lt.s32.totalorder %s19, 0
      %s248 = scalar_select %p247, %s19, 0
      %p249 = scmp.lt.s32.totalorder %s20, 0
      %s250 = scalar_select %p249, %s20, 0
      %s251 = sadd.s32 %s250, %s248
      %s252 = smul.addr %s251, 4
      %s253 = scalar_lea.vmem %s3, %s252
      %p254 = scmp.eq.s32.totalorder %s21, 0
      // Predicated region
      $region33: #{ar_straighter_forward.30} parent=31 // pred_check
        %p255 = pneg %p254
      $region34: #{ar_straighter_forward.30} parent=31 // pred_check_branch
        %257 = sbr.rel (%p255) target = $region36
      $region35: #{ar_straighter_forward.30} parent=31 // pred_region
        %258 = vst [vmem:[#allocation2] sm:$0xff] 0.0
      $region36: #{ar_straighter_forward.30} parent=31 // pred_fallthru
        _
      %v259 = vld [vmem:[%s234] sm:$0xf]
      %v260 = vld [vmem:[#allocation2] sm:$0xff]
      %v261 = vld [vmem:[%s242] sm:$0xf]
      %v262 = vld [vmem:[%s242 + $0x4] sm:$0xf]
      %v263 = vld [vmem:[%s242 + $0x8] sm:$0xf]
      %v264 = vld [vmem:[%s242 + $0xc] sm:$0xf]
      %v265 = vld [vmem:[%s242 + $0x10] sm:$0xf]
      %v266 = vld [vmem:[%s242 + $0x14] sm:$0xf]
      %v267 = vld [vmem:[%s242 + $0x18] sm:$0xf]
      %v268 = vld [vmem:[%s242 + $0x1c] sm:$0xf]
      %v269 = vld [vmem:[%s242 + $0x20] sm:$0xf]
      %v270 = vld [vmem:[%s242 + $0x24] sm:$0xf]
      %v271 = vld [vmem:[%s242 + $0x28] sm:$0xf]
      %v272 = vld [vmem:[%s242 + $0x2c] sm:$0xf]
      %v273 = vld [vmem:[%s242 + $0x30] sm:$0xf]
      %v274 = vld [vmem:[%s242 + $0x34] sm:$0xf]
      %v275 = vld [vmem:[%s242 + $0x38] sm:$0xf]
      %v276 = vld [vmem:[%s242 + $0x3c] sm:$0xf]
      %v293 = vunpack.c.l.b16 %v261
      %v294 = vunpack.c.l.b16 %v262
      %v295 = vunpack.c.l.b16 %v263
      %v296 = vunpack.c.l.b16 %v264
      %v297 = vunpack.c.l.b16 %v265
      %v298 = vunpack.c.l.b16 %v266
      %v299 = vunpack.c.l.b16 %v267
      %v300 = vunpack.c.l.b16 %v268
      %v301 = vunpack.c.l.b16 %v269
      %v302 = vunpack.c.l.b16 %v270
      %v303 = vunpack.c.l.b16 %v271
      %v304 = vunpack.c.l.b16 %v272
      %v305 = vunpack.c.l.b16 %v273
      %v306 = vunpack.c.l.b16 %v274
      %v307 = vunpack.c.l.b16 %v275
      %v308 = vunpack.c.l.b16 %v276
      %v309 = vpack.c.b16 %v294, %v293
      %v310 = vpack.c.b16 %v296, %v295
      %v311 = vpack.c.b16 %v298, %v297
      %v312 = vpack.c.b16 %v300, %v299
      %v313 = vpack.c.b16 %v302, %v301
      %v314 = vpack.c.b16 %v304, %v303
      %v315 = vpack.c.b16 %v306, %v305
      %v316 = vpack.c.b16 %v308, %v307
      %325 = vmatpush.bf16.msra.mxu0 %v316
      %326 = vmatpush.bf16.msra.mxu0 %v315
      %327 = vmatpush.bf16.msra.mxu0 %v314
      %328 = vmatpush.bf16.msra.mxu0 %v313
      %329 = vmatpush.bf16.msra.mxu0 %v312
      %330 = vmatpush.bf16.msra.mxu0 %v311
      %331 = vmatpush.bf16.msra.mxu0 %v310
      %332 = vmatpush.bf16.msra.mxu0 %v309
      %333 = vmatmul.bf16.gmra.mxu0 %v259
      %v334 = vpop.f32.mrf.mxu0
      %v335 = vadd.f32 0.0, %v334
      %v336 = vpop.f32.mrf.mxu0
      %337 = vdwg.mxu0
      %v338 = vadd.f32 %v260, %v335
      %339 = vst [vmem:[#allocation2] sm:$0xff] %v338
      %p340 = scmp.eq.s32.totalorder %s21, 2
      // Predicated region
      $region37: #{ar_straighter_forward.30} parent=31 // pred_check
        %p341 = pneg %p340
      $region38: #{ar_straighter_forward.30} parent=31 // pred_check_branch
        %343 = sbr.rel (%p341) target = $region40
      $region39: #{ar_straighter_forward.30} parent=31 // pred_region
        %v344 = vld [vmem:[#allocation2] sm:$0xff]
        %v345 = vld [vmem:[%s246] sm:$0x1]
        %v347 = vperm.slane %v345, 0
        %v349 = vadd.f32 %v344, %v347
        %v350 = vpack.c.bf16 %v349, %v349
        %351 = vst [vmem:[%s253] sm:$0xf] %v350
      $region40: #{ar_straighter_forward.30} parent=31 // pred_fallthru
        _
      %p352 = scmp.lt.s32.totalorder %s19, 0
      %s353 = scalar_select %p352, %s19, 0
      %p354 = scmp.lt.s32.totalorder %s20, 0
      %s355 = scalar_select %p354, %s20, 0
      %s356 = sadd.s32 %s355, %s353
      %s357 = smul.addr %s356, 4
      %s358 = scalar_lea.vmem %s3, %s357
      // Predicated region
      $region41: #{ar_straighter_forward.30} parent=31 // pred_check
        %p359 = pneg %p135
      $region42: #{ar_straighter_forward.30} parent=31 // pred_check_branch
        %361 = sbr.rel (%p359) target = $region44
      $region43: #{ar_straighter_forward.30} parent=31 // pred_region
        _
      $region44: #{ar_straighter_forward.30} parent=31 // pred_fallthru
        _
      // Predicated region
      $region45: #{ar_straighter_forward.30} parent=31 // pred_check
        %p362 = pneg %p135
      $region46: #{ar_straighter_forward.30} parent=31 // pred_check_branch
        %364 = sbr.rel (%p362) target = $region48
      $region47: #{ar_straighter_forward.30} parent=31 // pred_region
        %p365 = scmp.lt.s32.totalorder %s19, 0
        %s366 = scalar_select %p365, %s19, 0
        %p367 = scmp.lt.s32.totalorder %s20, 0
        %s368 = scalar_select %p367, %s20, 0
        %s369 = sadd.s32 %s368, %s366
        %s370 = smul.addr %s369, 4
        %s371 = scalar_lea.vmem %s3, %s370
      $region48: #{ar_straighter_forward.30} parent=31 // pred_fallthru
        _
    $region32: #{ar_straighter_forward.30} parent=5 // pred_fallthru
      _
    %p372 = scmp.le.s32.totalorder 2, %s9
    // Predicated region
    $region49: #{ar_straighter_forward.30} parent=5 // pred_check
      %p373 = pneg %p372
    $region50: #{ar_straighter_forward.30} parent=5 // pred_check_branch
      %375 = sbr.rel (%p373) target = $region52
    $region51: #{ar_straighter_forward.30} parent=5 // pred_region
      %s376 = ssub.s32 %s9, 2
    $region52: #{ar_straighter_forward.30} parent=5 // pred_fallthru
      _
  $region6: #{ar_straighter_forward.30} parent=0 // loop_footer
    %s13 = sadd.s32 1, %s9
  $region7: #{ar_straighter_forward.30} parent=0 // loop_footer_branch
    %8 = sbr.rel target = $region3
  $region8: #{ar_straighter_forward.30} parent=0 // loop_exit
    _

// kernel: ar_straighter_forward.29
$region0: #{ar_straighter_forward.29}
  #allocation0 [shape = 'u32[]', space=smem, size = 0x4, offset = 0x4, fixed_abs, tag = 'smem constant byte address 0x4 - core index']
  #allocation1 [shape = 'u32[72,128]{1,0:T(1,128)}', space=vmem, size = 0x9000, scoped, tag = 'internal scratch']
  #allocation2 [shape = 'f32[8,128]{1,0:T(8,128)}', space=vmem, size = 0x1000, scoped, tag = 'scratch operand']
  %s0 = inlined_call_operand.vmem [shape: bf16[8,588], index: 0, kind: input, shape index: {}]
  %s1 = inlined_call_operand.vmem [shape: bf16[588,384], index: 1, kind: input, shape index: {}]
  %s2 = inlined_call_operand.vmem [shape: f32[1,384], index: 2, kind: input, shape index: {}]
  %s3 = inlined_call_operand.vmem [shape: bf16[8,384], index: 3, kind: output, shape index: {}]
  %s4 = sld [smem:[#allocation0]]
  $region94: #{ar_straighter_forward.29} parent=0
    _
  %s6 = ssub.s32 1, %s4
  %s7 = scalar_select 0, %s6, %s4
  $region1: #{ar_straighter_forward.29} parent=0
    #allocation3 [shape = 'u8[303104]{0}', space=vmem, size = 0x4a000, scoped, tag = 'input window, operand 1']
    loop: start=0, step=1, limit=5
    $region2: #{ar_straighter_forward.29} parent=1 // loop_pre_header
      _
    $region3: #{ar_straighter_forward.29} parent=1 // loop_header
      %s9 = sphi 0, %s13
      %p10 = scmp.ge.s32.totalorder %s9, 5
      %s16 = sphi 0, %s35
      %s17 = sphi 0, %s31
      %s18 = sphi 0, %s27
      %s19 = sphi 0, %s16
      %s20 = sphi 0, %s17
      %s21 = sphi 0, %s18
      %s22 = sphi 0, %s19
      %s23 = sphi 0, %s20
      %s24 = sphi 0, %s21
      %s40 = sphi 0, %s42
      %s43 = sphi 0, %s40
      %s44 = sphi 0, %s43
      %s60 = sphi 0, %s44
      %s68 = sphi 0, %s70
      %s71 = sphi 0, %s68
      %s72 = sphi 0, %s71
      %s88 = sphi 0, %s72
      %s94 = sphi 0, %s96
      %s97 = sphi 0, %s94
      %s98 = sphi 0, %s97
      %s114 = sphi 0, %s98
      %s122 = sphi 0, %s124
      %s125 = sphi 0, %s122
      %s126 = sphi 0, %s125
      %s142 = sphi 0, %s126
    $region4: #{ar_straighter_forward.29} parent=1 // loop_header_branch
      %12 = sbr.rel (%p10) target = $region8
    $region5: #{ar_straighter_forward.29} parent=1 // loop_body
      %s14 = ssub.s32 %s9, 1
      %s15 = ssub.s32 %s9, 2
      %s25 = sadd.s32 1, %s18
      %p26 = scmp.ge.s32.totalorder %s25, 1
      %s27 = scalar_select %p26, 0, %s25
      %s28 = sadd.s32 1, %s17
      %s29 = scalar_select %p26, %s28, %s17
      %p30 = scmp.ge.s32.totalorder %s29, 3
      %s31 = scalar_select %p30, 0, %s29
      %s32 = sadd.s32 1, %s16
      %s33 = scalar_select %p30, %s32, %s16
      %p34 = scmp.ge.s32.totalorder %s33, 1
      %s35 = scalar_select %p34, 0, %s33
      %s36 = ssub.s32 %s16, %s35
      %s37 = ssub.s32 %s18, %s27
      %s38 = sor.u32 %s36, %s37
      %p39 = scmp.eq.s32.totalorder %s38, 0
      %s41 = sadd.s32 %s40, 1
      %s42 = scalar_select %p39, %s40, %s41
      %p45 = pneg %p39
      %p46 = scmp.eq.s32.totalorder %s9, 2
      %p47 = por %p45, %p46
      %p48 = scmp.ne.s32.totalorder %s40, %s43
      %p49 = scmp.eq.s32.totalorder %s9, 0
      %p50 = por %p48, %p49
      %p51 = scmp.ne.s32.totalorder %s40, %s43
      %p52 = scmp.eq.s32.totalorder %s14, 2
      %p53 = por %p51, %p52
      %p54 = scmp.ne.s32.totalorder %s43, %s44
      %p55 = scmp.eq.s32.totalorder %s14, 0
      %p56 = por %p54, %p55
      %p57 = scmp.ne.s32.totalorder %s43, %s44
      %p58 = scmp.eq.s32.totalorder %s15, 2
      %p59 = por %p57, %p58
      %p61 = scmp.ne.s32.totalorder %s44, %s60
      %p62 = scmp.eq.s32.totalorder %s15, 0
      %p63 = por %p61, %p62
      %s64 = ssub.s32 %s18, %s27
      %s65 = ssub.s32 %s17, %s31
      %s66 = sor.u32 %s64, %s65
      %p67 = scmp.eq.s32.totalorder %s66, 0
      %s69 = sadd.s32 %s68, 1
      %s70 = scalar_select %p67, %s68, %s69
      %p73 = pneg %p67
      %p74 = scmp.eq.s32.totalorder %s9, 2
      %p75 = por %p73, %p74
      %p76 = scmp.ne.s32.totalorder %s68, %s71
      %p77 = scmp.eq.s32.totalorder %s9, 0
      %p78 = por %p76, %p77
      %p79 = scmp.ne.s32.totalorder %s68, %s71
      %p80 = scmp.eq.s32.totalorder %s14, 2
      %p81 = por %p79, %p80
      %p82 = scmp.ne.s32.totalorder %s71, %s72
      %p83 = scmp.eq.s32.totalorder %s14, 0
      %p84 = por %p82, %p83
      %p85 = scmp.ne.s32.totalorder %s71, %s72
      %p86 = scmp.eq.s32.totalorder %s15, 2
      %p87 = por %p85, %p86
      %p89 = scmp.ne.s32.totalorder %s72, %s88
      %p90 = scmp.eq.s32.totalorder %s15, 0
      %p91 = por %p89, %p90
      %s92 = ssub.s32 %s17, %s31
      %p93 = scmp.eq.s32.totalorder %s92, 0
      %s95 = sadd.s32 %s94, 1
      %s96 = scalar_select %p93, %s94, %s95
      %p99 = pneg %p93
      %p100 = scmp.eq.s32.totalorder %s9, 2
      %p101 = por %p99, %p100
      %p102 = scmp.ne.s32.totalorder %s94, %s97
      %p103 = scmp.eq.s32.totalorder %s9, 0
      %p104 = por %p102, %p103
      %p105 = scmp.ne.s32.totalorder %s94, %s97
      %p106 = scmp.eq.s32.totalorder %s14, 2
      %p107 = por %p105, %p106
      %p108 = scmp.ne.s32.totalorder %s97, %s98
      %p109 = scmp.eq.s32.totalorder %s14, 0
      %p110 = por %p108, %p109
      %p111 = scmp.ne.s32.totalorder %s97, %s98
      %p112 = scmp.eq.s32.totalorder %s15, 2
      %p113 = por %p111, %p112
      %p115 = scmp.ne.s32.totalorder %s98, %s114
      %p116 = scmp.eq.s32.totalorder %s15, 0
      %p117 = por %p115, %p116
      %s118 = ssub.s32 %s16, %s35
      %s119 = ssub.s32 %s17, %s31
      %s120 = sor.u32 %s118, %s119
      %p121 = scmp.eq.s32.totalorder %s120, 0
      %s123 = sadd.s32 %s122, 1
      %s124 = scalar_select %p121, %s122, %s123
      %p127 = pneg %p121
      %p128 = scmp.eq.s32.totalorder %s9, 2
      %p129 = por %p127, %p128
      %p130 = scmp.ne.s32.totalorder %s122, %s125
      %p131 = scmp.eq.s32.totalorder %s9, 0
      %p132 = por %p130, %p131
      %p133 = scmp.ne.s32.totalorder %s122, %s125
      %p134 = scmp.eq.s32.totalorder %s14, 2
      %p135 = por %p133, %p134
      %p136 = scmp.ne.s32.totalorder %s125, %s126
      %p137 = scmp.eq.s32.totalorder %s14, 0
      %p138 = por %p136, %p137
      %p139 = scmp.ne.s32.totalorder %s125, %s126
      %p140 = scmp.eq.s32.totalorder %s15, 2
      %p141 = por %p139, %p140
      %p143 = scmp.ne.s32.totalorder %s126, %s142
      %p144 = scmp.eq.s32.totalorder %s15, 0
      %p145 = por %p143, %p144
      %p146 = scmp.le.s32.totalorder 1, %s9
      %p147 = scmp.lt.s32.totalorder %s9, 4
      %p148 = pnand %p146, %p147
      %p149 = pneg %p148
      // Predicated region
      $region9: #{ar_straighter_forward.29} parent=5 // pred_check
        _
      $region10: #{ar_straighter_forward.29} parent=5 // pred_check_branch
        %151 = sbr.rel (%p148) target = $region12
      $region11: #{ar_straighter_forward.29} parent=5 // pred_region
        %s152 = ssub.s32 %s9, 1
        // Predicated region
        $region13: #{ar_straighter_forward.29} parent=11 // pred_check
          %p153 = pneg %p56
        $region14: #{ar_straighter_forward.29} parent=11 // pred_check_branch
          %155 = sbr.rel (%p153) target = $region16
        $region15: #{ar_straighter_forward.29} parent=11 // pred_region
          %s156 = smul.u32 5, %s21
          %p157 = scmp.lt.s32.totalorder %s19, 0
          %s158 = scalar_select %p157, %s19, 0
          %p159 = scmp.lt.s32.totalorder %s156, 4
          %s160 = scalar_select %p159, %s156, 4
          %s161 = smul.addr %s158, 5
          %s162 = sadd.s32 %s160, %s161
          %s163 = smul.addr %s162, 4
          %s164 = scalar_lea.vmem %s0, %s163
          %s165 = smul.u32 5, %s21
        $region16: #{ar_straighter_forward.29} parent=11 // pred_fallthru
          _
      $region12: #{ar_straighter_forward.29} parent=5 // pred_fallthru
        _
      %p166 = scmp.lt.s32.totalorder %s9, 3
      // Predicated region
      $region17: #{ar_straighter_forward.29} parent=5 // pred_check
        %p167 = pneg %p166
      $region18: #{ar_straighter_forward.29} parent=5 // pred_check_branch
        %169 = sbr.rel (%p167) target = $region20
      $region19: #{ar_straighter_forward.29} parent=5 // pred_region
        // Predicated region
        $region21: #{ar_straighter_forward.29} parent=19 // pred_check
          %p170 = pneg %p78
        $region22: #{ar_straighter_forward.29} parent=19 // pred_check_branch
          %172 = sbr.rel (%p170) target = $region24
        $region23: #{ar_straighter_forward.29} parent=19 // pred_region
          %s173 = sand.u32 %s68, 1
          %s174 = sand.u32 %s68, 1
          %s175 = smul.addr %s174, 296
          %s176 = scalar_lea.vmem [#allocation3], %s175
          %s177 = smul.u32 74, %s18
          %s178 = smul.addr %s177, 3
          %s179 = sadd.s32 %s17, %s178
          %s180 = smul.addr %s179, 4
          %s181 = scalar_lea.vmem %s1, %s180
          // Predicated region
          $region25: #{ar_straighter_forward.29} parent=23 // pred_check
            _
          $region26: #{ar_straighter_forward.29} parent=23 // pred_check_branch
            %183 = sbr.rel (0) target = $region28
          $region27: #{ar_straighter_forward.29} parent=23 // pred_region
            // Predicated region
            $region29: #{ar_straighter_forward.29} parent=27 // pred_check
              _
            $region30: #{ar_straighter_forward.29} parent=27 // pred_check_branch
              %185 = sbr.rel target = $region32
            $region31: #{ar_straighter_forward.29} parent=27 // pred_region
              // Predicated region
              $region44: #{ar_straighter_forward.29} parent=31 // pred_check
                _
              $region45: #{ar_straighter_forward.29} parent=31 // pred_check_branch
                %347 = sbr.rel (0) target = $region47
              $region46: #{ar_straighter_forward.29} parent=31 // pred_region
                loop: start=0, step=1, limit=1
                $region48: #{ar_straighter_forward.29} parent=46 // loop_pre_header
                  _
                $region49: #{ar_straighter_forward.29} parent=46 // loop_header
                  %s349 = sphi 0, %s353
                  %p350 = scmp.ge.s32.totalorder %s349, 1
                  %s354 = sphi %s181, %s181
                  %s355 = sphi %s176, %s176
                $region50: #{ar_straighter_forward.29} parent=46 // loop_header_branch
                  %352 = sbr.rel (%p350) target = $region54
                $region51: #{ar_straighter_forward.29} parent=46 // loop_body
                  _
                $region52: #{ar_straighter_forward.29} parent=46 // loop_footer
                  %s353 = sadd.s32 1, %s349
                $region53: #{ar_straighter_forward.29} parent=46 // loop_footer_branch
                  %348 = sbr.rel target = $region49
                $region54: #{ar_straighter_forward.29} parent=46 // loop_exit
                  _
                %s357 = ssub.s32 16, 1
                loop: start=0, step=1, limit=1
                $region55: #{ar_straighter_forward.29} parent=46 // loop_pre_header
                  _
                $region56: #{ar_straighter_forward.29} parent=46 // loop_header
                  %s359 = sphi 0, %s363
                  %p360 = scmp.ge.s32.totalorder %s359, 1
                  %s364 = sphi %s181, %s181
                  %s365 = sphi %s176, %s176
                $region57: #{ar_straighter_forward.29} parent=46 // loop_header_branch
                  %362 = sbr.rel (%p360) target = $region61
                $region58: #{ar_straighter_forward.29} parent=46 // loop_body
                  %v366 = vld [vmem:[%s364] sm:%s357]
                  %367 = vst [vmem:[%s365] sm:%s357] %v366
                  %v368 = vld [vmem:[%s364 + $0xc] sm:%s357]
                  %369 = vst [vmem:[%s365 + $0x4] sm:%s357] %v368
                  %v370 = vld [vmem:[%s364 + $0x18] sm:%s357]
                  %371 = vst [vmem:[%s365 + $0x8] sm:%s357] %v370
                  %v372 = vld [vmem:[%s364 + $0x24] sm:%s357]
                  %373 = vst [vmem:[%s365 + $0xc] sm:%s357] %v372
                  %v374 = vld [vmem:[%s364 + $0x30] sm:%s357]
                  %375 = vst [vmem:[%s365 + $0x10] sm:%s357] %v374
                  %v376 = vld [vmem:[%s364 + $0x3c] sm:%s357]
                  %377 = vst [vmem:[%s365 + $0x14] sm:%s357] %v376
                  %v378 = vld [vmem:[%s364 + $0x48] sm:%s357]
                  %379 = vst [vmem:[%s365 + $0x18] sm:%s357] %v378
                  %v380 = vld [vmem:[%s364 + $0x54] sm:%s357]
                  %381 = vst [vmem:[%s365 + $0x1c] sm:%s357] %v380
                  %v382 = vld [vmem:[%s364 + $0x60] sm:%s357]
                  %383 = vst [vmem:[%s365 + $0x20] sm:%s357] %v382
                  %v384 = vld [vmem:[%s364 + $0x6c] sm:%s357]
                  %385 = vst [vmem:[%s365 + $0x24] sm:%s357] %v384
                  %v386 = vld [vmem:[%s364 + $0x78] sm:%s357]
                  %387 = vst [vmem:[%s365 + $0x28] sm:%s357] %v386
                  %v388 = vld [vmem:[%s364 + $0x84] sm:%s357]
                  %389 = vst [vmem:[%s365 + $0x2c] sm:%s357] %v388
                  %v390 = vld [vmem:[%s364 + $0x90] sm:%s357]
                  %391 = vst [vmem:[%s365 + $0x30] sm:%s357] %v390
                  %v392 = vld [vmem:[%s364 + $0x9c] sm:%s357]
                  %393 = vst [vmem:[%s365 + $0x34] sm:%s357] %v392
                  %v394 = vld [vmem:[%s364 + $0xa8] sm:%s357]
                  %395 = vst [vmem:[%s365 + $0x38] sm:%s357] %v394
                  %v396 = vld [vmem:[%s364 + $0xb4] sm:%s357]
                  %397 = vst [vmem:[%s365 + $0x3c] sm:%s357] %v396
                  %v398 = vld [vmem:[%s364 + $0xc0] sm:%s357]
                  %399 = vst [vmem:[%s365 + $0x40] sm:%s357] %v398
                  %v400 = vld [vmem:[%s364 + $0xcc] sm:%s357]
                  %401 = vst [vmem:[%s365 + $0x44] sm:%s357] %v400
                  %v402 = vld [vmem:[%s364 + $0xd8] sm:%s357]
                  %403 = vst [vmem:[%s365 + $0x48] sm:%s357] %v402
                  %v404 = vld [vmem:[%s364 + $0xe4] sm:%s357]
                  %405 = vst [vmem:[%s365 + $0x4c] sm:%s357] %v404
                  %v406 = vld [vmem:[%s364 + $0xf0] sm:%s357]
                  %407 = vst [vmem:[%s365 + $0x50] sm:%s357] %v406
                  %v408 = vld [vmem:[%s364 + $0xfc] sm:%s357]
                  %409 = vst [vmem:[%s365 + $0x54] sm:%s357] %v408
                  %v410 = vld [vmem:[%s364 + $0x108] sm:%s357]
                  %411 = vst [vmem:[%s365 + $0x58] sm:%s357] %v410
                  %v412 = vld [vmem:[%s364 + $0x114] sm:%s357]
                  %413 = vst [vmem:[%s365 + $0x5c] sm:%s357] %v412
                  %v414 = vld [vmem:[%s364 + $0x120] sm:%s357]
                  %415 = vst [vmem:[%s365 + $0x60] sm:%s357] %v414
                  %v416 = vld [vmem:[%s364 + $0x12c] sm:%s357]
                  %417 = vst [vmem:[%s365 + $0x64] sm:%s357] %v416
                  %v418 = vld [vmem:[%s364 + $0x138] sm:%s357]
                  %419 = vst [vmem:[%s365 + $0x68] sm:%s357] %v418
                  %v420 = vld [vmem:[%s364 + $0x144] sm:%s357]
                  %421 = vst [vmem:[%s365 + $0x6c] sm:%s357] %v420
                  %v422 = vld [vmem:[%s364 + $0x150] sm:%s357]
                  %423 = vst [vmem:[%s365 + $0x70] sm:%s357] %v422
                  %v424 = vld [vmem:[%s364 + $0x15c] sm:%s357]
                  %425 = vst [vmem:[%s365 + $0x74] sm:%s357] %v424
                  %v426 = vld [vmem:[%s364 + $0x168] sm:%s357]
                  %427 = vst [vmem:[%s365 + $0x78] sm:%s357] %v426
                  %v428 = vld [vmem:[%s364 + $0x174] sm:%s357]
                  %429 = vst [vmem:[%s365 + $0x7c] sm:%s357] %v428
                  %v430 = vld [vmem:[%s364 + $0x180] sm:%s357]
                  %431 = vst [vmem:[%s365 + $0x80] sm:%s357] %v430
                  %v432 = vld [vmem:[%s364 + $0x18c] sm:%s357]
                  %433 = vst [vmem:[%s365 + $0x84] sm:%s357] %v432
                  %v434 = vld [vmem:[%s364 + $0x198] sm:%s357]
                  %435 = vst [vmem:[%s365 + $0x88] sm:%s357] %v434
                  %v436 = vld [vmem:[%s364 + $0x1a4] sm:%s357]
                  %437 = vst [vmem:[%s365 + $0x8c] sm:%s357] %v436
                  %v438 = vld [vmem:[%s364 + $0x1b0] sm:%s357]
                  %439 = vst [vmem:[%s365 + $0x90] sm:%s357] %v438
                  %v440 = vld [vmem:[%s364 + $0x1bc] sm:%s357]
                  %441 = vst [vmem:[%s365 + $0x94] sm:%s357] %v440
                  %v442 = vld [vmem:[%s364 + $0x1c8] sm:%s357]
                  %443 = vst [vmem:[%s365 + $0x98] sm:%s357] %v442
                  %v444 = vld [vmem:[%s364 + $0x1d4] sm:%s357]
                  %445 = vst [vmem:[%s365 + $0x9c] sm:%s357] %v444
                  %v446 = vld [vmem:[%s364 + $0x1e0] sm:%s357]
                  %447 = vst [vmem:[%s365 + $0xa0] sm:%s357] %v446
                  %v448 = vld [vmem:[%s364 + $0x1ec] sm:%s357]
                  %449 = vst [vmem:[%s365 + $0xa4] sm:%s357] %v448
                  %v450 = vld [vmem:[%s364 + $0x1f8] sm:%s357]
                  %451 = vst [vmem:[%s365 + $0xa8] sm:%s357] %v450
                  %v452 = vld [vmem:[%s364 + $0x204] sm:%s357]
                  %453 = vst [vmem:[%s365 + $0xac] sm:%s357] %v452
                  %v454 = vld [vmem:[%s364 + $0x210] sm:%s357]
                  %455 = vst [vmem:[%s365 + $0xb0] sm:%s357] %v454
                  %v456 = vld [vmem:[%s364 + $0x21c] sm:%s357]
                  %457 = vst [vmem:[%s365 + $0xb4] sm:%s357] %v456
                  %v458 = vld [vmem:[%s364 + $0x228] sm:%s357]
                  %459 = vst [vmem:[%s365 + $0xb8] sm:%s357] %v458
                  %v460 = vld [vmem:[%s364 + $0x234] sm:%s357]
                  %461 = vst [vmem:[%s365 + $0xbc] sm:%s357] %v460
                  %v462 = vld [vmem:[%s364 + $0x240] sm:%s357]
                  %463 = vst [vmem:[%s365 + $0xc0] sm:%s357] %v462
                  %v464 = vld [vmem:[%s364 + $0x24c] sm:%s357]
                  %465 = vst [vmem:[%s365 + $0xc4] sm:%s357] %v464
                  %v466 = vld [vmem:[%s364 + $0x258] sm:%s357]
                  %467 = vst [vmem:[%s365 + $0xc8] sm:%s357] %v466
                  %v468 = vld [vmem:[%s364 + $0x264] sm:%s357]
                  %469 = vst [vmem:[%s365 + $0xcc] sm:%s357] %v468
                  %v470 = vld [vmem:[%s364 + $0x270] sm:%s357]
                  %471 = vst [vmem:[%s365 + $0xd0] sm:%s357] %v470
                  %v472 = vld [vmem:[%s364 + $0x27c] sm:%s357]
                  %473 = vst [vmem:[%s365 + $0xd4] sm:%s357] %v472
                  %v474 = vld [vmem:[%s364 + $0x288] sm:%s357]
                  %475 = vst [vmem:[%s365 + $0xd8] sm:%s357] %v474
                  %v476 = vld [vmem:[%s364 + $0x294] sm:%s357]
                  %477 = vst [vmem:[%s365 + $0xdc] sm:%s357] %v476
                  %v478 = vld [vmem:[%s364 + $0x2a0] sm:%s357]
                  %479 = vst [vmem:[%s365 + $0xe0] sm:%s357] %v478
                  %v480 = vld [vmem:[%s364 + $0x2ac] sm:%s357]
                  %481 = vst [vmem:[%s365 + $0xe4] sm:%s357] %v480
                  %v482 = vld [vmem:[%s364 + $0x2b8] sm:%s357]
                  %483 = vst [vmem:[%s365 + $0xe8] sm:%s357] %v482
                  %v484 = vld [vmem:[%s364 + $0x2c4] sm:%s357]
                  %485 = vst [vmem:[%s365 + $0xec] sm:%s357] %v484
                  %v486 = vld [vmem:[%s364 + $0x2d0] sm:%s357]
                  %487 = vst [vmem:[%s365 + $0xf0] sm:%s357] %v486
                  %v488 = vld [vmem:[%s364 + $0x2dc] sm:%s357]
                  %489 = vst [vmem:[%s365 + $0xf4] sm:%s357] %v488
                  %v490 = vld [vmem:[%s364 + $0x2e8] sm:%s357]
                  %491 = vst [vmem:[%s365 + $0xf8] sm:%s357] %v490
                  %v492 = vld [vmem:[%s364 + $0x2f4] sm:%s357]
                  %493 = vst [vmem:[%s365 + $0xfc] sm:%s357] %v492
                  %v494 = vld [vmem:[%s364 + $0x300] sm:%s357]
                  %495 = vst [vmem:[%s365 + $0x100] sm:%s357] %v494
                  %v496 = vld [vmem:[%s364 + $0x30c] sm:%s357]
                  %497 = vst [vmem:[%s365 + $0x104] sm:%s357] %v496
                  %v498 = vld [vmem:[%s364 + $0x318] sm:%s357]
                  %499 = vst [vmem:[%s365 + $0x108] sm:%s357] %v498
                  %v500 = vld [vmem:[%s364 + $0x324] sm:%s357]
                  %501 = vst [vmem:[%s365 + $0x10c] sm:%s357] %v500
                  %v502 = vld [vmem:[%s364 + $0x330] sm:%s357]
                  %503 = vst [vmem:[%s365 + $0x110] sm:%s357] %v502
                  %v504 = vld [vmem:[%s364 + $0x33c] sm:%s357]
                  %505 = vst [vmem:[%s365 + $0x114] sm:%s357] %v504
                  %v506 = vld [vmem:[%s364 + $0x348] sm:%s357]
                  %507 = vst [vmem:[%s365 + $0x118] sm:%s357] %v506
                  %v508 = vld [vmem:[%s364 + $0x354] sm:%s357]
                  %509 = vst [vmem:[%s365 + $0x11c] sm:%s357] %v508
                  %v510 = vld [vmem:[%s364 + $0x360] sm:%s357]
                  %511 = vst [vmem:[%s365 + $0x120] sm:%s357] %v510
                  %v512 = vld [vmem:[%s364 + $0x36c] sm:%s357]
                  %513 = vst [vmem:[%s365 + $0x124] sm:%s357] %v512
                $region59: #{ar_straighter_forward.29} parent=46 // loop_footer
                  %s363 = sadd.s32 1, %s359
                $region60: #{ar_straighter_forward.29} parent=46 // loop_footer_branch
                  %358 = sbr.rel target = $region56
                $region61: #{ar_straighter_forward.29} parent=46 // loop_exit
                  _
              $region47: #{ar_straighter_forward.29} parent=31 // pred_fallthru
                _
            $region32: #{ar_straighter_forward.29} parent=27 // pred_fallthru
              _
            // Predicated region
            $region33: #{ar_straighter_forward.29} parent=27 // pred_check
              _
            $region34: #{ar_straighter_forward.29} parent=27 // pred_check_branch
              %187 = sbr.rel (0) target = $region36
            $region35: #{ar_straighter_forward.29} parent=27 // pred_region
              %s189 = ssub.s32 16, 1
              loop: start=0, step=1, limit=1
              $region37: #{ar_straighter_forward.29} parent=35 // loop_pre_header
                _
              $region38: #{ar_straighter_forward.29} parent=35 // loop_header
                %s191 = sphi 0, %s195
                %p192 = scmp.ge.s32.totalorder %s191, 1
                %s196 = sphi %s181, %s181
                %s197 = sphi %s176, %s176
              $region39: #{ar_straighter_forward.29} parent=35 // loop_header_branch
                %194 = sbr.rel (%p192) target = $region43
              $region40: #{ar_straighter_forward.29} parent=35 // loop_body
                %v198 = vld [vmem:[%s196] sm:%s189]
                %199 = vst [vmem:[%s197] sm:%s189] %v198
                %v200 = vld [vmem:[%s196 + $0xc] sm:%s189]
                %201 = vst [vmem:[%s197 + $0x4] sm:%s189] %v200
                %v202 = vld [vmem:[%s196 + $0x18] sm:%s189]
                %203 = vst [vmem:[%s197 + $0x8] sm:%s189] %v202
                %v204 = vld [vmem:[%s196 + $0x24] sm:%s189]
                %205 = vst [vmem:[%s197 + $0xc] sm:%s189] %v204
                %v206 = vld [vmem:[%s196 + $0x30] sm:%s189]
                %207 = vst [vmem:[%s197 + $0x10] sm:%s189] %v206
                %v208 = vld [vmem:[%s196 + $0x3c] sm:%s189]
                %209 = vst [vmem:[%s197 + $0x14] sm:%s189] %v208
                %v210 = vld [vmem:[%s196 + $0x48] sm:%s189]
                %211 = vst [vmem:[%s197 + $0x18] sm:%s189] %v210
                %v212 = vld [vmem:[%s196 + $0x54] sm:%s189]
                %213 = vst [vmem:[%s197 + $0x1c] sm:%s189] %v212
                %v214 = vld [vmem:[%s196 + $0x60] sm:%s189]
                %215 = vst [vmem:[%s197 + $0x20] sm:%s189] %v214
                %v216 = vld [vmem:[%s196 + $0x6c] sm:%s189]
                %217 = vst [vmem:[%s197 + $0x24] sm:%s189] %v216
                %v218 = vld [vmem:[%s196 + $0x78] sm:%s189]
                %219 = vst [vmem:[%s197 + $0x28] sm:%s189] %v218
                %v220 = vld [vmem:[%s196 + $0x84] sm:%s189]
                %221 = vst [vmem:[%s197 + $0x2c] sm:%s189] %v220
                %v222 = vld [vmem:[%s196 + $0x90] sm:%s189]
                %223 = vst [vmem:[%s197 + $0x30] sm:%s189] %v222
                %v224 = vld [vmem:[%s196 + $0x9c] sm:%s189]
                %225 = vst [vmem:[%s197 + $0x34] sm:%s189] %v224
                %v226 = vld [vmem:[%s196 + $0xa8] sm:%s189]
                %227 = vst [vmem:[%s197 + $0x38] sm:%s189] %v226
                %v228 = vld [vmem:[%s196 + $0xb4] sm:%s189]
                %229 = vst [vmem:[%s197 + $0x3c] sm:%s189] %v228
                %v230 = vld [vmem:[%s196 + $0xc0] sm:%s189]
                %231 = vst [vmem:[%s197 + $0x40] sm:%s189] %v230
                %v232 = vld [vmem:[%s196 + $0xcc] sm:%s189]
                %233 = vst [vmem:[%s197 + $0x44] sm:%s189] %v232
                %v234 = vld [vmem:[%s196 + $0xd8] sm:%s189]
                %235 = vst [vmem:[%s197 + $0x48] sm:%s189] %v234
                %v236 = vld [vmem:[%s196 + $0xe4] sm:%s189]
                %237 = vst [vmem:[%s197 + $0x4c] sm:%s189] %v236
                %v238 = vld [vmem:[%s196 + $0xf0] sm:%s189]
                %239 = vst [vmem:[%s197 + $0x50] sm:%s189] %v238
                %v240 = vld [vmem:[%s196 + $0xfc] sm:%s189]
                %241 = vst [vmem:[%s197 + $0x54] sm:%s189] %v240
                %v242 = vld [vmem:[%s196 + $0x108] sm:%s189]
                %243 = vst [vmem:[%s197 + $0x58] sm:%s189] %v242
                %v244 = vld [vmem:[%s196 + $0x114] sm:%s189]
                %245 = vst [vmem:[%s197 + $0x5c] sm:%s189] %v244
                %v246 = vld [vmem:[%s196 + $0x120] sm:%s189]
                %247 = vst [vmem:[%s197 + $0x60] sm:%s189] %v246
                %v248 = vld [vmem:[%s196 + $0x12c] sm:%s189]
                %249 = vst [vmem:[%s197 + $0x64] sm:%s189] %v248
                %v250 = vld [vmem:[%s196 + $0x138] sm:%s189]
                %251 = vst [vmem:[%s197 + $0x68] sm:%s189] %v250
                %v252 = vld [vmem:[%s196 + $0x144] sm:%s189]
                %253 = vst [vmem:[%s197 + $0x6c] sm:%s189] %v252
                %v254 = vld [vmem:[%s196 + $0x150] sm:%s189]
                %255 = vst [vmem:[%s197 + $0x70] sm:%s189] %v254
                %v256 = vld [vmem:[%s196 + $0x15c] sm:%s189]
                %257 = vst [vmem:[%s197 + $0x74] sm:%s189] %v256
                %v258 = vld [vmem:[%s196 + $0x168] sm:%s189]
                %259 = vst [vmem:[%s197 + $0x78] sm:%s189] %v258
                %v260 = vld [vmem:[%s196 + $0x174] sm:%s189]
                %261 = vst [vmem:[%s197 + $0x7c] sm:%s189] %v260
                %v262 = vld [vmem:[%s196 + $0x180] sm:%s189]
                %263 = vst [vmem:[%s197 + $0x80] sm:%s189] %v262
                %v264 = vld [vmem:[%s196 + $0x18c] sm:%s189]
                %265 = vst [vmem:[%s197 + $0x84] sm:%s189] %v264
                %v266 = vld [vmem:[%s196 + $0x198] sm:%s189]
                %267 = vst [vmem:[%s197 + $0x88] sm:%s189] %v266
                %v268 = vld [vmem:[%s196 + $0x1a4] sm:%s189]
                %269 = vst [vmem:[%s197 + $0x8c] sm:%s189] %v268
                %v270 = vld [vmem:[%s196 + $0x1b0] sm:%s189]
                %271 = vst [vmem:[%s197 + $0x90] sm:%s189] %v270
                %v272 = vld [vmem:[%s196 + $0x1bc] sm:%s189]
                %273 = vst [vmem:[%s197 + $0x94] sm:%s189] %v272
                %v274 = vld [vmem:[%s196 + $0x1c8] sm:%s189]
                %275 = vst [vmem:[%s197 + $0x98] sm:%s189] %v274
                %v276 = vld [vmem:[%s196 + $0x1d4] sm:%s189]
                %277 = vst [vmem:[%s197 + $0x9c] sm:%s189] %v276
                %v278 = vld [vmem:[%s196 + $0x1e0] sm:%s189]
                %279 = vst [vmem:[%s197 + $0xa0] sm:%s189] %v278
                %v280 = vld [vmem:[%s196 + $0x1ec] sm:%s189]
                %281 = vst [vmem:[%s197 + $0xa4] sm:%s189] %v280
                %v282 = vld [vmem:[%s196 + $0x1f8] sm:%s189]
                %283 = vst [vmem:[%s197 + $0xa8] sm:%s189] %v282
                %v284 = vld [vmem:[%s196 + $0x204] sm:%s189]
                %285 = vst [vmem:[%s197 + $0xac] sm:%s189] %v284
                %v286 = vld [vmem:[%s196 + $0x210] sm:%s189]
                %287 = vst [vmem:[%s197 + $0xb0] sm:%s189] %v286
                %v288 = vld [vmem:[%s196 + $0x21c] sm:%s189]
                %289 = vst [vmem:[%s197 + $0xb4] sm:%s189] %v288
                %v290 = vld [vmem:[%s196 + $0x228] sm:%s189]
                %291 = vst [vmem:[%s197 + $0xb8] sm:%s189] %v290
                %v292 = vld [vmem:[%s196 + $0x234] sm:%s189]
                %293 = vst [vmem:[%s197 + $0xbc] sm:%s189] %v292
                %v294 = vld [vmem:[%s196 + $0x240] sm:%s189]
                %295 = vst [vmem:[%s197 + $0xc0] sm:%s189] %v294
                %v296 = vld [vmem:[%s196 + $0x24c] sm:%s189]
                %297 = vst [vmem:[%s197 + $0xc4] sm:%s189] %v296
                %v298 = vld [vmem:[%s196 + $0x258] sm:%s189]
                %299 = vst [vmem:[%s197 + $0xc8] sm:%s189] %v298
                %v300 = vld [vmem:[%s196 + $0x264] sm:%s189]
                %301 = vst [vmem:[%s197 + $0xcc] sm:%s189] %v300
                %v302 = vld [vmem:[%s196 + $0x270] sm:%s189]
                %303 = vst [vmem:[%s197 + $0xd0] sm:%s189] %v302
                %v304 = vld [vmem:[%s196 + $0x27c] sm:%s189]
                %305 = vst [vmem:[%s197 + $0xd4] sm:%s189] %v304
                %v306 = vld [vmem:[%s196 + $0x288] sm:%s189]
                %307 = vst [vmem:[%s197 + $0xd8] sm:%s189] %v306
                %v308 = vld [vmem:[%s196 + $0x294] sm:%s189]
                %309 = vst [vmem:[%s197 + $0xdc] sm:%s189] %v308
                %v310 = vld [vmem:[%s196 + $0x2a0] sm:%s189]
                %311 = vst [vmem:[%s197 + $0xe0] sm:%s189] %v310
                %v312 = vld [vmem:[%s196 + $0x2ac] sm:%s189]
                %313 = vst [vmem:[%s197 + $0xe4] sm:%s189] %v312
                %v314 = vld [vmem:[%s196 + $0x2b8] sm:%s189]
                %315 = vst [vmem:[%s197 + $0xe8] sm:%s189] %v314
                %v316 = vld [vmem:[%s196 + $0x2c4] sm:%s189]
                %317 = vst [vmem:[%s197 + $0xec] sm:%s189] %v316
                %v318 = vld [vmem:[%s196 + $0x2d0] sm:%s189]
                %319 = vst [vmem:[%s197 + $0xf0] sm:%s189] %v318
                %v320 = vld [vmem:[%s196 + $0x2dc] sm:%s189]
                %321 = vst [vmem:[%s197 + $0xf4] sm:%s189] %v320
                %v322 = vld [vmem:[%s196 + $0x2e8] sm:%s189]
                %323 = vst [vmem:[%s197 + $0xf8] sm:%s189] %v322
                %v324 = vld [vmem:[%s196 + $0x2f4] sm:%s189]
                %325 = vst [vmem:[%s197 + $0xfc] sm:%s189] %v324
                %v326 = vld [vmem:[%s196 + $0x300] sm:%s189]
                %327 = vst [vmem:[%s197 + $0x100] sm:%s189] %v326
                %v328 = vld [vmem:[%s196 + $0x30c] sm:%s189]
                %329 = vst [vmem:[%s197 + $0x104] sm:%s189] %v328
                %v330 = vld [vmem:[%s196 + $0x318] sm:%s189]
                %331 = vst [vmem:[%s197 + $0x108] sm:%s189] %v330
                %v332 = vld [vmem:[%s196 + $0x324] sm:%s189]
                %333 = vst [vmem:[%s197 + $0x10c] sm:%s189] %v332
                %v334 = vld [vmem:[%s196 + $0x330] sm:%s189]
                %335 = vst [vmem:[%s197 + $0x110] sm:%s189] %v334
                %v336 = vld [vmem:[%s196 + $0x33c] sm:%s189]
                %337 = vst [vmem:[%s197 + $0x114] sm:%s189] %v336
                %v338 = vld [vmem:[%s196 + $0x348] sm:%s189]
                %339 = vst [vmem:[%s197 + $0x118] sm:%s189] %v338
                %v340 = vld [vmem:[%s196 + $0x354] sm:%s189]
                %341 = vst [vmem:[%s197 + $0x11c] sm:%s189] %v340
                %v342 = vld [vmem:[%s196 + $0x360] sm:%s189]
                %343 = vst [vmem:[%s197 + $0x120] sm:%s189] %v342
                %v344 = vld [vmem:[%s196 + $0x36c] sm:%s189]
                %345 = vst [vmem:[%s197 + $0x124] sm:%s189] %v344
              $region41: #{ar_straighter_forward.29} parent=35 // loop_footer
                %s195 = sadd.s32 1, %s191
              $region42: #{ar_straighter_forward.29} parent=35 // loop_footer_branch
                %190 = sbr.rel target = $region38
              $region43: #{ar_straighter_forward.29} parent=35 // loop_exit
                _
            $region36: #{ar_straighter_forward.29} parent=27 // pred_fallthru
              _
          $region28: #{ar_straighter_forward.29} parent=23 // pred_fallthru
            _
          %514 = vnop
        $region24: #{ar_straighter_forward.29} parent=19 // pred_fallthru
          _
        // Predicated region
        $region62: #{ar_straighter_forward.29} parent=19 // pred_check
          %p515 = pneg %p104
        $region63: #{ar_straighter_forward.29} parent=19 // pred_check_branch
          %517 = sbr.rel (%p515) target = $region65
        $region64: #{ar_straighter_forward.29} parent=19 // pred_region
          %p518 = scmp.lt.s32.totalorder %s17, 2
          %s519 = scalar_select %p518, %s17, 2
          %s520 = scalar_lea.vmem %s2, %s519
        $region65: #{ar_straighter_forward.29} parent=19 // pred_fallthru
          _
      $region20: #{ar_straighter_forward.29} parent=5 // pred_fallthru
        _
      %p521 = scmp.le.s32.totalorder 1, %s9
      %p522 = scmp.lt.s32.totalorder %s9, 4
      %p523 = pnand %p521, %p522
      %p524 = pneg %p523
      // Predicated region
      $region66: #{ar_straighter_forward.29} parent=5 // pred_check
        _
      $region67: #{ar_straighter_forward.29} parent=5 // pred_check_branch
        %526 = sbr.rel (%p523) target = $region69
      $region68: #{ar_straighter_forward.29} parent=5 // pred_region
        %s527 = ssub.s32 %s9, 1
        %s528 = sand.u32 %s71, 1
        %s529 = sand.u32 %s71, 1
        %s530 = smul.addr %s529, 296
        %s531 = scalar_lea.vmem [#allocation3], %s530
        // Predicated region
        $region70: #{ar_straighter_forward.29} parent=68 // pred_check
          %p532 = pneg %p84
        $region71: #{ar_straighter_forward.29} parent=68 // pred_check_branch
          %534 = sbr.rel (%p532) target = $region73
        $region72: #{ar_straighter_forward.29} parent=68 // pred_region
          _
        $region73: #{ar_straighter_forward.29} parent=68 // pred_fallthru
          _
        %s535 = smul.u32 5, %s21
        %p536 = scmp.lt.s32.totalorder %s19, 0
        %s537 = scalar_select %p536, %s19, 0
        %p538 = scmp.lt.s32.totalorder %s535, 4
        %s539 = scalar_select %p538, %s535, 4
        %s540 = smul.addr %s537, 5
        %s541 = sadd.s32 %s539, %s540
        %s542 = smul.addr %s541, 4
        %s543 = scalar_lea.vmem %s0, %s542
        %p544 = pneg %p56
        %p545 = pneg %p53
        %s546 = sand.u32 %s71, 1
        %s547 = sand.u32 %s71, 1
        %s548 = smul.addr %s547, 296
        %s549 = scalar_lea.vmem [#allocation3], %s548
        %p550 = pneg %p84
        %p551 = pneg %p81
        %p552 = scmp.lt.s32.totalorder %s20, 2
        %s553 = scalar_select %p552, %s20, 2
        %s554 = scalar_lea.vmem %s2, %s553
        %p555 = pneg %p110
        %p556 = pneg %p107
        %p557 = pneg %p138
        %p558 = pneg %p135
        %p559 = scmp.lt.s32.totalorder %s19, 0
        %s560 = scalar_select %p559, %s19, 0
        %p561 = scmp.lt.s32.totalorder %s20, 2
        %s562 = scalar_select %p561, %s20, 2
        %s563 = smul.addr %s560, 3
        %s564 = sadd.s32 %s562, %s563
        %s565 = smul.addr %s564, 4
        %s566 = scalar_lea.vmem %s3, %s565
        %s567 = smul.u32 5, %s21
        %p568 = scmp.lt.s32.totalorder %s19, 0
        %s569 = scalar_select %p568, %s19, 0
        %p570 = scmp.lt.s32.totalorder %s567, 4
        %s571 = scalar_select %p570, %s567, 4
        %s572 = smul.addr %s569, 5
        %s573 = sadd.s32 %s571, %s572
        %s574 = smul.addr %s573, 4
        %s575 = scalar_lea.vmem %s0, %s574
        %s576 = smul.u32 5, %s21
        %s577 = smul.u32 74, %s21
        %p578 = scmp.lt.s32.totalorder %s20, 2
        %s579 = scalar_select %p578, %s20, 2
        %s580 = scalar_lea.vmem %s2, %s579
        %p581 = scmp.lt.s32.totalorder %s19, 0
        %s582 = scalar_select %p581, %s19, 0
        %p583 = scmp.lt.s32.totalorder %s20, 2
        %s584 = scalar_select %p583, %s20, 2
        %s585 = smul.addr %s582, 3
        %s586 = sadd.s32 %s584, %s585
        %s587 = smul.addr %s586, 4
        %s588 = scalar_lea.vmem %s3, %s587
        %p590 = scmp.eq.s32.totalorder %s21, 0
        // Predicated region
        $region74: #{ar_straighter_forward.29} parent=68 // pred_check
          %p591 = pneg %p590
        $region75: #{ar_straighter_forward.29} parent=68 // pred_check_branch
          %593 = sbr.rel (%p591) target = $region77
        $region76: #{ar_straighter_forward.29} parent=68 // pred_region
          %594 = vst [vmem:[#allocation2] sm:$0xff] 0.0
        $region77: #{ar_straighter_forward.29} parent=68 // pred_fallthru
          _
        %v595 = vld [vmem:[%s575] sm:$0xff]
        %v596 = vld [vmem:[%s575 + $0x8] sm:$0xff]
        %v597 = vld [vmem:[%s575 + $0x10] sm:$0xf]
        %v598 = vld [vmem:[#allocation2] sm:$0xff]
        %v599 = vld [vmem:[%s531] sm:$0xf]
        %v600 = vld [vmem:[%s531 + $0x4] sm:$0xf]
        %v601 = vld [vmem:[%s531 + $0x8] sm:$0xf]
        %v602 = vld [vmem:[%s531 + $0xc] sm:$0xf]
        %v603 = vld [vmem:[%s531 + $0x10] sm:$0xf]
        %v604 = vld [vmem:[%s531 + $0x14] sm:$0xf]
        %v605 = vld [vmem:[%s531 + $0x18] sm:$0xf]
        %v606 = vld [vmem:[%s531 + $0x1c] sm:$0xf]
        %v607 = vld [vmem:[%s531 + $0x20] sm:$0xf]
        %v608 = vld [vmem:[%s531 + $0x24] sm:$0xf]
        %v609 = vld [vmem:[%s531 + $0x28] sm:$0xf]
        %v610 = vld [vmem:[%s531 + $0x2c] sm:$0xf]
        %v611 = vld [vmem:[%s531 + $0x30] sm:$0xf]
        %v612 = vld [vmem:[%s531 + $0x34] sm:$0xf]
        %v613 = vld [vmem:[%s531 + $0x38] sm:$0xf]
        %v614 = vld [vmem:[%s531 + $0x3c] sm:$0xf]
        %v615 = vld [vmem:[%s531 + $0x40] sm:$0xf]
        %v616 = vld [vmem:[%s531 + $0x44] sm:$0xf]
        %v617 = vld [vmem:[%s531 + $0x48] sm:$0xf]
        %v618 = vld [vmem:[%s531 + $0x4c] sm:$0xf]
        %v619 = vld [vmem:[%s531 + $0x50] sm:$0xf]
        %v620 = vld [vmem:[%s531 + $0x54] sm:$0xf]
        %v621 = vld [vmem:[%s531 + $0x58] sm:$0xf]
        %v622 = vld [vmem:[%s531 + $0x5c] sm:$0xf]
        %v623 = vld [vmem:[%s531 + $0x60] sm:$0xf]
        %v624 = vld [vmem:[%s531 + $0x64] sm:$0xf]
        %v625 = vld [vmem:[%s531 + $0x68] sm:$0xf]
        %v626 = vld [vmem:[%s531 + $0x6c] sm:$0xf]
        %v627 = vld [vmem:[%s531 + $0x70] sm:$0xf]
        %v628 = vld [vmem:[%s531 + $0x74] sm:$0xf]
        %v629 = vld [vmem:[%s531 + $0x78] sm:$0xf]
        %v630 = vld [vmem:[%s531 + $0x7c] sm:$0xf]
        %v631 = vld [vmem:[%s531 + $0x80] sm:$0xf]
        %v632 = vld [vmem:[%s531 + $0x84] sm:$0xf]
        %v633 = vld [vmem:[%s531 + $0x88] sm:$0xf]
        %v634 = vld [vmem:[%s531 + $0x8c] sm:$0xf]
        %v635 = vld [vmem:[%s531 + $0x90] sm:$0xf]
        %v636 = vld [vmem:[%s531 + $0x94] sm:$0xf]
        %v637 = vld [vmem:[%s531 + $0x98] sm:$0xf]
        %v638 = vld [vmem:[%s531 + $0x9c] sm:$0xf]
        %v639 = vld [vmem:[%s531 + $0xa0] sm:$0xf]
        %v640 = vld [vmem:[%s531 + $0xa4] sm:$0xf]
        %v641 = vld [vmem:[%s531 + $0xa8] sm:$0xf]
        %v642 = vld [vmem:[%s531 + $0xac] sm:$0xf]
        %v643 = vld [vmem:[%s531 + $0xb0] sm:$0xf]
        %v644 = vld [vmem:[%s531 + $0xb4] sm:$0xf]
        %v645 = vld [vmem:[%s531 + $0xb8] sm:$0xf]
        %v646 = vld [vmem:[%s531 + $0xbc] sm:$0xf]
        %v647 = vld [vmem:[%s531 + $0xc0] sm:$0xf]
        %v648 = vld [vmem:[%s531 + $0xc4] sm:$0xf]
        %v649 = vld [vmem:[%s531 + $0xc8] sm:$0xf]
        %v650 = vld [vmem:[%s531 + $0xcc] sm:$0xf]
        %v651 = vld [vmem:[%s531 + $0xd0] sm:$0xf]
        %v652 = vld [vmem:[%s531 + $0xd4] sm:$0xf]
        %v653 = vld [vmem:[%s531 + $0xd8] sm:$0xf]
        %v654 = vld [vmem:[%s531 + $0xdc] sm:$0xf]
        %v655 = vld [vmem:[%s531 + $0xe0] sm:$0xf]
        %v656 = vld [vmem:[%s531 + $0xe4] sm:$0xf]
        %v657 = vld [vmem:[%s531 + $0xe8] sm:$0xf]
        %v658 = vld [vmem:[%s531 + $0xec] sm:$0xf]
        %v659 = vld [vmem:[%s531 + $0xf0] sm:$0xf]
        %v660 = vld [vmem:[%s531 + $0xf4] sm:$0xf]
        %v661 = vld [vmem:[%s531 + $0xf8] sm:$0xf]
        %v662 = vld [vmem:[%s531 + $0xfc] sm:$0xf]
        %v663 = vld [vmem:[%s531 + $0x100] sm:$0xf]
        %v664 = vld [vmem:[%s531 + $0x104] sm:$0xf]
        %v665 = vld [vmem:[%s531 + $0x108] sm:$0xf]
        %v666 = vld [vmem:[%s531 + $0x10c] sm:$0xf]
        %v667 = vld [vmem:[%s531 + $0x110] sm:$0xf]
        %v668 = vld [vmem:[%s531 + $0x114] sm:$0xf]
        %v669 = vld [vmem:[%s531 + $0x118] sm:$0xf]
        %v670 = vld [vmem:[%s531 + $0x11c] sm:$0xf]
        %v671 = vld [vmem:[%s531 + $0x120] sm:$0xf]
        %v672 = vld [vmem:[%s531 + $0x124] sm:$0x3]
        %v676 = vunpack.c.l.b16 %v595
        %v677 = vunpack.c.h.b16 %v595
        %v678 = vunpack.c.l.b16 %v596
        %v679 = vunpack.c.h.b16 %v596
        %v680 = vunpack.c.l.b16 %v597
        %v681 = vpack.c.b16 %v676, %v676
        %v682 = vpack.c.b16 %v677, %v677
        %v683 = vpack.c.b16 %v678, %v678
        %v684 = vpack.c.b16 %v679, %v679
        %v685 = vpack.c.b16 %v680, %v680
        %v764 = vunpack.c.l.b16 %v599
        %v765 = vunpack.c.l.b16 %v600
        %v766 = vunpack.c.l.b16 %v601
        %v767 = vunpack.c.l.b16 %v602
        %v768 = vunpack.c.l.b16 %v603
        %v769 = vunpack.c.l.b16 %v604
        %v770 = vunpack.c.l.b16 %v605
        %v771 = vunpack.c.l.b16 %v606
        %v772 = vunpack.c.l.b16 %v607
        %v773 = vunpack.c.l.b16 %v608
        %v774 = vunpack.c.l.b16 %v609
        %v775 = vunpack.c.l.b16 %v610
        %v776 = vunpack.c.l.b16 %v611
        %v777 = vunpack.c.l.b16 %v612
        %v778 = vunpack.c.l.b16 %v613
        %v779 = vunpack.c.l.b16 %v614
        %v780 = vunpack.c.l.b16 %v615
        %v781 = vunpack.c.l.b16 %v616
        %v782 = vunpack.c.l.b16 %v617
        %v783 = vunpack.c.l.b16 %v618
        %v784 = vunpack.c.l.b16 %v619
        %v785 = vunpack.c.l.b16 %v620
        %v786 = vunpack.c.l.b16 %v621
        %v787 = vunpack.c.l.b16 %v622
        %v788 = vunpack.c.l.b16 %v623
        %v789 = vunpack.c.l.b16 %v624
        %v790 = vunpack.c.l.b16 %v625
        %v791 = vunpack.c.l.b16 %v626
        %v792 = vunpack.c.l.b16 %v627
        %v793 = vunpack.c.l.b16 %v628
        %v794 = vunpack.c.l.b16 %v629
        %v795 = vunpack.c.l.b16 %v630
        %v796 = vunpack.c.l.b16 %v631
        %v797 = vunpack.c.l.b16 %v632
        %v798 = vunpack.c.l.b16 %v633
        %v799 = vunpack.c.l.b16 %v634
        %v800 = vunpack.c.l.b16 %v635
        %v801 = vunpack.c.l.b16 %v636
        %v802 = vunpack.c.l.b16 %v637
        %v803 = vunpack.c.l.b16 %v638
        %v804 = vunpack.c.l.b16 %v639
        %v805 = vunpack.c.l.b16 %v640
        %v806 = vunpack.c.l.b16 %v641
        %v807 = vunpack.c.l.b16 %v642
        %v808 = vunpack.c.l.b16 %v643
        %v809 = vunpack.c.l.b16 %v644
        %v810 = vunpack.c.l.b16 %v645
        %v811 = vunpack.c.l.b16 %v646
        %v812 = vunpack.c.l.b16 %v647
        %v813 = vunpack.c.l.b16 %v648
        %v814 = vunpack.c.l.b16 %v649
        %v815 = vunpack.c.l.b16 %v650
        %v816 = vunpack.c.l.b16 %v651
        %v817 = vunpack.c.l.b16 %v652
        %v818 = vunpack.c.l.b16 %v653
        %v819 = vunpack.c.l.b16 %v654
        %v820 = vunpack.c.l.b16 %v655
        %v821 = vunpack.c.l.b16 %v656
        %v822 = vunpack.c.l.b16 %v657
        %v823 = vunpack.c.l.b16 %v658
        %v824 = vunpack.c.l.b16 %v659
        %v825 = vunpack.c.l.b16 %v660
        %v826 = vunpack.c.l.b16 %v661
        %v827 = vunpack.c.l.b16 %v662
        %v828 = vunpack.c.l.b16 %v663
        %v829 = vunpack.c.l.b16 %v664
        %v830 = vunpack.c.l.b16 %v665
        %v831 = vunpack.c.l.b16 %v666
        %v832 = vunpack.c.l.b16 %v667
        %v833 = vunpack.c.l.b16 %v668
        %v834 = vunpack.c.l.b16 %v669
        %v835 = vunpack.c.l.b16 %v670
        %v836 = vunpack.c.l.b16 %v671
        %v837 = vunpack.c.l.b16 %v672
        %v838 = vpack.c.b16 %v765, %v764
        %v839 = vpack.c.b16 %v767, %v766
        %v840 = vpack.c.b16 %v769, %v768
        %v841 = vpack.c.b16 %v771, %v770
        %v842 = vpack.c.b16 %v773, %v772
        %v843 = vpack.c.b16 %v775, %v774
        %v844 = vpack.c.b16 %v777, %v776
        %v845 = vpack.c.b16 %v779, %v778
        %v846 = vpack.c.b16 %v781, %v780
        %v847 = vpack.c.b16 %v783, %v782
        %v848 = vpack.c.b16 %v785, %v784
        %v849 = vpack.c.b16 %v787, %v786
        %v850 = vpack.c.b16 %v789, %v788
        %v851 = vpack.c.b16 %v791, %v790
        %v852 = vpack.c.b16 %v793, %v792
        %v853 = vpack.c.b16 %v795, %v794
        %v854 = vpack.c.b16 %v797, %v796
        %v855 = vpack.c.b16 %v799, %v798
        %v856 = vpack.c.b16 %v801, %v800
        %v857 = vpack.c.b16 %v803, %v802
        %v858 = vpack.c.b16 %v805, %v804
        %v859 = vpack.c.b16 %v807, %v806
        %v860 = vpack.c.b16 %v809, %v808
        %v861 = vpack.c.b16 %v811, %v810
        %v862 = vpack.c.b16 %v813, %v812
        %v863 = vpack.c.b16 %v815, %v814
        %v864 = vpack.c.b16 %v817, %v816
        %v865 = vpack.c.b16 %v819, %v818
        %v866 = vpack.c.b16 %v821, %v820
        %v867 = vpack.c.b16 %v823, %v822
        %v868 = vpack.c.b16 %v825, %v824
        %v869 = vpack.c.b16 %v827, %v826
        %v870 = vpack.c.b16 %v829, %v828
        %v871 = vpack.c.b16 %v831, %v830
        %v872 = vpack.c.b16 %v833, %v832
        %v873 = vpack.c.b16 %v835, %v834
        %v874 = vpack.c.b16 %v837, %v836
        %vm911 = vcmask 621568
        %v913 = vsel %vm911, %v685, 0
        %vm915 = vcmask 1045504
        %v917 = vsel %vm915, %v874, 0
        %919 = vmatpush.bf16.msra.mxu0 %v845
        %920 = vmatpush.bf16.msra.mxu0 %v844
        %921 = vmatpush.bf16.msra.mxu0 %v843
        %922 = vmatpush.bf16.msra.mxu0 %v842
        %923 = vmatpush.bf16.msra.mxu0 %v841
        %924 = vmatpush.bf16.msra.mxu0 %v840
        %925 = vmatpush.bf16.msra.mxu0 %v839
        %926 = vmatpush.bf16.msra.mxu0 %v838
        %927 = vmatmul.bf16.gmra.mxu0 %v681
        %v928 = vpop.f32.mrf.mxu0
        %v929 = vadd.f32 0.0, %v928
        %v930 = vpop.f32.mrf.mxu0
        %931 = vdwg.mxu0
        %932 = vmatpush.bf16.msra.mxu0 %v853
        %933 = vmatpush.bf16.msra.mxu0 %v852
        %934 = vmatpush.bf16.msra.mxu0 %v851
        %935 = vmatpush.bf16.msra.mxu0 %v850
        %936 = vmatpush.bf16.msra.mxu0 %v849
        %937 = vmatpush.bf16.msra.mxu0 %v848
        %938 = vmatpush.bf16.msra.mxu0 %v847
        %939 = vmatpush.bf16.msra.mxu0 %v846
        %940 = vmatmul.bf16.gmra.mxu0 %v682
        %v941 = vpop.f32.mrf.mxu0
        %v942 = vadd.f32 %v929, %v941
        %v943 = vpop.f32.mrf.mxu0
        %944 = vdwg.mxu0
        %945 = vmatpush.bf16.msra.mxu0 %v861
        %946 = vmatpush.bf16.msra.mxu0 %v860
        %947 = vmatpush.bf16.msra.mxu0 %v859
        %948 = vmatpush.bf16.msra.mxu0 %v858
        %949 = vmatpush.bf16.msra.mxu0 %v857
        %950 = vmatpush.bf16.msra.mxu0 %v856
        %951 = vmatpush.bf16.msra.mxu0 %v855
        %952 = vmatpush.bf16.msra.mxu0 %v854
        %953 = vmatmul.bf16.gmra.mxu0 %v683
        %v954 = vpop.f32.mrf.mxu0
        %v955 = vadd.f32 %v942, %v954
        %v956 = vpop.f32.mrf.mxu0
        %957 = vdwg.mxu0
        %958 = vmatpush.bf16.msra.mxu0 %v869
        %959 = vmatpush.bf16.msra.mxu0 %v868
        %960 = vmatpush.bf16.msra.mxu0 %v867
        %961 = vmatpush.bf16.msra.mxu0 %v866
        %962 = vmatpush.bf16.msra.mxu0 %v865
        %963 = vmatpush.bf16.msra.mxu0 %v864
        %964 = vmatpush.bf16.msra.mxu0 %v863
        %965 = vmatpush.bf16.msra.mxu0 %v862
        %966 = vmatmul.bf16.gmra.mxu0 %v684
        %v967 = vpop.f32.mrf.mxu0
        %v968 = vadd.f32 %v955, %v967
        %v969 = vpop.f32.mrf.mxu0
        %970 = vdwg.mxu0
        %971 = vmatpush.bf16.msra.mxu0 0
        %972 = vmatpush.bf16.msra.mxu0 0
        %973 = vmatpush.bf16.msra.mxu0 0
        %974 = vmatpush.bf16.msra.mxu0 %v917
        %975 = vmatpush.bf16.msra.mxu0 %v873
        %976 = vmatpush.bf16.msra.mxu0 %v872
        %977 = vmatpush.bf16.msra.mxu0 %v871
        %978 = vmatpush.bf16.msra.mxu0 %v870
        %979 = vmatmul.bf16.gmra.mxu0 %v913
        %v980 = vpop.f32.mrf.mxu0
        %v981 = vadd.f32 %v968, %v980
        %v982 = vpop.f32.mrf.mxu0
        %983 = vdwg.mxu0
        %v984 = vadd.f32 %v598, %v981
        %985 = vst [vmem:[#allocation2] sm:$0xff] %v984
        // Predicated region
        $region78: #{ar_straighter_forward.29} parent=68 // pred_check
          %p986 = pneg %p590
        $region79: #{ar_straighter_forward.29} parent=68 // pred_check_branch
          %988 = sbr.rel (%p986) target = $region81
        $region80: #{ar_straighter_forward.29} parent=68 // pred_region
          %v989 = vld [vmem:[#allocation2] sm:$0xff]
          %v990 = vld [vmem:[%s580] sm:$0x1]
          %v992 = vperm.slane %v990, 0
          %v994 = vadd.f32 %v989, %v992
          %v995 = vpack.c.bf16 %v994, %v994
          %996 = vst [vmem:[%s588] sm:$0xf] %v995
        $region81: #{ar_straighter_forward.29} parent=68 // pred_fallthru
          _
        %p997 = scmp.lt.s32.totalorder %s19, 0
        %s998 = scalar_select %p997, %s19, 0
        %p999 = scmp.lt.s32.totalorder %s20, 2
        %s1000 = scalar_select %p999, %s20, 2
        %s1001 = smul.addr %s998, 3
        %s1002 = sadd.s32 %s1000, %s1001
        %s1003 = smul.addr %s1002, 4
        %s1004 = scalar_lea.vmem %s3, %s1003
        // Predicated region
        $region82: #{ar_straighter_forward.29} parent=68 // pred_check
          %p1005 = pneg %p135
        $region83: #{ar_straighter_forward.29} parent=68 // pred_check_branch
          %1007 = sbr.rel (%p1005) target = $region85
        $region84: #{ar_straighter_forward.29} parent=68 // pred_region
          _
        $region85: #{ar_straighter_forward.29} parent=68 // pred_fallthru
          _
      $region69: #{ar_straighter_forward.29} parent=5 // pred_fallthru
        _
      %p1008 = scmp.le.s32.totalorder 2, %s9
      // Predicated region
      $region86: #{ar_straighter_forward.29} parent=5 // pred_check
        %p1009 = pneg %p1008
      $region87: #{ar_straighter_forward.29} parent=5 // pred_check_branch
        %1011 = sbr.rel (%p1009) target = $region89
      $region88: #{ar_straighter_forward.29} parent=5 // pred_region
        %s1012 = ssub.s32 %s9, 2
        // Predicated region
        $region90: #{ar_straighter_forward.29} parent=88 // pred_check
          %p1013 = pneg %p141
        $region91: #{ar_straighter_forward.29} parent=88 // pred_check_branch
          %1015 = sbr.rel (%p1013) target = $region93
        $region92: #{ar_straighter_forward.29} parent=88 // pred_region
          %p1016 = scmp.lt.s32.totalorder %s22, 0
          %s1017 = scalar_select %p1016, %s22, 0
          %p1018 = scmp.lt.s32.totalorder %s23, 2
          %s1019 = scalar_select %p1018, %s23, 2
          %s1020 = smul.addr %s1017, 3
          %s1021 = sadd.s32 %s1019, %s1020
          %s1022 = smul.addr %s1021, 4
          %s1023 = scalar_lea.vmem %s3, %s1022
        $region93: #{ar_straighter_forward.29} parent=88 // pred_fallthru
          _
      $region89: #{ar_straighter_forward.29} parent=5 // pred_fallthru
        _
    $region6: #{ar_straighter_forward.29} parent=1 // loop_footer
      %s13 = sadd.s32 1, %s9
    $region7: #{ar_straighter_forward.29} parent=1 // loop_footer_branch
      %8 = sbr.rel target = $region3
    $region8: #{ar_straighter_forward.29} parent=1 // loop_exit
      _

// kernel: ar_straighter_forward.37
$region0: #{ar_straighter_forward.37}
  #allocation0 [shape = 'u32[]', space=smem, size = 0x4, offset = 0x4, fixed_abs, tag = 'smem constant byte address 0x4 - core index']
  #allocation1 [shape = 'u32[72,128]{1,0:T(1,128)}', space=vmem, size = 0x9000, scoped, tag = 'internal scratch']
  #allocation2 [shape = 'f32[8,256]{1,0:T(8,128)}', space=vmem, size = 0x2000, scoped, tag = 'scratch operand']
  %s0 = inlined_call_operand.vmem [shape: bf16[8,128], index: 0, kind: input, shape index: {}]
  %s1 = inlined_call_operand.hbm [shape: bf16[128,256], index: 1, kind: input, shape index: {}]
  %s2 = inlined_call_operand.vmem [shape: f32[1,256], index: 2, kind: input, shape index: {}]
  %s3 = inlined_call_operand.vmem [shape: f32[1,128], index: 3, kind: input, shape index: {}]
  %s4 = inlined_call_operand.vmem [shape: f32[1,128], index: 4, kind: input, shape index: {}]
  %s5 = inlined_call_operand.vmem [shape: bf16[8,256], index: 5, kind: output, shape index: {}]
  %s6 = sld [smem:[#allocation0]]
  $region42: #{ar_straighter_forward.37} parent=0
    _
  %s8 = ssub.s32 1, %s6
  %s9 = scalar_select 0, %s8, %s6
  $region1: #{ar_straighter_forward.37} parent=0
    #allocation3 [shape = 'u8[65536]{0}', space=vmem, size = 0x10000, scoped, tag = 'input window, operand 1, single buffered']
    #allocation4 [shape = 's32[1]{0}', space=sflag, size = 0x4, scoped, tag = 'scoped memory for ar_straighter_forward.37']
    %10 = vsyncpa [#allocation4], 0
    // Predicated region
    $region2: #{ar_straighter_forward.37} parent=1 // pred_check
      _
    $region3: #{ar_straighter_forward.37} parent=1 // pred_check_branch
      %12 = sbr.rel (0) target = $region5
    $region4: #{ar_straighter_forward.37} parent=1 // pred_region
      _
    $region5: #{ar_straighter_forward.37} parent=1 // pred_fallthru
      _
    // Predicated region
    $region6: #{ar_straighter_forward.37} parent=1 // pred_check
      _
    $region7: #{ar_straighter_forward.37} parent=1 // pred_check_branch
      %14 = sbr.rel (0) target = $region9
    $region8: #{ar_straighter_forward.37} parent=1 // pred_region
      %16 = vsyncadd [#allocation4], 0
      %s17 = sshll.u32 %s1, 4
      %s18 = int_to_ptr.hbm [resolvable:$true] %s17
      %s19 = sshll.u32 [#allocation3], 4
      %s20 = int_to_ptr.vmem [resolvable:$true] %s19
      %25 = dma.hbm_to_vmem [thread:$0]  %s18, 2048, %s20, [#allocation4], 128, 128, 8
    $region9: #{ar_straighter_forward.37} parent=1 // pred_fallthru
      _
    // Predicated region
    $region10: #{ar_straighter_forward.37} parent=1 // pred_check
      _
    $region11: #{ar_straighter_forward.37} parent=1 // pred_check_branch
      %27 = sbr.rel (0) target = $region13
    $region12: #{ar_straighter_forward.37} parent=1 // pred_region
      _
    $region13: #{ar_straighter_forward.37} parent=1 // pred_fallthru
      _
    // Predicated region
    $region14: #{ar_straighter_forward.37} parent=1 // pred_check
      _
    $region15: #{ar_straighter_forward.37} parent=1 // pred_check_branch
      %29 = sbr.rel (0) target = $region17
    $region16: #{ar_straighter_forward.37} parent=1 // pred_region
      _
    $region17: #{ar_straighter_forward.37} parent=1 // pred_fallthru
      _
    // Predicated region
    $region18: #{ar_straighter_forward.37} parent=1 // pred_check
      _
    $region19: #{ar_straighter_forward.37} parent=1 // pred_check_branch
      %31 = sbr.rel (0) target = $region21
    $region20: #{ar_straighter_forward.37} parent=1 // pred_region
      _
    $region21: #{ar_straighter_forward.37} parent=1 // pred_fallthru
      _
    // Predicated region
    $region22: #{ar_straighter_forward.37} parent=1 // pred_check
      _
    $region23: #{ar_straighter_forward.37} parent=1 // pred_check_branch
      %33 = sbr.rel (0) target = $region25
    $region24: #{ar_straighter_forward.37} parent=1 // pred_region
      %35 = dma.done [#allocation4], 2048
    $region25: #{ar_straighter_forward.37} parent=1 // pred_fallthru
      _
    %p36 = scmp.eq.s32.totalorder 0, 0
    // Predicated region
    $region26: #{ar_straighter_forward.37} parent=1 // pred_check
      %p37 = pneg %p36
    $region27: #{ar_straighter_forward.37} parent=1 // pred_check_branch
      %39 = sbr.rel (%p37) target = $region29
    $region28: #{ar_straighter_forward.37} parent=1 // pred_region
      %40 = vst [vmem:[#allocation2] sm:$0xff] 0.0
      %41 = vst [vmem:[#allocation2 + $0x8] sm:$0xff] 0.0
    $region29: #{ar_straighter_forward.37} parent=1 // pred_fallthru
      _
    %v42 = vld [vmem:[%s0] sm:$0xf]
    %v43 = vunpack.c.l.bf16 %v42
    %44 = vadd.xlane.f32.xlu0 %v43
    %v45 = vpop.xlane.xlu0 %44
    %v46 = vrcp.pop 128.0
    %v47 = vmul.f32 128.0, %v46
    %v48 = vsub.f32 1.0, %v47
    %v49 = vmul.f32 %v46, %v48
    %v50 = vadd.f32 %v46, %v49
    %vm51 = vweird.f32 %v46
    %v52 = vsel %vm51, %v46, %v50
    %v53 = vmul.f32 %v45, %v52
    %v54 = vsub.f32 %v43, %v53
    %v55 = vmul.f32 %v54, %v54
    %56 = vadd.xlane.f32.xlu0 %v55
    %v57 = vpop.xlane.xlu0 %56
    %v58 = vmul.f32 %v57, %v52
    %v59 = vadd.f32 %v58, 1e-05
    %v60 = vrsqrt.pop %v59
    %v61 = vmul.f32 %v60, %v59
    %v62 = vmul.f32 %v61, %v60
    %v63 = vmul.f32 0.5, %v62
    %v64 = vsub.f32 1.5, %v63
    %v65 = vmul.f32 %v60, %v64
    %vm66 = vweird.f32 %v59
    %vm67 = vweird.f32 %v60
    %vm68 = vmor %vm66, %vm67
    %v69 = vsel %vm68, %v60, %v65
    %v70 = vmul.f32 %v54, %v69
    %v71 = vld [vmem:[%s3] sm:$0x1]
    %v73 = vperm.slane %v71, 0
    %v75 = vmul.f32 %v70, %v73
    %v76 = vld [vmem:[%s4] sm:$0x1]
    %v78 = vperm.slane %v76, 0
    %v80 = vadd.f32 %v75, %v78
    %v81 = vpack.c.bf16 %v80, %v80
    %v82 = vld [vmem:[#allocation2] sm:$0xff]
    %v83 = vld [vmem:[#allocation2 + $0x8] sm:$0xff]
    %v84 = vld [vmem:[#allocation3] sm:$0xff]
    %v85 = vld [vmem:[#allocation3 + $0x8] sm:$0xff]
    %v86 = vld [vmem:[#allocation3 + $0x10] sm:$0xff]
    %v87 = vld [vmem:[#allocation3 + $0x18] sm:$0xff]
    %v88 = vld [vmem:[#allocation3 + $0x20] sm:$0xff]
    %v89 = vld [vmem:[#allocation3 + $0x28] sm:$0xff]
    %v90 = vld [vmem:[#allocation3 + $0x30] sm:$0xff]
    %v91 = vld [vmem:[#allocation3 + $0x38] sm:$0xff]
    %v92 = vld [vmem:[#allocation3 + $0x40] sm:$0xff]
    %v93 = vld [vmem:[#allocation3 + $0x48] sm:$0xff]
    %v94 = vld [vmem:[#allocation3 + $0x50] sm:$0xff]
    %v95 = vld [vmem:[#allocation3 + $0x58] sm:$0xff]
    %v96 = vld [vmem:[#allocation3 + $0x60] sm:$0xff]
    %v97 = vld [vmem:[#allocation3 + $0x68] sm:$0xff]
    %v98 = vld [vmem:[#allocation3 + $0x70] sm:$0xff]
    %v99 = vld [vmem:[#allocation3 + $0x78] sm:$0xff]
    %v116 = vunpack.c.l.b16 %v84
    %v117 = vunpack.c.h.b16 %v84
    %v118 = vunpack.c.l.b16 %v85
    %v119 = vunpack.c.h.b16 %v85
    %v120 = vunpack.c.l.b16 %v86
    %v121 = vunpack.c.h.b16 %v86
    %v122 = vunpack.c.l.b16 %v87
    %v123 = vunpack.c.h.b16 %v87
    %v124 = vunpack.c.l.b16 %v88
    %v125 = vunpack.c.h.b16 %v88
    %v126 = vunpack.c.l.b16 %v89
    %v127 = vunpack.c.h.b16 %v89
    %v128 = vunpack.c.l.b16 %v90
    %v129 = vunpack.c.h.b16 %v90
    %v130 = vunpack.c.l.b16 %v91
    %v131 = vunpack.c.h.b16 %v91
    %v132 = vunpack.c.l.b16 %v92
    %v133 = vunpack.c.h.b16 %v92
    %v134 = vunpack.c.l.b16 %v93
    %v135 = vunpack.c.h.b16 %v93
    %v136 = vunpack.c.l.b16 %v94
    %v137 = vunpack.c.h.b16 %v94
    %v138 = vunpack.c.l.b16 %v95
    %v139 = vunpack.c.h.b16 %v95
    %v140 = vunpack.c.l.b16 %v96
    %v141 = vunpack.c.h.b16 %v96
    %v142 = vunpack.c.l.b16 %v97
    %v143 = vunpack.c.h.b16 %v97
    %v144 = vunpack.c.l.b16 %v98
    %v145 = vunpack.c.h.b16 %v98
    %v146 = vunpack.c.l.b16 %v99
    %v147 = vunpack.c.h.b16 %v99
    %v148 = vpack.c.b16 %v118, %v116
    %v149 = vpack.c.b16 %v119, %v117
    %v150 = vpack.c.b16 %v122, %v120
    %v151 = vpack.c.b16 %v123, %v121
    %v152 = vpack.c.b16 %v126, %v124
    %v153 = vpack.c.b16 %v127, %v125
    %v154 = vpack.c.b16 %v130, %v128
    %v155 = vpack.c.b16 %v131, %v129
    %v156 = vpack.c.b16 %v134, %v132
    %v157 = vpack.c.b16 %v135, %v133
    %v158 = vpack.c.b16 %v138, %v136
    %v159 = vpack.c.b16 %v139, %v137
    %v160 = vpack.c.b16 %v142, %v140
    %v161 = vpack.c.b16 %v143, %v141
    %v162 = vpack.c.b16 %v146, %v144
    %v163 = vpack.c.b16 %v147, %v145
    %180 = vmatpush.bf16.msra.mxu0 %v162
    %181 = vmatpush.bf16.msra.mxu0 %v160
    %182 = vmatpush.bf16.msra.mxu0 %v158
    %183 = vmatpush.bf16.msra.mxu0 %v156
    %184 = vmatpush.bf16.msra.mxu0 %v154
    %185 = vmatpush.bf16.msra.mxu0 %v152
    %186 = vmatpush.bf16.msra.mxu0 %v150
    %187 = vmatpush.bf16.msra.mxu0 %v148
    %188 = vmatmul.bf16.gmra.mxu0 %v81
    %v189 = vpop.f32.mrf.mxu0
    %v190 = vadd.f32 0.0, %v189
    %v191 = vpop.f32.mrf.mxu0
    %192 = vdwg.mxu0
    %193 = vmatpush.bf16.msra.mxu0 %v163
    %194 = vmatpush.bf16.msra.mxu0 %v161
    %195 = vmatpush.bf16.msra.mxu0 %v159
    %196 = vmatpush.bf16.msra.mxu0 %v157
    %197 = vmatpush.bf16.msra.mxu0 %v155
    %198 = vmatpush.bf16.msra.mxu0 %v153
    %199 = vmatpush.bf16.msra.mxu0 %v151
    %200 = vmatpush.bf16.msra.mxu0 %v149
    %201 = vmatmul.bf16.gmra.mxu0 %v81
    %v202 = vpop.f32.mrf.mxu0
    %v203 = vadd.f32 0.0, %v202
    %v204 = vpop.f32.mrf.mxu0
    %205 = vdwg.mxu0
    %v206 = vadd.f32 %v82, %v190
    %v207 = vadd.f32 %v83, %v203
    %208 = vst [vmem:[#allocation2] sm:$0xff] %v206
    %209 = vst [vmem:[#allocation2 + $0x8] sm:$0xff] %v207
    // Predicated region
    $region30: #{ar_straighter_forward.37} parent=1 // pred_check
      %p210 = pneg %p36
    $region31: #{ar_straighter_forward.37} parent=1 // pred_check_branch
      %212 = sbr.rel (%p210) target = $region33
    $region32: #{ar_straighter_forward.37} parent=1 // pred_region
      %v213 = vld [vmem:[#allocation2] sm:$0xff]
      %v214 = vld [vmem:[#allocation2 + $0x8] sm:$0xff]
      %v215 = vld [vmem:[%s2] sm:$0x3]
      %v217 = vperm.slane %v215, 0
      %v218 = vperm.slane %v215, 1
      %v221 = vadd.f32 %v213, %v217
      %v222 = vadd.f32 %v214, %v218
      %v223 = vpack.c.bf16 %v222, %v221
      %224 = vst [vmem:[%s5] sm:$0xff] %v223
    $region33: #{ar_straighter_forward.37} parent=1 // pred_fallthru
      _
    // Predicated region
    $region34: #{ar_straighter_forward.37} parent=1 // pred_check
      _
    $region35: #{ar_straighter_forward.37} parent=1 // pred_check_branch
      %226 = sbr.rel (0) target = $region37
    $region36: #{ar_straighter_forward.37} parent=1 // pred_region
      _
    $region37: #{ar_straighter_forward.37} parent=1 // pred_fallthru
      _
    // Predicated region
    $region38: #{ar_straighter_forward.37} parent=1 // pred_check
      _
    $region39: #{ar_straighter_forward.37} parent=1 // pred_check_branch
      %228 = sbr.rel (0) target = $region41
    $region40: #{ar_straighter_forward.37} parent=1 // pred_region
      _
    $region41: #{ar_straighter_forward.37} parent=1 // pred_fallthru
      _
    %229 = vsyncpa [#allocation4], 1

// kernel: ar_straighter_forward.38
$region0: #{ar_straighter_forward.38}
  #allocation0 [shape = 'u32[]', space=smem, size = 0x4, offset = 0x4, fixed_abs, tag = 'smem constant byte address 0x4 - core index']
  #allocation1 [shape = 'u32[72,128]{1,0:T(1,128)}', space=vmem, size = 0x9000, scoped, tag = 'internal scratch']
  %s0 = inlined_call_operand.vmem [shape: bf16[2,8,128], index: 0, kind: input, shape index: {}]
  %s1 = inlined_call_operand.vmem [shape: bf16[2,4,256], index: 1, kind: input, shape index: {}]
  %s2 = inlined_call_operand.vmem [shape: bf16[2,8,128], index: 2, kind: output, shape index: {}]
  %s3 = sld [smem:[#allocation0]]
  $region41: #{ar_straighter_forward.38} parent=0
    _
  %s5 = ssub.s32 1, %s3
  %s6 = scalar_select 0, %s5, %s3
  loop: start=0, step=1, limit=4
  $region2: #{ar_straighter_forward.38} parent=0 // loop_pre_header
    _
  $region3: #{ar_straighter_forward.38} parent=0 // loop_header
    %s8 = sphi 0, %s12
    %p9 = scmp.ge.s32.totalorder %s8, 4
    %s18 = sphi 0, %s20
    %s21 = sphi 0, %s18
    %s22 = sphi 0, %s21
    %s38 = sphi 0, %s22
    %s44 = sphi 0, %s46
    %s47 = sphi 0, %s44
    %s48 = sphi 0, %s47
    %s64 = sphi 0, %s48
    %s70 = sphi 0, %s72
    %s73 = sphi 0, %s70
    %s74 = sphi 0, %s73
    %s90 = sphi 0, %s74
  $region4: #{ar_straighter_forward.38} parent=0 // loop_header_branch
    %11 = sbr.rel (%p9) target = $region8
  $region5: #{ar_straighter_forward.38} parent=0 // loop_body
    %s13 = ssub.s32 %s8, 1
    %s14 = ssub.s32 %s8, 2
    %s15 = sadd.s32 %s8, 1
    %s16 = ssub.s32 %s8, %s15
    %p17 = scmp.eq.s32.totalorder %s16, 0
    %s19 = sadd.s32 %s18, 1
    %s20 = scalar_select %p17, %s18, %s19
    %p23 = pneg %p17
    %p24 = scmp.eq.s32.totalorder %s8, 1
    %p25 = por %p23, %p24
    %p26 = scmp.ne.s32.totalorder %s18, %s21
    %p27 = scmp.eq.s32.totalorder %s8, 0
    %p28 = por %p26, %p27
    %p29 = scmp.ne.s32.totalorder %s18, %s21
    %p30 = scmp.eq.s32.totalorder %s13, 1
    %p31 = por %p29, %p30
    %p32 = scmp.ne.s32.totalorder %s21, %s22
    %p33 = scmp.eq.s32.totalorder %s13, 0
    %p34 = por %p32, %p33
    %p35 = scmp.ne.s32.totalorder %s21, %s22
    %p36 = scmp.eq.s32.totalorder %s14, 1
    %p37 = por %p35, %p36
    %p39 = scmp.ne.s32.totalorder %s22, %s38
    %p40 = scmp.eq.s32.totalorder %s14, 0
    %p41 = por %p39, %p40
    %s42 = ssub.s32 %s8, %s15
    %p43 = scmp.eq.s32.totalorder %s42, 0
    %s45 = sadd.s32 %s44, 1
    %s46 = scalar_select %p43, %s44, %s45
    %p49 = pneg %p43
    %p50 = scmp.eq.s32.totalorder %s8, 1
    %p51 = por %p49, %p50
    %p52 = scmp.ne.s32.totalorder %s44, %s47
    %p53 = scmp.eq.s32.totalorder %s8, 0
    %p54 = por %p52, %p53
    %p55 = scmp.ne.s32.totalorder %s44, %s47
    %p56 = scmp.eq.s32.totalorder %s13, 1
    %p57 = por %p55, %p56
    %p58 = scmp.ne.s32.totalorder %s47, %s48
    %p59 = scmp.eq.s32.totalorder %s13, 0
    %p60 = por %p58, %p59
    %p61 = scmp.ne.s32.totalorder %s47, %s48
    %p62 = scmp.eq.s32.totalorder %s14, 1
    %p63 = por %p61, %p62
    %p65 = scmp.ne.s32.totalorder %s48, %s64
    %p66 = scmp.eq.s32.totalorder %s14, 0
    %p67 = por %p65, %p66
    %s68 = ssub.s32 %s8, %s15
    %p69 = scmp.eq.s32.totalorder %s68, 0
    %s71 = sadd.s32 %s70, 1
    %s72 = scalar_select %p69, %s70, %s71
    %p75 = pneg %p69
    %p76 = scmp.eq.s32.totalorder %s8, 1
    %p77 = por %p75, %p76
    %p78 = scmp.ne.s32.totalorder %s70, %s73
    %p79 = scmp.eq.s32.totalorder %s8, 0
    %p80 = por %p78, %p79
    %p81 = scmp.ne.s32.totalorder %s70, %s73
    %p82 = scmp.eq.s32.totalorder %s13, 1
    %p83 = por %p81, %p82
    %p84 = scmp.ne.s32.totalorder %s73, %s74
    %p85 = scmp.eq.s32.totalorder %s13, 0
    %p86 = por %p84, %p85
    %p87 = scmp.ne.s32.totalorder %s73, %s74
    %p88 = scmp.eq.s32.totalorder %s14, 1
    %p89 = por %p87, %p88
    %p91 = scmp.ne.s32.totalorder %s74, %s90
    %p92 = scmp.eq.s32.totalorder %s14, 0
    %p93 = por %p91, %p92
    %p94 = scmp.le.s32.totalorder 1, %s8
    %p95 = scmp.lt.s32.totalorder %s8, 3
    %p96 = pnand %p94, %p95
    %p97 = pneg %p96
    // Predicated region
    $region9: #{ar_straighter_forward.38} parent=5 // pred_check
      _
    $region10: #{ar_straighter_forward.38} parent=5 // pred_check_branch
      %99 = sbr.rel (%p96) target = $region12
    $region11: #{ar_straighter_forward.38} parent=5 // pred_region
      %s100 = ssub.s32 %s8, 1
    $region12: #{ar_straighter_forward.38} parent=5 // pred_fallthru
      _
    %p101 = scmp.lt.s32.totalorder %s8, 2
    // Predicated region
    $region13: #{ar_straighter_forward.38} parent=5 // pred_check
      %p102 = pneg %p101
    $region14: #{ar_straighter_forward.38} parent=5 // pred_check_branch
      %104 = sbr.rel (%p102) target = $region16
    $region15: #{ar_straighter_forward.38} parent=5 // pred_region
      // Predicated region
      $region17: #{ar_straighter_forward.38} parent=15 // pred_check
        %p105 = pneg %p28
      $region18: #{ar_straighter_forward.38} parent=15 // pred_check_branch
        %107 = sbr.rel (%p105) target = $region20
      $region19: #{ar_straighter_forward.38} parent=15 // pred_region
        %p108 = scmp.lt.s32.totalorder %s8, 1
        %s109 = scalar_select %p108, %s8, 1
        %s110 = smul.addr %s109, 4
        %s111 = scalar_lea.vmem %s0, %s110
      $region20: #{ar_straighter_forward.38} parent=15 // pred_fallthru
        _
      // Predicated region
      $region21: #{ar_straighter_forward.38} parent=15 // pred_check
        %p112 = pneg %p54
      $region22: #{ar_straighter_forward.38} parent=15 // pred_check_branch
        %114 = sbr.rel (%p112) target = $region24
      $region23: #{ar_straighter_forward.38} parent=15 // pred_region
        %p115 = scmp.lt.s32.totalorder %s8, 1
        %s116 = scalar_select %p115, %s8, 1
        %s117 = smul.addr %s116, 2
        %s118 = smul.addr %s117, 2
        %s119 = scalar_lea.vmem %s1, %s118
      $region24: #{ar_straighter_forward.38} parent=15 // pred_fallthru
        _
    $region16: #{ar_straighter_forward.38} parent=5 // pred_fallthru
      _
    %p120 = scmp.le.s32.totalorder 1, %s8
    %p121 = scmp.lt.s32.totalorder %s8, 3
    %p122 = pnand %p120, %p121
    %p123 = pneg %p122
    // Predicated region
    $region25: #{ar_straighter_forward.38} parent=5 // pred_check
      _
    $region26: #{ar_straighter_forward.38} parent=5 // pred_check_branch
      %125 = sbr.rel (%p122) target = $region28
    $region27: #{ar_straighter_forward.38} parent=5 // pred_region
      %s126 = ssub.s32 %s8, 1
      %p127 = scmp.lt.s32.totalorder %s13, 1
      %s128 = scalar_select %p127, %s13, 1
      %s129 = smul.addr %s128, 4
      %s130 = scalar_lea.vmem %s0, %s129
      %p131 = pneg %p34
      %p132 = pneg %p31
      %p133 = scmp.lt.s32.totalorder %s13, 1
      %s134 = scalar_select %p133, %s13, 1
      %s135 = smul.addr %s134, 2
      %s136 = smul.addr %s135, 2
      %s137 = scalar_lea.vmem %s1, %s136
      %p138 = pneg %p60
      %p139 = pneg %p57
      %p140 = pneg %p86
      %p141 = pneg %p83
      %p142 = scmp.lt.s32.totalorder %s13, 1
      %s143 = scalar_select %p142, %s13, 1
      %s144 = smul.addr %s143, 4
      %s145 = scalar_lea.vmem %s2, %s144
      %p146 = scmp.lt.s32.totalorder %s13, 1
      %s147 = scalar_select %p146, %s13, 1
      %s148 = smul.addr %s147, 4
      %s149 = scalar_lea.vmem %s0, %s148
      %p150 = scmp.lt.s32.totalorder %s13, 1
      %s151 = scalar_select %p150, %s13, 1
      %s152 = smul.addr %s151, 2
      %s153 = smul.addr %s152, 2
      %s154 = scalar_lea.vmem %s1, %s153
      %p155 = scmp.lt.s32.totalorder %s13, 1
      %s156 = scalar_select %p155, %s13, 1
      %s157 = smul.addr %s156, 4
      %s158 = scalar_lea.vmem %s2, %s157
      %v160 = vld [vmem:[%s149] sm:$0xf]
      %v161 = vld [vmem:[%s154] sm:$0xf]
      %v162 = vunpack.c.l.bf16 %v160
      %v163 = vmul.f32 %v162, 0.17675781
      %v164 = vpack.c.bf16 %v163, %v163
      %vm165 = vcmask 261120
      %v167 = vsel %vm165, %v164, 0
      %v170 = vsel %vm165, %v161, 0
      %172 = vmatpush.bf16.xpose.msra.mxu0 0
      %173 = vmatpush.bf16.xpose.msra.mxu0 0
      %174 = vmatpush.bf16.xpose.msra.mxu0 0
      %175 = vmatpush.bf16.xpose.msra.mxu0 0
      %176 = vmatpush.bf16.xpose.msra.mxu0 0
      %177 = vmatpush.bf16.xpose.msra.mxu0 0
      %178 = vmatpush.bf16.xpose.msra.mxu0 0
      %179 = vmatpush.bf16.xpose.msra.mxu0 %v170
      %180 = vmatmul.bf16.gmra.mxu0 %v167
      %v181 = vpop.f32.mrf.mxu0
      %v182 = vadd.f32 0.0, %v181
      %v183 = vpop.f32.mrf.mxu0
      %184 = vdwg.mxu0
      %vm185 = vcmask 31744
      %v186 = vsel %vm185, %v182, -inf
      %187 = vmax.xlane.f32.xlu0 %v186
      %v188 = vpop.xlane.xlu0 %187
      %v189 = vsub.f32 %v182, %v188
      %v190 = vmul.f32 %v189, 1.442695
      %v191 = vpow.pop %v190
      %v192 = vsel %vm185, %v191, 0.0
      %193 = vadd.xlane.f32.xlu0 %v192
      %v194 = vpop.xlane.xlu0 %193
      %v195 = vrcp.pop %v194
      %v196 = vmul.f32 %v191, %v195
      %v197 = vpack.c.bf16 %v196, %v196
      %198 = vst [vmem:[#allocation1] ss:$4 sm:$0xff] %v161
      %v199 = vld.sshfl [vmem:[#allocation1 + $0x8] sm:$0xff pattern:$0x73625140]
      %v201 = vsel %vm185, %v197, 0
      %vm203 = vcmask 1041408
      %v204 = vsel %vm203, %v199, 0
      %206 = vmatpush.bf16.msra.mxu0 0
      %207 = vmatpush.bf16.msra.mxu0 0
      %208 = vmatpush.bf16.msra.mxu0 0
      %209 = vmatpush.bf16.msra.mxu0 0
      %210 = vmatpush.bf16.msra.mxu0 0
      %211 = vmatpush.bf16.msra.mxu0 0
      %212 = vmatpush.bf16.msra.mxu0 0
      %213 = vmatpush.bf16.msra.mxu0 %v204
      %214 = vmatmul.bf16.gmra.mxu0 %v201
      %v215 = vpop.f32.mrf.mxu0
      %v216 = vadd.f32 0.0, %v215
      %v217 = vpop.f32.mrf.mxu0
      %218 = vdwg.mxu0
      %v219 = vpack.c.bf16 %v216, %v216
      %vm220 = vcmask 257024
      %221 = vst.msk [vmem:[%s158] sm:$0xf] %vm220, %v219
      %v223 = vunpack.c.l.b16 %v164
      %v224 = vpack.c.b16 %v223, %v223
      %225 = vrot.lane.b32.xlu0 %v224, 96
      %v226 = vpop.permute.xlu0 %225
      %227 = vst [vmem:[#allocation1] ss:$4 sm:$0xff] %v161
      %v228 = vld.sshfl [vmem:[#allocation1] sm:$0xff pattern:$0x73625140]
      %230 = vrot.lane.b32.xlu0 %v228, 96
      %v231 = vpop.permute.xlu0 %230
      %v233 = vsel %vm165, %v226, 0
      %v236 = vsel %vm165, %v231, 0
      %238 = vmatpush.bf16.xpose.msra.mxu0 0
      %239 = vmatpush.bf16.xpose.msra.mxu0 0
      %240 = vmatpush.bf16.xpose.msra.mxu0 0
      %241 = vmatpush.bf16.xpose.msra.mxu0 0
      %242 = vmatpush.bf16.xpose.msra.mxu0 0
      %243 = vmatpush.bf16.xpose.msra.mxu0 0
      %244 = vmatpush.bf16.xpose.msra.mxu0 0
      %245 = vmatpush.bf16.xpose.msra.mxu0 %v236
      %246 = vmatmul.bf16.gmra.mxu0 %v233
      %v247 = vpop.f32.mrf.mxu0
      %v248 = vadd.f32 0.0, %v247
      %v249 = vpop.f32.mrf.mxu0
      %250 = vdwg.mxu0
      %v251 = vsel %vm185, %v248, -inf
      %252 = vmax.xlane.f32.xlu0 %v251
      %v253 = vpop.xlane.xlu0 %252
      %v254 = vsub.f32 %v248, %v253
      %v255 = vmul.f32 %v254, 1.442695
      %v256 = vpow.pop %v255
      %v257 = vsel %vm185, %v256, 0.0
      %258 = vadd.xlane.f32.xlu0 %v257
      %v259 = vpop.xlane.xlu0 %258
      %v260 = vrcp.pop %v259
      %v261 = vmul.f32 %v256, %v260
      %v262 = vpack.c.bf16 %v261, %v261
      %263 = vst [vmem:[#allocation1] ss:$4 sm:$0xff] %v161
      %v264 = vld.sshfl [vmem:[#allocation1 + $0x8] sm:$0xff pattern:$0x73625140]
      %266 = vrot.lane.b32.xlu0 %v264, 96
      %v267 = vpop.permute.xlu0 %266
      %v269 = vsel %vm185, %v262, 0
      %v272 = vsel %vm203, %v267, 0
      %274 = vmatpush.bf16.msra.mxu0 0
      %275 = vmatpush.bf16.msra.mxu0 0
      %276 = vmatpush.bf16.msra.mxu0 0
      %277 = vmatpush.bf16.msra.mxu0 0
      %278 = vmatpush.bf16.msra.mxu0 0
      %279 = vmatpush.bf16.msra.mxu0 0
      %280 = vmatpush.bf16.msra.mxu0 0
      %281 = vmatpush.bf16.msra.mxu0 %v272
      %282 = vmatmul.bf16.gmra.mxu0 %v269
      %v283 = vpop.f32.mrf.mxu0
      %v284 = vadd.f32 0.0, %v283
      %v285 = vpop.f32.mrf.mxu0
      %286 = vdwg.mxu0
      %v287 = vpack.c.bf16 %v284, %v284
      %289 = vrot.lane.b32.xlu0 %v287, 32
      %v290 = vpop.permute.xlu0 %289
      %vm292 = vcmask 519424
      %293 = vst.msk [vmem:[%s158] sm:$0xf] %vm292, %v290
      %294 = vrot.lane.b32.xlu0 %v224, 64
      %v295 = vpop.permute.xlu0 %294
      %296 = vst [vmem:[#allocation1] ss:$4 sm:$0xff] %v161
      %v297 = vld.sshfl [vmem:[#allocation1] sm:$0xff pattern:$0x73625140]
      %299 = vrot.lane.b32.xlu0 %v297, 64
      %v300 = vpop.permute.xlu0 %299
      %v302 = vsel %vm165, %v295, 0
      %v305 = vsel %vm165, %v300, 0
      %307 = vmatpush.bf16.xpose.msra.mxu0 0
      %308 = vmatpush.bf16.xpose.msra.mxu0 0
      %309 = vmatpush.bf16.xpose.msra.mxu0 0
      %310 = vmatpush.bf16.xpose.msra.mxu0 0
      %311 = vmatpush.bf16.xpose.msra.mxu0 0
      %312 = vmatpush.bf16.xpose.msra.mxu0 0
      %313 = vmatpush.bf16.xpose.msra.mxu0 0
      %314 = vmatpush.bf16.xpose.msra.mxu0 %v305
      %315 = vmatmul.bf16.gmra.mxu0 %v302
      %v316 = vpop.f32.mrf.mxu0
      %v317 = vadd.f32 0.0, %v316
      %v318 = vpop.f32.mrf.mxu0
      %319 = vdwg.mxu0
      %v320 = vsel %vm185, %v317, -inf
      %321 = vmax.xlane.f32.xlu0 %v320
      %v322 = vpop.xlane.xlu0 %321
      %v323 = vsub.f32 %v317, %v322
      %v324 = vmul.f32 %v323, 1.442695
      %v325 = vpow.pop %v324
      %v326 = vsel %vm185, %v325, 0.0
      %327 = vadd.xlane.f32.xlu0 %v326
      %v328 = vpop.xlane.xlu0 %327
      %v329 = vrcp.pop %v328
      %v330 = vmul.f32 %v325, %v329
      %v331 = vpack.c.bf16 %v330, %v330
      %332 = vst [vmem:[#allocation1] ss:$4 sm:$0xff] %v161
      %v333 = vld.sshfl [vmem:[#allocation1 + $0x8] sm:$0xff pattern:$0x73625140]
      %335 = vrot.lane.b32.xlu0 %v333, 64
      %v336 = vpop.permute.xlu0 %335
      %v338 = vsel %vm185, %v331, 0
      %v341 = vsel %vm203, %v336, 0
      %343 = vmatpush.bf16.msra.mxu0 0
      %344 = vmatpush.bf16.msra.mxu0 0
      %345 = vmatpush.bf16.msra.mxu0 0
      %346 = vmatpush.bf16.msra.mxu0 0
      %347 = vmatpush.bf16.msra.mxu0 0
      %348 = vmatpush.bf16.msra.mxu0 0
      %349 = vmatpush.bf16.msra.mxu0 0
      %350 = vmatpush.bf16.msra.mxu0 %v341
      %351 = vmatmul.bf16.gmra.mxu0 %v338
      %v352 = vpop.f32.mrf.mxu0
      %v353 = vadd.f32 0.0, %v352
      %v354 = vpop.f32.mrf.mxu0
      %355 = vdwg.mxu0
      %v356 = vpack.c.bf16 %v353, %v353
      %358 = vrot.lane.b32.xlu0 %v356, 64
      %v359 = vpop.permute.xlu0 %358
      %vm361 = vcmask 781824
      %362 = vst.msk [vmem:[%s158] sm:$0xf] %vm361, %v359
      %363 = vrot.lane.b32.xlu0 %v224, 32
      %v364 = vpop.permute.xlu0 %363
      %365 = vst [vmem:[#allocation1] ss:$4 sm:$0xff] %v161
      %v366 = vld.sshfl [vmem:[#allocation1] sm:$0xff pattern:$0x73625140]
      %368 = vrot.lane.b32.xlu0 %v366, 32
      %v369 = vpop.permute.xlu0 %368
      %v371 = vsel %vm165, %v364, 0
      %v374 = vsel %vm165, %v369, 0
      %376 = vmatpush.bf16.xpose.msra.mxu0 0
      %377 = vmatpush.bf16.xpose.msra.mxu0 0
      %378 = vmatpush.bf16.xpose.msra.mxu0 0
      %379 = vmatpush.bf16.xpose.msra.mxu0 0
      %380 = vmatpush.bf16.xpose.msra.mxu0 0
      %381 = vmatpush.bf16.xpose.msra.mxu0 0
      %382 = vmatpush.bf16.xpose.msra.mxu0 0
      %383 = vmatpush.bf16.xpose.msra.mxu0 %v374
      %384 = vmatmul.bf16.gmra.mxu0 %v371
      %v385 = vpop.f32.mrf.mxu0
      %v386 = vadd.f32 0.0, %v385
      %v387 = vpop.f32.mrf.mxu0
      %388 = vdwg.mxu0
      %v389 = vsel %vm185, %v386, -inf
      %390 = vmax.xlane.f32.xlu0 %v389
      %v391 = vpop.xlane.xlu0 %390
      %v392 = vsub.f32 %v386, %v391
      %v393 = vmul.f32 %v392, 1.442695
      %v394 = vpow.pop %v393
      %v395 = vsel %vm185, %v394, 0.0
      %396 = vadd.xlane.f32.xlu0 %v395
      %v397 = vpop.xlane.xlu0 %396
      %v398 = vrcp.pop %v397
      %v399 = vmul.f32 %v394, %v398
      %v400 = vpack.c.bf16 %v399, %v399
      %401 = vst [vmem:[#allocation1] ss:$4 sm:$0xff] %v161
      %v402 = vld.sshfl [vmem:[#allocation1 + $0x8] sm:$0xff pattern:$0x73625140]
      %404 = vrot.lane.b32.xlu0 %v402, 32
      %v405 = vpop.permute.xlu0 %404
      %v407 = vsel %vm185, %v400, 0
      %v410 = vsel %vm203, %v405, 0
      %412 = vmatpush.bf16.msra.mxu0 0
      %413 = vmatpush.bf16.msra.mxu0 0
      %414 = vmatpush.bf16.msra.mxu0 0
      %415 = vmatpush.bf16.msra.mxu0 0
      %416 = vmatpush.bf16.msra.mxu0 0
      %417 = vmatpush.bf16.msra.mxu0 0
      %418 = vmatpush.bf16.msra.mxu0 0
      %419 = vmatpush.bf16.msra.mxu0 %v410
      %420 = vmatmul.bf16.gmra.mxu0 %v407
      %v421 = vpop.f32.mrf.mxu0
      %v422 = vadd.f32 0.0, %v421
      %v423 = vpop.f32.mrf.mxu0
      %424 = vdwg.mxu0
      %v425 = vpack.c.bf16 %v422, %v422
      %427 = vrot.lane.b32.xlu0 %v425, 96
      %v428 = vpop.permute.xlu0 %427
      %vm430 = vcmask 1044224
      %431 = vst.msk [vmem:[%s158] sm:$0xf] %vm430, %v428
      %p432 = scmp.lt.s32.totalorder %s13, 1
      %s433 = scalar_select %p432, %s13, 1
      %s434 = smul.addr %s433, 4
      %s435 = scalar_lea.vmem %s2, %s434
      // Predicated region
      $region29: #{ar_straighter_forward.38} parent=27 // pred_check
        %p436 = pneg %p83
      $region30: #{ar_straighter_forward.38} parent=27 // pred_check_branch
        %438 = sbr.rel (%p436) target = $region32
      $region31: #{ar_straighter_forward.38} parent=27 // pred_region
        _
      $region32: #{ar_straighter_forward.38} parent=27 // pred_fallthru
        _
    $region28: #{ar_straighter_forward.38} parent=5 // pred_fallthru
      _
    %p439 = scmp.le.s32.totalorder 2, %s8
    // Predicated region
    $region33: #{ar_straighter_forward.38} parent=5 // pred_check
      %p440 = pneg %p439
    $region34: #{ar_straighter_forward.38} parent=5 // pred_check_branch
      %442 = sbr.rel (%p440) target = $region36
    $region35: #{ar_straighter_forward.38} parent=5 // pred_region
      %s443 = ssub.s32 %s8, 2
      // Predicated region
      $region37: #{ar_straighter_forward.38} parent=35 // pred_check
        %p444 = pneg %p89
      $region38: #{ar_straighter_forward.38} parent=35 // pred_check_branch
        %446 = sbr.rel (%p444) target = $region40
      $region39: #{ar_straighter_forward.38} parent=35 // pred_region
        %p447 = scmp.lt.s32.totalorder %s14, 1
        %s448 = scalar_select %p447, %s14, 1
        %s449 = smul.addr %s448, 4
        %s450 = scalar_lea.vmem %s2, %s449
      $region40: #{ar_straighter_forward.38} parent=35 // pred_fallthru
        _
    $region36: #{ar_straighter_forward.38} parent=5 // pred_fallthru
      _
  $region6: #{ar_straighter_forward.38} parent=0 // loop_footer
    %s12 = sadd.s32 1, %s8
  $region7: #{ar_straighter_forward.38} parent=0 // loop_footer_branch
    %7 = sbr.rel target = $region3
  $region8: #{ar_straighter_forward.38} parent=0 // loop_exit
    _

// kernel: ar_straighter_forward.53
$region0: #{ar_straighter_forward.53}
  #allocation0 [shape = 'u32[]', space=smem, size = 0x4, offset = 0x4, fixed_abs, tag = 'smem constant byte address 0x4 - core index']
  #allocation1 [shape = 'u32[72,128]{1,0:T(1,128)}', space=vmem, size = 0x9000, scoped, tag = 'internal scratch']
  #allocation2 [shape = 'f32[16,128]{1,0:T(8,128)}', space=vmem, size = 0x2000, scoped, tag = 'scratch operand']
  %s0 = inlined_call_operand.vmem [shape: bf16[16,128], index: 0, kind: input, shape index: {}]
  %s1 = inlined_call_operand.hbm [shape: bf16[128,384], index: 1, kind: input, shape index: {}]
  %s2 = inlined_call_operand.vmem [shape: f32[1,384], index: 2, kind: input, shape index: {}]
  %s3 = inlined_call_operand.vmem [shape: f32[16,384], index: 3, kind: output, shape index: {}]
  %s4 = sld [smem:[#allocation0]]
  $region91: #{ar_straighter_forward.53} parent=0
    _
  %s6 = ssub.s32 1, %s4
  %s7 = scalar_select 0, %s6, %s4
  $region1: #{ar_straighter_forward.53} parent=0
    #allocation3 [shape = 'u8[65536]{0}', space=vmem, size = 0x10000, scoped, tag = 'input window, operand 1']
    #allocation4 [shape = 's32[2]{0}', space=sflag, size = 0x8, scoped, tag = 'scoped memory for ar_straighter_forward.53']
    #allocation5 [shape = 'u8[16384]{0}', space=vmem, size = 0x4000, scoped, tag = 'output window, operand 0']
    %8 = vsyncpa [#allocation4], 0
    %s9 = scalar_lea.sflag [#allocation4], 1
    %10 = vsyncpa %s9, 0
    loop: start=0, step=1, limit=5
    $region2: #{ar_straighter_forward.53} parent=1 // loop_pre_header
      _
    $region3: #{ar_straighter_forward.53} parent=1 // loop_header
      %s12 = sphi 0, %s16
      %p13 = scmp.ge.s32.totalorder %s12, 5
      %s19 = sphi 0, %s38
      %s20 = sphi 0, %s34
      %s21 = sphi 0, %s30
      %s22 = sphi 0, %s19
      %s23 = sphi 0, %s20
      %s24 = sphi 0, %s21
      %s25 = sphi 0, %s22
      %s26 = sphi 0, %s23
      %s27 = sphi 0, %s24
      %s43 = sphi 0, %s45
      %s46 = sphi 0, %s43
      %s47 = sphi 0, %s46
      %s63 = sphi 0, %s47
      %s71 = sphi 0, %s73
      %s74 = sphi 0, %s71
      %s75 = sphi 0, %s74
      %s91 = sphi 0, %s75
      %s97 = sphi 0, %s99
      %s100 = sphi 0, %s97
      %s101 = sphi 0, %s100
      %s117 = sphi 0, %s101
      %s125 = sphi 0, %s127
      %s128 = sphi 0, %s125
      %s129 = sphi 0, %s128
      %s145 = sphi 0, %s129
    $region4: #{ar_straighter_forward.53} parent=1 // loop_header_branch
      %15 = sbr.rel (%p13) target = $region8
    $region5: #{ar_straighter_forward.53} parent=1 // loop_body
      %s17 = ssub.s32 %s12, 1
      %s18 = ssub.s32 %s12, 2
      %s28 = sadd.s32 1, %s21
      %p29 = scmp.ge.s32.totalorder %s28, 1
      %s30 = scalar_select %p29, 0, %s28
      %s31 = sadd.s32 1, %s20
      %s32 = scalar_select %p29, %s31, %s20
      %p33 = scmp.ge.s32.totalorder %s32, 3
      %s34 = scalar_select %p33, 0, %s32
      %s35 = sadd.s32 1, %s19
      %s36 = scalar_select %p33, %s35, %s19
      %p37 = scmp.ge.s32.totalorder %s36, 1
      %s38 = scalar_select %p37, 0, %s36
      %s39 = ssub.s32 %s19, %s38
      %s40 = ssub.s32 %s21, %s30
      %s41 = sor.u32 %s39, %s40
      %p42 = scmp.eq.s32.totalorder %s41, 0
      %s44 = sadd.s32 %s43, 1
      %s45 = scalar_select %p42, %s43, %s44
      %p48 = pneg %p42
      %p49 = scmp.eq.s32.totalorder %s12, 2
      %p50 = por %p48, %p49
      %p51 = scmp.ne.s32.totalorder %s43, %s46
      %p52 = scmp.eq.s32.totalorder %s12, 0
      %p53 = por %p51, %p52
      %p54 = scmp.ne.s32.totalorder %s43, %s46
      %p55 = scmp.eq.s32.totalorder %s17, 2
      %p56 = por %p54, %p55
      %p57 = scmp.ne.s32.totalorder %s46, %s47
      %p58 = scmp.eq.s32.totalorder %s17, 0
      %p59 = por %p57, %p58
      %p60 = scmp.ne.s32.totalorder %s46, %s47
      %p61 = scmp.eq.s32.totalorder %s18, 2
      %p62 = por %p60, %p61
      %p64 = scmp.ne.s32.totalorder %s47, %s63
      %p65 = scmp.eq.s32.totalorder %s18, 0
      %p66 = por %p64, %p65
      %s67 = ssub.s32 %s21, %s30
      %s68 = ssub.s32 %s20, %s34
      %s69 = sor.u32 %s67, %s68
      %p70 = scmp.eq.s32.totalorder %s69, 0
      %s72 = sadd.s32 %s71, 1
      %s73 = scalar_select %p70, %s71, %s72
      %p76 = pneg %p70
      %p77 = scmp.eq.s32.totalorder %s12, 2
      %p78 = por %p76, %p77
      %p79 = scmp.ne.s32.totalorder %s71, %s74
      %p80 = scmp.eq.s32.totalorder %s12, 0
      %p81 = por %p79, %p80
      %p82 = scmp.ne.s32.totalorder %s71, %s74
      %p83 = scmp.eq.s32.totalorder %s17, 2
      %p84 = por %p82, %p83
      %p85 = scmp.ne.s32.totalorder %s74, %s75
      %p86 = scmp.eq.s32.totalorder %s17, 0
      %p87 = por %p85, %p86
      %p88 = scmp.ne.s32.totalorder %s74, %s75
      %p89 = scmp.eq.s32.totalorder %s18, 2
      %p90 = por %p88, %p89
      %p92 = scmp.ne.s32.totalorder %s75, %s91
      %p93 = scmp.eq.s32.totalorder %s18, 0
      %p94 = por %p92, %p93
      %s95 = ssub.s32 %s20, %s34
      %p96 = scmp.eq.s32.totalorder %s95, 0
      %s98 = sadd.s32 %s97, 1
      %s99 = scalar_select %p96, %s97, %s98
      %p102 = pneg %p96
      %p103 = scmp.eq.s32.totalorder %s12, 2
      %p104 = por %p102, %p103
      %p105 = scmp.ne.s32.totalorder %s97, %s100
      %p106 = scmp.eq.s32.totalorder %s12, 0
      %p107 = por %p105, %p106
      %p108 = scmp.ne.s32.totalorder %s97, %s100
      %p109 = scmp.eq.s32.totalorder %s17, 2
      %p110 = por %p108, %p109
      %p111 = scmp.ne.s32.totalorder %s100, %s101
      %p112 = scmp.eq.s32.totalorder %s17, 0
      %p113 = por %p111, %p112
      %p114 = scmp.ne.s32.totalorder %s100, %s101
      %p115 = scmp.eq.s32.totalorder %s18, 2
      %p116 = por %p114, %p115
      %p118 = scmp.ne.s32.totalorder %s101, %s117
      %p119 = scmp.eq.s32.totalorder %s18, 0
      %p120 = por %p118, %p119
      %s121 = ssub.s32 %s19, %s38
      %s122 = ssub.s32 %s20, %s34
      %s123 = sor.u32 %s121, %s122
      %p124 = scmp.eq.s32.totalorder %s123, 0
      %s126 = sadd.s32 %s125, 1
      %s127 = scalar_select %p124, %s125, %s126
      %p130 = pneg %p124
      %p131 = scmp.eq.s32.totalorder %s12, 2
      %p132 = por %p130, %p131
      %p133 = scmp.ne.s32.totalorder %s125, %s128
      %p134 = scmp.eq.s32.totalorder %s12, 0
      %p135 = por %p133, %p134
      %p136 = scmp.ne.s32.totalorder %s125, %s128
      %p137 = scmp.eq.s32.totalorder %s17, 2
      %p138 = por %p136, %p137
      %p139 = scmp.ne.s32.totalorder %s128, %s129
      %p140 = scmp.eq.s32.totalorder %s17, 0
      %p141 = por %p139, %p140
      %p142 = scmp.ne.s32.totalorder %s128, %s129
      %p143 = scmp.eq.s32.totalorder %s18, 2
      %p144 = por %p142, %p143
      %p146 = scmp.ne.s32.totalorder %s129, %s145
      %p147 = scmp.eq.s32.totalorder %s18, 0
      %p148 = por %p146, %p147
      %p149 = scmp.le.s32.totalorder 1, %s12
      %p150 = scmp.lt.s32.totalorder %s12, 4
      %p151 = pnand %p149, %p150
      %p152 = pneg %p151
      // Predicated region
      $region9: #{ar_straighter_forward.53} parent=5 // pred_check
        _
      $region10: #{ar_straighter_forward.53} parent=5 // pred_check_branch
        %154 = sbr.rel (%p151) target = $region12
      $region11: #{ar_straighter_forward.53} parent=5 // pred_region
        %s155 = ssub.s32 %s12, 1
        // Predicated region
        $region13: #{ar_straighter_forward.53} parent=11 // pred_check
          %p156 = pneg %p59
        $region14: #{ar_straighter_forward.53} parent=11 // pred_check_branch
          %158 = sbr.rel (%p156) target = $region16
        $region15: #{ar_straighter_forward.53} parent=11 // pred_region
          %s159 = smul.u32 2, %s22
          %p160 = scmp.lt.s32.totalorder %s159, 1
          %s161 = scalar_select %p160, %s159, 1
          %p162 = scmp.lt.s32.totalorder %s24, 0
          %s163 = scalar_select %p162, %s24, 0
          %s164 = sadd.s32 %s163, %s161
          %s165 = smul.addr %s164, 4
          %s166 = scalar_lea.vmem %s0, %s165
          %s167 = smul.u32 2, %s22
        $region16: #{ar_straighter_forward.53} parent=11 // pred_fallthru
          _
      $region12: #{ar_straighter_forward.53} parent=5 // pred_fallthru
        _
      %p168 = scmp.lt.s32.totalorder %s12, 3
      // Predicated region
      $region17: #{ar_straighter_forward.53} parent=5 // pred_check
        %p169 = pneg %p168
      $region18: #{ar_straighter_forward.53} parent=5 // pred_check_branch
        %171 = sbr.rel (%p169) target = $region20
      $region19: #{ar_straighter_forward.53} parent=5 // pred_region
        // Predicated region
        $region21: #{ar_straighter_forward.53} parent=19 // pred_check
          %p172 = pneg %p81
        $region22: #{ar_straighter_forward.53} parent=19 // pred_check_branch
          %174 = sbr.rel (%p172) target = $region24
        $region23: #{ar_straighter_forward.53} parent=19 // pred_region
          %s175 = sand.u32 %s71, 1
          %s176 = scalar_lea.sflag [#allocation4], %s175
          %s177 = sand.u32 %s71, 1
          %s178 = smul.addr %s177, 64
          %s179 = scalar_lea.vmem [#allocation3], %s178
          %s180 = smul.u32 16, %s21
          %182 = vsyncadd %s176, 0
          %s183 = smul.addr %s180, 3
          %s184 = sadd.s32 %s20, %s183
          %s185 = smul.addr %s184, 4
          %s186 = scalar_lea.hbm %s1, %s185
          %s187 = sshll.u32 %s186, 4
          %s188 = int_to_ptr.hbm [resolvable:$true] %s187
          %s189 = sshll.u32 %s179, 4
          %s190 = int_to_ptr.vmem [resolvable:$true] %s189
          %195 = dma.hbm_to_vmem [thread:$0]  %s188, 1024, %s190, %s176, 192, 64, 4
        $region24: #{ar_straighter_forward.53} parent=19 // pred_fallthru
          _
        // Predicated region
        $region25: #{ar_straighter_forward.53} parent=19 // pred_check
          %p196 = pneg %p107
        $region26: #{ar_straighter_forward.53} parent=19 // pred_check_branch
          %198 = sbr.rel (%p196) target = $region28
        $region27: #{ar_straighter_forward.53} parent=19 // pred_region
          %p199 = scmp.lt.s32.totalorder %s20, 2
          %s200 = scalar_select %p199, %s20, 2
          %s201 = scalar_lea.vmem %s2, %s200
        $region28: #{ar_straighter_forward.53} parent=19 // pred_fallthru
          _
      $region20: #{ar_straighter_forward.53} parent=5 // pred_fallthru
        _
      %p202 = scmp.le.s32.totalorder 1, %s12
      %p203 = scmp.lt.s32.totalorder %s12, 4
      %p204 = pnand %p202, %p203
      %p205 = pneg %p204
      // Predicated region
      $region29: #{ar_straighter_forward.53} parent=5 // pred_check
        _
      $region30: #{ar_straighter_forward.53} parent=5 // pred_check_branch
        %207 = sbr.rel (%p204) target = $region32
      $region31: #{ar_straighter_forward.53} parent=5 // pred_region
        %s208 = ssub.s32 %s12, 1
        %s209 = sand.u32 %s74, 1
        %s210 = scalar_lea.sflag [#allocation4], %s209
        %s211 = sand.u32 %s74, 1
        %s212 = smul.addr %s211, 64
        %s213 = scalar_lea.vmem [#allocation3], %s212
        // Predicated region
        $region33: #{ar_straighter_forward.53} parent=31 // pred_check
          %p214 = pneg %p87
        $region34: #{ar_straighter_forward.53} parent=31 // pred_check_branch
          %216 = sbr.rel (%p214) target = $region36
        $region35: #{ar_straighter_forward.53} parent=31 // pred_region
          %218 = dma.done %s210, 1024
        $region36: #{ar_straighter_forward.53} parent=31 // pred_fallthru
          _
        %s219 = smul.u32 2, %s22
        %p220 = scmp.lt.s32.totalorder %s219, 1
        %s221 = scalar_select %p220, %s219, 1
        %p222 = scmp.lt.s32.totalorder %s24, 0
        %s223 = scalar_select %p222, %s24, 0
        %s224 = sadd.s32 %s223, %s221
        %s225 = smul.addr %s224, 4
        %s226 = scalar_lea.vmem %s0, %s225
        %p227 = pneg %p59
        %p228 = pneg %p56
        %s229 = sand.u32 %s74, 1
        %s230 = scalar_lea.sflag [#allocation4], %s229
        %s231 = sand.u32 %s74, 1
        %s232 = smul.addr %s231, 64
        %s233 = scalar_lea.vmem [#allocation3], %s232
        %p234 = pneg %p87
        %p235 = pneg %p84
        %p236 = scmp.lt.s32.totalorder %s23, 2
        %s237 = scalar_select %p236, %s23, 2
        %s238 = scalar_lea.vmem %s2, %s237
        %p239 = pneg %p113
        %p240 = pneg %p110
        %p241 = pneg %p141
        %p242 = pneg %p138
        %s243 = sand.u32 %s128, 1
        %s244 = sand.u32 %s128, 1
        %s245 = smul.addr %s244, 16
        %s246 = scalar_lea.vmem [#allocation5], %s245
        %s247 = smul.u32 2, %s22
        %p248 = scmp.lt.s32.totalorder %s247, 1
        %s249 = scalar_select %p248, %s247, 1
        %p250 = scmp.lt.s32.totalorder %s24, 0
        %s251 = scalar_select %p250, %s24, 0
        %s252 = sadd.s32 %s251, %s249
        %s253 = smul.addr %s252, 4
        %s254 = scalar_lea.vmem %s0, %s253
        %s255 = smul.u32 2, %s22
        %s256 = smul.u32 16, %s24
        %p257 = scmp.lt.s32.totalorder %s23, 2
        %s258 = scalar_select %p257, %s23, 2
        %s259 = scalar_lea.vmem %s2, %s258
        %s260 = smul.u32 2, %s22
        %p261 = scmp.eq.s32.totalorder %s24, 0
        // Predicated region
        $region37: #{ar_straighter_forward.53} parent=31 // pred_check
          %p262 = pneg %p261
        $region38: #{ar_straighter_forward.53} parent=31 // pred_check_branch
          %264 = sbr.rel (%p262) target = $region40
        $region39: #{ar_straighter_forward.53} parent=31 // pred_region
          %265 = vst [vmem:[#allocation2] sm:$0xff] 0.0
          %266 = vst [vmem:[#allocation2 + $0x8] sm:$0xff] 0.0
        $region40: #{ar_straighter_forward.53} parent=31 // pred_fallthru
          _
        %v267 = vld [vmem:[%s254] sm:$0xf]
        %v268 = vld [vmem:[%s254 + $0x4] sm:$0xf]
        %v269 = vld [vmem:[#allocation2] sm:$0xff]
        %v270 = vld [vmem:[#allocation2 + $0x8] sm:$0xff]
        %v271 = vld [vmem:[%s213] sm:$0xf]
        %v272 = vld [vmem:[%s213 + $0x4] sm:$0xf]
        %v273 = vld [vmem:[%s213 + $0x8] sm:$0xf]
        %v274 = vld [vmem:[%s213 + $0xc] sm:$0xf]
        %v275 = vld [vmem:[%s213 + $0x10] sm:$0xf]
        %v276 = vld [vmem:[%s213 + $0x14] sm:$0xf]
        %v277 = vld [vmem:[%s213 + $0x18] sm:$0xf]
        %v278 = vld [vmem:[%s213 + $0x1c] sm:$0xf]
        %v279 = vld [vmem:[%s213 + $0x20] sm:$0xf]
        %v280 = vld [vmem:[%s213 + $0x24] sm:$0xf]
        %v281 = vld [vmem:[%s213 + $0x28] sm:$0xf]
        %v282 = vld [vmem:[%s213 + $0x2c] sm:$0xf]
        %v283 = vld [vmem:[%s213 + $0x30] sm:$0xf]
        %v284 = vld [vmem:[%s213 + $0x34] sm:$0xf]
        %v285 = vld [vmem:[%s213 + $0x38] sm:$0xf]
        %v286 = vld [vmem:[%s213 + $0x3c] sm:$0xf]
        %v289 = vunpack.c.l.b16 %v267
        %v290 = vunpack.c.l.b16 %v268
        %v291 = vpack.c.b16 %v290, %v289
        %v309 = vunpack.c.l.b16 %v271
        %v310 = vunpack.c.l.b16 %v272
        %v311 = vunpack.c.l.b16 %v273
        %v312 = vunpack.c.l.b16 %v274
        %v313 = vunpack.c.l.b16 %v275
        %v314 = vunpack.c.l.b16 %v276
        %v315 = vunpack.c.l.b16 %v277
        %v316 = vunpack.c.l.b16 %v278
        %v317 = vunpack.c.l.b16 %v279
        %v318 = vunpack.c.l.b16 %v280
        %v319 = vunpack.c.l.b16 %v281
        %v320 = vunpack.c.l.b16 %v282
        %v321 = vunpack.c.l.b16 %v283
        %v322 = vunpack.c.l.b16 %v284
        %v323 = vunpack.c.l.b16 %v285
        %v324 = vunpack.c.l.b16 %v286
        %v325 = vpack.c.b16 %v310, %v309
        %v326 = vpack.c.b16 %v312, %v311
        %v327 = vpack.c.b16 %v314, %v313
        %v328 = vpack.c.b16 %v316, %v315
        %v329 = vpack.c.b16 %v318, %v317
        %v330 = vpack.c.b16 %v320, %v319
        %v331 = vpack.c.b16 %v322, %v321
        %v332 = vpack.c.b16 %v324, %v323
        %341 = vmatpush.bf16.msra.mxu0 %v332
        %342 = vmatpush.bf16.msra.mxu0 %v331
        %343 = vmatpush.bf16.msra.mxu0 %v330
        %344 = vmatpush.bf16.msra.mxu0 %v329
        %345 = vmatpush.bf16.msra.mxu0 %v328
        %346 = vmatpush.bf16.msra.mxu0 %v327
        %347 = vmatpush.bf16.msra.mxu0 %v326
        %348 = vmatpush.bf16.msra.mxu0 %v325
        %349 = vmatmul.bf16.gmra.mxu0 %v291
        %v350 = vpop.f32.mrf.mxu0
        %v351 = vadd.f32 0.0, %v350
        %v352 = vpop.f32.mrf.mxu0
        %v353 = vadd.f32 0.0, %v352
        %354 = vdwg.mxu0
        %v355 = vadd.f32 %v269, %v351
        %v356 = vadd.f32 %v270, %v353
        %357 = vst [vmem:[#allocation2] sm:$0xff] %v355
        %358 = vst [vmem:[#allocation2 + $0x8] sm:$0xff] %v356
        // Predicated region
        $region41: #{ar_straighter_forward.53} parent=31 // pred_check
          %p359 = pneg %p261
        $region42: #{ar_straighter_forward.53} parent=31 // pred_check_branch
          %361 = sbr.rel (%p359) target = $region44
        $region43: #{ar_straighter_forward.53} parent=31 // pred_region
          %v362 = vld [vmem:[#allocation2] sm:$0xff]
          %v363 = vld [vmem:[#allocation2 + $0x8] sm:$0xff]
          %v364 = vld [vmem:[%s259] sm:$0x1]
          %v366 = vperm.slane %v364, 0
          %v368 = vadd.f32 %v362, %v366
          %v369 = vadd.f32 %v363, %v366
          %370 = vst [vmem:[%s246] sm:$0xff] %v368
          %371 = vst [vmem:[%s246 + $0x8] sm:$0xff] %v369
        $region44: #{ar_straighter_forward.53} parent=31 // pred_fallthru
          _
        %s372 = sand.u32 %s128, 1
        %s373 = sand.u32 %s128, 1
        %s374 = smul.addr %s373, 16
        %s375 = scalar_lea.vmem [#allocation5], %s374
        // Predicated region
        $region45: #{ar_straighter_forward.53} parent=31 // pred_check
          %p376 = pneg %p138
        $region46: #{ar_straighter_forward.53} parent=31 // pred_check_branch
          %378 = sbr.rel (%p376) target = $region48
        $region47: #{ar_straighter_forward.53} parent=31 // pred_region
          %s379 = smul.u32 2, %s22
          %s380 = smul.addr %s379, 3
          %s381 = sadd.s32 %s23, %s380
          %s382 = smul.addr %s381, 8
          %s383 = scalar_lea.vmem %s3, %s382
          // Predicated region
          $region49: #{ar_straighter_forward.53} parent=47 // pred_check
            _
          $region50: #{ar_straighter_forward.53} parent=47 // pred_check_branch
            %385 = sbr.rel (0) target = $region52
          $region51: #{ar_straighter_forward.53} parent=47 // pred_region
            // Predicated region
            $region53: #{ar_straighter_forward.53} parent=51 // pred_check
              _
            $region54: #{ar_straighter_forward.53} parent=51 // pred_check_branch
              %387 = sbr.rel (0) target = $region56
            $region55: #{ar_straighter_forward.53} parent=51 // pred_region
              // Predicated region
              $region68: #{ar_straighter_forward.53} parent=55 // pred_check
                _
              $region69: #{ar_straighter_forward.53} parent=55 // pred_check_branch
                %405 = sbr.rel (0) target = $region71
              $region70: #{ar_straighter_forward.53} parent=55 // pred_region
                loop: start=0, step=1, limit=1
                $region72: #{ar_straighter_forward.53} parent=70 // loop_pre_header
                  _
                $region73: #{ar_straighter_forward.53} parent=70 // loop_header
                  %s407 = sphi 0, %s411
                  %p408 = scmp.ge.s32.totalorder %s407, 1
                  %s412 = sphi %s375, %s375
                  %s413 = sphi %s383, %s383
                $region74: #{ar_straighter_forward.53} parent=70 // loop_header_branch
                  %410 = sbr.rel (%p408) target = $region78
                $region75: #{ar_straighter_forward.53} parent=70 // loop_body
                  %v414 = vld [vmem:[%s412] sm:$0xff]
                  %415 = vst [vmem:[%s413] sm:$0xff] %v414
                  %v416 = vld [vmem:[%s412 + $0x8] sm:$0xff]
                  %417 = vst [vmem:[%s413 + $0x18] sm:$0xff] %v416
                $region76: #{ar_straighter_forward.53} parent=70 // loop_footer
                  %s411 = sadd.s32 1, %s407
                $region77: #{ar_straighter_forward.53} parent=70 // loop_footer_branch
                  %406 = sbr.rel target = $region73
                $region78: #{ar_straighter_forward.53} parent=70 // loop_exit
                  _
              $region71: #{ar_straighter_forward.53} parent=55 // pred_fallthru
                _
              // Predicated region
              $region79: #{ar_straighter_forward.53} parent=55 // pred_check
                _
              $region80: #{ar_straighter_forward.53} parent=55 // pred_check_branch
                %419 = sbr.rel target = $region82
              $region81: #{ar_straighter_forward.53} parent=55 // pred_region
                _
              $region82: #{ar_straighter_forward.53} parent=55 // pred_fallthru
                _
            $region56: #{ar_straighter_forward.53} parent=51 // pred_fallthru
              _
            // Predicated region
            $region57: #{ar_straighter_forward.53} parent=51 // pred_check
              _
            $region58: #{ar_straighter_forward.53} parent=51 // pred_check_branch
              %389 = sbr.rel target = $region60
            $region59: #{ar_straighter_forward.53} parent=51 // pred_region
              %s391 = ssub.s32 256, 1
              loop: start=0, step=1, limit=1
              $region61: #{ar_straighter_forward.53} parent=59 // loop_pre_header
                _
              $region62: #{ar_straighter_forward.53} parent=59 // loop_header
                %s393 = sphi 0, %s397
                %p394 = scmp.ge.s32.totalorder %s393, 1
                %s398 = sphi %s375, %s375
                %s399 = sphi %s383, %s383
              $region63: #{ar_straighter_forward.53} parent=59 // loop_header_branch
                %396 = sbr.rel (%p394) target = $region67
              $region64: #{ar_straighter_forward.53} parent=59 // loop_body
                %v400 = vld [vmem:[%s398] sm:%s391]
                %401 = vst [vmem:[%s399] sm:%s391] %v400
                %v402 = vld [vmem:[%s398 + $0x8] sm:%s391]
                %403 = vst [vmem:[%s399 + $0x18] sm:%s391] %v402
              $region65: #{ar_straighter_forward.53} parent=59 // loop_footer
                %s397 = sadd.s32 1, %s393
              $region66: #{ar_straighter_forward.53} parent=59 // loop_footer_branch
                %392 = sbr.rel target = $region62
              $region67: #{ar_straighter_forward.53} parent=59 // loop_exit
                _
            $region60: #{ar_straighter_forward.53} parent=51 // pred_fallthru
              _
          $region52: #{ar_straighter_forward.53} parent=47 // pred_fallthru
            _
          %420 = vnop
        $region48: #{ar_straighter_forward.53} parent=31 // pred_fallthru
          _
      $region32: #{ar_straighter_forward.53} parent=5 // pred_fallthru
        _
      %p421 = scmp.le.s32.totalorder 2, %s12
      // Predicated region
      $region83: #{ar_straighter_forward.53} parent=5 // pred_check
        %p422 = pneg %p421
      $region84: #{ar_straighter_forward.53} parent=5 // pred_check_branch
        %424 = sbr.rel (%p422) target = $region86
      $region85: #{ar_straighter_forward.53} parent=5 // pred_region
        %s425 = ssub.s32 %s12, 2
        // Predicated region
        $region87: #{ar_straighter_forward.53} parent=85 // pred_check
          %p426 = pneg %p144
        $region88: #{ar_straighter_forward.53} parent=85 // pred_check_branch
          %428 = sbr.rel (%p426) target = $region90
        $region89: #{ar_straighter_forward.53} parent=85 // pred_region
          %s429 = sand.u32 %s129, 1
          %s430 = sand.u32 %s129, 1
          %s431 = smul.addr %s430, 16
          %s432 = scalar_lea.vmem [#allocation5], %s431
        $region90: #{ar_straighter_forward.53} parent=85 // pred_fallthru
          _
      $region86: #{ar_straighter_forward.53} parent=5 // pred_fallthru
        _
    $region6: #{ar_straighter_forward.53} parent=1 // loop_footer
      %s16 = sadd.s32 1, %s12
    $region7: #{ar_straighter_forward.53} parent=1 // loop_footer_branch
      %11 = sbr.rel target = $region3
    $region8: #{ar_straighter_forward.53} parent=1 // loop_exit
      _
    %433 = vsyncpa [#allocation4], 1
    %s434 = scalar_lea.sflag [#allocation4], 1
    %435 = vsyncpa %s434, 1

</llo_original>
